<compile_context>
chip_gen: v7x
topology: tpu7x:2x2x1
jax: 0.10.0
libtpu: 0.0.40
codegen_flags: <defaults>
</compile_context>

<pallas_src>
import functools

import jax
import jax.numpy as jnp
import numpy as np
from jax.experimental import pallas as pl
from jax.experimental.pallas import tpu as pltpu

LN_EPS = 1e-5
CONV_SCALES = (1, 3, 5)
NUM_TAPS = max(CONV_SCALES)        # the three grouped convs fold into one 5-tap conv

ATTN_KEYS = ('ln_g', 'ln_b', 'wq', 'wk', 'wv', 'wo', 'bo', 'wc')
FF_KEYS = ('ln_g', 'ln_b', 'w1', 'b1', 'w2', 'b2')


def _round_up(n, m):
    return ((n + m - 1) // m) * m


# ------------------------------ in-kernel helpers ------------------------------

def _layernorm(x, gamma, beta):
    mu = jnp.mean(x, axis=-1, keepdims=True)
    var = jnp.mean(jnp.square(x - mu), axis=-1, keepdims=True)
    return (x - mu) * jax.lax.rsqrt(var + LN_EPS) * gamma + beta


def _erf(z):
    # Abramowitz & Stegun 7.1.26 (|err| < 1.5e-7): erf via exp only (EUP friendly),
    # reproduces the exact (erf-based) nn.GELU().
    p = 0.3275911
    a1, a2, a3, a4, a5 = (0.254829592, -0.284496736, 1.421413741,
                          -1.453152027, 1.061405429)
    sgn = jnp.where(z >= 0.0, 1.0, -1.0)
    az = jnp.abs(z)
    t = 1.0 / (1.0 + p * az)
    poly = ((((a5 * t + a4) * t + a3) * t + a2) * t + a1) * t
    return sgn * (1.0 - poly * jnp.exp(-az * az))


def _gelu_exact(x):
    # TODO(synk): on v6e/v7x this polynomial could run in bf16 (2x packed VPU/EUP);
    # kept fp32 so it is also correct/fast on v5e.
    return 0.5 * x * (1.0 + _erf(x * 0.7071067811865476))


def _bf16(x):
    return x.astype(jnp.bfloat16)


def _msa(xn, ctx, p, att_ref, *, num_heads, block_b, q_rows, kv_rows, kv_real, t_real):
    """Multi-scale attention residual update for block_b batch elements.

    xn  : (block_b*q_rows, D) fp32 = LayerNorm(x)
    ctx : (block_b*kv_rows, D) fp32
    scale*temperature folded into wq, softmax(head_weights) into wv, conv bias folded into
    bo, identity folded into the centre conv tap.  wc holds per-tap block-diagonal (D, D)
    matrices (fold of the grouped Conv1d branch, already divided by len(scales))."""
    rows, D = xn.shape
    hd = D // num_heads

    # Projections over all block_b*rows at once; each operand cast to bf16 exactly once.
    q = _bf16(jnp.dot(_bf16(xn), p['wq'][0], preferred_element_type=jnp.float32))
    k = _bf16(jnp.dot(_bf16(ctx), p['wk'][0], preferred_element_type=jnp.float32))
    v = _bf16(jnp.dot(_bf16(ctx), p['wv'][0], preferred_element_type=jnp.float32))

    kv_mask = None
    if kv_real < kv_rows:            # padded keys -> mask before softmax (compile-time)
        col = jax.lax.broadcasted_iota(jnp.int32, (q_rows, kv_rows), 1)
        kv_mask = col < kv_real

    # Per (batch-in-block, head) attention; per-head outputs land in their head slice of
    # the fp32 VMEM scratch (keeps vreg live ranges bounded despite the static unroll).
    # TODO(synk): switch to lax.fori_loop over heads for very large head counts.
    for b in range(block_b):
        qr = slice(b * q_rows, (b + 1) * q_rows)
        kr = slice(b * kv_rows, (b + 1) * kv_rows)
        for h in range(num_heads):
            sl = slice(h * hd, (h + 1) * hd)
            dots = jax.lax.dot_general(q[qr, sl], k[kr, sl], (((1,), (1,)), ((), ())),
                                       preferred_element_type=jnp.float32)
            if kv_mask is not None:
                dots = jnp.where(kv_mask, dots, -1e30)
            dots = dots - jnp.max(dots, axis=-1, keepdims=True)
            pexp = jnp.exp(dots)
            attn = pexp * pl.reciprocal(jnp.sum(pexp, axis=-1, keepdims=True),
                                        approx=True)
            att_ref[qr, sl] = jnp.dot(_bf16(attn), v[kr, sl],
                                      preferred_element_type=jnp.float32)

    # Folded multi-scale grouped conv: 5 sequence taps == 5 rolls of the FULL (rows, D)
    # tensor (identity folded into the centre tap), each one block-diagonal (D, D) bf16
    # MXU matmul.  Border / padded-row / batch-boundary handling via an iota row mask.
    att = att_ref[...]                                                  # (rows, D) fp32
    rib = jax.lax.broadcasted_iota(jnp.int32, (rows, 1), 0) % q_rows    # row within elem
    comb = jnp.zeros((rows, D), jnp.float32)
    for tap in range(NUM_TAPS):
        d = tap - NUM_TAPS // 2
        if d == 0:
            shifted = att
        else:
            # Roll in fp32 (avoids packed-bf16 sublane rolls), mask the zero-padded
            # borders / batch-element boundaries, cast to bf16 only for the MXU.
            shifted = pltpu.roll(att, shift=(-d) % rows, axis=0)        # row t -> att[t+d]
            if d > 0:
                shifted = jnp.where(rib < t_real - d, shifted, 0.0)
            else:
                shifted = jnp.where(rib >= -d, shifted, 0.0)
        comb = comb + jnp.dot(_bf16(shifted), p['wc'][0, tap],
                              preferred_element_type=jnp.float32)

    # Single (rows, D) @ (D, D) output projection; conv bias already folded into bo.
    return jnp.dot(_bf16(comb), p['wo'][0], preferred_element_type=jnp.float32) + p['bo'][0]


def _ff(xn, p, ff_chunk):
    rows, D = xn.shape
    mlp = p['w1'].shape[-1]
    xb = _bf16(xn)
    acc = jnp.zeros((rows, D), jnp.float32)
    # Chunk the mlp (N) dimension: keeps the (rows, chunk) GELU intermediate small.
    for n0 in range(0, mlp, ff_chunk):
        n1 = min(n0 + ff_chunk, mlp)
        h = jnp.dot(xb, p['w1'][0, :, n0:n1], preferred_element_type=jnp.float32)
        h = _gelu_exact(h + p['b1'][0, :, n0:n1])   # dropout layers = identity (inference)
        acc = acc + jnp.dot(_bf16(h), p['w2'][0, n0:n1, :],
                            preferred_element_type=jnp.float32)
    return acc + p['b2'][0]


# --------------------------- fused transformer kernel ----------------------------

def _transformer_kernel(*refs, num_heads, has_context, block_b,
                        t_pad, s_pad, t_real, s_real, ff_chunk):
    """One grid step = (block of batch elements, layer).  Residual stream is resident in
    the revisited output block across the depth ('arbitrary') grid axis."""
    *in_refs, o_ref, att_ref = refs
    it = iter(in_refs)
    x_ref = next(it)
    ctx_ref = next(it) if has_context else None
    sp = {k: next(it) for k in ATTN_KEYS}
    cp = {k: next(it) for k in ATTN_KEYS} if has_context else None
    fp = {k: next(it) for k in FF_KEYS}

    @pl.when(pl.program_id(1) == 0)
    def _():
        o_ref[...] = x_ref[...]              # seed the resident residual stream

    x = o_ref[...]                           # (block_b * t_pad, D) fp32

    # --- self-attention block (context = LN(x); padded keys masked) ---
    xn = _layernorm(x, sp['ln_g'][0], sp['ln_b'][0])
    x = x + _msa(xn, xn, sp, att_ref, num_heads=num_heads, block_b=block_b,
                 q_rows=t_pad, kv_rows=t_pad, kv_real=t_real, t_real=t_real)

    # --- cross-attention block ---
    if has_context:
        xn = _layernorm(x, cp['ln_g'][0], cp['ln_b'][0])
        x = x + _msa(xn, ctx_ref[...], cp, att_ref, num_heads=num_heads,
                     block_b=block_b, q_rows=t_pad, kv_rows=s_pad,
                     kv_real=s_real, t_real=t_real)

    # --- feed-forward block ---
    xn = _layernorm(x, fp['ln_g'][0], fp['ln_b'][0])
    x = x + _ff(xn, fp, ff_chunk)

    o_ref[...] = x


def cross_modal_transformer_forward(x, context, params, *, num_heads, block_b=1,
                                    t_multiple=8, s_multiple=128, ff_chunk=512):
    """x: (B, T, D) fp32; context: (B, S, D) fp32 or None; params from prepare_params."""
    B, T, D = x.shape
    has_context = context is not None
    depth = params['self']['wq'].shape[0]
    mlp = params['ff']['w1'].shape[-1]

    bb = max(1, min(block_b, B))
    while B % bb:                      # effective batch block must divide B
        bb -= 1

    t_pad = _round_up(T, t_multiple)
    xp = jnp.pad(x, ((0, 0), (0, t_pad - T), (0, 0))) if t_pad != T else x
    xp = xp.reshape(B * t_pad, D)      # pre-flattened: no in-kernel reshapes

    if has_context:
        S = context.shape[1]
        s_pad = _round_up(S, s_multiple)
        ctx_p = (jnp.pad(context, ((0, 0), (0, s_pad - S), (0, 0)))
                 if s_pad != S else context)
        ctx_p = ctx_p.reshape(B * s_pad, D)
    else:
        S = s_pad = 0
        ctx_p = None

    ffc = mlp if mlp <= ff_chunk else ff_chunk

    def pspec(arr):  # per-layer parameter: block = one layer's slab, indexed by l
        rest = arr.shape[1:]
        zeros = (0,) * len(rest)
        return pl.BlockSpec((1,) + rest, lambda b, l, _z=zeros: (l,) + _z)

    args = [xp]
    in_specs = [pl.BlockSpec((bb * t_pad, D), lambda b, l: (b, 0))]
    if has_context:
        args.append(ctx_p)
        in_specs.append(pl.BlockSpec((bb * s_pad, D), lambda b, l: (b, 0)))
    for key in ATTN_KEYS:
        a = params['self'][key]; args.append(a); in_specs.append(pspec(a))
    if has_context:
        for key in ATTN_KEYS:
            a = params['cross'][key]; args.append(a); in_specs.append(pspec(a))
    for key in FF_KEYS:
        a = params['ff'][key]; args.append(a); in_specs.append(pspec(a))

    # --- VMEM budget from the real weight footprint (double-buffered slab + activations) ---
    weight_bytes = 0
    for g in (['self', 'ff'] + (['cross'] if has_context else [])):
        for v in params[g].values():
            weight_bytes += int(np.prod(v.shape[1:])) * v.dtype.itemsize
    act_bytes = (2 * bb * t_pad * D + (bb * s_pad * D if has_context else 0)) * 4
    scratch_bytes = bb * t_pad * D * 4
    vmem_limit = int(min(max(2 * weight_bytes + 2 * act_bytes + scratch_bytes + (8 << 20),
                             32 << 20), 100 << 20))
    # TODO(synk): on v7x (64 MiB physical VMEM) at real MMAudio sizes, additionally split
    # each layer into self/cross/FF phases on a third grid axis sharing one flat weight
    # slab so only one group's weights is double-buffered at a time.

    # --- advisory cost estimate so XLA schedules/prefetches around the fused call ---
    per_be = (3 * 2 * t_pad * D * D + 2 * 2 * t_pad * t_pad * D
              + NUM_TAPS * 2 * t_pad * D * D + 2 * t_pad * D * D)           # self-attn
    if has_context:
        per_be += (3 * 2 * t_pad * D * D + 2 * 2 * t_pad * s_pad * D
                   + NUM_TAPS * 2 * t_pad * D * D + 2 * t_pad * D * D)      # cross-attn
    per_be += 2 * 2 * t_pad * D * mlp                                       # feed-forward
    flops = B * depth * per_be
    trans = B * depth * (num_heads * t_pad * (t_pad + (s_pad if has_context else 0))
                         + t_pad * mlp)
    bytes_accessed = (weight_bytes * depth * (B // bb)
                      + 2 * xp.size * 4 + (ctx_p.size * 4 if has_context else 0))

    kernel = functools.partial(
        _transformer_kernel, num_heads=num_heads, has_context=has_context, block_b=bb,
        t_pad=t_pad, s_pad=s_pad, t_real=T, s_real=S, ff_chunk=ffc)

    out = pl.pallas_call(
        kernel,
        out_shape=jax.ShapeDtypeStruct((B * t_pad, D), jnp.float32),
        grid=(B // bb, depth),
        in_specs=in_specs,
        out_specs=pl.BlockSpec((bb * t_pad, D), lambda b, l: (b, 0)),
        scratch_shapes=[pltpu.VMEM((bb * t_pad, D), jnp.float32)],
        compiler_params=pltpu.CompilerParams(
            dimension_semantics=("parallel", "arbitrary"),
            vmem_limit_bytes=vmem_limit),
        cost_estimate=pl.CostEstimate(flops=int(flops), transcendentals=int(trans),
                                      bytes_accessed=int(bytes_accessed)),
    )(*args)
    return out.reshape(B, t_pad, D)[:, :T, :]


# -------------------- fold torch params into kernel params -----------------------

def _prep_attn(p, heads):
    dim = p['wq'].shape[0]
    hd = dim // heads
    scale = hd ** -0.5
    temp = p['temperature'].reshape(heads)
    hw = jax.nn.softmax(p['head_weights'].reshape(heads))
    wq_eff = p['wq'].T * jnp.repeat(scale * temp, hd)[None, :]
    wv_eff = p['wv'].T * jnp.repeat(hw, hd)[None, :]

    # Per-tap block-diagonal (D, D) conv matrices (fold of the grouped Conv1d branch,
    # already divided by len(scales)); identity folded into the centre tap so the
    # "out + conv" add becomes part of the same matmul.
    n = float(len(CONV_SCALES))
    wc = jnp.zeros((NUM_TAPS, dim, dim), jnp.float32)
    bc = jnp.zeros((dim,), jnp.float32)
    for s, w_s, b_s in zip(CONV_SCALES, p['conv_w'], p['conv_b']):
        start = NUM_TAPS // 2 - s // 2
        for h in range(heads):
            blk = jnp.transpose(w_s[h * hd:(h + 1) * hd], (2, 1, 0)) / n   # (s, in, out)
            for ki in range(s):
                wc = wc.at[start + ki,
                           h * hd:(h + 1) * hd,
                           h * hd:(h + 1) * hd].add(blk[ki])
        bc = bc + b_s / n
    wc = wc.at[NUM_TAPS // 2].add(jnp.eye(dim, dtype=jnp.float32))
    bo_eff = p['bo'] + bc @ p['wo'].T        # fold conv bias through the out-projection

    return dict(
        ln_g=p['ln_g'].reshape(1, dim), ln_b=p['ln_b'].reshape(1, dim),
        wq=wq_eff.astype(jnp.bfloat16), wk=p['wk'].T.astype(jnp.bfloat16),
        wv=wv_eff.astype(jnp.bfloat16), wo=p['wo'].T.astype(jnp.bfloat16),
        bo=bo_eff.reshape(1, dim),
        wc=wc.astype(jnp.bfloat16),
    )


def _prep_ff(p):
    dim = p['w2'].shape[0]
    mlp = p['w1'].shape[0]
    return dict(
        ln_g=p['ln_g'].reshape(1, dim), ln_b=p['ln_b'].reshape(1, dim),
        w1=p['w1'].T.astype(jnp.bfloat16), b1=p['b1'].reshape(1, mlp),
        w2=p['w2'].T.astype(jnp.bfloat16), b2=p['b2'].reshape(1, dim),
    )


def _stack(dicts):
    return {k: jnp.stack([d[k] for d in dicts]) for k in dicts[0]}


def prepare_params(raw_layers, heads, has_context=True):
    out = dict(self=_stack([_prep_attn(l['self'], heads) for l in raw_layers]),
               ff=_stack([_prep_ff(l['ff']) for l in raw_layers]))
    if has_context:
        out['cross'] = _stack([_prep_attn(l['cross'], heads) for l in raw_layers])
    return out


# ----------------------- parameter init (torch layouts) --------------------------

def _init_msa(key, dim, heads):
    hd = dim // heads
    ks = jax.random.split(key, 16)
    nrm = lambda k_, shape, s: jax.random.normal(k_, shape, jnp.float32) * s
    return dict(
        ln_g=1.0 + 0.1 * jax.random.normal(ks[0], (dim,), jnp.float32),
        ln_b=0.1 * jax.random.normal(ks[1], (dim,), jnp.float32),
        wq=nrm(ks[2], (dim, dim), 0.1), wk=nrm(ks[3], (dim, dim), 0.1),
        wv=nrm(ks[4], (dim, dim), 0.15),
        wo=nrm(ks[5], (dim, dim), 0.15), bo=nrm(ks[6], (dim,), 0.05),
        temperature=1.0 + 0.1 * jax.random.normal(ks[7], (1, heads, 1, 1), jnp.float32),
        head_weights=0.3 * jax.random.normal(ks[8], (1, heads, 1, 1), jnp.float32),
        conv_w=[nrm(ks[9 + i], (dim, hd, s), 0.4) for i, s in enumerate(CONV_SCALES)],
        conv_b=[nrm(ks[12 + i], (dim,), 0.05) for i in range(len(CONV_SCALES))],
    )


def _init_ff(key, dim, mlp_dim):
    ks = jax.random.split(key, 6)
    return dict(
        ln_g=1.0 + 0.1 * jax.random.normal(ks[0], (dim,), jnp.float32),
        ln_b=0.1 * jax.random.normal(ks[1], (dim,), jnp.float32),
        w1=0.1 * jax.random.normal(ks[2], (mlp_dim, dim), jnp.float32),
        b1=0.05 * jax.random.normal(ks[3], (mlp_dim,), jnp.float32),
        w2=0.1 * jax.random.normal(ks[4], (dim, mlp_dim), jnp.float32),
        b2=0.05 * jax.random.normal(ks[5], (dim,), jnp.float32),
    )


# ------------------------------ pure-JAX reference -------------------------------

def _ref_layer_norm(x, g, b):
    mu = x.mean(-1, keepdims=True)
    var = ((x - mu) ** 2).mean(-1, keepdims=True)
    return (x - mu) / jnp.sqrt(var + LN_EPS) * g + b


def _ref_grouped_conv1d(x_ncw, w, bias, heads):
    k = w.shape[-1]
    y = jax.lax.conv_general_dilated(
        x_ncw, w, window_strides=(1,), padding=[(k // 2, k // 2)],
        dimension_numbers=('NCH', 'OIH', 'NCH'), feature_group_count=heads)
    return y + bias[None, :, None]


def _ref_multiscale_attention(x, ctx, p, heads):
    b, n, d = x.shape
    hd = d // heads
    split = lambda t: t.reshape(t.shape[0], t.shape[1], heads, hd).transpose(0, 2, 1, 3)
    q, k, v = split(x @ p['wq'].T), split(ctx @ p['wk'].T), split(ctx @ p['wv'].T)
    dots = jnp.einsum('bhnd,bhmd->bhnm', q, k) * (hd ** -0.5) * p['temperature']
    attn = jax.nn.softmax(dots, axis=-1)
    attn = attn * jax.nn.softmax(p['head_weights'], axis=1)
    out = jnp.einsum('bhnm,bhmd->bhnd', attn, v).transpose(0, 2, 1, 3).reshape(b, n, d)
    out_ncw = out.transpose(0, 2, 1)
    combined = out
    for w_s, b_s in zip(p['conv_w'], p['conv_b']):
        y = _ref_grouped_conv1d(out_ncw, w_s, b_s, heads).transpose(0, 2, 1)
        combined = combined + y / len(CONV_SCALES)
    return combined @ p['wo'].T + p['bo']


def _ref_feedforward(x, p):
    h = jax.nn.gelu(x @ p['w1'].T + p['b1'], approximate=False)
    return h @ p['w2'].T + p['b2']


def _ref_forward(x, context, raw_layers, heads):
    for lp in raw_layers:
        xn = _ref_layer_norm(x, lp['self']['ln_g'], lp['self']['ln_b'])
        x = x + _ref_multiscale_attention(xn, xn, lp['self'], heads)
        if context is not None:
            xn = _ref_layer_norm(x, lp['cross']['ln_g'], lp['cross']['ln_b'])
            x = x + _ref_multiscale_attention(xn, context, lp['cross'], heads)
        xn = _ref_layer_norm(x, lp['ff']['ln_g'], lp['ff']['ln_b'])
        x = x + _ref_feedforward(xn, lp['ff'])
    return x


# ------------------------------------ main ---------------------------------------

if __name__ == "__main__":
    B, T, S = 4, 8, 12
    DIM, HEADS, MLP_DIM, DEPTH = 32, 4, 64, 2

    key = jax.random.PRNGKey(0)
    kx, kc, kp = jax.random.split(key, 3)
    x = jax.random.normal(kx, (B, T, DIM), jnp.float32)
    context = jax.random.normal(kc, (B, S, DIM), jnp.float32)

    raw_layers = []
    for lk in jax.random.split(kp, DEPTH):
        k1, k2, k3 = jax.random.split(lk, 3)
        raw_layers.append(dict(self=_init_msa(k1, DIM, HEADS),
                               cross=_init_msa(k2, DIM, HEADS),
                               ff=_init_ff(k3, DIM, MLP_DIM)))

    params = prepare_params(raw_layers, HEADS, has_context=True)

    # block_b=2 exercises batch blocking while keeping 2 "parallel" grid steps for v7x.
    out = cross_modal_transformer_forward(x, context, params, num_heads=HEADS,
                                          block_b=2)
    out = jax.block_until_ready(out)

    with jax.default_matmul_precision('highest'):
        ref = _ref_forward(x, context, raw_layers, HEADS)
    ref = jax.block_until_ready(ref)

    # bf16 MXU operands (fp32 accumulation) across ~15 chained matmuls + approx
    # reciprocal softmax: compare with a bf16-appropriate tolerance; still tight enough
    # to catch conv/shift/mask/fold mistakes (those produce O(0.1..1) errors).
    np.testing.assert_allclose(np.asarray(out), np.asarray(ref), rtol=5e-2, atol=5e-2)
    print("KERNEL_OK")
</pallas_src>

<mosaic_0001>
module attributes {stable_mosaic.version = 11 : i64} {
  func.func @_transformer_kernel(%arg0: i32, %arg1: i32, %arg2: memref<16x32xf32, #tpu.memory_space<vmem>>, %arg3: memref<256x32xf32, #tpu.memory_space<vmem>>, %arg4: memref<1x1x32xf32, #tpu.memory_space<vmem>>, %arg5: memref<1x1x32xf32, #tpu.memory_space<vmem>>, %arg6: memref<1x32x32xbf16, #tpu.memory_space<vmem>>, %arg7: memref<1x32x32xbf16, #tpu.memory_space<vmem>>, %arg8: memref<1x32x32xbf16, #tpu.memory_space<vmem>>, %arg9: memref<1x32x32xbf16, #tpu.memory_space<vmem>>, %arg10: memref<1x1x32xf32, #tpu.memory_space<vmem>>, %arg11: memref<1x5x32x32xbf16, #tpu.memory_space<vmem>>, %arg12: memref<1x1x32xf32, #tpu.memory_space<vmem>>, %arg13: memref<1x1x32xf32, #tpu.memory_space<vmem>>, %arg14: memref<1x32x32xbf16, #tpu.memory_space<vmem>>, %arg15: memref<1x32x32xbf16, #tpu.memory_space<vmem>>, %arg16: memref<1x32x32xbf16, #tpu.memory_space<vmem>>, %arg17: memref<1x32x32xbf16, #tpu.memory_space<vmem>>, %arg18: memref<1x1x32xf32, #tpu.memory_space<vmem>>, %arg19: memref<1x5x32x32xbf16, #tpu.memory_space<vmem>>, %arg20: memref<1x1x32xf32, #tpu.memory_space<vmem>>, %arg21: memref<1x1x32xf32, #tpu.memory_space<vmem>>, %arg22: memref<1x32x64xbf16, #tpu.memory_space<vmem>>, %arg23: memref<1x1x64xf32, #tpu.memory_space<vmem>>, %arg24: memref<1x64x32xbf16, #tpu.memory_space<vmem>>, %arg25: memref<1x1x32xf32, #tpu.memory_space<vmem>>, %arg26: memref<16x32xf32, #tpu.memory_space<vmem>>, %arg27: memref<16x32xf32, #tpu.memory_space<vmem>>) attributes {dimension_semantics = [#tpu.dimension_semantics<parallel>, #tpu.dimension_semantics<arbitrary>], iteration_bounds = array<i64: 2, 2>, scalar_prefetch = 0 : i64, scratch_operands = 1 : i64, tpu.core_type = #tpu.core_type<tc>, window_params = [{transform_indices = @transform_0, window_bounds = array<i64: 16, 32>}, {transform_indices = @transform_1, window_bounds = array<i64: 256, 32>}, {transform_indices = @transform_2, window_bounds = array<i64: 1, 1, 32>}, {transform_indices = @transform_3, window_bounds = array<i64: 1, 1, 32>}, {transform_indices = @transform_4, window_bounds = array<i64: 1, 32, 32>}, {transform_indices = @transform_5, window_bounds = array<i64: 1, 32, 32>}, {transform_indices = @transform_6, window_bounds = array<i64: 1, 32, 32>}, {transform_indices = @transform_7, window_bounds = array<i64: 1, 32, 32>}, {transform_indices = @transform_8, window_bounds = array<i64: 1, 1, 32>}, {transform_indices = @transform_9, window_bounds = array<i64: 1, 5, 32, 32>}, {transform_indices = @transform_10, window_bounds = array<i64: 1, 1, 32>}, {transform_indices = @transform_11, window_bounds = array<i64: 1, 1, 32>}, {transform_indices = @transform_12, window_bounds = array<i64: 1, 32, 32>}, {transform_indices = @transform_13, window_bounds = array<i64: 1, 32, 32>}, {transform_indices = @transform_14, window_bounds = array<i64: 1, 32, 32>}, {transform_indices = @transform_15, window_bounds = array<i64: 1, 32, 32>}, {transform_indices = @transform_16, window_bounds = array<i64: 1, 1, 32>}, {transform_indices = @transform_17, window_bounds = array<i64: 1, 5, 32, 32>}, {transform_indices = @transform_18, window_bounds = array<i64: 1, 1, 32>}, {transform_indices = @transform_19, window_bounds = array<i64: 1, 1, 32>}, {transform_indices = @transform_20, window_bounds = array<i64: 1, 32, 64>}, {transform_indices = @transform_21, window_bounds = array<i64: 1, 1, 64>}, {transform_indices = @transform_22, window_bounds = array<i64: 1, 64, 32>}, {transform_indices = @transform_23, window_bounds = array<i64: 1, 1, 32>}, {transform_indices = @transform_24, window_bounds = array<i64: 16, 32>}]} {
    %c0_i32 = arith.constant 0 : i32
    %0 = arith.cmpi eq, %arg1, %c0_i32 : i32
    %1 = arith.extui %0 : i1 to i32
    %c0_i32_0 = arith.constant 0 : i32
    %2 = arith.cmpi ne, %1, %c0_i32_0 : i32
    scf.if %2 {
      %c0_289 = arith.constant 0 : index
      %c0_290 = arith.constant 0 : index
      %627 = vector.load %arg2[%c0_289, %c0_290] : memref<16x32xf32, #tpu.memory_space<vmem>>, vector<16x32xf32>
      %c0_291 = arith.constant 0 : index
      %c0_292 = arith.constant 0 : index
      %628 = vector.load %arg26[%c0_291, %c0_292] : memref<16x32xf32, #tpu.memory_space<vmem>>, vector<16x32xf32>
      tpu.vector_store %arg26[%c0_291, %c0_292], %627 {strides = array<i32>} : memref<16x32xf32, #tpu.memory_space<vmem>>, vector<16x32xf32>,
    } else {
    }
    %c0 = arith.constant 0 : index
    %c0_1 = arith.constant 0 : index
    %3 = vector.load %arg26[%c0, %c0_1] : memref<16x32xf32, #tpu.memory_space<vmem>>, vector<16x32xf32>
    %c0_2 = arith.constant 0 : index
    %c0_3 = arith.constant 0 : index
    %c0_4 = arith.constant 0 : index
    %4 = vector.load %arg4[%c0_2, %c0_3, %c0_4] : memref<1x1x32xf32, #tpu.memory_space<vmem>>, vector<1x1x32xf32>
    %5 = vector.shape_cast %4 : vector<1x1x32xf32> to vector<1x32xf32>
    %c0_5 = arith.constant 0 : index
    %c0_6 = arith.constant 0 : index
    %c0_7 = arith.constant 0 : index
    %6 = vector.load %arg5[%c0_5, %c0_6, %c0_7] : memref<1x1x32xf32, #tpu.memory_space<vmem>>, vector<1x1x32xf32>
    %7 = vector.shape_cast %6 : vector<1x1x32xf32> to vector<1x32xf32>
    %cst = arith.constant dense<0.000000e+00> : vector<16xf32>
    %8 = vector.multi_reduction <add>, %3, %cst [1] : vector<16x32xf32> to vector<16xf32>
    %9 = vector.shape_cast %8 : vector<16xf32> to vector<16x1xf32>
    %cst_8 = arith.constant 3.200000e+01 : f32
    %10 = vector.broadcast %cst_8 : f32 to vector<16x1xf32>
    %11 = arith.divf %9, %10 : vector<16x1xf32>
    %12 = vector.broadcast %11 : vector<16x1xf32> to vector<16x32xf32>
    %13 = arith.subf %3, %12 : vector<16x32xf32>
    %14 = arith.mulf %13, %13 : vector<16x32xf32>
    %cst_9 = arith.constant dense<0.000000e+00> : vector<16xf32>
    %15 = vector.multi_reduction <add>, %14, %cst_9 [1] : vector<16x32xf32> to vector<16xf32>
    %16 = vector.shape_cast %15 : vector<16xf32> to vector<16x1xf32>
    %cst_10 = arith.constant 3.200000e+01 : f32
    %17 = vector.broadcast %cst_10 : f32 to vector<16x1xf32>
    %18 = arith.divf %16, %17 : vector<16x1xf32>
    %19 = vector.broadcast %11 : vector<16x1xf32> to vector<16x32xf32>
    %20 = arith.subf %3, %19 : vector<16x32xf32>
    %cst_11 = arith.constant 9.99999974E-6 : f32
    %21 = vector.broadcast %cst_11 : f32 to vector<16x1xf32>
    %22 = arith.addf %18, %21 : vector<16x1xf32>
    %23 = math.rsqrt %22 : vector<16x1xf32>
    %24 = vector.broadcast %23 : vector<16x1xf32> to vector<16x32xf32>
    %25 = arith.mulf %20, %24 : vector<16x32xf32>
    %26 = vector.broadcast %5 : vector<1x32xf32> to vector<16x32xf32>
    %27 = arith.mulf %25, %26 : vector<16x32xf32>
    %28 = vector.broadcast %7 : vector<1x32xf32> to vector<16x32xf32>
    %29 = arith.addf %27, %28 : vector<16x32xf32>
    %30 = arith.truncf %29 : vector<16x32xf32> to vector<16x32xbf16>
    %c0_12 = arith.constant 0 : index
    %c0_13 = arith.constant 0 : index
    %c0_14 = arith.constant 0 : index
    %31 = vector.load %arg6[%c0_12, %c0_13, %c0_14] : memref<1x32x32xbf16, #tpu.memory_space<vmem>>, vector<1x32x32xbf16>
    %32 = vector.shape_cast %31 : vector<1x32x32xbf16> to vector<32x32xbf16>
    %cst_15 = arith.constant dense<0.000000e+00> : vector<16x32xf32>
    %33 = tpu.matmul %30, %32, %cst_15 {dimension_numbers = #tpu.dot_dimension_numbers<[1], [0], [0], [1], [0, 0, 1, 1], [], []>} : vector<16x32xbf16>, vector<32x32xbf16>, vector<16x32xf32> -> vector<16x32xf32>
    %34 = arith.truncf %33 : vector<16x32xf32> to vector<16x32xbf16>
    %35 = arith.truncf %29 : vector<16x32xf32> to vector<16x32xbf16>
    %c0_16 = arith.constant 0 : index
    %c0_17 = arith.constant 0 : index
    %c0_18 = arith.constant 0 : index
    %36 = vector.load %arg7[%c0_16, %c0_17, %c0_18] : memref<1x32x32xbf16, #tpu.memory_space<vmem>>, vector<1x32x32xbf16>
    %37 = vector.shape_cast %36 : vector<1x32x32xbf16> to vector<32x32xbf16>
    %cst_19 = arith.constant dense<0.000000e+00> : vector<16x32xf32>
    %38 = tpu.matmul %35, %37, %cst_19 {dimension_numbers = #tpu.dot_dimension_numbers<[1], [0], [0], [1], [0, 0, 1, 1], [], []>} : vector<16x32xbf16>, vector<32x32xbf16>, vector<16x32xf32> -> vector<16x32xf32>
    %39 = arith.truncf %38 : vector<16x32xf32> to vector<16x32xbf16>
    %40 = arith.truncf %29 : vector<16x32xf32> to vector<16x32xbf16>
    %c0_20 = arith.constant 0 : index
    %c0_21 = arith.constant 0 : index
    %c0_22 = arith.constant 0 : index
    %41 = vector.load %arg8[%c0_20, %c0_21, %c0_22] : memref<1x32x32xbf16, #tpu.memory_space<vmem>>, vector<1x32x32xbf16>
    %42 = vector.shape_cast %41 : vector<1x32x32xbf16> to vector<32x32xbf16>
    %cst_23 = arith.constant dense<0.000000e+00> : vector<16x32xf32>
    %43 = tpu.matmul %40, %42, %cst_23 {dimension_numbers = #tpu.dot_dimension_numbers<[1], [0], [0], [1], [0, 0, 1, 1], [], []>} : vector<16x32xbf16>, vector<32x32xbf16>, vector<16x32xf32> -> vector<16x32xf32>
    %44 = arith.truncf %43 : vector<16x32xf32> to vector<16x32xbf16>
    %45 = vector.extract_strided_slice %34 {offsets = [0, 0], sizes = [8, 8], strides = [1, 1]} : vector<16x32xbf16> to vector<8x8xbf16>
    %46 = vector.extract_strided_slice %39 {offsets = [0, 0], sizes = [8, 8], strides = [1, 1]} : vector<16x32xbf16> to vector<8x8xbf16>
    %cst_24 = arith.constant dense<0.000000e+00> : vector<8x8xf32>
    %47 = tpu.matmul %45, %46, %cst_24 {dimension_numbers = #tpu.dot_dimension_numbers<[1], [1], [0], [0], [0, 0, 1, 0], [], []>} : vector<8x8xbf16>, vector<8x8xbf16>, vector<8x8xf32> -> vector<8x8xf32>
    %cst_25 = arith.constant dense<0xFF800000> : vector<8xf32>
    %48 = vector.multi_reduction <maximumf>, %47, %cst_25 [1] : vector<8x8xf32> to vector<8xf32>
    %49 = vector.shape_cast %48 : vector<8xf32> to vector<8x1xf32>
    %50 = vector.broadcast %49 : vector<8x1xf32> to vector<8x8xf32>
    %51 = arith.subf %47, %50 : vector<8x8xf32>
    %52 = math.exp %51 : vector<8x8xf32>
    %cst_26 = arith.constant dense<0.000000e+00> : vector<8xf32>
    %53 = vector.multi_reduction <add>, %52, %cst_26 [1] : vector<8x8xf32> to vector<8xf32>
    %54 = vector.shape_cast %53 : vector<8xf32> to vector<8x1xf32>
    %55 = tpu.reciprocal %54 {approx = true} : vector<8x1xf32> -> vector<8x1xf32>
    %56 = vector.broadcast %55 : vector<8x1xf32> to vector<8x8xf32>
    %57 = arith.mulf %52, %56 : vector<8x8xf32>
    %58 = arith.truncf %57 : vector<8x8xf32> to vector<8x8xbf16>
    %59 = vector.extract_strided_slice %44 {offsets = [0, 0], sizes = [8, 8], strides = [1, 1]} : vector<16x32xbf16> to vector<8x8xbf16>
    %cst_27 = arith.constant dense<0.000000e+00> : vector<8x8xf32>
    %60 = tpu.matmul %58, %59, %cst_27 {dimension_numbers = #tpu.dot_dimension_numbers<[1], [0], [0], [1], [0, 0, 1, 1], [], []>} : vector<8x8xbf16>, vector<8x8xbf16>, vector<8x8xf32> -> vector<8x8xf32>
    %c0_28 = arith.constant 0 : index
    %c0_29 = arith.constant 0 : index
    %61 = vector.load %arg27[%c0_28, %c0_29] : memref<16x32xf32, #tpu.memory_space<vmem>>, vector<8x8xf32>
    tpu.vector_store %arg27[%c0_28, %c0_29], %60 {strides = array<i32>} : memref<16x32xf32, #tpu.memory_space<vmem>>, vector<8x8xf32>,
    %62 = vector.extract_strided_slice %34 {offsets = [0, 8], sizes = [8, 8], strides = [1, 1]} : vector<16x32xbf16> to vector<8x8xbf16>
    %63 = vector.extract_strided_slice %39 {offsets = [0, 8], sizes = [8, 8], strides = [1, 1]} : vector<16x32xbf16> to vector<8x8xbf16>
    %cst_30 = arith.constant dense<0.000000e+00> : vector<8x8xf32>
    %64 = tpu.matmul %62, %63, %cst_30 {dimension_numbers = #tpu.dot_dimension_numbers<[1], [1], [0], [0], [0, 0, 1, 0], [], []>} : vector<8x8xbf16>, vector<8x8xbf16>, vector<8x8xf32> -> vector<8x8xf32>
    %cst_31 = arith.constant dense<0xFF800000> : vector<8xf32>
    %65 = vector.multi_reduction <maximumf>, %64, %cst_31 [1] : vector<8x8xf32> to vector<8xf32>
    %66 = vector.shape_cast %65 : vector<8xf32> to vector<8x1xf32>
    %67 = vector.broadcast %66 : vector<8x1xf32> to vector<8x8xf32>
    %68 = arith.subf %64, %67 : vector<8x8xf32>
    %69 = math.exp %68 : vector<8x8xf32>
    %cst_32 = arith.constant dense<0.000000e+00> : vector<8xf32>
    %70 = vector.multi_reduction <add>, %69, %cst_32 [1] : vector<8x8xf32> to vector<8xf32>
    %71 = vector.shape_cast %70 : vector<8xf32> to vector<8x1xf32>
    %72 = tpu.reciprocal %71 {approx = true} : vector<8x1xf32> -> vector<8x1xf32>
    %73 = vector.broadcast %72 : vector<8x1xf32> to vector<8x8xf32>
    %74 = arith.mulf %69, %73 : vector<8x8xf32>
    %75 = arith.truncf %74 : vector<8x8xf32> to vector<8x8xbf16>
    %76 = vector.extract_strided_slice %44 {offsets = [0, 8], sizes = [8, 8], strides = [1, 1]} : vector<16x32xbf16> to vector<8x8xbf16>
    %cst_33 = arith.constant dense<0.000000e+00> : vector<8x8xf32>
    %77 = tpu.matmul %75, %76, %cst_33 {dimension_numbers = #tpu.dot_dimension_numbers<[1], [0], [0], [1], [0, 0, 1, 1], [], []>} : vector<8x8xbf16>, vector<8x8xbf16>, vector<8x8xf32> -> vector<8x8xf32>
    %c0_34 = arith.constant 0 : index
    %c8 = arith.constant 8 : index
    %78 = vector.load %arg27[%c0_34, %c8] : memref<16x32xf32, #tpu.memory_space<vmem>>, vector<8x8xf32>
    tpu.vector_store %arg27[%c0_34, %c8], %77 {strides = array<i32>} : memref<16x32xf32, #tpu.memory_space<vmem>>, vector<8x8xf32>,
    %79 = vector.extract_strided_slice %34 {offsets = [0, 16], sizes = [8, 8], strides = [1, 1]} : vector<16x32xbf16> to vector<8x8xbf16>
    %80 = vector.extract_strided_slice %39 {offsets = [0, 16], sizes = [8, 8], strides = [1, 1]} : vector<16x32xbf16> to vector<8x8xbf16>
    %cst_35 = arith.constant dense<0.000000e+00> : vector<8x8xf32>
    %81 = tpu.matmul %79, %80, %cst_35 {dimension_numbers = #tpu.dot_dimension_numbers<[1], [1], [0], [0], [0, 0, 1, 0], [], []>} : vector<8x8xbf16>, vector<8x8xbf16>, vector<8x8xf32> -> vector<8x8xf32>
    %cst_36 = arith.constant dense<0xFF800000> : vector<8xf32>
    %82 = vector.multi_reduction <maximumf>, %81, %cst_36 [1] : vector<8x8xf32> to vector<8xf32>
    %83 = vector.shape_cast %82 : vector<8xf32> to vector<8x1xf32>
    %84 = vector.broadcast %83 : vector<8x1xf32> to vector<8x8xf32>
    %85 = arith.subf %81, %84 : vector<8x8xf32>
    %86 = math.exp %85 : vector<8x8xf32>
    %cst_37 = arith.constant dense<0.000000e+00> : vector<8xf32>
    %87 = vector.multi_reduction <add>, %86, %cst_37 [1] : vector<8x8xf32> to vector<8xf32>
    %88 = vector.shape_cast %87 : vector<8xf32> to vector<8x1xf32>
    %89 = tpu.reciprocal %88 {approx = true} : vector<8x1xf32> -> vector<8x1xf32>
    %90 = vector.broadcast %89 : vector<8x1xf32> to vector<8x8xf32>
    %91 = arith.mulf %86, %90 : vector<8x8xf32>
    %92 = arith.truncf %91 : vector<8x8xf32> to vector<8x8xbf16>
    %93 = vector.extract_strided_slice %44 {offsets = [0, 16], sizes = [8, 8], strides = [1, 1]} : vector<16x32xbf16> to vector<8x8xbf16>
    %cst_38 = arith.constant dense<0.000000e+00> : vector<8x8xf32>
    %94 = tpu.matmul %92, %93, %cst_38 {dimension_numbers = #tpu.dot_dimension_numbers<[1], [0], [0], [1], [0, 0, 1, 1], [], []>} : vector<8x8xbf16>, vector<8x8xbf16>, vector<8x8xf32> -> vector<8x8xf32>
    %c0_39 = arith.constant 0 : index
    %c16 = arith.constant 16 : index
    %95 = vector.load %arg27[%c0_39, %c16] : memref<16x32xf32, #tpu.memory_space<vmem>>, vector<8x8xf32>
    tpu.vector_store %arg27[%c0_39, %c16], %94 {strides = array<i32>} : memref<16x32xf32, #tpu.memory_space<vmem>>, vector<8x8xf32>,
    %96 = vector.extract_strided_slice %34 {offsets = [0, 24], sizes = [8, 8], strides = [1, 1]} : vector<16x32xbf16> to vector<8x8xbf16>
    %97 = vector.extract_strided_slice %39 {offsets = [0, 24], sizes = [8, 8], strides = [1, 1]} : vector<16x32xbf16> to vector<8x8xbf16>
    %cst_40 = arith.constant dense<0.000000e+00> : vector<8x8xf32>
    %98 = tpu.matmul %96, %97, %cst_40 {dimension_numbers = #tpu.dot_dimension_numbers<[1], [1], [0], [0], [0, 0, 1, 0], [], []>} : vector<8x8xbf16>, vector<8x8xbf16>, vector<8x8xf32> -> vector<8x8xf32>
    %cst_41 = arith.constant dense<0xFF800000> : vector<8xf32>
    %99 = vector.multi_reduction <maximumf>, %98, %cst_41 [1] : vector<8x8xf32> to vector<8xf32>
    %100 = vector.shape_cast %99 : vector<8xf32> to vector<8x1xf32>
    %101 = vector.broadcast %100 : vector<8x1xf32> to vector<8x8xf32>
    %102 = arith.subf %98, %101 : vector<8x8xf32>
    %103 = math.exp %102 : vector<8x8xf32>
    %cst_42 = arith.constant dense<0.000000e+00> : vector<8xf32>
    %104 = vector.multi_reduction <add>, %103, %cst_42 [1] : vector<8x8xf32> to vector<8xf32>
    %105 = vector.shape_cast %104 : vector<8xf32> to vector<8x1xf32>
    %106 = tpu.reciprocal %105 {approx = true} : vector<8x1xf32> -> vector<8x1xf32>
    %107 = vector.broadcast %106 : vector<8x1xf32> to vector<8x8xf32>
    %108 = arith.mulf %103, %107 : vector<8x8xf32>
    %109 = arith.truncf %108 : vector<8x8xf32> to vector<8x8xbf16>
    %110 = vector.extract_strided_slice %44 {offsets = [0, 24], sizes = [8, 8], strides = [1, 1]} : vector<16x32xbf16> to vector<8x8xbf16>
    %cst_43 = arith.constant dense<0.000000e+00> : vector<8x8xf32>
    %111 = tpu.matmul %109, %110, %cst_43 {dimension_numbers = #tpu.dot_dimension_numbers<[1], [0], [0], [1], [0, 0, 1, 1], [], []>} : vector<8x8xbf16>, vector<8x8xbf16>, vector<8x8xf32> -> vector<8x8xf32>
    %c0_44 = arith.constant 0 : index
    %c24 = arith.constant 24 : index
    %112 = vector.load %arg27[%c0_44, %c24] : memref<16x32xf32, #tpu.memory_space<vmem>>, vector<8x8xf32>
    tpu.vector_store %arg27[%c0_44, %c24], %111 {strides = array<i32>} : memref<16x32xf32, #tpu.memory_space<vmem>>, vector<8x8xf32>,
    %113 = vector.extract_strided_slice %34 {offsets = [8, 0], sizes = [8, 8], strides = [1, 1]} : vector<16x32xbf16> to vector<8x8xbf16>
    %114 = vector.extract_strided_slice %39 {offsets = [8, 0], sizes = [8, 8], strides = [1, 1]} : vector<16x32xbf16> to vector<8x8xbf16>
    %cst_45 = arith.constant dense<0.000000e+00> : vector<8x8xf32>
    %115 = tpu.matmul %113, %114, %cst_45 {dimension_numbers = #tpu.dot_dimension_numbers<[1], [1], [0], [0], [0, 0, 1, 0], [], []>} : vector<8x8xbf16>, vector<8x8xbf16>, vector<8x8xf32> -> vector<8x8xf32>
    %cst_46 = arith.constant dense<0xFF800000> : vector<8xf32>
    %116 = vector.multi_reduction <maximumf>, %115, %cst_46 [1] : vector<8x8xf32> to vector<8xf32>
    %117 = vector.shape_cast %116 : vector<8xf32> to vector<8x1xf32>
    %118 = vector.broadcast %117 : vector<8x1xf32> to vector<8x8xf32>
    %119 = arith.subf %115, %118 : vector<8x8xf32>
    %120 = math.exp %119 : vector<8x8xf32>
    %cst_47 = arith.constant dense<0.000000e+00> : vector<8xf32>
    %121 = vector.multi_reduction <add>, %120, %cst_47 [1] : vector<8x8xf32> to vector<8xf32>
    %122 = vector.shape_cast %121 : vector<8xf32> to vector<8x1xf32>
    %123 = tpu.reciprocal %122 {approx = true} : vector<8x1xf32> -> vector<8x1xf32>
    %124 = vector.broadcast %123 : vector<8x1xf32> to vector<8x8xf32>
    %125 = arith.mulf %120, %124 : vector<8x8xf32>
    %126 = arith.truncf %125 : vector<8x8xf32> to vector<8x8xbf16>
    %127 = vector.extract_strided_slice %44 {offsets = [8, 0], sizes = [8, 8], strides = [1, 1]} : vector<16x32xbf16> to vector<8x8xbf16>
    %cst_48 = arith.constant dense<0.000000e+00> : vector<8x8xf32>
    %128 = tpu.matmul %126, %127, %cst_48 {dimension_numbers = #tpu.dot_dimension_numbers<[1], [0], [0], [1], [0, 0, 1, 1], [], []>} : vector<8x8xbf16>, vector<8x8xbf16>, vector<8x8xf32> -> vector<8x8xf32>
    %c8_49 = arith.constant 8 : index
    %c0_50 = arith.constant 0 : index
    %129 = vector.load %arg27[%c8_49, %c0_50] : memref<16x32xf32, #tpu.memory_space<vmem>>, vector<8x8xf32>
    tpu.vector_store %arg27[%c8_49, %c0_50], %128 {strides = array<i32>} : memref<16x32xf32, #tpu.memory_space<vmem>>, vector<8x8xf32>,
    %130 = vector.extract_strided_slice %34 {offsets = [8, 8], sizes = [8, 8], strides = [1, 1]} : vector<16x32xbf16> to vector<8x8xbf16>
    %131 = vector.extract_strided_slice %39 {offsets = [8, 8], sizes = [8, 8], strides = [1, 1]} : vector<16x32xbf16> to vector<8x8xbf16>
    %cst_51 = arith.constant dense<0.000000e+00> : vector<8x8xf32>
    %132 = tpu.matmul %130, %131, %cst_51 {dimension_numbers = #tpu.dot_dimension_numbers<[1], [1], [0], [0], [0, 0, 1, 0], [], []>} : vector<8x8xbf16>, vector<8x8xbf16>, vector<8x8xf32> -> vector<8x8xf32>
    %cst_52 = arith.constant dense<0xFF800000> : vector<8xf32>
    %133 = vector.multi_reduction <maximumf>, %132, %cst_52 [1] : vector<8x8xf32> to vector<8xf32>
    %134 = vector.shape_cast %133 : vector<8xf32> to vector<8x1xf32>
    %135 = vector.broadcast %134 : vector<8x1xf32> to vector<8x8xf32>
    %136 = arith.subf %132, %135 : vector<8x8xf32>
    %137 = math.exp %136 : vector<8x8xf32>
    %cst_53 = arith.constant dense<0.000000e+00> : vector<8xf32>
    %138 = vector.multi_reduction <add>, %137, %cst_53 [1] : vector<8x8xf32> to vector<8xf32>
    %139 = vector.shape_cast %138 : vector<8xf32> to vector<8x1xf32>
    %140 = tpu.reciprocal %139 {approx = true} : vector<8x1xf32> -> vector<8x1xf32>
    %141 = vector.broadcast %140 : vector<8x1xf32> to vector<8x8xf32>
    %142 = arith.mulf %137, %141 : vector<8x8xf32>
    %143 = arith.truncf %142 : vector<8x8xf32> to vector<8x8xbf16>
    %144 = vector.extract_strided_slice %44 {offsets = [8, 8], sizes = [8, 8], strides = [1, 1]} : vector<16x32xbf16> to vector<8x8xbf16>
    %cst_54 = arith.constant dense<0.000000e+00> : vector<8x8xf32>
    %145 = tpu.matmul %143, %144, %cst_54 {dimension_numbers = #tpu.dot_dimension_numbers<[1], [0], [0], [1], [0, 0, 1, 1], [], []>} : vector<8x8xbf16>, vector<8x8xbf16>, vector<8x8xf32> -> vector<8x8xf32>
    %c8_55 = arith.constant 8 : index
    %c8_56 = arith.constant 8 : index
    %146 = vector.load %arg27[%c8_55, %c8_56] : memref<16x32xf32, #tpu.memory_space<vmem>>, vector<8x8xf32>
    tpu.vector_store %arg27[%c8_55, %c8_56], %145 {strides = array<i32>} : memref<16x32xf32, #tpu.memory_space<vmem>>, vector<8x8xf32>,
    %147 = vector.extract_strided_slice %34 {offsets = [8, 16], sizes = [8, 8], strides = [1, 1]} : vector<16x32xbf16> to vector<8x8xbf16>
    %148 = vector.extract_strided_slice %39 {offsets = [8, 16], sizes = [8, 8], strides = [1, 1]} : vector<16x32xbf16> to vector<8x8xbf16>
    %cst_57 = arith.constant dense<0.000000e+00> : vector<8x8xf32>
    %149 = tpu.matmul %147, %148, %cst_57 {dimension_numbers = #tpu.dot_dimension_numbers<[1], [1], [0], [0], [0, 0, 1, 0], [], []>} : vector<8x8xbf16>, vector<8x8xbf16>, vector<8x8xf32> -> vector<8x8xf32>
    %cst_58 = arith.constant dense<0xFF800000> : vector<8xf32>
    %150 = vector.multi_reduction <maximumf>, %149, %cst_58 [1] : vector<8x8xf32> to vector<8xf32>
    %151 = vector.shape_cast %150 : vector<8xf32> to vector<8x1xf32>
    %152 = vector.broadcast %151 : vector<8x1xf32> to vector<8x8xf32>
    %153 = arith.subf %149, %152 : vector<8x8xf32>
    %154 = math.exp %153 : vector<8x8xf32>
    %cst_59 = arith.constant dense<0.000000e+00> : vector<8xf32>
    %155 = vector.multi_reduction <add>, %154, %cst_59 [1] : vector<8x8xf32> to vector<8xf32>
    %156 = vector.shape_cast %155 : vector<8xf32> to vector<8x1xf32>
    %157 = tpu.reciprocal %156 {approx = true} : vector<8x1xf32> -> vector<8x1xf32>
    %158 = vector.broadcast %157 : vector<8x1xf32> to vector<8x8xf32>
    %159 = arith.mulf %154, %158 : vector<8x8xf32>
    %160 = arith.truncf %159 : vector<8x8xf32> to vector<8x8xbf16>
    %161 = vector.extract_strided_slice %44 {offsets = [8, 16], sizes = [8, 8], strides = [1, 1]} : vector<16x32xbf16> to vector<8x8xbf16>
    %cst_60 = arith.constant dense<0.000000e+00> : vector<8x8xf32>
    %162 = tpu.matmul %160, %161, %cst_60 {dimension_numbers = #tpu.dot_dimension_numbers<[1], [0], [0], [1], [0, 0, 1, 1], [], []>} : vector<8x8xbf16>, vector<8x8xbf16>, vector<8x8xf32> -> vector<8x8xf32>
    %c8_61 = arith.constant 8 : index
    %c16_62 = arith.constant 16 : index
    %163 = vector.load %arg27[%c8_61, %c16_62] : memref<16x32xf32, #tpu.memory_space<vmem>>, vector<8x8xf32>
    tpu.vector_store %arg27[%c8_61, %c16_62], %162 {strides = array<i32>} : memref<16x32xf32, #tpu.memory_space<vmem>>, vector<8x8xf32>,
    %164 = vector.extract_strided_slice %34 {offsets = [8, 24], sizes = [8, 8], strides = [1, 1]} : vector<16x32xbf16> to vector<8x8xbf16>
    %165 = vector.extract_strided_slice %39 {offsets = [8, 24], sizes = [8, 8], strides = [1, 1]} : vector<16x32xbf16> to vector<8x8xbf16>
    %cst_63 = arith.constant dense<0.000000e+00> : vector<8x8xf32>
    %166 = tpu.matmul %164, %165, %cst_63 {dimension_numbers = #tpu.dot_dimension_numbers<[1], [1], [0], [0], [0, 0, 1, 0], [], []>} : vector<8x8xbf16>, vector<8x8xbf16>, vector<8x8xf32> -> vector<8x8xf32>
    %cst_64 = arith.constant dense<0xFF800000> : vector<8xf32>
    %167 = vector.multi_reduction <maximumf>, %166, %cst_64 [1] : vector<8x8xf32> to vector<8xf32>
    %168 = vector.shape_cast %167 : vector<8xf32> to vector<8x1xf32>
    %169 = vector.broadcast %168 : vector<8x1xf32> to vector<8x8xf32>
    %170 = arith.subf %166, %169 : vector<8x8xf32>
    %171 = math.exp %170 : vector<8x8xf32>
    %cst_65 = arith.constant dense<0.000000e+00> : vector<8xf32>
    %172 = vector.multi_reduction <add>, %171, %cst_65 [1] : vector<8x8xf32> to vector<8xf32>
    %173 = vector.shape_cast %172 : vector<8xf32> to vector<8x1xf32>
    %174 = tpu.reciprocal %173 {approx = true} : vector<8x1xf32> -> vector<8x1xf32>
    %175 = vector.broadcast %174 : vector<8x1xf32> to vector<8x8xf32>
    %176 = arith.mulf %171, %175 : vector<8x8xf32>
    %177 = arith.truncf %176 : vector<8x8xf32> to vector<8x8xbf16>
    %178 = vector.extract_strided_slice %44 {offsets = [8, 24], sizes = [8, 8], strides = [1, 1]} : vector<16x32xbf16> to vector<8x8xbf16>
    %cst_66 = arith.constant dense<0.000000e+00> : vector<8x8xf32>
    %179 = tpu.matmul %177, %178, %cst_66 {dimension_numbers = #tpu.dot_dimension_numbers<[1], [0], [0], [1], [0, 0, 1, 1], [], []>} : vector<8x8xbf16>, vector<8x8xbf16>, vector<8x8xf32> -> vector<8x8xf32>
    %c8_67 = arith.constant 8 : index
    %c24_68 = arith.constant 24 : index
    %180 = vector.load %arg27[%c8_67, %c24_68] : memref<16x32xf32, #tpu.memory_space<vmem>>, vector<8x8xf32>
    tpu.vector_store %arg27[%c8_67, %c24_68], %179 {strides = array<i32>} : memref<16x32xf32, #tpu.memory_space<vmem>>, vector<8x8xf32>,
    %c0_69 = arith.constant 0 : index
    %c0_70 = arith.constant 0 : index
    %181 = vector.load %arg27[%c0_69, %c0_70] : memref<16x32xf32, #tpu.memory_space<vmem>>, vector<16x32xf32>
    %182 = tpu.iota {dimensions = array<i32: 0>} : vector<16x1xi32>
    %c8_i32 = arith.constant 8 : i32
    %c0_i32_71 = arith.constant 0 : i32
    %183 = arith.cmpi eq, %c8_i32, %c0_i32_71 : i32
    %c1_i32 = arith.constant 1 : i32
    %184 = arith.select %183, %c1_i32, %c8_i32 : i32
    %185 = vector.broadcast %184 : i32 to vector<16x1xi32>
    %186 = arith.remsi %182, %185 : vector<16x1xi32>
    %c0_i32_72 = arith.constant 0 : i32
    %187 = vector.broadcast %c0_i32_72 : i32 to vector<16x1xi32>
    %188 = arith.cmpi ne, %186, %187 : vector<16x1xi32>
    %c0_i32_73 = arith.constant 0 : i32
    %189 = vector.broadcast %c0_i32_73 : i32 to vector<16x1xi32>
    %190 = arith.cmpi slt, %186, %189 : vector<16x1xi32>
    %c0_i32_74 = arith.constant 0 : i32
    %191 = arith.cmpi slt, %184, %c0_i32_74 : i32
    %192 = vector.broadcast %191 : i1 to vector<16x1xi1>
    %193 = vector.broadcast %192 : vector<16x1xi1> to vector<16x1xi1>
    %194 = arith.xori %190, %193 : vector<16x1xi1>
    %195 = arith.andi %194, %188 : vector<16x1xi1>
    %196 = vector.broadcast %184 : i32 to vector<16x1xi32>
    %197 = arith.addi %186, %196 : vector<16x1xi32>
    %198 = arith.select %195, %197, %186 : vector<16x1xi1>, vector<16x1xi32>
    %cst_75 = arith.constant 0.000000e+00 : f32
    %199 = vector.broadcast %cst_75 : f32 to vector<16x32xf32>
    %c2_i32 = arith.constant 2 : i32
    %200 = tpu.dynamic_rotate %181 by %c2_i32 dim 0 : vector<16x32xf32>, i32 -> vector<16x32xf32>
    %c2_i32_76 = arith.constant 2 : i32
    %201 = vector.broadcast %c2_i32_76 : i32 to vector<16x1xi32>
    %202 = arith.cmpi sge, %198, %201 : vector<16x1xi32>
    %cst_77 = arith.constant 0.000000e+00 : f32
    %203 = vector.shape_cast %202 : vector<16x1xi1> to vector<16x1xi1>
    %204 = vector.broadcast %203 : vector<16x1xi1> to vector<16x32xi1>
    %205 = vector.broadcast %cst_77 : f32 to vector<16x32xf32>
    %206 = arith.select %204, %200, %205 : vector<16x32xi1>, vector<16x32xf32>
    %207 = arith.truncf %206 : vector<16x32xf32> to vector<16x32xbf16>
    %c0_78 = arith.constant 0 : index
    %c0_79 = arith.constant 0 : index
    %c0_80 = arith.constant 0 : index
    %c0_81 = arith.constant 0 : index
    %208 = vector.load %arg11[%c0_78, %c0_79, %c0_80, %c0_81] : memref<1x5x32x32xbf16, #tpu.memory_space<vmem>>, vector<1x1x32x32xbf16>
    %209 = vector.shape_cast %208 : vector<1x1x32x32xbf16> to vector<32x32xbf16>
    %cst_82 = arith.constant dense<0.000000e+00> : vector<16x32xf32>
    %210 = tpu.matmul %207, %209, %cst_82 {dimension_numbers = #tpu.dot_dimension_numbers<[1], [0], [0], [1], [0, 0, 1, 1], [], []>} : vector<16x32xbf16>, vector<32x32xbf16>, vector<16x32xf32> -> vector<16x32xf32>
    %211 = arith.addf %199, %210 : vector<16x32xf32>
    %c1_i32_83 = arith.constant 1 : i32
    %212 = tpu.dynamic_rotate %181 by %c1_i32_83 dim 0 : vector<16x32xf32>, i32 -> vector<16x32xf32>
    %c1_i32_84 = arith.constant 1 : i32
    %213 = vector.broadcast %c1_i32_84 : i32 to vector<16x1xi32>
    %214 = arith.cmpi sge, %198, %213 : vector<16x1xi32>
    %cst_85 = arith.constant 0.000000e+00 : f32
    %215 = vector.shape_cast %214 : vector<16x1xi1> to vector<16x1xi1>
    %216 = vector.broadcast %215 : vector<16x1xi1> to vector<16x32xi1>
    %217 = vector.broadcast %cst_85 : f32 to vector<16x32xf32>
    %218 = arith.select %216, %212, %217 : vector<16x32xi1>, vector<16x32xf32>
    %219 = arith.truncf %218 : vector<16x32xf32> to vector<16x32xbf16>
    %c0_86 = arith.constant 0 : index
    %c1 = arith.constant 1 : index
    %c0_87 = arith.constant 0 : index
    %c0_88 = arith.constant 0 : index
    %220 = vector.load %arg11[%c0_86, %c1, %c0_87, %c0_88] : memref<1x5x32x32xbf16, #tpu.memory_space<vmem>>, vector<1x1x32x32xbf16>
    %221 = vector.shape_cast %220 : vector<1x1x32x32xbf16> to vector<32x32xbf16>
    %cst_89 = arith.constant dense<0.000000e+00> : vector<16x32xf32>
    %222 = tpu.matmul %219, %221, %cst_89 {dimension_numbers = #tpu.dot_dimension_numbers<[1], [0], [0], [1], [0, 0, 1, 1], [], []>} : vector<16x32xbf16>, vector<32x32xbf16>, vector<16x32xf32> -> vector<16x32xf32>
    %223 = arith.addf %211, %222 : vector<16x32xf32>
    %224 = arith.truncf %181 : vector<16x32xf32> to vector<16x32xbf16>
    %c0_90 = arith.constant 0 : index
    %c2 = arith.constant 2 : index
    %c0_91 = arith.constant 0 : index
    %c0_92 = arith.constant 0 : index
    %225 = vector.load %arg11[%c0_90, %c2, %c0_91, %c0_92] : memref<1x5x32x32xbf16, #tpu.memory_space<vmem>>, vector<1x1x32x32xbf16>
    %226 = vector.shape_cast %225 : vector<1x1x32x32xbf16> to vector<32x32xbf16>
    %cst_93 = arith.constant dense<0.000000e+00> : vector<16x32xf32>
    %227 = tpu.matmul %224, %226, %cst_93 {dimension_numbers = #tpu.dot_dimension_numbers<[1], [0], [0], [1], [0, 0, 1, 1], [], []>} : vector<16x32xbf16>, vector<32x32xbf16>, vector<16x32xf32> -> vector<16x32xf32>
    %228 = arith.addf %223, %227 : vector<16x32xf32>
    %c15_i32 = arith.constant 15 : i32
    %229 = tpu.dynamic_rotate %181 by %c15_i32 dim 0 : vector<16x32xf32>, i32 -> vector<16x32xf32>
    %c7_i32 = arith.constant 7 : i32
    %230 = vector.broadcast %c7_i32 : i32 to vector<16x1xi32>
    %231 = arith.cmpi slt, %198, %230 : vector<16x1xi32>
    %cst_94 = arith.constant 0.000000e+00 : f32
    %232 = vector.shape_cast %231 : vector<16x1xi1> to vector<16x1xi1>
    %233 = vector.broadcast %232 : vector<16x1xi1> to vector<16x32xi1>
    %234 = vector.broadcast %cst_94 : f32 to vector<16x32xf32>
    %235 = arith.select %233, %229, %234 : vector<16x32xi1>, vector<16x32xf32>
    %236 = arith.truncf %235 : vector<16x32xf32> to vector<16x32xbf16>
    %c0_95 = arith.constant 0 : index
    %c3 = arith.constant 3 : index
    %c0_96 = arith.constant 0 : index
    %c0_97 = arith.constant 0 : index
    %237 = vector.load %arg11[%c0_95, %c3, %c0_96, %c0_97] : memref<1x5x32x32xbf16, #tpu.memory_space<vmem>>, vector<1x1x32x32xbf16>
    %238 = vector.shape_cast %237 : vector<1x1x32x32xbf16> to vector<32x32xbf16>
    %cst_98 = arith.constant dense<0.000000e+00> : vector<16x32xf32>
    %239 = tpu.matmul %236, %238, %cst_98 {dimension_numbers = #tpu.dot_dimension_numbers<[1], [0], [0], [1], [0, 0, 1, 1], [], []>} : vector<16x32xbf16>, vector<32x32xbf16>, vector<16x32xf32> -> vector<16x32xf32>
    %240 = arith.addf %228, %239 : vector<16x32xf32>
    %c14_i32 = arith.constant 14 : i32
    %241 = tpu.dynamic_rotate %181 by %c14_i32 dim 0 : vector<16x32xf32>, i32 -> vector<16x32xf32>
    %c6_i32 = arith.constant 6 : i32
    %242 = vector.broadcast %c6_i32 : i32 to vector<16x1xi32>
    %243 = arith.cmpi slt, %198, %242 : vector<16x1xi32>
    %cst_99 = arith.constant 0.000000e+00 : f32
    %244 = vector.shape_cast %243 : vector<16x1xi1> to vector<16x1xi1>
    %245 = vector.broadcast %244 : vector<16x1xi1> to vector<16x32xi1>
    %246 = vector.broadcast %cst_99 : f32 to vector<16x32xf32>
    %247 = arith.select %245, %241, %246 : vector<16x32xi1>, vector<16x32xf32>
    %248 = arith.truncf %247 : vector<16x32xf32> to vector<16x32xbf16>
    %c0_100 = arith.constant 0 : index
    %c4 = arith.constant 4 : index
    %c0_101 = arith.constant 0 : index
    %c0_102 = arith.constant 0 : index
    %249 = vector.load %arg11[%c0_100, %c4, %c0_101, %c0_102] : memref<1x5x32x32xbf16, #tpu.memory_space<vmem>>, vector<1x1x32x32xbf16>
    %250 = vector.shape_cast %249 : vector<1x1x32x32xbf16> to vector<32x32xbf16>
    %cst_103 = arith.constant dense<0.000000e+00> : vector<16x32xf32>
    %251 = tpu.matmul %248, %250, %cst_103 {dimension_numbers = #tpu.dot_dimension_numbers<[1], [0], [0], [1], [0, 0, 1, 1], [], []>} : vector<16x32xbf16>, vector<32x32xbf16>, vector<16x32xf32> -> vector<16x32xf32>
    %252 = arith.addf %240, %251 : vector<16x32xf32>
    %253 = arith.truncf %252 : vector<16x32xf32> to vector<16x32xbf16>
    %c0_104 = arith.constant 0 : index
    %c0_105 = arith.constant 0 : index
    %c0_106 = arith.constant 0 : index
    %254 = vector.load %arg9[%c0_104, %c0_105, %c0_106] : memref<1x32x32xbf16, #tpu.memory_space<vmem>>, vector<1x32x32xbf16>
    %255 = vector.shape_cast %254 : vector<1x32x32xbf16> to vector<32x32xbf16>
    %cst_107 = arith.constant dense<0.000000e+00> : vector<16x32xf32>
    %256 = tpu.matmul %253, %255, %cst_107 {dimension_numbers = #tpu.dot_dimension_numbers<[1], [0], [0], [1], [0, 0, 1, 1], [], []>} : vector<16x32xbf16>, vector<32x32xbf16>, vector<16x32xf32> -> vector<16x32xf32>
    %c0_108 = arith.constant 0 : index
    %c0_109 = arith.constant 0 : index
    %c0_110 = arith.constant 0 : index
    %257 = vector.load %arg10[%c0_108, %c0_109, %c0_110] : memref<1x1x32xf32, #tpu.memory_space<vmem>>, vector<1x1x32xf32>
    %258 = vector.shape_cast %257 : vector<1x1x32xf32> to vector<1x32xf32>
    %259 = vector.broadcast %258 : vector<1x32xf32> to vector<16x32xf32>
    %260 = arith.addf %256, %259 : vector<16x32xf32>
    %261 = arith.addf %3, %260 : vector<16x32xf32>
    %c0_111 = arith.constant 0 : index
    %c0_112 = arith.constant 0 : index
    %c0_113 = arith.constant 0 : index
    %262 = vector.load %arg12[%c0_111, %c0_112, %c0_113] : memref<1x1x32xf32, #tpu.memory_space<vmem>>, vector<1x1x32xf32>
    %263 = vector.shape_cast %262 : vector<1x1x32xf32> to vector<1x32xf32>
    %c0_114 = arith.constant 0 : index
    %c0_115 = arith.constant 0 : index
    %c0_116 = arith.constant 0 : index
    %264 = vector.load %arg13[%c0_114, %c0_115, %c0_116] : memref<1x1x32xf32, #tpu.memory_space<vmem>>, vector<1x1x32xf32>
    %265 = vector.shape_cast %264 : vector<1x1x32xf32> to vector<1x32xf32>
    %cst_117 = arith.constant dense<0.000000e+00> : vector<16xf32>
    %266 = vector.multi_reduction <add>, %261, %cst_117 [1] : vector<16x32xf32> to vector<16xf32>
    %267 = vector.shape_cast %266 : vector<16xf32> to vector<16x1xf32>
    %cst_118 = arith.constant 3.200000e+01 : f32
    %268 = vector.broadcast %cst_118 : f32 to vector<16x1xf32>
    %269 = arith.divf %267, %268 : vector<16x1xf32>
    %270 = vector.broadcast %269 : vector<16x1xf32> to vector<16x32xf32>
    %271 = arith.subf %261, %270 : vector<16x32xf32>
    %272 = arith.mulf %271, %271 : vector<16x32xf32>
    %cst_119 = arith.constant dense<0.000000e+00> : vector<16xf32>
    %273 = vector.multi_reduction <add>, %272, %cst_119 [1] : vector<16x32xf32> to vector<16xf32>
    %274 = vector.shape_cast %273 : vector<16xf32> to vector<16x1xf32>
    %cst_120 = arith.constant 3.200000e+01 : f32
    %275 = vector.broadcast %cst_120 : f32 to vector<16x1xf32>
    %276 = arith.divf %274, %275 : vector<16x1xf32>
    %277 = vector.broadcast %269 : vector<16x1xf32> to vector<16x32xf32>
    %278 = arith.subf %261, %277 : vector<16x32xf32>
    %cst_121 = arith.constant 9.99999974E-6 : f32
    %279 = vector.broadcast %cst_121 : f32 to vector<16x1xf32>
    %280 = arith.addf %276, %279 : vector<16x1xf32>
    %281 = math.rsqrt %280 : vector<16x1xf32>
    %282 = vector.broadcast %281 : vector<16x1xf32> to vector<16x32xf32>
    %283 = arith.mulf %278, %282 : vector<16x32xf32>
    %284 = vector.broadcast %263 : vector<1x32xf32> to vector<16x32xf32>
    %285 = arith.mulf %283, %284 : vector<16x32xf32>
    %286 = vector.broadcast %265 : vector<1x32xf32> to vector<16x32xf32>
    %287 = arith.addf %285, %286 : vector<16x32xf32>
    %c0_122 = arith.constant 0 : index
    %c0_123 = arith.constant 0 : index
    %288 = vector.load %arg3[%c0_122, %c0_123] : memref<256x32xf32, #tpu.memory_space<vmem>>, vector<256x32xf32>
    %289 = arith.truncf %287 : vector<16x32xf32> to vector<16x32xbf16>
    %c0_124 = arith.constant 0 : index
    %c0_125 = arith.constant 0 : index
    %c0_126 = arith.constant 0 : index
    %290 = vector.load %arg14[%c0_124, %c0_125, %c0_126] : memref<1x32x32xbf16, #tpu.memory_space<vmem>>, vector<1x32x32xbf16>
    %291 = vector.shape_cast %290 : vector<1x32x32xbf16> to vector<32x32xbf16>
    %cst_127 = arith.constant dense<0.000000e+00> : vector<16x32xf32>
    %292 = tpu.matmul %289, %291, %cst_127 {dimension_numbers = #tpu.dot_dimension_numbers<[1], [0], [0], [1], [0, 0, 1, 1], [], []>} : vector<16x32xbf16>, vector<32x32xbf16>, vector<16x32xf32> -> vector<16x32xf32>
    %293 = arith.truncf %292 : vector<16x32xf32> to vector<16x32xbf16>
    %294 = arith.truncf %288 : vector<256x32xf32> to vector<256x32xbf16>
    %c0_128 = arith.constant 0 : index
    %c0_129 = arith.constant 0 : index
    %c0_130 = arith.constant 0 : index
    %295 = vector.load %arg15[%c0_128, %c0_129, %c0_130] : memref<1x32x32xbf16, #tpu.memory_space<vmem>>, vector<1x32x32xbf16>
    %296 = vector.shape_cast %295 : vector<1x32x32xbf16> to vector<32x32xbf16>
    %cst_131 = arith.constant dense<0.000000e+00> : vector<256x32xf32>
    %297 = tpu.matmul %294, %296, %cst_131 {dimension_numbers = #tpu.dot_dimension_numbers<[1], [0], [0], [1], [0, 0, 1, 1], [], []>} : vector<256x32xbf16>, vector<32x32xbf16>, vector<256x32xf32> -> vector<256x32xf32>
    %298 = arith.truncf %297 : vector<256x32xf32> to vector<256x32xbf16>
    %299 = arith.truncf %288 : vector<256x32xf32> to vector<256x32xbf16>
    %c0_132 = arith.constant 0 : index
    %c0_133 = arith.constant 0 : index
    %c0_134 = arith.constant 0 : index
    %300 = vector.load %arg16[%c0_132, %c0_133, %c0_134] : memref<1x32x32xbf16, #tpu.memory_space<vmem>>, vector<1x32x32xbf16>
    %301 = vector.shape_cast %300 : vector<1x32x32xbf16> to vector<32x32xbf16>
    %cst_135 = arith.constant dense<0.000000e+00> : vector<256x32xf32>
    %302 = tpu.matmul %299, %301, %cst_135 {dimension_numbers = #tpu.dot_dimension_numbers<[1], [0], [0], [1], [0, 0, 1, 1], [], []>} : vector<256x32xbf16>, vector<32x32xbf16>, vector<256x32xf32> -> vector<256x32xf32>
    %303 = arith.truncf %302 : vector<256x32xf32> to vector<256x32xbf16>
    %304 = tpu.iota {dimensions = array<i32: 1>} : vector<8x128xi32>
    %c12_i32 = arith.constant 12 : i32
    %305 = vector.broadcast %c12_i32 : i32 to vector<8x128xi32>
    %306 = arith.cmpi slt, %304, %305 : vector<8x128xi32>
    %307 = vector.extract_strided_slice %293 {offsets = [0, 0], sizes = [8, 8], strides = [1, 1]} : vector<16x32xbf16> to vector<8x8xbf16>
    %308 = vector.extract_strided_slice %298 {offsets = [0, 0], sizes = [128, 8], strides = [1, 1]} : vector<256x32xbf16> to vector<128x8xbf16>
    %cst_136 = arith.constant dense<0.000000e+00> : vector<8x128xf32>
    %309 = tpu.matmul %307, %308, %cst_136 {dimension_numbers = #tpu.dot_dimension_numbers<[1], [1], [0], [0], [0, 0, 1, 0], [], []>} : vector<8x8xbf16>, vector<128x8xbf16>, vector<8x128xf32> -> vector<8x128xf32>
    %cst_137 = arith.constant -1.000000e+30 : f32
    %310 = vector.broadcast %cst_137 : f32 to vector<8x128xf32>
    %311 = arith.select %306, %309, %310 : vector<8x128xi1>, vector<8x128xf32>
    %cst_138 = arith.constant dense<0xFF800000> : vector<8xf32>
    %312 = vector.multi_reduction <maximumf>, %311, %cst_138 [1] : vector<8x128xf32> to vector<8xf32>
    %313 = vector.shape_cast %312 : vector<8xf32> to vector<8x1xf32>
    %314 = vector.broadcast %313 : vector<8x1xf32> to vector<8x128xf32>
    %315 = arith.subf %311, %314 : vector<8x128xf32>
    %316 = math.exp %315 : vector<8x128xf32>
    %cst_139 = arith.constant dense<0.000000e+00> : vector<8xf32>
    %317 = vector.multi_reduction <add>, %316, %cst_139 [1] : vector<8x128xf32> to vector<8xf32>
    %318 = vector.shape_cast %317 : vector<8xf32> to vector<8x1xf32>
    %319 = tpu.reciprocal %318 {approx = true} : vector<8x1xf32> -> vector<8x1xf32>
    %320 = vector.broadcast %319 : vector<8x1xf32> to vector<8x128xf32>
    %321 = arith.mulf %316, %320 : vector<8x128xf32>
    %322 = arith.truncf %321 : vector<8x128xf32> to vector<8x128xbf16>
    %323 = vector.extract_strided_slice %303 {offsets = [0, 0], sizes = [128, 8], strides = [1, 1]} : vector<256x32xbf16> to vector<128x8xbf16>
    %cst_140 = arith.constant dense<0.000000e+00> : vector<8x8xf32>
    %324 = tpu.matmul %322, %323, %cst_140 {dimension_numbers = #tpu.dot_dimension_numbers<[1], [0], [0], [1], [0, 0, 1, 1], [], []>} : vector<8x128xbf16>, vector<128x8xbf16>, vector<8x8xf32> -> vector<8x8xf32>
    %c0_141 = arith.constant 0 : index
    %c0_142 = arith.constant 0 : index
    %325 = vector.load %arg27[%c0_141, %c0_142] : memref<16x32xf32, #tpu.memory_space<vmem>>, vector<8x8xf32>
    tpu.vector_store %arg27[%c0_141, %c0_142], %324 {strides = array<i32>} : memref<16x32xf32, #tpu.memory_space<vmem>>, vector<8x8xf32>,
    %326 = vector.extract_strided_slice %293 {offsets = [0, 8], sizes = [8, 8], strides = [1, 1]} : vector<16x32xbf16> to vector<8x8xbf16>
    %327 = vector.extract_strided_slice %298 {offsets = [0, 8], sizes = [128, 8], strides = [1, 1]} : vector<256x32xbf16> to vector<128x8xbf16>
    %cst_143 = arith.constant dense<0.000000e+00> : vector<8x128xf32>
    %328 = tpu.matmul %326, %327, %cst_143 {dimension_numbers = #tpu.dot_dimension_numbers<[1], [1], [0], [0], [0, 0, 1, 0], [], []>} : vector<8x8xbf16>, vector<128x8xbf16>, vector<8x128xf32> -> vector<8x128xf32>
    %cst_144 = arith.constant -1.000000e+30 : f32
    %329 = vector.broadcast %cst_144 : f32 to vector<8x128xf32>
    %330 = arith.select %306, %328, %329 : vector<8x128xi1>, vector<8x128xf32>
    %cst_145 = arith.constant dense<0xFF800000> : vector<8xf32>
    %331 = vector.multi_reduction <maximumf>, %330, %cst_145 [1] : vector<8x128xf32> to vector<8xf32>
    %332 = vector.shape_cast %331 : vector<8xf32> to vector<8x1xf32>
    %333 = vector.broadcast %332 : vector<8x1xf32> to vector<8x128xf32>
    %334 = arith.subf %330, %333 : vector<8x128xf32>
    %335 = math.exp %334 : vector<8x128xf32>
    %cst_146 = arith.constant dense<0.000000e+00> : vector<8xf32>
    %336 = vector.multi_reduction <add>, %335, %cst_146 [1] : vector<8x128xf32> to vector<8xf32>
    %337 = vector.shape_cast %336 : vector<8xf32> to vector<8x1xf32>
    %338 = tpu.reciprocal %337 {approx = true} : vector<8x1xf32> -> vector<8x1xf32>
    %339 = vector.broadcast %338 : vector<8x1xf32> to vector<8x128xf32>
    %340 = arith.mulf %335, %339 : vector<8x128xf32>
    %341 = arith.truncf %340 : vector<8x128xf32> to vector<8x128xbf16>
    %342 = vector.extract_strided_slice %303 {offsets = [0, 8], sizes = [128, 8], strides = [1, 1]} : vector<256x32xbf16> to vector<128x8xbf16>
    %cst_147 = arith.constant dense<0.000000e+00> : vector<8x8xf32>
    %343 = tpu.matmul %341, %342, %cst_147 {dimension_numbers = #tpu.dot_dimension_numbers<[1], [0], [0], [1], [0, 0, 1, 1], [], []>} : vector<8x128xbf16>, vector<128x8xbf16>, vector<8x8xf32> -> vector<8x8xf32>
    %c0_148 = arith.constant 0 : index
    %c8_149 = arith.constant 8 : index
    %344 = vector.load %arg27[%c0_148, %c8_149] : memref<16x32xf32, #tpu.memory_space<vmem>>, vector<8x8xf32>
    tpu.vector_store %arg27[%c0_148, %c8_149], %343 {strides = array<i32>} : memref<16x32xf32, #tpu.memory_space<vmem>>, vector<8x8xf32>,
    %345 = vector.extract_strided_slice %293 {offsets = [0, 16], sizes = [8, 8], strides = [1, 1]} : vector<16x32xbf16> to vector<8x8xbf16>
    %346 = vector.extract_strided_slice %298 {offsets = [0, 16], sizes = [128, 8], strides = [1, 1]} : vector<256x32xbf16> to vector<128x8xbf16>
    %cst_150 = arith.constant dense<0.000000e+00> : vector<8x128xf32>
    %347 = tpu.matmul %345, %346, %cst_150 {dimension_numbers = #tpu.dot_dimension_numbers<[1], [1], [0], [0], [0, 0, 1, 0], [], []>} : vector<8x8xbf16>, vector<128x8xbf16>, vector<8x128xf32> -> vector<8x128xf32>
    %cst_151 = arith.constant -1.000000e+30 : f32
    %348 = vector.broadcast %cst_151 : f32 to vector<8x128xf32>
    %349 = arith.select %306, %347, %348 : vector<8x128xi1>, vector<8x128xf32>
    %cst_152 = arith.constant dense<0xFF800000> : vector<8xf32>
    %350 = vector.multi_reduction <maximumf>, %349, %cst_152 [1] : vector<8x128xf32> to vector<8xf32>
    %351 = vector.shape_cast %350 : vector<8xf32> to vector<8x1xf32>
    %352 = vector.broadcast %351 : vector<8x1xf32> to vector<8x128xf32>
    %353 = arith.subf %349, %352 : vector<8x128xf32>
    %354 = math.exp %353 : vector<8x128xf32>
    %cst_153 = arith.constant dense<0.000000e+00> : vector<8xf32>
    %355 = vector.multi_reduction <add>, %354, %cst_153 [1] : vector<8x128xf32> to vector<8xf32>
    %356 = vector.shape_cast %355 : vector<8xf32> to vector<8x1xf32>
    %357 = tpu.reciprocal %356 {approx = true} : vector<8x1xf32> -> vector<8x1xf32>
    %358 = vector.broadcast %357 : vector<8x1xf32> to vector<8x128xf32>
    %359 = arith.mulf %354, %358 : vector<8x128xf32>
    %360 = arith.truncf %359 : vector<8x128xf32> to vector<8x128xbf16>
    %361 = vector.extract_strided_slice %303 {offsets = [0, 16], sizes = [128, 8], strides = [1, 1]} : vector<256x32xbf16> to vector<128x8xbf16>
    %cst_154 = arith.constant dense<0.000000e+00> : vector<8x8xf32>
    %362 = tpu.matmul %360, %361, %cst_154 {dimension_numbers = #tpu.dot_dimension_numbers<[1], [0], [0], [1], [0, 0, 1, 1], [], []>} : vector<8x128xbf16>, vector<128x8xbf16>, vector<8x8xf32> -> vector<8x8xf32>
    %c0_155 = arith.constant 0 : index
    %c16_156 = arith.constant 16 : index
    %363 = vector.load %arg27[%c0_155, %c16_156] : memref<16x32xf32, #tpu.memory_space<vmem>>, vector<8x8xf32>
    tpu.vector_store %arg27[%c0_155, %c16_156], %362 {strides = array<i32>} : memref<16x32xf32, #tpu.memory_space<vmem>>, vector<8x8xf32>,
    %364 = vector.extract_strided_slice %293 {offsets = [0, 24], sizes = [8, 8], strides = [1, 1]} : vector<16x32xbf16> to vector<8x8xbf16>
    %365 = vector.extract_strided_slice %298 {offsets = [0, 24], sizes = [128, 8], strides = [1, 1]} : vector<256x32xbf16> to vector<128x8xbf16>
    %cst_157 = arith.constant dense<0.000000e+00> : vector<8x128xf32>
    %366 = tpu.matmul %364, %365, %cst_157 {dimension_numbers = #tpu.dot_dimension_numbers<[1], [1], [0], [0], [0, 0, 1, 0], [], []>} : vector<8x8xbf16>, vector<128x8xbf16>, vector<8x128xf32> -> vector<8x128xf32>
    %cst_158 = arith.constant -1.000000e+30 : f32
    %367 = vector.broadcast %cst_158 : f32 to vector<8x128xf32>
    %368 = arith.select %306, %366, %367 : vector<8x128xi1>, vector<8x128xf32>
    %cst_159 = arith.constant dense<0xFF800000> : vector<8xf32>
    %369 = vector.multi_reduction <maximumf>, %368, %cst_159 [1] : vector<8x128xf32> to vector<8xf32>
    %370 = vector.shape_cast %369 : vector<8xf32> to vector<8x1xf32>
    %371 = vector.broadcast %370 : vector<8x1xf32> to vector<8x128xf32>
    %372 = arith.subf %368, %371 : vector<8x128xf32>
    %373 = math.exp %372 : vector<8x128xf32>
    %cst_160 = arith.constant dense<0.000000e+00> : vector<8xf32>
    %374 = vector.multi_reduction <add>, %373, %cst_160 [1] : vector<8x128xf32> to vector<8xf32>
    %375 = vector.shape_cast %374 : vector<8xf32> to vector<8x1xf32>
    %376 = tpu.reciprocal %375 {approx = true} : vector<8x1xf32> -> vector<8x1xf32>
    %377 = vector.broadcast %376 : vector<8x1xf32> to vector<8x128xf32>
    %378 = arith.mulf %373, %377 : vector<8x128xf32>
    %379 = arith.truncf %378 : vector<8x128xf32> to vector<8x128xbf16>
    %380 = vector.extract_strided_slice %303 {offsets = [0, 24], sizes = [128, 8], strides = [1, 1]} : vector<256x32xbf16> to vector<128x8xbf16>
    %cst_161 = arith.constant dense<0.000000e+00> : vector<8x8xf32>
    %381 = tpu.matmul %379, %380, %cst_161 {dimension_numbers = #tpu.dot_dimension_numbers<[1], [0], [0], [1], [0, 0, 1, 1], [], []>} : vector<8x128xbf16>, vector<128x8xbf16>, vector<8x8xf32> -> vector<8x8xf32>
    %c0_162 = arith.constant 0 : index
    %c24_163 = arith.constant 24 : index
    %382 = vector.load %arg27[%c0_162, %c24_163] : memref<16x32xf32, #tpu.memory_space<vmem>>, vector<8x8xf32>
    tpu.vector_store %arg27[%c0_162, %c24_163], %381 {strides = array<i32>} : memref<16x32xf32, #tpu.memory_space<vmem>>, vector<8x8xf32>,
    %383 = vector.extract_strided_slice %293 {offsets = [8, 0], sizes = [8, 8], strides = [1, 1]} : vector<16x32xbf16> to vector<8x8xbf16>
    %384 = vector.extract_strided_slice %298 {offsets = [128, 0], sizes = [128, 8], strides = [1, 1]} : vector<256x32xbf16> to vector<128x8xbf16>
    %cst_164 = arith.constant dense<0.000000e+00> : vector<8x128xf32>
    %385 = tpu.matmul %383, %384, %cst_164 {dimension_numbers = #tpu.dot_dimension_numbers<[1], [1], [0], [0], [0, 0, 1, 0], [], []>} : vector<8x8xbf16>, vector<128x8xbf16>, vector<8x128xf32> -> vector<8x128xf32>
    %cst_165 = arith.constant -1.000000e+30 : f32
    %386 = vector.broadcast %cst_165 : f32 to vector<8x128xf32>
    %387 = arith.select %306, %385, %386 : vector<8x128xi1>, vector<8x128xf32>
    %cst_166 = arith.constant dense<0xFF800000> : vector<8xf32>
    %388 = vector.multi_reduction <maximumf>, %387, %cst_166 [1] : vector<8x128xf32> to vector<8xf32>
    %389 = vector.shape_cast %388 : vector<8xf32> to vector<8x1xf32>
    %390 = vector.broadcast %389 : vector<8x1xf32> to vector<8x128xf32>
    %391 = arith.subf %387, %390 : vector<8x128xf32>
    %392 = math.exp %391 : vector<8x128xf32>
    %cst_167 = arith.constant dense<0.000000e+00> : vector<8xf32>
    %393 = vector.multi_reduction <add>, %392, %cst_167 [1] : vector<8x128xf32> to vector<8xf32>
    %394 = vector.shape_cast %393 : vector<8xf32> to vector<8x1xf32>
    %395 = tpu.reciprocal %394 {approx = true} : vector<8x1xf32> -> vector<8x1xf32>
    %396 = vector.broadcast %395 : vector<8x1xf32> to vector<8x128xf32>
    %397 = arith.mulf %392, %396 : vector<8x128xf32>
    %398 = arith.truncf %397 : vector<8x128xf32> to vector<8x128xbf16>
    %399 = vector.extract_strided_slice %303 {offsets = [128, 0], sizes = [128, 8], strides = [1, 1]} : vector<256x32xbf16> to vector<128x8xbf16>
    %cst_168 = arith.constant dense<0.000000e+00> : vector<8x8xf32>
    %400 = tpu.matmul %398, %399, %cst_168 {dimension_numbers = #tpu.dot_dimension_numbers<[1], [0], [0], [1], [0, 0, 1, 1], [], []>} : vector<8x128xbf16>, vector<128x8xbf16>, vector<8x8xf32> -> vector<8x8xf32>
    %c8_169 = arith.constant 8 : index
    %c0_170 = arith.constant 0 : index
    %401 = vector.load %arg27[%c8_169, %c0_170] : memref<16x32xf32, #tpu.memory_space<vmem>>, vector<8x8xf32>
    tpu.vector_store %arg27[%c8_169, %c0_170], %400 {strides = array<i32>} : memref<16x32xf32, #tpu.memory_space<vmem>>, vector<8x8xf32>,
    %402 = vector.extract_strided_slice %293 {offsets = [8, 8], sizes = [8, 8], strides = [1, 1]} : vector<16x32xbf16> to vector<8x8xbf16>
    %403 = vector.extract_strided_slice %298 {offsets = [128, 8], sizes = [128, 8], strides = [1, 1]} : vector<256x32xbf16> to vector<128x8xbf16>
    %cst_171 = arith.constant dense<0.000000e+00> : vector<8x128xf32>
    %404 = tpu.matmul %402, %403, %cst_171 {dimension_numbers = #tpu.dot_dimension_numbers<[1], [1], [0], [0], [0, 0, 1, 0], [], []>} : vector<8x8xbf16>, vector<128x8xbf16>, vector<8x128xf32> -> vector<8x128xf32>
    %cst_172 = arith.constant -1.000000e+30 : f32
    %405 = vector.broadcast %cst_172 : f32 to vector<8x128xf32>
    %406 = arith.select %306, %404, %405 : vector<8x128xi1>, vector<8x128xf32>
    %cst_173 = arith.constant dense<0xFF800000> : vector<8xf32>
    %407 = vector.multi_reduction <maximumf>, %406, %cst_173 [1] : vector<8x128xf32> to vector<8xf32>
    %408 = vector.shape_cast %407 : vector<8xf32> to vector<8x1xf32>
    %409 = vector.broadcast %408 : vector<8x1xf32> to vector<8x128xf32>
    %410 = arith.subf %406, %409 : vector<8x128xf32>
    %411 = math.exp %410 : vector<8x128xf32>
    %cst_174 = arith.constant dense<0.000000e+00> : vector<8xf32>
    %412 = vector.multi_reduction <add>, %411, %cst_174 [1] : vector<8x128xf32> to vector<8xf32>
    %413 = vector.shape_cast %412 : vector<8xf32> to vector<8x1xf32>
    %414 = tpu.reciprocal %413 {approx = true} : vector<8x1xf32> -> vector<8x1xf32>
    %415 = vector.broadcast %414 : vector<8x1xf32> to vector<8x128xf32>
    %416 = arith.mulf %411, %415 : vector<8x128xf32>
    %417 = arith.truncf %416 : vector<8x128xf32> to vector<8x128xbf16>
    %418 = vector.extract_strided_slice %303 {offsets = [128, 8], sizes = [128, 8], strides = [1, 1]} : vector<256x32xbf16> to vector<128x8xbf16>
    %cst_175 = arith.constant dense<0.000000e+00> : vector<8x8xf32>
    %419 = tpu.matmul %417, %418, %cst_175 {dimension_numbers = #tpu.dot_dimension_numbers<[1], [0], [0], [1], [0, 0, 1, 1], [], []>} : vector<8x128xbf16>, vector<128x8xbf16>, vector<8x8xf32> -> vector<8x8xf32>
    %c8_176 = arith.constant 8 : index
    %c8_177 = arith.constant 8 : index
    %420 = vector.load %arg27[%c8_176, %c8_177] : memref<16x32xf32, #tpu.memory_space<vmem>>, vector<8x8xf32>
    tpu.vector_store %arg27[%c8_176, %c8_177], %419 {strides = array<i32>} : memref<16x32xf32, #tpu.memory_space<vmem>>, vector<8x8xf32>,
    %421 = vector.extract_strided_slice %293 {offsets = [8, 16], sizes = [8, 8], strides = [1, 1]} : vector<16x32xbf16> to vector<8x8xbf16>
    %422 = vector.extract_strided_slice %298 {offsets = [128, 16], sizes = [128, 8], strides = [1, 1]} : vector<256x32xbf16> to vector<128x8xbf16>
    %cst_178 = arith.constant dense<0.000000e+00> : vector<8x128xf32>
    %423 = tpu.matmul %421, %422, %cst_178 {dimension_numbers = #tpu.dot_dimension_numbers<[1], [1], [0], [0], [0, 0, 1, 0], [], []>} : vector<8x8xbf16>, vector<128x8xbf16>, vector<8x128xf32> -> vector<8x128xf32>
    %cst_179 = arith.constant -1.000000e+30 : f32
    %424 = vector.broadcast %cst_179 : f32 to vector<8x128xf32>
    %425 = arith.select %306, %423, %424 : vector<8x128xi1>, vector<8x128xf32>
    %cst_180 = arith.constant dense<0xFF800000> : vector<8xf32>
    %426 = vector.multi_reduction <maximumf>, %425, %cst_180 [1] : vector<8x128xf32> to vector<8xf32>
    %427 = vector.shape_cast %426 : vector<8xf32> to vector<8x1xf32>
    %428 = vector.broadcast %427 : vector<8x1xf32> to vector<8x128xf32>
    %429 = arith.subf %425, %428 : vector<8x128xf32>
    %430 = math.exp %429 : vector<8x128xf32>
    %cst_181 = arith.constant dense<0.000000e+00> : vector<8xf32>
    %431 = vector.multi_reduction <add>, %430, %cst_181 [1] : vector<8x128xf32> to vector<8xf32>
    %432 = vector.shape_cast %431 : vector<8xf32> to vector<8x1xf32>
    %433 = tpu.reciprocal %432 {approx = true} : vector<8x1xf32> -> vector<8x1xf32>
    %434 = vector.broadcast %433 : vector<8x1xf32> to vector<8x128xf32>
    %435 = arith.mulf %430, %434 : vector<8x128xf32>
    %436 = arith.truncf %435 : vector<8x128xf32> to vector<8x128xbf16>
    %437 = vector.extract_strided_slice %303 {offsets = [128, 16], sizes = [128, 8], strides = [1, 1]} : vector<256x32xbf16> to vector<128x8xbf16>
    %cst_182 = arith.constant dense<0.000000e+00> : vector<8x8xf32>
    %438 = tpu.matmul %436, %437, %cst_182 {dimension_numbers = #tpu.dot_dimension_numbers<[1], [0], [0], [1], [0, 0, 1, 1], [], []>} : vector<8x128xbf16>, vector<128x8xbf16>, vector<8x8xf32> -> vector<8x8xf32>
    %c8_183 = arith.constant 8 : index
    %c16_184 = arith.constant 16 : index
    %439 = vector.load %arg27[%c8_183, %c16_184] : memref<16x32xf32, #tpu.memory_space<vmem>>, vector<8x8xf32>
    tpu.vector_store %arg27[%c8_183, %c16_184], %438 {strides = array<i32>} : memref<16x32xf32, #tpu.memory_space<vmem>>, vector<8x8xf32>,
    %440 = vector.extract_strided_slice %293 {offsets = [8, 24], sizes = [8, 8], strides = [1, 1]} : vector<16x32xbf16> to vector<8x8xbf16>
    %441 = vector.extract_strided_slice %298 {offsets = [128, 24], sizes = [128, 8], strides = [1, 1]} : vector<256x32xbf16> to vector<128x8xbf16>
    %cst_185 = arith.constant dense<0.000000e+00> : vector<8x128xf32>
    %442 = tpu.matmul %440, %441, %cst_185 {dimension_numbers = #tpu.dot_dimension_numbers<[1], [1], [0], [0], [0, 0, 1, 0], [], []>} : vector<8x8xbf16>, vector<128x8xbf16>, vector<8x128xf32> -> vector<8x128xf32>
    %cst_186 = arith.constant -1.000000e+30 : f32
    %443 = vector.broadcast %cst_186 : f32 to vector<8x128xf32>
    %444 = arith.select %306, %442, %443 : vector<8x128xi1>, vector<8x128xf32>
    %cst_187 = arith.constant dense<0xFF800000> : vector<8xf32>
    %445 = vector.multi_reduction <maximumf>, %444, %cst_187 [1] : vector<8x128xf32> to vector<8xf32>
    %446 = vector.shape_cast %445 : vector<8xf32> to vector<8x1xf32>
    %447 = vector.broadcast %446 : vector<8x1xf32> to vector<8x128xf32>
    %448 = arith.subf %444, %447 : vector<8x128xf32>
    %449 = math.exp %448 : vector<8x128xf32>
    %cst_188 = arith.constant dense<0.000000e+00> : vector<8xf32>
    %450 = vector.multi_reduction <add>, %449, %cst_188 [1] : vector<8x128xf32> to vector<8xf32>
    %451 = vector.shape_cast %450 : vector<8xf32> to vector<8x1xf32>
    %452 = tpu.reciprocal %451 {approx = true} : vector<8x1xf32> -> vector<8x1xf32>
    %453 = vector.broadcast %452 : vector<8x1xf32> to vector<8x128xf32>
    %454 = arith.mulf %449, %453 : vector<8x128xf32>
    %455 = arith.truncf %454 : vector<8x128xf32> to vector<8x128xbf16>
    %456 = vector.extract_strided_slice %303 {offsets = [128, 24], sizes = [128, 8], strides = [1, 1]} : vector<256x32xbf16> to vector<128x8xbf16>
    %cst_189 = arith.constant dense<0.000000e+00> : vector<8x8xf32>
    %457 = tpu.matmul %455, %456, %cst_189 {dimension_numbers = #tpu.dot_dimension_numbers<[1], [0], [0], [1], [0, 0, 1, 1], [], []>} : vector<8x128xbf16>, vector<128x8xbf16>, vector<8x8xf32> -> vector<8x8xf32>
    %c8_190 = arith.constant 8 : index
    %c24_191 = arith.constant 24 : index
    %458 = vector.load %arg27[%c8_190, %c24_191] : memref<16x32xf32, #tpu.memory_space<vmem>>, vector<8x8xf32>
    tpu.vector_store %arg27[%c8_190, %c24_191], %457 {strides = array<i32>} : memref<16x32xf32, #tpu.memory_space<vmem>>, vector<8x8xf32>,
    %c0_192 = arith.constant 0 : index
    %c0_193 = arith.constant 0 : index
    %459 = vector.load %arg27[%c0_192, %c0_193] : memref<16x32xf32, #tpu.memory_space<vmem>>, vector<16x32xf32>
    %460 = tpu.iota {dimensions = array<i32: 0>} : vector<16x1xi32>
    %c8_i32_194 = arith.constant 8 : i32
    %c0_i32_195 = arith.constant 0 : i32
    %461 = arith.cmpi eq, %c8_i32_194, %c0_i32_195 : i32
    %c1_i32_196 = arith.constant 1 : i32
    %462 = arith.select %461, %c1_i32_196, %c8_i32_194 : i32
    %463 = vector.broadcast %462 : i32 to vector<16x1xi32>
    %464 = arith.remsi %460, %463 : vector<16x1xi32>
    %c0_i32_197 = arith.constant 0 : i32
    %465 = vector.broadcast %c0_i32_197 : i32 to vector<16x1xi32>
    %466 = arith.cmpi ne, %464, %465 : vector<16x1xi32>
    %c0_i32_198 = arith.constant 0 : i32
    %467 = vector.broadcast %c0_i32_198 : i32 to vector<16x1xi32>
    %468 = arith.cmpi slt, %464, %467 : vector<16x1xi32>
    %c0_i32_199 = arith.constant 0 : i32
    %469 = arith.cmpi slt, %462, %c0_i32_199 : i32
    %470 = vector.broadcast %469 : i1 to vector<16x1xi1>
    %471 = vector.broadcast %470 : vector<16x1xi1> to vector<16x1xi1>
    %472 = arith.xori %468, %471 : vector<16x1xi1>
    %473 = arith.andi %472, %466 : vector<16x1xi1>
    %474 = vector.broadcast %462 : i32 to vector<16x1xi32>
    %475 = arith.addi %464, %474 : vector<16x1xi32>
    %476 = arith.select %473, %475, %464 : vector<16x1xi1>, vector<16x1xi32>
    %cst_200 = arith.constant 0.000000e+00 : f32
    %477 = vector.broadcast %cst_200 : f32 to vector<16x32xf32>
    %c2_i32_201 = arith.constant 2 : i32
    %478 = tpu.dynamic_rotate %459 by %c2_i32_201 dim 0 : vector<16x32xf32>, i32 -> vector<16x32xf32>
    %c2_i32_202 = arith.constant 2 : i32
    %479 = vector.broadcast %c2_i32_202 : i32 to vector<16x1xi32>
    %480 = arith.cmpi sge, %476, %479 : vector<16x1xi32>
    %cst_203 = arith.constant 0.000000e+00 : f32
    %481 = vector.shape_cast %480 : vector<16x1xi1> to vector<16x1xi1>
    %482 = vector.broadcast %481 : vector<16x1xi1> to vector<16x32xi1>
    %483 = vector.broadcast %cst_203 : f32 to vector<16x32xf32>
    %484 = arith.select %482, %478, %483 : vector<16x32xi1>, vector<16x32xf32>
    %485 = arith.truncf %484 : vector<16x32xf32> to vector<16x32xbf16>
    %c0_204 = arith.constant 0 : index
    %c0_205 = arith.constant 0 : index
    %c0_206 = arith.constant 0 : index
    %c0_207 = arith.constant 0 : index
    %486 = vector.load %arg19[%c0_204, %c0_205, %c0_206, %c0_207] : memref<1x5x32x32xbf16, #tpu.memory_space<vmem>>, vector<1x1x32x32xbf16>
    %487 = vector.shape_cast %486 : vector<1x1x32x32xbf16> to vector<32x32xbf16>
    %cst_208 = arith.constant dense<0.000000e+00> : vector<16x32xf32>
    %488 = tpu.matmul %485, %487, %cst_208 {dimension_numbers = #tpu.dot_dimension_numbers<[1], [0], [0], [1], [0, 0, 1, 1], [], []>} : vector<16x32xbf16>, vector<32x32xbf16>, vector<16x32xf32> -> vector<16x32xf32>
    %489 = arith.addf %477, %488 : vector<16x32xf32>
    %c1_i32_209 = arith.constant 1 : i32
    %490 = tpu.dynamic_rotate %459 by %c1_i32_209 dim 0 : vector<16x32xf32>, i32 -> vector<16x32xf32>
    %c1_i32_210 = arith.constant 1 : i32
    %491 = vector.broadcast %c1_i32_210 : i32 to vector<16x1xi32>
    %492 = arith.cmpi sge, %476, %491 : vector<16x1xi32>
    %cst_211 = arith.constant 0.000000e+00 : f32
    %493 = vector.shape_cast %492 : vector<16x1xi1> to vector<16x1xi1>
    %494 = vector.broadcast %493 : vector<16x1xi1> to vector<16x32xi1>
    %495 = vector.broadcast %cst_211 : f32 to vector<16x32xf32>
    %496 = arith.select %494, %490, %495 : vector<16x32xi1>, vector<16x32xf32>
    %497 = arith.truncf %496 : vector<16x32xf32> to vector<16x32xbf16>
    %c0_212 = arith.constant 0 : index
    %c1_213 = arith.constant 1 : index
    %c0_214 = arith.constant 0 : index
    %c0_215 = arith.constant 0 : index
    %498 = vector.load %arg19[%c0_212, %c1_213, %c0_214, %c0_215] : memref<1x5x32x32xbf16, #tpu.memory_space<vmem>>, vector<1x1x32x32xbf16>
    %499 = vector.shape_cast %498 : vector<1x1x32x32xbf16> to vector<32x32xbf16>
    %cst_216 = arith.constant dense<0.000000e+00> : vector<16x32xf32>
    %500 = tpu.matmul %497, %499, %cst_216 {dimension_numbers = #tpu.dot_dimension_numbers<[1], [0], [0], [1], [0, 0, 1, 1], [], []>} : vector<16x32xbf16>, vector<32x32xbf16>, vector<16x32xf32> -> vector<16x32xf32>
    %501 = arith.addf %489, %500 : vector<16x32xf32>
    %502 = arith.truncf %459 : vector<16x32xf32> to vector<16x32xbf16>
    %c0_217 = arith.constant 0 : index
    %c2_218 = arith.constant 2 : index
    %c0_219 = arith.constant 0 : index
    %c0_220 = arith.constant 0 : index
    %503 = vector.load %arg19[%c0_217, %c2_218, %c0_219, %c0_220] : memref<1x5x32x32xbf16, #tpu.memory_space<vmem>>, vector<1x1x32x32xbf16>
    %504 = vector.shape_cast %503 : vector<1x1x32x32xbf16> to vector<32x32xbf16>
    %cst_221 = arith.constant dense<0.000000e+00> : vector<16x32xf32>
    %505 = tpu.matmul %502, %504, %cst_221 {dimension_numbers = #tpu.dot_dimension_numbers<[1], [0], [0], [1], [0, 0, 1, 1], [], []>} : vector<16x32xbf16>, vector<32x32xbf16>, vector<16x32xf32> -> vector<16x32xf32>
    %506 = arith.addf %501, %505 : vector<16x32xf32>
    %c15_i32_222 = arith.constant 15 : i32
    %507 = tpu.dynamic_rotate %459 by %c15_i32_222 dim 0 : vector<16x32xf32>, i32 -> vector<16x32xf32>
    %c7_i32_223 = arith.constant 7 : i32
    %508 = vector.broadcast %c7_i32_223 : i32 to vector<16x1xi32>
    %509 = arith.cmpi slt, %476, %508 : vector<16x1xi32>
    %cst_224 = arith.constant 0.000000e+00 : f32
    %510 = vector.shape_cast %509 : vector<16x1xi1> to vector<16x1xi1>
    %511 = vector.broadcast %510 : vector<16x1xi1> to vector<16x32xi1>
    %512 = vector.broadcast %cst_224 : f32 to vector<16x32xf32>
    %513 = arith.select %511, %507, %512 : vector<16x32xi1>, vector<16x32xf32>
    %514 = arith.truncf %513 : vector<16x32xf32> to vector<16x32xbf16>
    %c0_225 = arith.constant 0 : index
    %c3_226 = arith.constant 3 : index
    %c0_227 = arith.constant 0 : index
    %c0_228 = arith.constant 0 : index
    %515 = vector.load %arg19[%c0_225, %c3_226, %c0_227, %c0_228] : memref<1x5x32x32xbf16, #tpu.memory_space<vmem>>, vector<1x1x32x32xbf16>
    %516 = vector.shape_cast %515 : vector<1x1x32x32xbf16> to vector<32x32xbf16>
    %cst_229 = arith.constant dense<0.000000e+00> : vector<16x32xf32>
    %517 = tpu.matmul %514, %516, %cst_229 {dimension_numbers = #tpu.dot_dimension_numbers<[1], [0], [0], [1], [0, 0, 1, 1], [], []>} : vector<16x32xbf16>, vector<32x32xbf16>, vector<16x32xf32> -> vector<16x32xf32>
    %518 = arith.addf %506, %517 : vector<16x32xf32>
    %c14_i32_230 = arith.constant 14 : i32
    %519 = tpu.dynamic_rotate %459 by %c14_i32_230 dim 0 : vector<16x32xf32>, i32 -> vector<16x32xf32>
    %c6_i32_231 = arith.constant 6 : i32
    %520 = vector.broadcast %c6_i32_231 : i32 to vector<16x1xi32>
    %521 = arith.cmpi slt, %476, %520 : vector<16x1xi32>
    %cst_232 = arith.constant 0.000000e+00 : f32
    %522 = vector.shape_cast %521 : vector<16x1xi1> to vector<16x1xi1>
    %523 = vector.broadcast %522 : vector<16x1xi1> to vector<16x32xi1>
    %524 = vector.broadcast %cst_232 : f32 to vector<16x32xf32>
    %525 = arith.select %523, %519, %524 : vector<16x32xi1>, vector<16x32xf32>
    %526 = arith.truncf %525 : vector<16x32xf32> to vector<16x32xbf16>
    %c0_233 = arith.constant 0 : index
    %c4_234 = arith.constant 4 : index
    %c0_235 = arith.constant 0 : index
    %c0_236 = arith.constant 0 : index
    %527 = vector.load %arg19[%c0_233, %c4_234, %c0_235, %c0_236] : memref<1x5x32x32xbf16, #tpu.memory_space<vmem>>, vector<1x1x32x32xbf16>
    %528 = vector.shape_cast %527 : vector<1x1x32x32xbf16> to vector<32x32xbf16>
    %cst_237 = arith.constant dense<0.000000e+00> : vector<16x32xf32>
    %529 = tpu.matmul %526, %528, %cst_237 {dimension_numbers = #tpu.dot_dimension_numbers<[1], [0], [0], [1], [0, 0, 1, 1], [], []>} : vector<16x32xbf16>, vector<32x32xbf16>, vector<16x32xf32> -> vector<16x32xf32>
    %530 = arith.addf %518, %529 : vector<16x32xf32>
    %531 = arith.truncf %530 : vector<16x32xf32> to vector<16x32xbf16>
    %c0_238 = arith.constant 0 : index
    %c0_239 = arith.constant 0 : index
    %c0_240 = arith.constant 0 : index
    %532 = vector.load %arg17[%c0_238, %c0_239, %c0_240] : memref<1x32x32xbf16, #tpu.memory_space<vmem>>, vector<1x32x32xbf16>
    %533 = vector.shape_cast %532 : vector<1x32x32xbf16> to vector<32x32xbf16>
    %cst_241 = arith.constant dense<0.000000e+00> : vector<16x32xf32>
    %534 = tpu.matmul %531, %533, %cst_241 {dimension_numbers = #tpu.dot_dimension_numbers<[1], [0], [0], [1], [0, 0, 1, 1], [], []>} : vector<16x32xbf16>, vector<32x32xbf16>, vector<16x32xf32> -> vector<16x32xf32>
    %c0_242 = arith.constant 0 : index
    %c0_243 = arith.constant 0 : index
    %c0_244 = arith.constant 0 : index
    %535 = vector.load %arg18[%c0_242, %c0_243, %c0_244] : memref<1x1x32xf32, #tpu.memory_space<vmem>>, vector<1x1x32xf32>
    %536 = vector.shape_cast %535 : vector<1x1x32xf32> to vector<1x32xf32>
    %537 = vector.broadcast %536 : vector<1x32xf32> to vector<16x32xf32>
    %538 = arith.addf %534, %537 : vector<16x32xf32>
    %539 = arith.addf %261, %538 : vector<16x32xf32>
    %c0_245 = arith.constant 0 : index
    %c0_246 = arith.constant 0 : index
    %c0_247 = arith.constant 0 : index
    %540 = vector.load %arg20[%c0_245, %c0_246, %c0_247] : memref<1x1x32xf32, #tpu.memory_space<vmem>>, vector<1x1x32xf32>
    %541 = vector.shape_cast %540 : vector<1x1x32xf32> to vector<1x32xf32>
    %c0_248 = arith.constant 0 : index
    %c0_249 = arith.constant 0 : index
    %c0_250 = arith.constant 0 : index
    %542 = vector.load %arg21[%c0_248, %c0_249, %c0_250] : memref<1x1x32xf32, #tpu.memory_space<vmem>>, vector<1x1x32xf32>
    %543 = vector.shape_cast %542 : vector<1x1x32xf32> to vector<1x32xf32>
    %cst_251 = arith.constant dense<0.000000e+00> : vector<16xf32>
    %544 = vector.multi_reduction <add>, %539, %cst_251 [1] : vector<16x32xf32> to vector<16xf32>
    %545 = vector.shape_cast %544 : vector<16xf32> to vector<16x1xf32>
    %cst_252 = arith.constant 3.200000e+01 : f32
    %546 = vector.broadcast %cst_252 : f32 to vector<16x1xf32>
    %547 = arith.divf %545, %546 : vector<16x1xf32>
    %548 = vector.broadcast %547 : vector<16x1xf32> to vector<16x32xf32>
    %549 = arith.subf %539, %548 : vector<16x32xf32>
    %550 = arith.mulf %549, %549 : vector<16x32xf32>
    %cst_253 = arith.constant dense<0.000000e+00> : vector<16xf32>
    %551 = vector.multi_reduction <add>, %550, %cst_253 [1] : vector<16x32xf32> to vector<16xf32>
    %552 = vector.shape_cast %551 : vector<16xf32> to vector<16x1xf32>
    %cst_254 = arith.constant 3.200000e+01 : f32
    %553 = vector.broadcast %cst_254 : f32 to vector<16x1xf32>
    %554 = arith.divf %552, %553 : vector<16x1xf32>
    %555 = vector.broadcast %547 : vector<16x1xf32> to vector<16x32xf32>
    %556 = arith.subf %539, %555 : vector<16x32xf32>
    %cst_255 = arith.constant 9.99999974E-6 : f32
    %557 = vector.broadcast %cst_255 : f32 to vector<16x1xf32>
    %558 = arith.addf %554, %557 : vector<16x1xf32>
    %559 = math.rsqrt %558 : vector<16x1xf32>
    %560 = vector.broadcast %559 : vector<16x1xf32> to vector<16x32xf32>
    %561 = arith.mulf %556, %560 : vector<16x32xf32>
    %562 = vector.broadcast %541 : vector<1x32xf32> to vector<16x32xf32>
    %563 = arith.mulf %561, %562 : vector<16x32xf32>
    %564 = vector.broadcast %543 : vector<1x32xf32> to vector<16x32xf32>
    %565 = arith.addf %563, %564 : vector<16x32xf32>
    %566 = arith.truncf %565 : vector<16x32xf32> to vector<16x32xbf16>
    %cst_256 = arith.constant 0.000000e+00 : f32
    %567 = vector.broadcast %cst_256 : f32 to vector<16x32xf32>
    %c0_257 = arith.constant 0 : index
    %c0_258 = arith.constant 0 : index
    %c0_259 = arith.constant 0 : index
    %568 = vector.load %arg22[%c0_257, %c0_258, %c0_259] : memref<1x32x64xbf16, #tpu.memory_space<vmem>>, vector<1x32x64xbf16>
    %569 = vector.shape_cast %568 : vector<1x32x64xbf16> to vector<32x64xbf16>
    %cst_260 = arith.constant dense<0.000000e+00> : vector<16x64xf32>
    %570 = tpu.matmul %566, %569, %cst_260 {dimension_numbers = #tpu.dot_dimension_numbers<[1], [0], [0], [1], [0, 0, 1, 1], [], []>} : vector<16x32xbf16>, vector<32x64xbf16>, vector<16x64xf32> -> vector<16x64xf32>
    %c0_261 = arith.constant 0 : index
    %c0_262 = arith.constant 0 : index
    %c0_263 = arith.constant 0 : index
    %571 = vector.load %arg23[%c0_261, %c0_262, %c0_263] : memref<1x1x64xf32, #tpu.memory_space<vmem>>, vector<1x1x64xf32>
    %572 = vector.shape_cast %571 : vector<1x1x64xf32> to vector<1x64xf32>
    %573 = vector.broadcast %572 : vector<1x64xf32> to vector<16x64xf32>
    %574 = arith.addf %570, %573 : vector<16x64xf32>
    %cst_264 = arith.constant 5.000000e-01 : f32
    %575 = vector.broadcast %cst_264 : f32 to vector<16x64xf32>
    %576 = arith.mulf %575, %574 : vector<16x64xf32>
    %cst_265 = arith.constant 0.707106769 : f32
    %577 = vector.broadcast %cst_265 : f32 to vector<16x64xf32>
    %578 = arith.mulf %574, %577 : vector<16x64xf32>
    %cst_266 = arith.constant 0.000000e+00 : f32
    %579 = vector.broadcast %cst_266 : f32 to vector<16x64xf32>
    %580 = arith.cmpf oge, %578, %579 : vector<16x64xf32>
    %cst_267 = arith.constant 1.000000e+00 : f32
    %cst_268 = arith.constant -1.000000e+00 : f32
    %581 = vector.broadcast %cst_267 : f32 to vector<16x64xf32>
    %582 = vector.broadcast %cst_268 : f32 to vector<16x64xf32>
    %583 = arith.select %580, %581, %582 : vector<16x64xi1>, vector<16x64xf32>
    %584 = math.absf %578 : vector<16x64xf32>
    %cst_269 = arith.constant 0.327591091 : f32
    %585 = vector.broadcast %cst_269 : f32 to vector<16x64xf32>
    %586 = arith.mulf %585, %584 : vector<16x64xf32>
    %cst_270 = arith.constant 1.000000e+00 : f32
    %587 = vector.broadcast %cst_270 : f32 to vector<16x64xf32>
    %588 = arith.addf %587, %586 : vector<16x64xf32>
    %cst_271 = arith.constant 1.000000e+00 : f32
    %589 = vector.broadcast %cst_271 : f32 to vector<16x64xf32>
    %590 = arith.divf %589, %588 : vector<16x64xf32>
    %cst_272 = arith.constant 1.06140542 : f32
    %591 = vector.broadcast %cst_272 : f32 to vector<16x64xf32>
    %592 = arith.mulf %591, %590 : vector<16x64xf32>
    %cst_273 = arith.constant -1.45315206 : f32
    %593 = vector.broadcast %cst_273 : f32 to vector<16x64xf32>
    %594 = arith.addf %592, %593 : vector<16x64xf32>
    %595 = arith.mulf %594, %590 : vector<16x64xf32>
    %cst_274 = arith.constant 1.42141378 : f32
    %596 = vector.broadcast %cst_274 : f32 to vector<16x64xf32>
    %597 = arith.addf %595, %596 : vector<16x64xf32>
    %598 = arith.mulf %597, %590 : vector<16x64xf32>
    %cst_275 = arith.constant -0.284496725 : f32
    %599 = vector.broadcast %cst_275 : f32 to vector<16x64xf32>
    %600 = arith.addf %598, %599 : vector<16x64xf32>
    %601 = arith.mulf %600, %590 : vector<16x64xf32>
    %cst_276 = arith.constant 0.254829586 : f32
    %602 = vector.broadcast %cst_276 : f32 to vector<16x64xf32>
    %603 = arith.addf %601, %602 : vector<16x64xf32>
    %604 = arith.mulf %603, %590 : vector<16x64xf32>
    %cst_277 = arith.constant 0.000000e+00 : f32
    %605 = vector.broadcast %cst_277 : f32 to vector<16x64xf32>
    %606 = arith.subf %605, %584 : vector<16x64xf32>
    %607 = arith.mulf %606, %584 : vector<16x64xf32>
    %608 = math.exp %607 : vector<16x64xf32>
    %609 = arith.mulf %604, %608 : vector<16x64xf32>
    %cst_278 = arith.constant 1.000000e+00 : f32
    %610 = vector.broadcast %cst_278 : f32 to vector<16x64xf32>
    %611 = arith.subf %610, %609 : vector<16x64xf32>
    %612 = arith.mulf %583, %611 : vector<16x64xf32>
    %cst_279 = arith.constant 1.000000e+00 : f32
    %613 = vector.broadcast %cst_279 : f32 to vector<16x64xf32>
    %614 = arith.addf %613, %612 : vector<16x64xf32>
    %615 = arith.mulf %576, %614 : vector<16x64xf32>
    %616 = arith.truncf %615 : vector<16x64xf32> to vector<16x64xbf16>
    %c0_280 = arith.constant 0 : index
    %c0_281 = arith.constant 0 : index
    %c0_282 = arith.constant 0 : index
    %617 = vector.load %arg24[%c0_280, %c0_281, %c0_282] : memref<1x64x32xbf16, #tpu.memory_space<vmem>>, vector<1x64x32xbf16>
    %618 = vector.shape_cast %617 : vector<1x64x32xbf16> to vector<64x32xbf16>
    %cst_283 = arith.constant dense<0.000000e+00> : vector<16x32xf32>
    %619 = tpu.matmul %616, %618, %cst_283 {dimension_numbers = #tpu.dot_dimension_numbers<[1], [0], [0], [1], [0, 0, 1, 1], [], []>} : vector<16x64xbf16>, vector<64x32xbf16>, vector<16x32xf32> -> vector<16x32xf32>
    %620 = arith.addf %567, %619 : vector<16x32xf32>
    %c0_284 = arith.constant 0 : index
    %c0_285 = arith.constant 0 : index
    %c0_286 = arith.constant 0 : index
    %621 = vector.load %arg25[%c0_284, %c0_285, %c0_286] : memref<1x1x32xf32, #tpu.memory_space<vmem>>, vector<1x1x32xf32>
    %622 = vector.shape_cast %621 : vector<1x1x32xf32> to vector<1x32xf32>
    %623 = vector.broadcast %622 : vector<1x32xf32> to vector<16x32xf32>
    %624 = arith.addf %620, %623 : vector<16x32xf32>
    %625 = arith.addf %539, %624 : vector<16x32xf32>
    %c0_287 = arith.constant 0 : index
    %c0_288 = arith.constant 0 : index
    %626 = vector.load %arg26[%c0_287, %c0_288] : memref<16x32xf32, #tpu.memory_space<vmem>>, vector<16x32xf32>
    tpu.vector_store %arg26[%c0_287, %c0_288], %625 {strides = array<i32>} : memref<16x32xf32, #tpu.memory_space<vmem>>, vector<16x32xf32>,
    return
  }
  func.func @transform_0(%arg0: i32, %arg1: i32) -> (i32, i32) {
    %c0_i32 = arith.constant 0 : i32
    %c0_i32_0 = arith.constant 0 : i32
    return %arg0, %c0_i32 : i32, i32
  }
  func.func @transform_1(%arg0: i32, %arg1: i32) -> (i32, i32) {
    %c0_i32 = arith.constant 0 : i32
    %c0_i32_0 = arith.constant 0 : i32
    return %arg0, %c0_i32 : i32, i32
  }
  func.func @transform_2(%arg0: i32, %arg1: i32) -> (i32, i32, i32) {
    %c0_i32 = arith.constant 0 : i32
    %c0_i32_0 = arith.constant 0 : i32
    %c0_i32_1 = arith.constant 0 : i32
    return %arg1, %c0_i32, %c0_i32_0 : i32, i32, i32
  }
  func.func @transform_3(%arg0: i32, %arg1: i32) -> (i32, i32, i32) {
    %c0_i32 = arith.constant 0 : i32
    %c0_i32_0 = arith.constant 0 : i32
    %c0_i32_1 = arith.constant 0 : i32
    return %arg1, %c0_i32, %c0_i32_0 : i32, i32, i32
  }
  func.func @transform_4(%arg0: i32, %arg1: i32) -> (i32, i32, i32) {
    %c0_i32 = arith.constant 0 : i32
    %c0_i32_0 = arith.constant 0 : i32
    %c0_i32_1 = arith.constant 0 : i32
    return %arg1, %c0_i32, %c0_i32_0 : i32, i32, i32
  }
  func.func @transform_5(%arg0: i32, %arg1: i32) -> (i32, i32, i32) {
    %c0_i32 = arith.constant 0 : i32
    %c0_i32_0 = arith.constant 0 : i32
    %c0_i32_1 = arith.constant 0 : i32
    return %arg1, %c0_i32, %c0_i32_0 : i32, i32, i32
  }
  func.func @transform_6(%arg0: i32, %arg1: i32) -> (i32, i32, i32) {
    %c0_i32 = arith.constant 0 : i32
    %c0_i32_0 = arith.constant 0 : i32
    %c0_i32_1 = arith.constant 0 : i32
    return %arg1, %c0_i32, %c0_i32_0 : i32, i32, i32
  }
  func.func @transform_7(%arg0: i32, %arg1: i32) -> (i32, i32, i32) {
    %c0_i32 = arith.constant 0 : i32
    %c0_i32_0 = arith.constant 0 : i32
    %c0_i32_1 = arith.constant 0 : i32
    return %arg1, %c0_i32, %c0_i32_0 : i32, i32, i32
  }
  func.func @transform_8(%arg0: i32, %arg1: i32) -> (i32, i32, i32) {
    %c0_i32 = arith.constant 0 : i32
    %c0_i32_0 = arith.constant 0 : i32
    %c0_i32_1 = arith.constant 0 : i32
    return %arg1, %c0_i32, %c0_i32_0 : i32, i32, i32
  }
  func.func @transform_9(%arg0: i32, %arg1: i32) -> (i32, i32, i32, i32) {
    %c0_i32 = arith.constant 0 : i32
    %c0_i32_0 = arith.constant 0 : i32
    %c0_i32_1 = arith.constant 0 : i32
    %c0_i32_2 = arith.constant 0 : i32
    return %arg1, %c0_i32, %c0_i32_0, %c0_i32_1 : i32, i32, i32, i32
  }
  func.func @transform_10(%arg0: i32, %arg1: i32) -> (i32, i32, i32) {
    %c0_i32 = arith.constant 0 : i32
    %c0_i32_0 = arith.constant 0 : i32
    %c0_i32_1 = arith.constant 0 : i32
    return %arg1, %c0_i32, %c0_i32_0 : i32, i32, i32
  }
  func.func @transform_11(%arg0: i32, %arg1: i32) -> (i32, i32, i32) {
    %c0_i32 = arith.constant 0 : i32
    %c0_i32_0 = arith.constant 0 : i32
    %c0_i32_1 = arith.constant 0 : i32
    return %arg1, %c0_i32, %c0_i32_0 : i32, i32, i32
  }
  func.func @transform_12(%arg0: i32, %arg1: i32) -> (i32, i32, i32) {
    %c0_i32 = arith.constant 0 : i32
    %c0_i32_0 = arith.constant 0 : i32
    %c0_i32_1 = arith.constant 0 : i32
    return %arg1, %c0_i32, %c0_i32_0 : i32, i32, i32
  }
  func.func @transform_13(%arg0: i32, %arg1: i32) -> (i32, i32, i32) {
    %c0_i32 = arith.constant 0 : i32
    %c0_i32_0 = arith.constant 0 : i32
    %c0_i32_1 = arith.constant 0 : i32
    return %arg1, %c0_i32, %c0_i32_0 : i32, i32, i32
  }
  func.func @transform_14(%arg0: i32, %arg1: i32) -> (i32, i32, i32) {
    %c0_i32 = arith.constant 0 : i32
    %c0_i32_0 = arith.constant 0 : i32
    %c0_i32_1 = arith.constant 0 : i32
    return %arg1, %c0_i32, %c0_i32_0 : i32, i32, i32
  }
  func.func @transform_15(%arg0: i32, %arg1: i32) -> (i32, i32, i32) {
    %c0_i32 = arith.constant 0 : i32
    %c0_i32_0 = arith.constant 0 : i32
    %c0_i32_1 = arith.constant 0 : i32
    return %arg1, %c0_i32, %c0_i32_0 : i32, i32, i32
  }
  func.func @transform_16(%arg0: i32, %arg1: i32) -> (i32, i32, i32) {
    %c0_i32 = arith.constant 0 : i32
    %c0_i32_0 = arith.constant 0 : i32
    %c0_i32_1 = arith.constant 0 : i32
    return %arg1, %c0_i32, %c0_i32_0 : i32, i32, i32
  }
  func.func @transform_17(%arg0: i32, %arg1: i32) -> (i32, i32, i32, i32) {
    %c0_i32 = arith.constant 0 : i32
    %c0_i32_0 = arith.constant 0 : i32
    %c0_i32_1 = arith.constant 0 : i32
    %c0_i32_2 = arith.constant 0 : i32
    return %arg1, %c0_i32, %c0_i32_0, %c0_i32_1 : i32, i32, i32, i32
  }
  func.func @transform_18(%arg0: i32, %arg1: i32) -> (i32, i32, i32) {
    %c0_i32 = arith.constant 0 : i32
    %c0_i32_0 = arith.constant 0 : i32
    %c0_i32_1 = arith.constant 0 : i32
    return %arg1, %c0_i32, %c0_i32_0 : i32, i32, i32
  }
  func.func @transform_19(%arg0: i32, %arg1: i32) -> (i32, i32, i32) {
    %c0_i32 = arith.constant 0 : i32
    %c0_i32_0 = arith.constant 0 : i32
    %c0_i32_1 = arith.constant 0 : i32
    return %arg1, %c0_i32, %c0_i32_0 : i32, i32, i32
  }
  func.func @transform_20(%arg0: i32, %arg1: i32) -> (i32, i32, i32) {
    %c0_i32 = arith.constant 0 : i32
    %c0_i32_0 = arith.constant 0 : i32
    %c0_i32_1 = arith.constant 0 : i32
    return %arg1, %c0_i32, %c0_i32_0 : i32, i32, i32
  }
  func.func @transform_21(%arg0: i32, %arg1: i32) -> (i32, i32, i32) {
    %c0_i32 = arith.constant 0 : i32
    %c0_i32_0 = arith.constant 0 : i32
    %c0_i32_1 = arith.constant 0 : i32
    return %arg1, %c0_i32, %c0_i32_0 : i32, i32, i32
  }
  func.func @transform_22(%arg0: i32, %arg1: i32) -> (i32, i32, i32) {
    %c0_i32 = arith.constant 0 : i32
    %c0_i32_0 = arith.constant 0 : i32
    %c0_i32_1 = arith.constant 0 : i32
    return %arg1, %c0_i32, %c0_i32_0 : i32, i32, i32
  }
  func.func @transform_23(%arg0: i32, %arg1: i32) -> (i32, i32, i32) {
    %c0_i32 = arith.constant 0 : i32
    %c0_i32_0 = arith.constant 0 : i32
    %c0_i32_1 = arith.constant 0 : i32
    return %arg1, %c0_i32, %c0_i32_0 : i32, i32, i32
  }
  func.func @transform_24(%arg0: i32, %arg1: i32) -> (i32, i32) {
    %c0_i32 = arith.constant 0 : i32
    %c0_i32_0 = arith.constant 0 : i32
    return %arg0, %c0_i32 : i32, i32
  }
}

</mosaic_0001>

<llo_original>
// kernel: tpu_custom_call.1
$region0: #{tpu_custom_call.1}
  #allocation0 [shape = 'u32[]', space=smem, size = 0x4, offset = 0x4, fixed_abs, tag = 'smem constant byte address 0x4 - core index']
  #allocation1 [shape = 'u32[144,128]{1,0:T(1,128)}', space=vmem, size = 0x12000, scoped, tag = 'internal scratch']
  #allocation2 [shape = 'f32[16,32]{1,0:T(8,128)}', space=vmem, size = 0x2000, scoped, tag = 'scratch operand']
  %s0 = inlined_call_operand.vmem [shape: f32[32,32], index: 0, kind: input, shape index: {}]
  %s1 = inlined_call_operand.vmem [shape: f32[512,32], index: 1, kind: input, shape index: {}]
  %s2 = inlined_call_operand.vmem [shape: f32[2,1,32], index: 2, kind: input, shape index: {}]
  %s3 = inlined_call_operand.vmem [shape: f32[2,1,32], index: 3, kind: input, shape index: {}]
  %s4 = inlined_call_operand.vmem [shape: bf16[2,32,32], index: 4, kind: input, shape index: {}]
  %s5 = inlined_call_operand.vmem [shape: bf16[2,32,32], index: 5, kind: input, shape index: {}]
  %s6 = inlined_call_operand.vmem [shape: bf16[2,32,32], index: 6, kind: input, shape index: {}]
  %s7 = inlined_call_operand.vmem [shape: bf16[2,32,32], index: 7, kind: input, shape index: {}]
  %s8 = inlined_call_operand.vmem [shape: f32[2,1,32], index: 8, kind: input, shape index: {}]
  %s9 = inlined_call_operand.vmem [shape: bf16[2,5,32,32], index: 9, kind: input, shape index: {}]
  %s10 = inlined_call_operand.vmem [shape: f32[2,1,32], index: 10, kind: input, shape index: {}]
  %s11 = inlined_call_operand.vmem [shape: f32[2,1,32], index: 11, kind: input, shape index: {}]
  %s12 = inlined_call_operand.vmem [shape: bf16[2,32,32], index: 12, kind: input, shape index: {}]
  %s13 = inlined_call_operand.vmem [shape: bf16[2,32,32], index: 13, kind: input, shape index: {}]
  %s14 = inlined_call_operand.vmem [shape: bf16[2,32,32], index: 14, kind: input, shape index: {}]
  %s15 = inlined_call_operand.vmem [shape: bf16[2,32,32], index: 15, kind: input, shape index: {}]
  %s16 = inlined_call_operand.vmem [shape: f32[2,1,32], index: 16, kind: input, shape index: {}]
  %s17 = inlined_call_operand.vmem [shape: bf16[2,5,32,32], index: 17, kind: input, shape index: {}]
  %s18 = inlined_call_operand.vmem [shape: f32[2,1,32], index: 18, kind: input, shape index: {}]
  %s19 = inlined_call_operand.vmem [shape: f32[2,1,32], index: 19, kind: input, shape index: {}]
  %s20 = inlined_call_operand.vmem [shape: bf16[2,32,64], index: 20, kind: input, shape index: {}]
  %s21 = inlined_call_operand.vmem [shape: f32[2,1,64], index: 21, kind: input, shape index: {}]
  %s22 = inlined_call_operand.vmem [shape: bf16[2,64,32], index: 22, kind: input, shape index: {}]
  %s23 = inlined_call_operand.vmem [shape: f32[2,1,32], index: 23, kind: input, shape index: {}]
  %s24 = inlined_call_operand.hbm [shape: f32[32,32], index: 24, kind: output, shape index: {}]
  %s25 = sld [smem:[#allocation0]]
  $region133: #{tpu_custom_call.1} parent=0
    _
  %s27 = ssub.s32 1, %s25
  %s28 = scalar_select 0, %s27, %s25
  $region1: #{tpu_custom_call.1} parent=0
    #allocation3 [shape = 'u8[16384]{0}', space=vmem, size = 0x4000, scoped, tag = 'output window, operand 0']
    #allocation4 [shape = 's32[2]{0}', space=sflag, size = 0x8, scoped, tag = 'scoped memory for tpu_custom_call.1']
    %29 = vsyncpa [#allocation4], 0
    %s30 = scalar_lea.sflag [#allocation4], 1
    %31 = vsyncpa %s30, 0
    loop: start=0, step=1, limit=6
    $region2: #{tpu_custom_call.1} parent=1 // loop_pre_header
      _
    $region3: #{tpu_custom_call.1} parent=1 // loop_header
      %s33 = sphi 0, %s37
      %p34 = scmp.ge.s32.totalorder %s33, 6
      %s40 = sphi 0, %s52
      %s41 = sphi 0, %s48
      %s42 = sphi 0, %s40
      %s43 = sphi 0, %s41
      %s44 = sphi 0, %s42
      %s45 = sphi 0, %s43
      %s55 = sphi 0, %s57
      %s58 = sphi 0, %s55
      %s59 = sphi 0, %s58
      %s75 = sphi 0, %s59
      %s81 = sphi 0, %s83
      %s84 = sphi 0, %s81
      %s85 = sphi 0, %s84
      %s101 = sphi 0, %s85
      %s107 = sphi 0, %s109
      %s110 = sphi 0, %s107
      %s111 = sphi 0, %s110
      %s127 = sphi 0, %s111
      %s133 = sphi 0, %s135
      %s136 = sphi 0, %s133
      %s137 = sphi 0, %s136
      %s153 = sphi 0, %s137
      %s159 = sphi 0, %s161
      %s162 = sphi 0, %s159
      %s163 = sphi 0, %s162
      %s179 = sphi 0, %s163
      %s185 = sphi 0, %s187
      %s188 = sphi 0, %s185
      %s189 = sphi 0, %s188
      %s205 = sphi 0, %s189
      %s211 = sphi 0, %s213
      %s214 = sphi 0, %s211
      %s215 = sphi 0, %s214
      %s231 = sphi 0, %s215
      %s237 = sphi 0, %s239
      %s240 = sphi 0, %s237
      %s241 = sphi 0, %s240
      %s257 = sphi 0, %s241
      %s263 = sphi 0, %s265
      %s266 = sphi 0, %s263
      %s267 = sphi 0, %s266
      %s283 = sphi 0, %s267
      %s289 = sphi 0, %s291
      %s292 = sphi 0, %s289
      %s293 = sphi 0, %s292
      %s309 = sphi 0, %s293
      %s315 = sphi 0, %s317
      %s318 = sphi 0, %s315
      %s319 = sphi 0, %s318
      %s335 = sphi 0, %s319
      %s341 = sphi 0, %s343
      %s344 = sphi 0, %s341
      %s345 = sphi 0, %s344
      %s361 = sphi 0, %s345
      %s367 = sphi 0, %s369
      %s370 = sphi 0, %s367
      %s371 = sphi 0, %s370
      %s387 = sphi 0, %s371
      %s393 = sphi 0, %s395
      %s396 = sphi 0, %s393
      %s397 = sphi 0, %s396
      %s413 = sphi 0, %s397
      %s419 = sphi 0, %s421
      %s422 = sphi 0, %s419
      %s423 = sphi 0, %s422
      %s439 = sphi 0, %s423
      %s445 = sphi 0, %s447
      %s448 = sphi 0, %s445
      %s449 = sphi 0, %s448
      %s465 = sphi 0, %s449
      %s471 = sphi 0, %s473
      %s474 = sphi 0, %s471
      %s475 = sphi 0, %s474
      %s491 = sphi 0, %s475
      %s497 = sphi 0, %s499
      %s500 = sphi 0, %s497
      %s501 = sphi 0, %s500
      %s517 = sphi 0, %s501
      %s523 = sphi 0, %s525
      %s526 = sphi 0, %s523
      %s527 = sphi 0, %s526
      %s543 = sphi 0, %s527
      %s549 = sphi 0, %s551
      %s552 = sphi 0, %s549
      %s553 = sphi 0, %s552
      %s569 = sphi 0, %s553
      %s575 = sphi 0, %s577
      %s578 = sphi 0, %s575
      %s579 = sphi 0, %s578
      %s595 = sphi 0, %s579
      %s601 = sphi 0, %s603
      %s604 = sphi 0, %s601
      %s605 = sphi 0, %s604
      %s621 = sphi 0, %s605
      %s627 = sphi 0, %s629
      %s630 = sphi 0, %s627
      %s631 = sphi 0, %s630
      %s647 = sphi 0, %s631
      %s653 = sphi 0, %s655
      %s656 = sphi 0, %s653
      %s657 = sphi 0, %s656
      %s673 = sphi 0, %s657
      %s679 = sphi 0, %s681
      %s682 = sphi 0, %s679
      %s683 = sphi 0, %s682
      %s699 = sphi 0, %s683
    $region4: #{tpu_custom_call.1} parent=1 // loop_header_branch
      %36 = sbr.rel (%p34) target = $region8
    $region5: #{tpu_custom_call.1} parent=1 // loop_body
      %s38 = ssub.s32 %s33, 1
      %s39 = ssub.s32 %s33, 2
      %s46 = sadd.s32 1, %s41
      %p47 = scmp.ge.s32.totalorder %s46, 2
      %s48 = scalar_select %p47, 0, %s46
      %s49 = sadd.s32 1, %s40
      %s50 = scalar_select %p47, %s49, %s40
      %p51 = scmp.ge.s32.totalorder %s50, 2
      %s52 = scalar_select %p51, 0, %s50
      %s53 = ssub.s32 %s40, %s52
      %p54 = scmp.eq.s32.totalorder %s53, 0
      %s56 = sadd.s32 %s55, 1
      %s57 = scalar_select %p54, %s55, %s56
      %p60 = pneg %p54
      %p61 = scmp.eq.s32.totalorder %s33, 3
      %p62 = por %p60, %p61
      %p63 = scmp.ne.s32.totalorder %s55, %s58
      %p64 = scmp.eq.s32.totalorder %s33, 0
      %p65 = por %p63, %p64
      %p66 = scmp.ne.s32.totalorder %s55, %s58
      %p67 = scmp.eq.s32.totalorder %s38, 3
      %p68 = por %p66, %p67
      %p69 = scmp.ne.s32.totalorder %s58, %s59
      %p70 = scmp.eq.s32.totalorder %s38, 0
      %p71 = por %p69, %p70
      %p72 = scmp.ne.s32.totalorder %s58, %s59
      %p73 = scmp.eq.s32.totalorder %s39, 3
      %p74 = por %p72, %p73
      %p76 = scmp.ne.s32.totalorder %s59, %s75
      %p77 = scmp.eq.s32.totalorder %s39, 0
      %p78 = por %p76, %p77
      %s79 = ssub.s32 %s40, %s52
      %p80 = scmp.eq.s32.totalorder %s79, 0
      %s82 = sadd.s32 %s81, 1
      %s83 = scalar_select %p80, %s81, %s82
      %p86 = pneg %p80
      %p87 = scmp.eq.s32.totalorder %s33, 3
      %p88 = por %p86, %p87
      %p89 = scmp.ne.s32.totalorder %s81, %s84
      %p90 = scmp.eq.s32.totalorder %s33, 0
      %p91 = por %p89, %p90
      %p92 = scmp.ne.s32.totalorder %s81, %s84
      %p93 = scmp.eq.s32.totalorder %s38, 3
      %p94 = por %p92, %p93
      %p95 = scmp.ne.s32.totalorder %s84, %s85
      %p96 = scmp.eq.s32.totalorder %s38, 0
      %p97 = por %p95, %p96
      %p98 = scmp.ne.s32.totalorder %s84, %s85
      %p99 = scmp.eq.s32.totalorder %s39, 3
      %p100 = por %p98, %p99
      %p102 = scmp.ne.s32.totalorder %s85, %s101
      %p103 = scmp.eq.s32.totalorder %s39, 0
      %p104 = por %p102, %p103
      %s105 = ssub.s32 %s41, %s48
      %p106 = scmp.eq.s32.totalorder %s105, 0
      %s108 = sadd.s32 %s107, 1
      %s109 = scalar_select %p106, %s107, %s108
      %p112 = pneg %p106
      %p113 = scmp.eq.s32.totalorder %s33, 3
      %p114 = por %p112, %p113
      %p115 = scmp.ne.s32.totalorder %s107, %s110
      %p116 = scmp.eq.s32.totalorder %s33, 0
      %p117 = por %p115, %p116
      %p118 = scmp.ne.s32.totalorder %s107, %s110
      %p119 = scmp.eq.s32.totalorder %s38, 3
      %p120 = por %p118, %p119
      %p121 = scmp.ne.s32.totalorder %s110, %s111
      %p122 = scmp.eq.s32.totalorder %s38, 0
      %p123 = por %p121, %p122
      %p124 = scmp.ne.s32.totalorder %s110, %s111
      %p125 = scmp.eq.s32.totalorder %s39, 3
      %p126 = por %p124, %p125
      %p128 = scmp.ne.s32.totalorder %s111, %s127
      %p129 = scmp.eq.s32.totalorder %s39, 0
      %p130 = por %p128, %p129
      %s131 = ssub.s32 %s41, %s48
      %p132 = scmp.eq.s32.totalorder %s131, 0
      %s134 = sadd.s32 %s133, 1
      %s135 = scalar_select %p132, %s133, %s134
      %p138 = pneg %p132
      %p139 = scmp.eq.s32.totalorder %s33, 3
      %p140 = por %p138, %p139
      %p141 = scmp.ne.s32.totalorder %s133, %s136
      %p142 = scmp.eq.s32.totalorder %s33, 0
      %p143 = por %p141, %p142
      %p144 = scmp.ne.s32.totalorder %s133, %s136
      %p145 = scmp.eq.s32.totalorder %s38, 3
      %p146 = por %p144, %p145
      %p147 = scmp.ne.s32.totalorder %s136, %s137
      %p148 = scmp.eq.s32.totalorder %s38, 0
      %p149 = por %p147, %p148
      %p150 = scmp.ne.s32.totalorder %s136, %s137
      %p151 = scmp.eq.s32.totalorder %s39, 3
      %p152 = por %p150, %p151
      %p154 = scmp.ne.s32.totalorder %s137, %s153
      %p155 = scmp.eq.s32.totalorder %s39, 0
      %p156 = por %p154, %p155
      %s157 = ssub.s32 %s41, %s48
      %p158 = scmp.eq.s32.totalorder %s157, 0
      %s160 = sadd.s32 %s159, 1
      %s161 = scalar_select %p158, %s159, %s160
      %p164 = pneg %p158
      %p165 = scmp.eq.s32.totalorder %s33, 3
      %p166 = por %p164, %p165
      %p167 = scmp.ne.s32.totalorder %s159, %s162
      %p168 = scmp.eq.s32.totalorder %s33, 0
      %p169 = por %p167, %p168
      %p170 = scmp.ne.s32.totalorder %s159, %s162
      %p171 = scmp.eq.s32.totalorder %s38, 3
      %p172 = por %p170, %p171
      %p173 = scmp.ne.s32.totalorder %s162, %s163
      %p174 = scmp.eq.s32.totalorder %s38, 0
      %p175 = por %p173, %p174
      %p176 = scmp.ne.s32.totalorder %s162, %s163
      %p177 = scmp.eq.s32.totalorder %s39, 3
      %p178 = por %p176, %p177
      %p180 = scmp.ne.s32.totalorder %s163, %s179
      %p181 = scmp.eq.s32.totalorder %s39, 0
      %p182 = por %p180, %p181
      %s183 = ssub.s32 %s41, %s48
      %p184 = scmp.eq.s32.totalorder %s183, 0
      %s186 = sadd.s32 %s185, 1
      %s187 = scalar_select %p184, %s185, %s186
      %p190 = pneg %p184
      %p191 = scmp.eq.s32.totalorder %s33, 3
      %p192 = por %p190, %p191
      %p193 = scmp.ne.s32.totalorder %s185, %s188
      %p194 = scmp.eq.s32.totalorder %s33, 0
      %p195 = por %p193, %p194
      %p196 = scmp.ne.s32.totalorder %s185, %s188
      %p197 = scmp.eq.s32.totalorder %s38, 3
      %p198 = por %p196, %p197
      %p199 = scmp.ne.s32.totalorder %s188, %s189
      %p200 = scmp.eq.s32.totalorder %s38, 0
      %p201 = por %p199, %p200
      %p202 = scmp.ne.s32.totalorder %s188, %s189
      %p203 = scmp.eq.s32.totalorder %s39, 3
      %p204 = por %p202, %p203
      %p206 = scmp.ne.s32.totalorder %s189, %s205
      %p207 = scmp.eq.s32.totalorder %s39, 0
      %p208 = por %p206, %p207
      %s209 = ssub.s32 %s41, %s48
      %p210 = scmp.eq.s32.totalorder %s209, 0
      %s212 = sadd.s32 %s211, 1
      %s213 = scalar_select %p210, %s211, %s212
      %p216 = pneg %p210
      %p217 = scmp.eq.s32.totalorder %s33, 3
      %p218 = por %p216, %p217
      %p219 = scmp.ne.s32.totalorder %s211, %s214
      %p220 = scmp.eq.s32.totalorder %s33, 0
      %p221 = por %p219, %p220
      %p222 = scmp.ne.s32.totalorder %s211, %s214
      %p223 = scmp.eq.s32.totalorder %s38, 3
      %p224 = por %p222, %p223
      %p225 = scmp.ne.s32.totalorder %s214, %s215
      %p226 = scmp.eq.s32.totalorder %s38, 0
      %p227 = por %p225, %p226
      %p228 = scmp.ne.s32.totalorder %s214, %s215
      %p229 = scmp.eq.s32.totalorder %s39, 3
      %p230 = por %p228, %p229
      %p232 = scmp.ne.s32.totalorder %s215, %s231
      %p233 = scmp.eq.s32.totalorder %s39, 0
      %p234 = por %p232, %p233
      %s235 = ssub.s32 %s41, %s48
      %p236 = scmp.eq.s32.totalorder %s235, 0
      %s238 = sadd.s32 %s237, 1
      %s239 = scalar_select %p236, %s237, %s238
      %p242 = pneg %p236
      %p243 = scmp.eq.s32.totalorder %s33, 3
      %p244 = por %p242, %p243
      %p245 = scmp.ne.s32.totalorder %s237, %s240
      %p246 = scmp.eq.s32.totalorder %s33, 0
      %p247 = por %p245, %p246
      %p248 = scmp.ne.s32.totalorder %s237, %s240
      %p249 = scmp.eq.s32.totalorder %s38, 3
      %p250 = por %p248, %p249
      %p251 = scmp.ne.s32.totalorder %s240, %s241
      %p252 = scmp.eq.s32.totalorder %s38, 0
      %p253 = por %p251, %p252
      %p254 = scmp.ne.s32.totalorder %s240, %s241
      %p255 = scmp.eq.s32.totalorder %s39, 3
      %p256 = por %p254, %p255
      %p258 = scmp.ne.s32.totalorder %s241, %s257
      %p259 = scmp.eq.s32.totalorder %s39, 0
      %p260 = por %p258, %p259
      %s261 = ssub.s32 %s41, %s48
      %p262 = scmp.eq.s32.totalorder %s261, 0
      %s264 = sadd.s32 %s263, 1
      %s265 = scalar_select %p262, %s263, %s264
      %p268 = pneg %p262
      %p269 = scmp.eq.s32.totalorder %s33, 3
      %p270 = por %p268, %p269
      %p271 = scmp.ne.s32.totalorder %s263, %s266
      %p272 = scmp.eq.s32.totalorder %s33, 0
      %p273 = por %p271, %p272
      %p274 = scmp.ne.s32.totalorder %s263, %s266
      %p275 = scmp.eq.s32.totalorder %s38, 3
      %p276 = por %p274, %p275
      %p277 = scmp.ne.s32.totalorder %s266, %s267
      %p278 = scmp.eq.s32.totalorder %s38, 0
      %p279 = por %p277, %p278
      %p280 = scmp.ne.s32.totalorder %s266, %s267
      %p281 = scmp.eq.s32.totalorder %s39, 3
      %p282 = por %p280, %p281
      %p284 = scmp.ne.s32.totalorder %s267, %s283
      %p285 = scmp.eq.s32.totalorder %s39, 0
      %p286 = por %p284, %p285
      %s287 = ssub.s32 %s41, %s48
      %p288 = scmp.eq.s32.totalorder %s287, 0
      %s290 = sadd.s32 %s289, 1
      %s291 = scalar_select %p288, %s289, %s290
      %p294 = pneg %p288
      %p295 = scmp.eq.s32.totalorder %s33, 3
      %p296 = por %p294, %p295
      %p297 = scmp.ne.s32.totalorder %s289, %s292
      %p298 = scmp.eq.s32.totalorder %s33, 0
      %p299 = por %p297, %p298
      %p300 = scmp.ne.s32.totalorder %s289, %s292
      %p301 = scmp.eq.s32.totalorder %s38, 3
      %p302 = por %p300, %p301
      %p303 = scmp.ne.s32.totalorder %s292, %s293
      %p304 = scmp.eq.s32.totalorder %s38, 0
      %p305 = por %p303, %p304
      %p306 = scmp.ne.s32.totalorder %s292, %s293
      %p307 = scmp.eq.s32.totalorder %s39, 3
      %p308 = por %p306, %p307
      %p310 = scmp.ne.s32.totalorder %s293, %s309
      %p311 = scmp.eq.s32.totalorder %s39, 0
      %p312 = por %p310, %p311
      %s313 = ssub.s32 %s41, %s48
      %p314 = scmp.eq.s32.totalorder %s313, 0
      %s316 = sadd.s32 %s315, 1
      %s317 = scalar_select %p314, %s315, %s316
      %p320 = pneg %p314
      %p321 = scmp.eq.s32.totalorder %s33, 3
      %p322 = por %p320, %p321
      %p323 = scmp.ne.s32.totalorder %s315, %s318
      %p324 = scmp.eq.s32.totalorder %s33, 0
      %p325 = por %p323, %p324
      %p326 = scmp.ne.s32.totalorder %s315, %s318
      %p327 = scmp.eq.s32.totalorder %s38, 3
      %p328 = por %p326, %p327
      %p329 = scmp.ne.s32.totalorder %s318, %s319
      %p330 = scmp.eq.s32.totalorder %s38, 0
      %p331 = por %p329, %p330
      %p332 = scmp.ne.s32.totalorder %s318, %s319
      %p333 = scmp.eq.s32.totalorder %s39, 3
      %p334 = por %p332, %p333
      %p336 = scmp.ne.s32.totalorder %s319, %s335
      %p337 = scmp.eq.s32.totalorder %s39, 0
      %p338 = por %p336, %p337
      %s339 = ssub.s32 %s41, %s48
      %p340 = scmp.eq.s32.totalorder %s339, 0
      %s342 = sadd.s32 %s341, 1
      %s343 = scalar_select %p340, %s341, %s342
      %p346 = pneg %p340
      %p347 = scmp.eq.s32.totalorder %s33, 3
      %p348 = por %p346, %p347
      %p349 = scmp.ne.s32.totalorder %s341, %s344
      %p350 = scmp.eq.s32.totalorder %s33, 0
      %p351 = por %p349, %p350
      %p352 = scmp.ne.s32.totalorder %s341, %s344
      %p353 = scmp.eq.s32.totalorder %s38, 3
      %p354 = por %p352, %p353
      %p355 = scmp.ne.s32.totalorder %s344, %s345
      %p356 = scmp.eq.s32.totalorder %s38, 0
      %p357 = por %p355, %p356
      %p358 = scmp.ne.s32.totalorder %s344, %s345
      %p359 = scmp.eq.s32.totalorder %s39, 3
      %p360 = por %p358, %p359
      %p362 = scmp.ne.s32.totalorder %s345, %s361
      %p363 = scmp.eq.s32.totalorder %s39, 0
      %p364 = por %p362, %p363
      %s365 = ssub.s32 %s41, %s48
      %p366 = scmp.eq.s32.totalorder %s365, 0
      %s368 = sadd.s32 %s367, 1
      %s369 = scalar_select %p366, %s367, %s368
      %p372 = pneg %p366
      %p373 = scmp.eq.s32.totalorder %s33, 3
      %p374 = por %p372, %p373
      %p375 = scmp.ne.s32.totalorder %s367, %s370
      %p376 = scmp.eq.s32.totalorder %s33, 0
      %p377 = por %p375, %p376
      %p378 = scmp.ne.s32.totalorder %s367, %s370
      %p379 = scmp.eq.s32.totalorder %s38, 3
      %p380 = por %p378, %p379
      %p381 = scmp.ne.s32.totalorder %s370, %s371
      %p382 = scmp.eq.s32.totalorder %s38, 0
      %p383 = por %p381, %p382
      %p384 = scmp.ne.s32.totalorder %s370, %s371
      %p385 = scmp.eq.s32.totalorder %s39, 3
      %p386 = por %p384, %p385
      %p388 = scmp.ne.s32.totalorder %s371, %s387
      %p389 = scmp.eq.s32.totalorder %s39, 0
      %p390 = por %p388, %p389
      %s391 = ssub.s32 %s41, %s48
      %p392 = scmp.eq.s32.totalorder %s391, 0
      %s394 = sadd.s32 %s393, 1
      %s395 = scalar_select %p392, %s393, %s394
      %p398 = pneg %p392
      %p399 = scmp.eq.s32.totalorder %s33, 3
      %p400 = por %p398, %p399
      %p401 = scmp.ne.s32.totalorder %s393, %s396
      %p402 = scmp.eq.s32.totalorder %s33, 0
      %p403 = por %p401, %p402
      %p404 = scmp.ne.s32.totalorder %s393, %s396
      %p405 = scmp.eq.s32.totalorder %s38, 3
      %p406 = por %p404, %p405
      %p407 = scmp.ne.s32.totalorder %s396, %s397
      %p408 = scmp.eq.s32.totalorder %s38, 0
      %p409 = por %p407, %p408
      %p410 = scmp.ne.s32.totalorder %s396, %s397
      %p411 = scmp.eq.s32.totalorder %s39, 3
      %p412 = por %p410, %p411
      %p414 = scmp.ne.s32.totalorder %s397, %s413
      %p415 = scmp.eq.s32.totalorder %s39, 0
      %p416 = por %p414, %p415
      %s417 = ssub.s32 %s41, %s48
      %p418 = scmp.eq.s32.totalorder %s417, 0
      %s420 = sadd.s32 %s419, 1
      %s421 = scalar_select %p418, %s419, %s420
      %p424 = pneg %p418
      %p425 = scmp.eq.s32.totalorder %s33, 3
      %p426 = por %p424, %p425
      %p427 = scmp.ne.s32.totalorder %s419, %s422
      %p428 = scmp.eq.s32.totalorder %s33, 0
      %p429 = por %p427, %p428
      %p430 = scmp.ne.s32.totalorder %s419, %s422
      %p431 = scmp.eq.s32.totalorder %s38, 3
      %p432 = por %p430, %p431
      %p433 = scmp.ne.s32.totalorder %s422, %s423
      %p434 = scmp.eq.s32.totalorder %s38, 0
      %p435 = por %p433, %p434
      %p436 = scmp.ne.s32.totalorder %s422, %s423
      %p437 = scmp.eq.s32.totalorder %s39, 3
      %p438 = por %p436, %p437
      %p440 = scmp.ne.s32.totalorder %s423, %s439
      %p441 = scmp.eq.s32.totalorder %s39, 0
      %p442 = por %p440, %p441
      %s443 = ssub.s32 %s41, %s48
      %p444 = scmp.eq.s32.totalorder %s443, 0
      %s446 = sadd.s32 %s445, 1
      %s447 = scalar_select %p444, %s445, %s446
      %p450 = pneg %p444
      %p451 = scmp.eq.s32.totalorder %s33, 3
      %p452 = por %p450, %p451
      %p453 = scmp.ne.s32.totalorder %s445, %s448
      %p454 = scmp.eq.s32.totalorder %s33, 0
      %p455 = por %p453, %p454
      %p456 = scmp.ne.s32.totalorder %s445, %s448
      %p457 = scmp.eq.s32.totalorder %s38, 3
      %p458 = por %p456, %p457
      %p459 = scmp.ne.s32.totalorder %s448, %s449
      %p460 = scmp.eq.s32.totalorder %s38, 0
      %p461 = por %p459, %p460
      %p462 = scmp.ne.s32.totalorder %s448, %s449
      %p463 = scmp.eq.s32.totalorder %s39, 3
      %p464 = por %p462, %p463
      %p466 = scmp.ne.s32.totalorder %s449, %s465
      %p467 = scmp.eq.s32.totalorder %s39, 0
      %p468 = por %p466, %p467
      %s469 = ssub.s32 %s41, %s48
      %p470 = scmp.eq.s32.totalorder %s469, 0
      %s472 = sadd.s32 %s471, 1
      %s473 = scalar_select %p470, %s471, %s472
      %p476 = pneg %p470
      %p477 = scmp.eq.s32.totalorder %s33, 3
      %p478 = por %p476, %p477
      %p479 = scmp.ne.s32.totalorder %s471, %s474
      %p480 = scmp.eq.s32.totalorder %s33, 0
      %p481 = por %p479, %p480
      %p482 = scmp.ne.s32.totalorder %s471, %s474
      %p483 = scmp.eq.s32.totalorder %s38, 3
      %p484 = por %p482, %p483
      %p485 = scmp.ne.s32.totalorder %s474, %s475
      %p486 = scmp.eq.s32.totalorder %s38, 0
      %p487 = por %p485, %p486
      %p488 = scmp.ne.s32.totalorder %s474, %s475
      %p489 = scmp.eq.s32.totalorder %s39, 3
      %p490 = por %p488, %p489
      %p492 = scmp.ne.s32.totalorder %s475, %s491
      %p493 = scmp.eq.s32.totalorder %s39, 0
      %p494 = por %p492, %p493
      %s495 = ssub.s32 %s41, %s48
      %p496 = scmp.eq.s32.totalorder %s495, 0
      %s498 = sadd.s32 %s497, 1
      %s499 = scalar_select %p496, %s497, %s498
      %p502 = pneg %p496
      %p503 = scmp.eq.s32.totalorder %s33, 3
      %p504 = por %p502, %p503
      %p505 = scmp.ne.s32.totalorder %s497, %s500
      %p506 = scmp.eq.s32.totalorder %s33, 0
      %p507 = por %p505, %p506
      %p508 = scmp.ne.s32.totalorder %s497, %s500
      %p509 = scmp.eq.s32.totalorder %s38, 3
      %p510 = por %p508, %p509
      %p511 = scmp.ne.s32.totalorder %s500, %s501
      %p512 = scmp.eq.s32.totalorder %s38, 0
      %p513 = por %p511, %p512
      %p514 = scmp.ne.s32.totalorder %s500, %s501
      %p515 = scmp.eq.s32.totalorder %s39, 3
      %p516 = por %p514, %p515
      %p518 = scmp.ne.s32.totalorder %s501, %s517
      %p519 = scmp.eq.s32.totalorder %s39, 0
      %p520 = por %p518, %p519
      %s521 = ssub.s32 %s41, %s48
      %p522 = scmp.eq.s32.totalorder %s521, 0
      %s524 = sadd.s32 %s523, 1
      %s525 = scalar_select %p522, %s523, %s524
      %p528 = pneg %p522
      %p529 = scmp.eq.s32.totalorder %s33, 3
      %p530 = por %p528, %p529
      %p531 = scmp.ne.s32.totalorder %s523, %s526
      %p532 = scmp.eq.s32.totalorder %s33, 0
      %p533 = por %p531, %p532
      %p534 = scmp.ne.s32.totalorder %s523, %s526
      %p535 = scmp.eq.s32.totalorder %s38, 3
      %p536 = por %p534, %p535
      %p537 = scmp.ne.s32.totalorder %s526, %s527
      %p538 = scmp.eq.s32.totalorder %s38, 0
      %p539 = por %p537, %p538
      %p540 = scmp.ne.s32.totalorder %s526, %s527
      %p541 = scmp.eq.s32.totalorder %s39, 3
      %p542 = por %p540, %p541
      %p544 = scmp.ne.s32.totalorder %s527, %s543
      %p545 = scmp.eq.s32.totalorder %s39, 0
      %p546 = por %p544, %p545
      %s547 = ssub.s32 %s41, %s48
      %p548 = scmp.eq.s32.totalorder %s547, 0
      %s550 = sadd.s32 %s549, 1
      %s551 = scalar_select %p548, %s549, %s550
      %p554 = pneg %p548
      %p555 = scmp.eq.s32.totalorder %s33, 3
      %p556 = por %p554, %p555
      %p557 = scmp.ne.s32.totalorder %s549, %s552
      %p558 = scmp.eq.s32.totalorder %s33, 0
      %p559 = por %p557, %p558
      %p560 = scmp.ne.s32.totalorder %s549, %s552
      %p561 = scmp.eq.s32.totalorder %s38, 3
      %p562 = por %p560, %p561
      %p563 = scmp.ne.s32.totalorder %s552, %s553
      %p564 = scmp.eq.s32.totalorder %s38, 0
      %p565 = por %p563, %p564
      %p566 = scmp.ne.s32.totalorder %s552, %s553
      %p567 = scmp.eq.s32.totalorder %s39, 3
      %p568 = por %p566, %p567
      %p570 = scmp.ne.s32.totalorder %s553, %s569
      %p571 = scmp.eq.s32.totalorder %s39, 0
      %p572 = por %p570, %p571
      %s573 = ssub.s32 %s41, %s48
      %p574 = scmp.eq.s32.totalorder %s573, 0
      %s576 = sadd.s32 %s575, 1
      %s577 = scalar_select %p574, %s575, %s576
      %p580 = pneg %p574
      %p581 = scmp.eq.s32.totalorder %s33, 3
      %p582 = por %p580, %p581
      %p583 = scmp.ne.s32.totalorder %s575, %s578
      %p584 = scmp.eq.s32.totalorder %s33, 0
      %p585 = por %p583, %p584
      %p586 = scmp.ne.s32.totalorder %s575, %s578
      %p587 = scmp.eq.s32.totalorder %s38, 3
      %p588 = por %p586, %p587
      %p589 = scmp.ne.s32.totalorder %s578, %s579
      %p590 = scmp.eq.s32.totalorder %s38, 0
      %p591 = por %p589, %p590
      %p592 = scmp.ne.s32.totalorder %s578, %s579
      %p593 = scmp.eq.s32.totalorder %s39, 3
      %p594 = por %p592, %p593
      %p596 = scmp.ne.s32.totalorder %s579, %s595
      %p597 = scmp.eq.s32.totalorder %s39, 0
      %p598 = por %p596, %p597
      %s599 = ssub.s32 %s41, %s48
      %p600 = scmp.eq.s32.totalorder %s599, 0
      %s602 = sadd.s32 %s601, 1
      %s603 = scalar_select %p600, %s601, %s602
      %p606 = pneg %p600
      %p607 = scmp.eq.s32.totalorder %s33, 3
      %p608 = por %p606, %p607
      %p609 = scmp.ne.s32.totalorder %s601, %s604
      %p610 = scmp.eq.s32.totalorder %s33, 0
      %p611 = por %p609, %p610
      %p612 = scmp.ne.s32.totalorder %s601, %s604
      %p613 = scmp.eq.s32.totalorder %s38, 3
      %p614 = por %p612, %p613
      %p615 = scmp.ne.s32.totalorder %s604, %s605
      %p616 = scmp.eq.s32.totalorder %s38, 0
      %p617 = por %p615, %p616
      %p618 = scmp.ne.s32.totalorder %s604, %s605
      %p619 = scmp.eq.s32.totalorder %s39, 3
      %p620 = por %p618, %p619
      %p622 = scmp.ne.s32.totalorder %s605, %s621
      %p623 = scmp.eq.s32.totalorder %s39, 0
      %p624 = por %p622, %p623
      %s625 = ssub.s32 %s41, %s48
      %p626 = scmp.eq.s32.totalorder %s625, 0
      %s628 = sadd.s32 %s627, 1
      %s629 = scalar_select %p626, %s627, %s628
      %p632 = pneg %p626
      %p633 = scmp.eq.s32.totalorder %s33, 3
      %p634 = por %p632, %p633
      %p635 = scmp.ne.s32.totalorder %s627, %s630
      %p636 = scmp.eq.s32.totalorder %s33, 0
      %p637 = por %p635, %p636
      %p638 = scmp.ne.s32.totalorder %s627, %s630
      %p639 = scmp.eq.s32.totalorder %s38, 3
      %p640 = por %p638, %p639
      %p641 = scmp.ne.s32.totalorder %s630, %s631
      %p642 = scmp.eq.s32.totalorder %s38, 0
      %p643 = por %p641, %p642
      %p644 = scmp.ne.s32.totalorder %s630, %s631
      %p645 = scmp.eq.s32.totalorder %s39, 3
      %p646 = por %p644, %p645
      %p648 = scmp.ne.s32.totalorder %s631, %s647
      %p649 = scmp.eq.s32.totalorder %s39, 0
      %p650 = por %p648, %p649
      %s651 = ssub.s32 %s41, %s48
      %p652 = scmp.eq.s32.totalorder %s651, 0
      %s654 = sadd.s32 %s653, 1
      %s655 = scalar_select %p652, %s653, %s654
      %p658 = pneg %p652
      %p659 = scmp.eq.s32.totalorder %s33, 3
      %p660 = por %p658, %p659
      %p661 = scmp.ne.s32.totalorder %s653, %s656
      %p662 = scmp.eq.s32.totalorder %s33, 0
      %p663 = por %p661, %p662
      %p664 = scmp.ne.s32.totalorder %s653, %s656
      %p665 = scmp.eq.s32.totalorder %s38, 3
      %p666 = por %p664, %p665
      %p667 = scmp.ne.s32.totalorder %s656, %s657
      %p668 = scmp.eq.s32.totalorder %s38, 0
      %p669 = por %p667, %p668
      %p670 = scmp.ne.s32.totalorder %s656, %s657
      %p671 = scmp.eq.s32.totalorder %s39, 3
      %p672 = por %p670, %p671
      %p674 = scmp.ne.s32.totalorder %s657, %s673
      %p675 = scmp.eq.s32.totalorder %s39, 0
      %p676 = por %p674, %p675
      %s677 = ssub.s32 %s40, %s52
      %p678 = scmp.eq.s32.totalorder %s677, 0
      %s680 = sadd.s32 %s679, 1
      %s681 = scalar_select %p678, %s679, %s680
      %p684 = pneg %p678
      %p685 = scmp.eq.s32.totalorder %s33, 3
      %p686 = por %p684, %p685
      %p687 = scmp.ne.s32.totalorder %s679, %s682
      %p688 = scmp.eq.s32.totalorder %s33, 0
      %p689 = por %p687, %p688
      %p690 = scmp.ne.s32.totalorder %s679, %s682
      %p691 = scmp.eq.s32.totalorder %s38, 3
      %p692 = por %p690, %p691
      %p693 = scmp.ne.s32.totalorder %s682, %s683
      %p694 = scmp.eq.s32.totalorder %s38, 0
      %p695 = por %p693, %p694
      %p696 = scmp.ne.s32.totalorder %s682, %s683
      %p697 = scmp.eq.s32.totalorder %s39, 3
      %p698 = por %p696, %p697
      %p700 = scmp.ne.s32.totalorder %s683, %s699
      %p701 = scmp.eq.s32.totalorder %s39, 0
      %p702 = por %p700, %p701
      %p703 = scmp.le.s32.totalorder 1, %s33
      %p704 = scmp.lt.s32.totalorder %s33, 5
      %p705 = pnand %p703, %p704
      %p706 = pneg %p705
      // Predicated region
      $region9: #{tpu_custom_call.1} parent=5 // pred_check
        _
      $region10: #{tpu_custom_call.1} parent=5 // pred_check_branch
        %708 = sbr.rel (%p705) target = $region12
      $region11: #{tpu_custom_call.1} parent=5 // pred_region
        %s709 = ssub.s32 %s33, 1
      $region12: #{tpu_custom_call.1} parent=5 // pred_fallthru
        _
      %p710 = scmp.lt.s32.totalorder %s33, 4
      // Predicated region
      $region13: #{tpu_custom_call.1} parent=5 // pred_check
        %p711 = pneg %p710
      $region14: #{tpu_custom_call.1} parent=5 // pred_check_branch
        %713 = sbr.rel (%p711) target = $region16
      $region15: #{tpu_custom_call.1} parent=5 // pred_region
        // Predicated region
        $region17: #{tpu_custom_call.1} parent=15 // pred_check
          %p714 = pneg %p65
        $region18: #{tpu_custom_call.1} parent=15 // pred_check_branch
          %716 = sbr.rel (%p714) target = $region20
        $region19: #{tpu_custom_call.1} parent=15 // pred_region
          %s717 = smul.u32 2, %s40
          %p718 = scmp.lt.s32.totalorder %s717, 3
          %s719 = scalar_select %p718, %s717, 3
          %s720 = smul.addr %s719, 8
          %s721 = scalar_lea.vmem %s0, %s720
          %s722 = smul.u32 2, %s40
        $region20: #{tpu_custom_call.1} parent=15 // pred_fallthru
          _
        // Predicated region
        $region21: #{tpu_custom_call.1} parent=15 // pred_check
          %p723 = pneg %p91
        $region22: #{tpu_custom_call.1} parent=15 // pred_check_branch
          %725 = sbr.rel (%p723) target = $region24
        $region23: #{tpu_custom_call.1} parent=15 // pred_region
          %s726 = smul.u32 32, %s40
          %p727 = scmp.lt.s32.totalorder %s726, 63
          %s728 = scalar_select %p727, %s726, 63
          %s729 = smul.addr %s728, 8
          %s730 = scalar_lea.vmem %s1, %s729
          %s731 = smul.u32 32, %s40
        $region24: #{tpu_custom_call.1} parent=15 // pred_fallthru
          _
        // Predicated region
        $region25: #{tpu_custom_call.1} parent=15 // pred_check
          %p732 = pneg %p117
        $region26: #{tpu_custom_call.1} parent=15 // pred_check_branch
          %734 = sbr.rel (%p732) target = $region28
        $region27: #{tpu_custom_call.1} parent=15 // pred_region
          %p735 = scmp.lt.s32.totalorder %s41, 1
          %s736 = scalar_select %p735, %s41, 1
          %s737 = scalar_lea.vmem %s2, %s736
        $region28: #{tpu_custom_call.1} parent=15 // pred_fallthru
          _
        // Predicated region
        $region29: #{tpu_custom_call.1} parent=15 // pred_check
          %p738 = pneg %p143
        $region30: #{tpu_custom_call.1} parent=15 // pred_check_branch
          %740 = sbr.rel (%p738) target = $region32
        $region31: #{tpu_custom_call.1} parent=15 // pred_region
          %p741 = scmp.lt.s32.totalorder %s41, 1
          %s742 = scalar_select %p741, %s41, 1
          %s743 = scalar_lea.vmem %s3, %s742
        $region32: #{tpu_custom_call.1} parent=15 // pred_fallthru
          _
        // Predicated region
        $region33: #{tpu_custom_call.1} parent=15 // pred_check
          %p744 = pneg %p169
        $region34: #{tpu_custom_call.1} parent=15 // pred_check_branch
          %746 = sbr.rel (%p744) target = $region36
        $region35: #{tpu_custom_call.1} parent=15 // pred_region
          %p747 = scmp.lt.s32.totalorder %s41, 1
          %s748 = scalar_select %p747, %s41, 1
          %s749 = smul.addr %s748, 4
          %s750 = smul.addr %s749, 4
          %s751 = scalar_lea.vmem %s4, %s750
        $region36: #{tpu_custom_call.1} parent=15 // pred_fallthru
          _
        // Predicated region
        $region37: #{tpu_custom_call.1} parent=15 // pred_check
          %p752 = pneg %p195
        $region38: #{tpu_custom_call.1} parent=15 // pred_check_branch
          %754 = sbr.rel (%p752) target = $region40
        $region39: #{tpu_custom_call.1} parent=15 // pred_region
          %p755 = scmp.lt.s32.totalorder %s41, 1
          %s756 = scalar_select %p755, %s41, 1
          %s757 = smul.addr %s756, 4
          %s758 = smul.addr %s757, 4
          %s759 = scalar_lea.vmem %s5, %s758
        $region40: #{tpu_custom_call.1} parent=15 // pred_fallthru
          _
        // Predicated region
        $region41: #{tpu_custom_call.1} parent=15 // pred_check
          %p760 = pneg %p221
        $region42: #{tpu_custom_call.1} parent=15 // pred_check_branch
          %762 = sbr.rel (%p760) target = $region44
        $region43: #{tpu_custom_call.1} parent=15 // pred_region
          %p763 = scmp.lt.s32.totalorder %s41, 1
          %s764 = scalar_select %p763, %s41, 1
          %s765 = smul.addr %s764, 4
          %s766 = smul.addr %s765, 4
          %s767 = scalar_lea.vmem %s6, %s766
        $region44: #{tpu_custom_call.1} parent=15 // pred_fallthru
          _
        // Predicated region
        $region45: #{tpu_custom_call.1} parent=15 // pred_check
          %p768 = pneg %p247
        $region46: #{tpu_custom_call.1} parent=15 // pred_check_branch
          %770 = sbr.rel (%p768) target = $region48
        $region47: #{tpu_custom_call.1} parent=15 // pred_region
          %p771 = scmp.lt.s32.totalorder %s41, 1
          %s772 = scalar_select %p771, %s41, 1
          %s773 = smul.addr %s772, 4
          %s774 = smul.addr %s773, 4
          %s775 = scalar_lea.vmem %s7, %s774
        $region48: #{tpu_custom_call.1} parent=15 // pred_fallthru
          _
        // Predicated region
        $region49: #{tpu_custom_call.1} parent=15 // pred_check
          %p776 = pneg %p273
        $region50: #{tpu_custom_call.1} parent=15 // pred_check_branch
          %778 = sbr.rel (%p776) target = $region52
        $region51: #{tpu_custom_call.1} parent=15 // pred_region
          %p779 = scmp.lt.s32.totalorder %s41, 1
          %s780 = scalar_select %p779, %s41, 1
          %s781 = scalar_lea.vmem %s8, %s780
        $region52: #{tpu_custom_call.1} parent=15 // pred_fallthru
          _
        // Predicated region
        $region53: #{tpu_custom_call.1} parent=15 // pred_check
          %p782 = pneg %p299
        $region54: #{tpu_custom_call.1} parent=15 // pred_check_branch
          %784 = sbr.rel (%p782) target = $region56
        $region55: #{tpu_custom_call.1} parent=15 // pred_region
          %p785 = scmp.lt.s32.totalorder %s41, 1
          %s786 = scalar_select %p785, %s41, 1
          %s787 = smul.addr %s786, 20
          %s788 = smul.addr %s787, 4
          %s789 = scalar_lea.vmem %s9, %s788
        $region56: #{tpu_custom_call.1} parent=15 // pred_fallthru
          _
        // Predicated region
        $region57: #{tpu_custom_call.1} parent=15 // pred_check
          %p790 = pneg %p325
        $region58: #{tpu_custom_call.1} parent=15 // pred_check_branch
          %792 = sbr.rel (%p790) target = $region60
        $region59: #{tpu_custom_call.1} parent=15 // pred_region
          %p793 = scmp.lt.s32.totalorder %s41, 1
          %s794 = scalar_select %p793, %s41, 1
          %s795 = scalar_lea.vmem %s10, %s794
        $region60: #{tpu_custom_call.1} parent=15 // pred_fallthru
          _
        // Predicated region
        $region61: #{tpu_custom_call.1} parent=15 // pred_check
          %p796 = pneg %p351
        $region62: #{tpu_custom_call.1} parent=15 // pred_check_branch
          %798 = sbr.rel (%p796) target = $region64
        $region63: #{tpu_custom_call.1} parent=15 // pred_region
          %p799 = scmp.lt.s32.totalorder %s41, 1
          %s800 = scalar_select %p799, %s41, 1
          %s801 = scalar_lea.vmem %s11, %s800
        $region64: #{tpu_custom_call.1} parent=15 // pred_fallthru
          _
        // Predicated region
        $region65: #{tpu_custom_call.1} parent=15 // pred_check
          %p802 = pneg %p377
        $region66: #{tpu_custom_call.1} parent=15 // pred_check_branch
          %804 = sbr.rel (%p802) target = $region68
        $region67: #{tpu_custom_call.1} parent=15 // pred_region
          %p805 = scmp.lt.s32.totalorder %s41, 1
          %s806 = scalar_select %p805, %s41, 1
          %s807 = smul.addr %s806, 4
          %s808 = smul.addr %s807, 4
          %s809 = scalar_lea.vmem %s12, %s808
        $region68: #{tpu_custom_call.1} parent=15 // pred_fallthru
          _
        // Predicated region
        $region69: #{tpu_custom_call.1} parent=15 // pred_check
          %p810 = pneg %p403
        $region70: #{tpu_custom_call.1} parent=15 // pred_check_branch
          %812 = sbr.rel (%p810) target = $region72
        $region71: #{tpu_custom_call.1} parent=15 // pred_region
          %p813 = scmp.lt.s32.totalorder %s41, 1
          %s814 = scalar_select %p813, %s41, 1
          %s815 = smul.addr %s814, 4
          %s816 = smul.addr %s815, 4
          %s817 = scalar_lea.vmem %s13, %s816
        $region72: #{tpu_custom_call.1} parent=15 // pred_fallthru
          _
        // Predicated region
        $region73: #{tpu_custom_call.1} parent=15 // pred_check
          %p818 = pneg %p429
        $region74: #{tpu_custom_call.1} parent=15 // pred_check_branch
          %820 = sbr.rel (%p818) target = $region76
        $region75: #{tpu_custom_call.1} parent=15 // pred_region
          %p821 = scmp.lt.s32.totalorder %s41, 1
          %s822 = scalar_select %p821, %s41, 1
          %s823 = smul.addr %s822, 4
          %s824 = smul.addr %s823, 4
          %s825 = scalar_lea.vmem %s14, %s824
        $region76: #{tpu_custom_call.1} parent=15 // pred_fallthru
          _
        // Predicated region
        $region77: #{tpu_custom_call.1} parent=15 // pred_check
          %p826 = pneg %p455
        $region78: #{tpu_custom_call.1} parent=15 // pred_check_branch
          %828 = sbr.rel (%p826) target = $region80
        $region79: #{tpu_custom_call.1} parent=15 // pred_region
          %p829 = scmp.lt.s32.totalorder %s41, 1
          %s830 = scalar_select %p829, %s41, 1
          %s831 = smul.addr %s830, 4
          %s832 = smul.addr %s831, 4
          %s833 = scalar_lea.vmem %s15, %s832
        $region80: #{tpu_custom_call.1} parent=15 // pred_fallthru
          _
        // Predicated region
        $region81: #{tpu_custom_call.1} parent=15 // pred_check
          %p834 = pneg %p481
        $region82: #{tpu_custom_call.1} parent=15 // pred_check_branch
          %836 = sbr.rel (%p834) target = $region84
        $region83: #{tpu_custom_call.1} parent=15 // pred_region
          %p837 = scmp.lt.s32.totalorder %s41, 1
          %s838 = scalar_select %p837, %s41, 1
          %s839 = scalar_lea.vmem %s16, %s838
        $region84: #{tpu_custom_call.1} parent=15 // pred_fallthru
          _
        // Predicated region
        $region85: #{tpu_custom_call.1} parent=15 // pred_check
          %p840 = pneg %p507
        $region86: #{tpu_custom_call.1} parent=15 // pred_check_branch
          %842 = sbr.rel (%p840) target = $region88
        $region87: #{tpu_custom_call.1} parent=15 // pred_region
          %p843 = scmp.lt.s32.totalorder %s41, 1
          %s844 = scalar_select %p843, %s41, 1
          %s845 = smul.addr %s844, 20
          %s846 = smul.addr %s845, 4
          %s847 = scalar_lea.vmem %s17, %s846
        $region88: #{tpu_custom_call.1} parent=15 // pred_fallthru
          _
        // Predicated region
        $region89: #{tpu_custom_call.1} parent=15 // pred_check
          %p848 = pneg %p533
        $region90: #{tpu_custom_call.1} parent=15 // pred_check_branch
          %850 = sbr.rel (%p848) target = $region92
        $region91: #{tpu_custom_call.1} parent=15 // pred_region
          %p851 = scmp.lt.s32.totalorder %s41, 1
          %s852 = scalar_select %p851, %s41, 1
          %s853 = scalar_lea.vmem %s18, %s852
        $region92: #{tpu_custom_call.1} parent=15 // pred_fallthru
          _
        // Predicated region
        $region93: #{tpu_custom_call.1} parent=15 // pred_check
          %p854 = pneg %p559
        $region94: #{tpu_custom_call.1} parent=15 // pred_check_branch
          %856 = sbr.rel (%p854) target = $region96
        $region95: #{tpu_custom_call.1} parent=15 // pred_region
          %p857 = scmp.lt.s32.totalorder %s41, 1
          %s858 = scalar_select %p857, %s41, 1
          %s859 = scalar_lea.vmem %s19, %s858
        $region96: #{tpu_custom_call.1} parent=15 // pred_fallthru
          _
        // Predicated region
        $region97: #{tpu_custom_call.1} parent=15 // pred_check
          %p860 = pneg %p585
        $region98: #{tpu_custom_call.1} parent=15 // pred_check_branch
          %862 = sbr.rel (%p860) target = $region100
        $region99: #{tpu_custom_call.1} parent=15 // pred_region
          %p863 = scmp.lt.s32.totalorder %s41, 1
          %s864 = scalar_select %p863, %s41, 1
          %s865 = smul.addr %s864, 4
          %s866 = smul.addr %s865, 4
          %s867 = scalar_lea.vmem %s20, %s866
        $region100: #{tpu_custom_call.1} parent=15 // pred_fallthru
          _
        // Predicated region
        $region101: #{tpu_custom_call.1} parent=15 // pred_check
          %p868 = pneg %p611
        $region102: #{tpu_custom_call.1} parent=15 // pred_check_branch
          %870 = sbr.rel (%p868) target = $region104
        $region103: #{tpu_custom_call.1} parent=15 // pred_region
          %p871 = scmp.lt.s32.totalorder %s41, 1
          %s872 = scalar_select %p871, %s41, 1
          %s873 = scalar_lea.vmem %s21, %s872
        $region104: #{tpu_custom_call.1} parent=15 // pred_fallthru
          _
        // Predicated region
        $region105: #{tpu_custom_call.1} parent=15 // pred_check
          %p874 = pneg %p637
        $region106: #{tpu_custom_call.1} parent=15 // pred_check_branch
          %876 = sbr.rel (%p874) target = $region108
        $region107: #{tpu_custom_call.1} parent=15 // pred_region
          %p877 = scmp.lt.s32.totalorder %s41, 1
          %s878 = scalar_select %p877, %s41, 1
          %s879 = smul.addr %s878, 8
          %s880 = smul.addr %s879, 4
          %s881 = scalar_lea.vmem %s22, %s880
        $region108: #{tpu_custom_call.1} parent=15 // pred_fallthru
          _
        // Predicated region
        $region109: #{tpu_custom_call.1} parent=15 // pred_check
          %p882 = pneg %p663
        $region110: #{tpu_custom_call.1} parent=15 // pred_check_branch
          %884 = sbr.rel (%p882) target = $region112
        $region111: #{tpu_custom_call.1} parent=15 // pred_region
          %p885 = scmp.lt.s32.totalorder %s41, 1
          %s886 = scalar_select %p885, %s41, 1
          %s887 = scalar_lea.vmem %s23, %s886
        $region112: #{tpu_custom_call.1} parent=15 // pred_fallthru
          _
      $region16: #{tpu_custom_call.1} parent=5 // pred_fallthru
        _
      %p888 = scmp.le.s32.totalorder 1, %s33
      %p889 = scmp.lt.s32.totalorder %s33, 5
      %p890 = pnand %p888, %p889
      %p891 = pneg %p890
      // Predicated region
      $region113: #{tpu_custom_call.1} parent=5 // pred_check
        _
      $region114: #{tpu_custom_call.1} parent=5 // pred_check_branch
        %893 = sbr.rel (%p890) target = $region116
      $region115: #{tpu_custom_call.1} parent=5 // pred_region
        %s894 = ssub.s32 %s33, 1
        %s895 = smul.u32 2, %s42
        %p896 = scmp.lt.s32.totalorder %s895, 3
        %s897 = scalar_select %p896, %s895, 3
        %s898 = smul.addr %s897, 8
        %s899 = scalar_lea.vmem %s0, %s898
        %p900 = pneg %p71
        %p901 = pneg %p68
        %s902 = smul.u32 32, %s42
        %p903 = scmp.lt.s32.totalorder %s902, 63
        %s904 = scalar_select %p903, %s902, 63
        %s905 = smul.addr %s904, 8
        %s906 = scalar_lea.vmem %s1, %s905
        %p907 = pneg %p97
        %p908 = pneg %p94
        %p909 = scmp.lt.s32.totalorder %s43, 1
        %s910 = scalar_select %p909, %s43, 1
        %s911 = scalar_lea.vmem %s2, %s910
        %p912 = pneg %p123
        %p913 = pneg %p120
        %p914 = scmp.lt.s32.totalorder %s43, 1
        %s915 = scalar_select %p914, %s43, 1
        %s916 = scalar_lea.vmem %s3, %s915
        %p917 = pneg %p149
        %p918 = pneg %p146
        %p919 = scmp.lt.s32.totalorder %s43, 1
        %s920 = scalar_select %p919, %s43, 1
        %s921 = smul.addr %s920, 4
        %s922 = smul.addr %s921, 4
        %s923 = scalar_lea.vmem %s4, %s922
        %p924 = pneg %p175
        %p925 = pneg %p172
        %p926 = scmp.lt.s32.totalorder %s43, 1
        %s927 = scalar_select %p926, %s43, 1
        %s928 = smul.addr %s927, 4
        %s929 = smul.addr %s928, 4
        %s930 = scalar_lea.vmem %s5, %s929
        %p931 = pneg %p201
        %p932 = pneg %p198
        %p933 = scmp.lt.s32.totalorder %s43, 1
        %s934 = scalar_select %p933, %s43, 1
        %s935 = smul.addr %s934, 4
        %s936 = smul.addr %s935, 4
        %s937 = scalar_lea.vmem %s6, %s936
        %p938 = pneg %p227
        %p939 = pneg %p224
        %p940 = scmp.lt.s32.totalorder %s43, 1
        %s941 = scalar_select %p940, %s43, 1
        %s942 = smul.addr %s941, 4
        %s943 = smul.addr %s942, 4
        %s944 = scalar_lea.vmem %s7, %s943
        %p945 = pneg %p253
        %p946 = pneg %p250
        %p947 = scmp.lt.s32.totalorder %s43, 1
        %s948 = scalar_select %p947, %s43, 1
        %s949 = scalar_lea.vmem %s8, %s948
        %p950 = pneg %p279
        %p951 = pneg %p276
        %p952 = scmp.lt.s32.totalorder %s43, 1
        %s953 = scalar_select %p952, %s43, 1
        %s954 = smul.addr %s953, 20
        %s955 = smul.addr %s954, 4
        %s956 = scalar_lea.vmem %s9, %s955
        %p957 = pneg %p305
        %p958 = pneg %p302
        %p959 = scmp.lt.s32.totalorder %s43, 1
        %s960 = scalar_select %p959, %s43, 1
        %s961 = scalar_lea.vmem %s10, %s960
        %p962 = pneg %p331
        %p963 = pneg %p328
        %p964 = scmp.lt.s32.totalorder %s43, 1
        %s965 = scalar_select %p964, %s43, 1
        %s966 = scalar_lea.vmem %s11, %s965
        %p967 = pneg %p357
        %p968 = pneg %p354
        %p969 = scmp.lt.s32.totalorder %s43, 1
        %s970 = scalar_select %p969, %s43, 1
        %s971 = smul.addr %s970, 4
        %s972 = smul.addr %s971, 4
        %s973 = scalar_lea.vmem %s12, %s972
        %p974 = pneg %p383
        %p975 = pneg %p380
        %p976 = scmp.lt.s32.totalorder %s43, 1
        %s977 = scalar_select %p976, %s43, 1
        %s978 = smul.addr %s977, 4
        %s979 = smul.addr %s978, 4
        %s980 = scalar_lea.vmem %s13, %s979
        %p981 = pneg %p409
        %p982 = pneg %p406
        %p983 = scmp.lt.s32.totalorder %s43, 1
        %s984 = scalar_select %p983, %s43, 1
        %s985 = smul.addr %s984, 4
        %s986 = smul.addr %s985, 4
        %s987 = scalar_lea.vmem %s14, %s986
        %p988 = pneg %p435
        %p989 = pneg %p432
        %p990 = scmp.lt.s32.totalorder %s43, 1
        %s991 = scalar_select %p990, %s43, 1
        %s992 = smul.addr %s991, 4
        %s993 = smul.addr %s992, 4
        %s994 = scalar_lea.vmem %s15, %s993
        %p995 = pneg %p461
        %p996 = pneg %p458
        %p997 = scmp.lt.s32.totalorder %s43, 1
        %s998 = scalar_select %p997, %s43, 1
        %s999 = scalar_lea.vmem %s16, %s998
        %p1000 = pneg %p487
        %p1001 = pneg %p484
        %p1002 = scmp.lt.s32.totalorder %s43, 1
        %s1003 = scalar_select %p1002, %s43, 1
        %s1004 = smul.addr %s1003, 20
        %s1005 = smul.addr %s1004, 4
        %s1006 = scalar_lea.vmem %s17, %s1005
        %p1007 = pneg %p513
        %p1008 = pneg %p510
        %p1009 = scmp.lt.s32.totalorder %s43, 1
        %s1010 = scalar_select %p1009, %s43, 1
        %s1011 = scalar_lea.vmem %s18, %s1010
        %p1012 = pneg %p539
        %p1013 = pneg %p536
        %p1014 = scmp.lt.s32.totalorder %s43, 1
        %s1015 = scalar_select %p1014, %s43, 1
        %s1016 = scalar_lea.vmem %s19, %s1015
        %p1017 = pneg %p565
        %p1018 = pneg %p562
        %p1019 = scmp.lt.s32.totalorder %s43, 1
        %s1020 = scalar_select %p1019, %s43, 1
        %s1021 = smul.addr %s1020, 4
        %s1022 = smul.addr %s1021, 4
        %s1023 = scalar_lea.vmem %s20, %s1022
        %p1024 = pneg %p591
        %p1025 = pneg %p588
        %p1026 = scmp.lt.s32.totalorder %s43, 1
        %s1027 = scalar_select %p1026, %s43, 1
        %s1028 = scalar_lea.vmem %s21, %s1027
        %p1029 = pneg %p617
        %p1030 = pneg %p614
        %p1031 = scmp.lt.s32.totalorder %s43, 1
        %s1032 = scalar_select %p1031, %s43, 1
        %s1033 = smul.addr %s1032, 8
        %s1034 = smul.addr %s1033, 4
        %s1035 = scalar_lea.vmem %s22, %s1034
        %p1036 = pneg %p643
        %p1037 = pneg %p640
        %p1038 = scmp.lt.s32.totalorder %s43, 1
        %s1039 = scalar_select %p1038, %s43, 1
        %s1040 = scalar_lea.vmem %s23, %s1039
        %p1041 = pneg %p669
        %p1042 = pneg %p666
        %p1043 = pneg %p695
        %p1044 = pneg %p692
        %s1045 = sand.u32 %s682, 1
        %s1046 = scalar_lea.sflag [#allocation4], %s1045
        %s1047 = sand.u32 %s682, 1
        %s1048 = smul.addr %s1047, 16
        %s1049 = scalar_lea.vmem [#allocation3], %s1048
        %s1050 = smul.u32 2, %s42
        %p1051 = scmp.lt.s32.totalorder %s1050, 3
        %s1052 = scalar_select %p1051, %s1050, 3
        %s1053 = smul.addr %s1052, 8
        %s1054 = scalar_lea.vmem %s0, %s1053
        %s1055 = smul.u32 2, %s42
        %s1056 = smul.u32 32, %s42
        %p1057 = scmp.lt.s32.totalorder %s1056, 63
        %s1058 = scalar_select %p1057, %s1056, 63
        %s1059 = smul.addr %s1058, 8
        %s1060 = scalar_lea.vmem %s1, %s1059
        %s1061 = smul.u32 32, %s42
        %p1062 = scmp.lt.s32.totalorder %s43, 1
        %s1063 = scalar_select %p1062, %s43, 1
        %s1064 = scalar_lea.vmem %s2, %s1063
        %p1065 = scmp.lt.s32.totalorder %s43, 1
        %s1066 = scalar_select %p1065, %s43, 1
        %s1067 = scalar_lea.vmem %s3, %s1066
        %p1068 = scmp.lt.s32.totalorder %s43, 1
        %s1069 = scalar_select %p1068, %s43, 1
        %s1070 = smul.addr %s1069, 4
        %s1071 = smul.addr %s1070, 4
        %s1072 = scalar_lea.vmem %s4, %s1071
        %p1073 = scmp.lt.s32.totalorder %s43, 1
        %s1074 = scalar_select %p1073, %s43, 1
        %s1075 = smul.addr %s1074, 4
        %s1076 = smul.addr %s1075, 4
        %s1077 = scalar_lea.vmem %s5, %s1076
        %p1078 = scmp.lt.s32.totalorder %s43, 1
        %s1079 = scalar_select %p1078, %s43, 1
        %s1080 = smul.addr %s1079, 4
        %s1081 = smul.addr %s1080, 4
        %s1082 = scalar_lea.vmem %s6, %s1081
        %p1083 = scmp.lt.s32.totalorder %s43, 1
        %s1084 = scalar_select %p1083, %s43, 1
        %s1085 = smul.addr %s1084, 4
        %s1086 = smul.addr %s1085, 4
        %s1087 = scalar_lea.vmem %s7, %s1086
        %p1088 = scmp.lt.s32.totalorder %s43, 1
        %s1089 = scalar_select %p1088, %s43, 1
        %s1090 = scalar_lea.vmem %s8, %s1089
        %p1091 = scmp.lt.s32.totalorder %s43, 1
        %s1092 = scalar_select %p1091, %s43, 1
        %s1093 = smul.addr %s1092, 20
        %s1094 = smul.addr %s1093, 4
        %s1095 = scalar_lea.vmem %s9, %s1094
        %p1096 = scmp.lt.s32.totalorder %s43, 1
        %s1097 = scalar_select %p1096, %s43, 1
        %s1098 = scalar_lea.vmem %s10, %s1097
        %p1099 = scmp.lt.s32.totalorder %s43, 1
        %s1100 = scalar_select %p1099, %s43, 1
        %s1101 = scalar_lea.vmem %s11, %s1100
        %p1102 = scmp.lt.s32.totalorder %s43, 1
        %s1103 = scalar_select %p1102, %s43, 1
        %s1104 = smul.addr %s1103, 4
        %s1105 = smul.addr %s1104, 4
        %s1106 = scalar_lea.vmem %s12, %s1105
        %p1107 = scmp.lt.s32.totalorder %s43, 1
        %s1108 = scalar_select %p1107, %s43, 1
        %s1109 = smul.addr %s1108, 4
        %s1110 = smul.addr %s1109, 4
        %s1111 = scalar_lea.vmem %s13, %s1110
        %p1112 = scmp.lt.s32.totalorder %s43, 1
        %s1113 = scalar_select %p1112, %s43, 1
        %s1114 = smul.addr %s1113, 4
        %s1115 = smul.addr %s1114, 4
        %s1116 = scalar_lea.vmem %s14, %s1115
        %p1117 = scmp.lt.s32.totalorder %s43, 1
        %s1118 = scalar_select %p1117, %s43, 1
        %s1119 = smul.addr %s1118, 4
        %s1120 = smul.addr %s1119, 4
        %s1121 = scalar_lea.vmem %s15, %s1120
        %p1122 = scmp.lt.s32.totalorder %s43, 1
        %s1123 = scalar_select %p1122, %s43, 1
        %s1124 = scalar_lea.vmem %s16, %s1123
        %p1125 = scmp.lt.s32.totalorder %s43, 1
        %s1126 = scalar_select %p1125, %s43, 1
        %s1127 = smul.addr %s1126, 20
        %s1128 = smul.addr %s1127, 4
        %s1129 = scalar_lea.vmem %s17, %s1128
        %p1130 = scmp.lt.s32.totalorder %s43, 1
        %s1131 = scalar_select %p1130, %s43, 1
        %s1132 = scalar_lea.vmem %s18, %s1131
        %p1133 = scmp.lt.s32.totalorder %s43, 1
        %s1134 = scalar_select %p1133, %s43, 1
        %s1135 = scalar_lea.vmem %s19, %s1134
        %p1136 = scmp.lt.s32.totalorder %s43, 1
        %s1137 = scalar_select %p1136, %s43, 1
        %s1138 = smul.addr %s1137, 4
        %s1139 = smul.addr %s1138, 4
        %s1140 = scalar_lea.vmem %s20, %s1139
        %p1141 = scmp.lt.s32.totalorder %s43, 1
        %s1142 = scalar_select %p1141, %s43, 1
        %s1143 = scalar_lea.vmem %s21, %s1142
        %p1144 = scmp.lt.s32.totalorder %s43, 1
        %s1145 = scalar_select %p1144, %s43, 1
        %s1146 = smul.addr %s1145, 8
        %s1147 = smul.addr %s1146, 4
        %s1148 = scalar_lea.vmem %s22, %s1147
        %p1149 = scmp.lt.s32.totalorder %s43, 1
        %s1150 = scalar_select %p1149, %s43, 1
        %s1151 = scalar_lea.vmem %s23, %s1150
        %s1152 = smul.u32 2, %s42
        %p1154 = scmp.eq.s32.totalorder %s43, 0
        // Predicated region
        $region117: #{tpu_custom_call.1} parent=115 // pred_check
          %p1155 = pneg %p1154
        $region118: #{tpu_custom_call.1} parent=115 // pred_check_branch
          %1157 = sbr.rel (%p1155) target = $region120
        $region119: #{tpu_custom_call.1} parent=115 // pred_region
          %v1158 = vld [vmem:[%s1054] sm:$0xff]
          %v1159 = vld [vmem:[%s1054 + $0x8] sm:$0xff]
          %vm1160 = vcmask 261120
          %1161 = vst.msk [vmem:[%s1049] sm:$0xff] %vm1160, %v1158
          %1162 = vst.msk [vmem:[%s1049 + $0x8] sm:$0xff] %vm1160, %v1159
        $region120: #{tpu_custom_call.1} parent=115 // pred_fallthru
          _
        %v1163 = vld [vmem:[%s1049] sm:$0xff]
        %v1164 = vld [vmem:[%s1049 + $0x8] sm:$0xff]
        %v1165 = vld [vmem:[%s1064] sm:$0x1]
        %v1166 = vld [vmem:[%s1067] sm:$0x1]
        %vm1167 = vcmask 261120
        %v1168 = vsel %vm1167, %v1163, 0.0
        %1169 = vadd.xlane.f32.xlu0 %v1168
        %v1170 = vpop.xlane.xlu0 %1169
        %v1171 = vsel %vm1167, %v1164, 0.0
        %1172 = vadd.xlane.f32.xlu0 %v1171
        %v1173 = vpop.xlane.xlu0 %1172
        %v1174 = vrcp.pop 32.0
        %v1175 = vmul.f32 %v1170, %v1174
        %v1176 = vmul.f32 %v1173, %v1174
        %v1177 = vsub.f32 %v1163, %v1175
        %v1178 = vsub.f32 %v1164, %v1176
        %v1179 = vmul.f32 %v1177, %v1177
        %v1180 = vmul.f32 %v1178, %v1178
        %v1181 = vsel %vm1167, %v1179, 0.0
        %1182 = vadd.xlane.f32.xlu0 %v1181
        %v1183 = vpop.xlane.xlu0 %1182
        %v1184 = vsel %vm1167, %v1180, 0.0
        %1185 = vadd.xlane.f32.xlu0 %v1184
        %v1186 = vpop.xlane.xlu0 %1185
        %v1187 = vmul.f32 %v1183, %v1174
        %v1188 = vmul.f32 %v1186, %v1174
        %v1189 = vadd.f32 %v1187, 1e-05
        %v1190 = vadd.f32 %v1188, 1e-05
        %v1191 = vrsqrt.pop %v1189
        %v1192 = vrsqrt.pop %v1190
        %v1193 = vmul.f32 %v1177, %v1191
        %v1194 = vmul.f32 %v1178, %v1192
        %v1196 = vlaneseq
        %v1197 = vshrl.u32 %v1196, 7
        %v1198 = vsub.s32 0, %v1197
        %v1199 = vrot.slane %v1165, %v1198
        %v1201 = vmul.f32 %v1193, %v1199
        %v1202 = vmul.f32 %v1194, %v1199
        %v1204 = vlaneseq
        %v1205 = vshrl.u32 %v1204, 7
        %v1206 = vsub.s32 0, %v1205
        %v1207 = vrot.slane %v1166, %v1206
        %v1209 = vadd.f32 %v1201, %v1207
        %v1210 = vadd.f32 %v1202, %v1207
        %v1211 = vpack.c.bf16 %v1210, %v1209
        %v1212 = vld [vmem:[%s1072] sm:$0xf]
        %v1213 = vld [vmem:[%s1072 + $0x4] sm:$0xf]
        %v1214 = vld [vmem:[%s1072 + $0x8] sm:$0xf]
        %v1215 = vld [vmem:[%s1072 + $0xc] sm:$0xf]
        %v1220 = vunpack.c.l.b16 %v1212
        %v1221 = vunpack.c.l.b16 %v1213
        %v1222 = vunpack.c.l.b16 %v1214
        %v1223 = vunpack.c.l.b16 %v1215
        %v1224 = vpack.c.b16 %v1221, %v1220
        %v1225 = vpack.c.b16 %v1223, %v1222
        %v1229 = vsel %vm1167, %v1211, 0
        %1231 = vmatprep.subr.bf16.mxu0 0
        %1232 = vmatpush1.bf16.msra.mxu0 %v1224
        %1233 = vmatprep.subr.bf16.mxu0 0
        %1234 = vmatpush1.bf16.msra.mxu0 %v1225
        %1235 = vmatprep.subr.bf16.mxu0 0
        %1236 = vmatpush1.bf16.msra.mxu0 0
        %1237 = vmatprep.subr.bf16.mxu0 0
        %1238 = vmatpush1.bf16.msra.mxu0 0
        %1239 = vmatprep.subr.bf16.mxu0 0
        %1240 = vmatpush1.bf16.msra.mxu0 0
        %1241 = vmatprep.subr.bf16.mxu0 0
        %1242 = vmatpush1.bf16.msra.mxu0 0
        %1243 = vmatprep.subr.bf16.mxu0 0
        %1244 = vmatpush1.bf16.msra.mxu0 0
        %1245 = vmatprep.subr.bf16.mxu0 0
        %1246 = vmatpush1.bf16.msra.mxu0 0
        %1247 = vmatprep.subr.bf16.mxu0 0
        %1248 = vmatpush1.bf16.msra.mxu0 0
        %1249 = vmatprep.subr.bf16.mxu0 0
        %1250 = vmatpush1.bf16.msra.mxu0 0
        %1251 = vmatprep.subr.bf16.mxu0 0
        %1252 = vmatpush1.bf16.msra.mxu0 0
        %1253 = vmatprep.subr.bf16.mxu0 0
        %1254 = vmatpush1.bf16.msra.mxu0 0
        %1255 = vmatprep.subr.bf16.mxu0 0
        %1256 = vmatpush1.bf16.msra.mxu0 0
        %1257 = vmatprep.subr.bf16.mxu0 0
        %1258 = vmatpush1.bf16.msra.mxu0 0
        %1259 = vmatprep.subr.bf16.mxu0 0
        %1260 = vmatpush1.bf16.msra.mxu0 0
        %1261 = vmatprep.subr.bf16.mxu0 0
        %1262 = vmatpush1.bf16.msra.mxu0 0
        %1263 = vmatprep.mubr.bf16.mxu0 0
        %1264 = vmatmul.mubr.bf16.gmra.mrb[0].mxu0 %v1229
        %v1265 = vpop.f32.mrb[0].mxu0
        %v1266 = vadd.f32 0.0, %v1265
        %v1267 = vpop.f32.mrb[0].mxu0
        %v1268 = vpop.f32.mrb[0].mxu0
        %v1269 = vadd.f32 0.0, %v1268
        %v1270 = vpop.f32.mrb[0].mxu0
        %1271 = vdwg.mxu0
        %v1272 = vpack.c.bf16 %v1269, %v1266
        %v1273 = vld [vmem:[%s1077] sm:$0xf]
        %v1274 = vld [vmem:[%s1077 + $0x4] sm:$0xf]
        %v1275 = vld [vmem:[%s1077 + $0x8] sm:$0xf]
        %v1276 = vld [vmem:[%s1077 + $0xc] sm:$0xf]
        %v1281 = vunpack.c.l.b16 %v1273
        %v1282 = vunpack.c.l.b16 %v1274
        %v1283 = vunpack.c.l.b16 %v1275
        %v1284 = vunpack.c.l.b16 %v1276
        %v1285 = vpack.c.b16 %v1282, %v1281
        %v1286 = vpack.c.b16 %v1284, %v1283
        %1289 = vmatprep.subr.bf16.mxu0 0
        %1290 = vmatpush1.bf16.msra.mxu0 %v1285
        %1291 = vmatprep.subr.bf16.mxu0 0
        %1292 = vmatpush1.bf16.msra.mxu0 %v1286
        %1293 = vmatprep.subr.bf16.mxu0 0
        %1294 = vmatpush1.bf16.msra.mxu0 0
        %1295 = vmatprep.subr.bf16.mxu0 0
        %1296 = vmatpush1.bf16.msra.mxu0 0
        %1297 = vmatprep.subr.bf16.mxu0 0
        %1298 = vmatpush1.bf16.msra.mxu0 0
        %1299 = vmatprep.subr.bf16.mxu0 0
        %1300 = vmatpush1.bf16.msra.mxu0 0
        %1301 = vmatprep.subr.bf16.mxu0 0
        %1302 = vmatpush1.bf16.msra.mxu0 0
        %1303 = vmatprep.subr.bf16.mxu0 0
        %1304 = vmatpush1.bf16.msra.mxu0 0
        %1305 = vmatprep.subr.bf16.mxu0 0
        %1306 = vmatpush1.bf16.msra.mxu0 0
        %1307 = vmatprep.subr.bf16.mxu0 0
        %1308 = vmatpush1.bf16.msra.mxu0 0
        %1309 = vmatprep.subr.bf16.mxu0 0
        %1310 = vmatpush1.bf16.msra.mxu0 0
        %1311 = vmatprep.subr.bf16.mxu0 0
        %1312 = vmatpush1.bf16.msra.mxu0 0
        %1313 = vmatprep.subr.bf16.mxu0 0
        %1314 = vmatpush1.bf16.msra.mxu0 0
        %1315 = vmatprep.subr.bf16.mxu0 0
        %1316 = vmatpush1.bf16.msra.mxu0 0
        %1317 = vmatprep.subr.bf16.mxu0 0
        %1318 = vmatpush1.bf16.msra.mxu0 0
        %1319 = vmatprep.subr.bf16.mxu0 0
        %1320 = vmatpush1.bf16.msra.mxu0 0
        %1321 = vmatprep.mubr.bf16.mxu0 0
        %1322 = vmatmul.mubr.bf16.gmra.mrb[0].mxu0 %v1229
        %v1323 = vpop.f32.mrb[0].mxu0
        %v1324 = vadd.f32 0.0, %v1323
        %v1325 = vpop.f32.mrb[0].mxu0
        %v1326 = vpop.f32.mrb[0].mxu0
        %v1327 = vadd.f32 0.0, %v1326
        %v1328 = vpop.f32.mrb[0].mxu0
        %1329 = vdwg.mxu0
        %v1330 = vpack.c.bf16 %v1327, %v1324
        %v1331 = vld [vmem:[%s1082] sm:$0xf]
        %v1332 = vld [vmem:[%s1082 + $0x4] sm:$0xf]
        %v1333 = vld [vmem:[%s1082 + $0x8] sm:$0xf]
        %v1334 = vld [vmem:[%s1082 + $0xc] sm:$0xf]
        %v1339 = vunpack.c.l.b16 %v1331
        %v1340 = vunpack.c.l.b16 %v1332
        %v1341 = vunpack.c.l.b16 %v1333
        %v1342 = vunpack.c.l.b16 %v1334
        %v1343 = vpack.c.b16 %v1340, %v1339
        %v1344 = vpack.c.b16 %v1342, %v1341
        %1347 = vmatprep.subr.bf16.mxu0 0
        %1348 = vmatpush1.bf16.msra.mxu0 %v1343
        %1349 = vmatprep.subr.bf16.mxu0 0
        %1350 = vmatpush1.bf16.msra.mxu0 %v1344
        %1351 = vmatprep.subr.bf16.mxu0 0
        %1352 = vmatpush1.bf16.msra.mxu0 0
        %1353 = vmatprep.subr.bf16.mxu0 0
        %1354 = vmatpush1.bf16.msra.mxu0 0
        %1355 = vmatprep.subr.bf16.mxu0 0
        %1356 = vmatpush1.bf16.msra.mxu0 0
        %1357 = vmatprep.subr.bf16.mxu0 0
        %1358 = vmatpush1.bf16.msra.mxu0 0
        %1359 = vmatprep.subr.bf16.mxu0 0
        %1360 = vmatpush1.bf16.msra.mxu0 0
        %1361 = vmatprep.subr.bf16.mxu0 0
        %1362 = vmatpush1.bf16.msra.mxu0 0
        %1363 = vmatprep.subr.bf16.mxu0 0
        %1364 = vmatpush1.bf16.msra.mxu0 0
        %1365 = vmatprep.subr.bf16.mxu0 0
        %1366 = vmatpush1.bf16.msra.mxu0 0
        %1367 = vmatprep.subr.bf16.mxu0 0
        %1368 = vmatpush1.bf16.msra.mxu0 0
        %1369 = vmatprep.subr.bf16.mxu0 0
        %1370 = vmatpush1.bf16.msra.mxu0 0
        %1371 = vmatprep.subr.bf16.mxu0 0
        %1372 = vmatpush1.bf16.msra.mxu0 0
        %1373 = vmatprep.subr.bf16.mxu0 0
        %1374 = vmatpush1.bf16.msra.mxu0 0
        %1375 = vmatprep.subr.bf16.mxu0 0
        %1376 = vmatpush1.bf16.msra.mxu0 0
        %1377 = vmatprep.subr.bf16.mxu0 0
        %1378 = vmatpush1.bf16.msra.mxu0 0
        %1379 = vmatprep.mubr.bf16.mxu0 0
        %1380 = vmatmul.mubr.bf16.gmra.mrb[0].mxu0 %v1229
        %v1381 = vpop.f32.mrb[0].mxu0
        %v1382 = vadd.f32 0.0, %v1381
        %v1383 = vpop.f32.mrb[0].mxu0
        %v1384 = vpop.f32.mrb[0].mxu0
        %v1385 = vadd.f32 0.0, %v1384
        %v1386 = vpop.f32.mrb[0].mxu0
        %1387 = vdwg.mxu0
        %v1388 = vpack.c.bf16 %v1385, %v1382
        %vm1389 = vcmask 64512
        %v1391 = vsel %vm1389, %v1272, 0
        %v1394 = vsel %vm1389, %v1330, 0
        %1396 = vmatprep.subr.bf16.mxu0 0
        %1397 = vmatpush1.bf16.xpose.msra.mxu0 %v1394
        %1398 = vmatprep.subr.bf16.mxu0 0
        %1399 = vmatpush1.bf16.xpose.msra.mxu0 0
        %1400 = vmatprep.subr.bf16.mxu0 0
        %1401 = vmatpush1.bf16.xpose.msra.mxu0 0
        %1402 = vmatprep.subr.bf16.mxu0 0
        %1403 = vmatpush1.bf16.xpose.msra.mxu0 0
        %1404 = vmatprep.subr.bf16.mxu0 0
        %1405 = vmatpush1.bf16.xpose.msra.mxu0 0
        %1406 = vmatprep.subr.bf16.mxu0 0
        %1407 = vmatpush1.bf16.xpose.msra.mxu0 0
        %1408 = vmatprep.subr.bf16.mxu0 0
        %1409 = vmatpush1.bf16.xpose.msra.mxu0 0
        %1410 = vmatprep.subr.bf16.mxu0 0
        %1411 = vmatpush1.bf16.xpose.msra.mxu0 0
        %1412 = vmatprep.subr.bf16.mxu0 0
        %1413 = vmatpush1.bf16.xpose.msra.mxu0 0
        %1414 = vmatprep.subr.bf16.mxu0 0
        %1415 = vmatpush1.bf16.xpose.msra.mxu0 0
        %1416 = vmatprep.subr.bf16.mxu0 0
        %1417 = vmatpush1.bf16.xpose.msra.mxu0 0
        %1418 = vmatprep.subr.bf16.mxu0 0
        %1419 = vmatpush1.bf16.xpose.msra.mxu0 0
        %1420 = vmatprep.subr.bf16.mxu0 0
        %1421 = vmatpush1.bf16.xpose.msra.mxu0 0
        %1422 = vmatprep.subr.bf16.mxu0 0
        %1423 = vmatpush1.bf16.xpose.msra.mxu0 0
        %1424 = vmatprep.subr.bf16.mxu0 0
        %1425 = vmatpush1.bf16.xpose.msra.mxu0 0
        %1426 = vmatprep.subr.bf16.mxu0 0
        %1427 = vmatpush1.bf16.xpose.msra.mxu0 0
        %1428 = vmatprep.mubr.bf16.mxu0 0
        %1429 = vmatmul.mubr.bf16.gmra.mrb[0].mxu0 %v1391
        %v1430 = vpop.f32.mrb[0].mxu0
        %v1431 = vadd.f32 0.0, %v1430
        %v1432 = vpop.f32.mrb[0].mxu0
        %v1433 = vpop.f32.mrb[0].mxu0
        %v1434 = vpop.f32.mrb[0].mxu0
        %1435 = vdwg.mxu0
        %v1436 = vsel %vm1389, %v1431, -inf
        %1437 = vmax.xlane.f32.xlu0 %v1436
        %v1438 = vpop.xlane.xlu0 %1437
        %v1439 = vsub.f32 %v1431, %v1438
        %v1440 = vmul.f32 %v1439, 1.442695
        %v1441 = vpow.pop %v1440
        %v1442 = vsel %vm1389, %v1441, 0.0
        %1443 = vadd.xlane.f32.xlu0 %v1442
        %v1444 = vpop.xlane.xlu0 %1443
        %v1445 = vrcp.pop %v1444
        %v1446 = vmul.f32 %v1441, %v1445
        %v1447 = vpack.c.bf16 %v1446, %v1446
        %v1449 = vsel %vm1389, %v1447, 0
        %vm1451 = vcmask 1043456
        %v1453 = vsel %vm1451, %v1388, 0
        %1455 = vmatprep.subr.bf16.mxu0 0
        %1456 = vmatpush1.bf16.msra.mxu0 %v1453
        %1457 = vmatprep.subr.bf16.mxu0 0
        %1458 = vmatpush1.bf16.msra.mxu0 0
        %1459 = vmatprep.subr.bf16.mxu0 0
        %1460 = vmatpush1.bf16.msra.mxu0 0
        %1461 = vmatprep.subr.bf16.mxu0 0
        %1462 = vmatpush1.bf16.msra.mxu0 0
        %1463 = vmatprep.subr.bf16.mxu0 0
        %1464 = vmatpush1.bf16.msra.mxu0 0
        %1465 = vmatprep.subr.bf16.mxu0 0
        %1466 = vmatpush1.bf16.msra.mxu0 0
        %1467 = vmatprep.subr.bf16.mxu0 0
        %1468 = vmatpush1.bf16.msra.mxu0 0
        %1469 = vmatprep.subr.bf16.mxu0 0
        %1470 = vmatpush1.bf16.msra.mxu0 0
        %1471 = vmatprep.subr.bf16.mxu0 0
        %1472 = vmatpush1.bf16.msra.mxu0 0
        %1473 = vmatprep.subr.bf16.mxu0 0
        %1474 = vmatpush1.bf16.msra.mxu0 0
        %1475 = vmatprep.subr.bf16.mxu0 0
        %1476 = vmatpush1.bf16.msra.mxu0 0
        %1477 = vmatprep.subr.bf16.mxu0 0
        %1478 = vmatpush1.bf16.msra.mxu0 0
        %1479 = vmatprep.subr.bf16.mxu0 0
        %1480 = vmatpush1.bf16.msra.mxu0 0
        %1481 = vmatprep.subr.bf16.mxu0 0
        %1482 = vmatpush1.bf16.msra.mxu0 0
        %1483 = vmatprep.subr.bf16.mxu0 0
        %1484 = vmatpush1.bf16.msra.mxu0 0
        %1485 = vmatprep.subr.bf16.mxu0 0
        %1486 = vmatpush1.bf16.msra.mxu0 0
        %1487 = vmatprep.mubr.bf16.mxu0 0
        %1488 = vmatmul.mubr.bf16.gmra.mrb[0].mxu0 %v1449
        %v1489 = vpop.f32.mrb[0].mxu0
        %v1490 = vadd.f32 0.0, %v1489
        %v1491 = vpop.f32.mrb[0].mxu0
        %v1492 = vpop.f32.mrb[0].mxu0
        %v1493 = vpop.f32.mrb[0].mxu0
        %1494 = vdwg.mxu0
        %1495 = vst.msk [vmem:[#allocation2] sm:$0xff] %vm1389, %v1490
        %1497 = vrot.lane.b32.xlu0 %v1272, 120
        %v1498 = vpop.permute.xlu0 %1497
        %1500 = vrot.lane.b32.xlu0 %v1330, 120
        %v1501 = vpop.permute.xlu0 %1500
        %v1503 = vsel %vm1389, %v1498, 0
        %v1506 = vsel %vm1389, %v1501, 0
        %1508 = vmatprep.subr.bf16.mxu0 0
        %1509 = vmatpush1.bf16.xpose.msra.mxu0 %v1506
        %1510 = vmatprep.subr.bf16.mxu0 0
        %1511 = vmatpush1.bf16.xpose.msra.mxu0 0
        %1512 = vmatprep.subr.bf16.mxu0 0
        %1513 = vmatpush1.bf16.xpose.msra.mxu0 0
        %1514 = vmatprep.subr.bf16.mxu0 0
        %1515 = vmatpush1.bf16.xpose.msra.mxu0 0
        %1516 = vmatprep.subr.bf16.mxu0 0
        %1517 = vmatpush1.bf16.xpose.msra.mxu0 0
        %1518 = vmatprep.subr.bf16.mxu0 0
        %1519 = vmatpush1.bf16.xpose.msra.mxu0 0
        %1520 = vmatprep.subr.bf16.mxu0 0
        %1521 = vmatpush1.bf16.xpose.msra.mxu0 0
        %1522 = vmatprep.subr.bf16.mxu0 0
        %1523 = vmatpush1.bf16.xpose.msra.mxu0 0
        %1524 = vmatprep.subr.bf16.mxu0 0
        %1525 = vmatpush1.bf16.xpose.msra.mxu0 0
        %1526 = vmatprep.subr.bf16.mxu0 0
        %1527 = vmatpush1.bf16.xpose.msra.mxu0 0
        %1528 = vmatprep.subr.bf16.mxu0 0
        %1529 = vmatpush1.bf16.xpose.msra.mxu0 0
        %1530 = vmatprep.subr.bf16.mxu0 0
        %1531 = vmatpush1.bf16.xpose.msra.mxu0 0
        %1532 = vmatprep.subr.bf16.mxu0 0
        %1533 = vmatpush1.bf16.xpose.msra.mxu0 0
        %1534 = vmatprep.subr.bf16.mxu0 0
        %1535 = vmatpush1.bf16.xpose.msra.mxu0 0
        %1536 = vmatprep.subr.bf16.mxu0 0
        %1537 = vmatpush1.bf16.xpose.msra.mxu0 0
        %1538 = vmatprep.subr.bf16.mxu0 0
        %1539 = vmatpush1.bf16.xpose.msra.mxu0 0
        %1540 = vmatprep.mubr.bf16.mxu0 0
        %1541 = vmatmul.mubr.bf16.gmra.mrb[0].mxu0 %v1503
        %v1542 = vpop.f32.mrb[0].mxu0
        %v1543 = vadd.f32 0.0, %v1542
        %v1544 = vpop.f32.mrb[0].mxu0
        %v1545 = vpop.f32.mrb[0].mxu0
        %v1546 = vpop.f32.mrb[0].mxu0
        %1547 = vdwg.mxu0
        %v1548 = vsel %vm1389, %v1543, -inf
        %1549 = vmax.xlane.f32.xlu0 %v1548
        %v1550 = vpop.xlane.xlu0 %1549
        %v1551 = vsub.f32 %v1543, %v1550
        %v1552 = vmul.f32 %v1551, 1.442695
        %v1553 = vpow.pop %v1552
        %v1554 = vsel %vm1389, %v1553, 0.0
        %1555 = vadd.xlane.f32.xlu0 %v1554
        %v1556 = vpop.xlane.xlu0 %1555
        %v1557 = vrcp.pop %v1556
        %v1558 = vmul.f32 %v1553, %v1557
        %v1559 = vpack.c.bf16 %v1558, %v1558
        %1561 = vrot.lane.b32.xlu0 %v1388, 120
        %v1562 = vpop.permute.xlu0 %1561
        %v1564 = vsel %vm1389, %v1559, 0
        %v1567 = vsel %vm1451, %v1562, 0
        %1569 = vmatprep.subr.bf16.mxu0 0
        %1570 = vmatpush1.bf16.msra.mxu0 %v1567
        %1571 = vmatprep.subr.bf16.mxu0 0
        %1572 = vmatpush1.bf16.msra.mxu0 0
        %1573 = vmatprep.subr.bf16.mxu0 0
        %1574 = vmatpush1.bf16.msra.mxu0 0
        %1575 = vmatprep.subr.bf16.mxu0 0
        %1576 = vmatpush1.bf16.msra.mxu0 0
        %1577 = vmatprep.subr.bf16.mxu0 0
        %1578 = vmatpush1.bf16.msra.mxu0 0
        %1579 = vmatprep.subr.bf16.mxu0 0
        %1580 = vmatpush1.bf16.msra.mxu0 0
        %1581 = vmatprep.subr.bf16.mxu0 0
        %1582 = vmatpush1.bf16.msra.mxu0 0
        %1583 = vmatprep.subr.bf16.mxu0 0
        %1584 = vmatpush1.bf16.msra.mxu0 0
        %1585 = vmatprep.subr.bf16.mxu0 0
        %1586 = vmatpush1.bf16.msra.mxu0 0
        %1587 = vmatprep.subr.bf16.mxu0 0
        %1588 = vmatpush1.bf16.msra.mxu0 0
        %1589 = vmatprep.subr.bf16.mxu0 0
        %1590 = vmatpush1.bf16.msra.mxu0 0
        %1591 = vmatprep.subr.bf16.mxu0 0
        %1592 = vmatpush1.bf16.msra.mxu0 0
        %1593 = vmatprep.subr.bf16.mxu0 0
        %1594 = vmatpush1.bf16.msra.mxu0 0
        %1595 = vmatprep.subr.bf16.mxu0 0
        %1596 = vmatpush1.bf16.msra.mxu0 0
        %1597 = vmatprep.subr.bf16.mxu0 0
        %1598 = vmatpush1.bf16.msra.mxu0 0
        %1599 = vmatprep.subr.bf16.mxu0 0
        %1600 = vmatpush1.bf16.msra.mxu0 0
        %1601 = vmatprep.mubr.bf16.mxu0 0
        %1602 = vmatmul.mubr.bf16.gmra.mrb[0].mxu0 %v1564
        %v1603 = vpop.f32.mrb[0].mxu0
        %v1604 = vadd.f32 0.0, %v1603
        %v1605 = vpop.f32.mrb[0].mxu0
        %v1606 = vpop.f32.mrb[0].mxu0
        %v1607 = vpop.f32.mrb[0].mxu0
        %1608 = vdwg.mxu0
        %1610 = vrot.lane.b32.xlu0 %v1604, 8
        %v1611 = vpop.permute.xlu0 %1610
        %vm1613 = vcmask 130112
        %1614 = vst.msk [vmem:[#allocation2] sm:$0xff] %vm1613, %v1611
        %1615 = vrot.lane.b32.xlu0 %v1272, 112
        %v1616 = vpop.permute.xlu0 %1615
        %1617 = vrot.lane.b32.xlu0 %v1330, 112
        %v1618 = vpop.permute.xlu0 %1617
        %v1620 = vsel %vm1389, %v1616, 0
        %v1623 = vsel %vm1389, %v1618, 0
        %1625 = vmatprep.subr.bf16.mxu0 0
        %1626 = vmatpush1.bf16.xpose.msra.mxu0 %v1623
        %1627 = vmatprep.subr.bf16.mxu0 0
        %1628 = vmatpush1.bf16.xpose.msra.mxu0 0
        %1629 = vmatprep.subr.bf16.mxu0 0
        %1630 = vmatpush1.bf16.xpose.msra.mxu0 0
        %1631 = vmatprep.subr.bf16.mxu0 0
        %1632 = vmatpush1.bf16.xpose.msra.mxu0 0
        %1633 = vmatprep.subr.bf16.mxu0 0
        %1634 = vmatpush1.bf16.xpose.msra.mxu0 0
        %1635 = vmatprep.subr.bf16.mxu0 0
        %1636 = vmatpush1.bf16.xpose.msra.mxu0 0
        %1637 = vmatprep.subr.bf16.mxu0 0
        %1638 = vmatpush1.bf16.xpose.msra.mxu0 0
        %1639 = vmatprep.subr.bf16.mxu0 0
        %1640 = vmatpush1.bf16.xpose.msra.mxu0 0
        %1641 = vmatprep.subr.bf16.mxu0 0
        %1642 = vmatpush1.bf16.xpose.msra.mxu0 0
        %1643 = vmatprep.subr.bf16.mxu0 0
        %1644 = vmatpush1.bf16.xpose.msra.mxu0 0
        %1645 = vmatprep.subr.bf16.mxu0 0
        %1646 = vmatpush1.bf16.xpose.msra.mxu0 0
        %1647 = vmatprep.subr.bf16.mxu0 0
        %1648 = vmatpush1.bf16.xpose.msra.mxu0 0
        %1649 = vmatprep.subr.bf16.mxu0 0
        %1650 = vmatpush1.bf16.xpose.msra.mxu0 0
        %1651 = vmatprep.subr.bf16.mxu0 0
        %1652 = vmatpush1.bf16.xpose.msra.mxu0 0
        %1653 = vmatprep.subr.bf16.mxu0 0
        %1654 = vmatpush1.bf16.xpose.msra.mxu0 0
        %1655 = vmatprep.subr.bf16.mxu0 0
        %1656 = vmatpush1.bf16.xpose.msra.mxu0 0
        %1657 = vmatprep.mubr.bf16.mxu0 0
        %1658 = vmatmul.mubr.bf16.gmra.mrb[0].mxu0 %v1620
        %v1659 = vpop.f32.mrb[0].mxu0
        %v1660 = vadd.f32 0.0, %v1659
        %v1661 = vpop.f32.mrb[0].mxu0
        %v1662 = vpop.f32.mrb[0].mxu0
        %v1663 = vpop.f32.mrb[0].mxu0
        %1664 = vdwg.mxu0
        %v1665 = vsel %vm1389, %v1660, -inf
        %1666 = vmax.xlane.f32.xlu0 %v1665
        %v1667 = vpop.xlane.xlu0 %1666
        %v1668 = vsub.f32 %v1660, %v1667
        %v1669 = vmul.f32 %v1668, 1.442695
        %v1670 = vpow.pop %v1669
        %v1671 = vsel %vm1389, %v1670, 0.0
        %1672 = vadd.xlane.f32.xlu0 %v1671
        %v1673 = vpop.xlane.xlu0 %1672
        %v1674 = vrcp.pop %v1673
        %v1675 = vmul.f32 %v1670, %v1674
        %v1676 = vpack.c.bf16 %v1675, %v1675
        %1677 = vrot.lane.b32.xlu0 %v1388, 112
        %v1678 = vpop.permute.xlu0 %1677
        %v1680 = vsel %vm1389, %v1676, 0
        %v1683 = vsel %vm1451, %v1678, 0
        %1685 = vmatprep.subr.bf16.mxu0 0
        %1686 = vmatpush1.bf16.msra.mxu0 %v1683
        %1687 = vmatprep.subr.bf16.mxu0 0
        %1688 = vmatpush1.bf16.msra.mxu0 0
        %1689 = vmatprep.subr.bf16.mxu0 0
        %1690 = vmatpush1.bf16.msra.mxu0 0
        %1691 = vmatprep.subr.bf16.mxu0 0
        %1692 = vmatpush1.bf16.msra.mxu0 0
        %1693 = vmatprep.subr.bf16.mxu0 0
        %1694 = vmatpush1.bf16.msra.mxu0 0
        %1695 = vmatprep.subr.bf16.mxu0 0
        %1696 = vmatpush1.bf16.msra.mxu0 0
        %1697 = vmatprep.subr.bf16.mxu0 0
        %1698 = vmatpush1.bf16.msra.mxu0 0
        %1699 = vmatprep.subr.bf16.mxu0 0
        %1700 = vmatpush1.bf16.msra.mxu0 0
        %1701 = vmatprep.subr.bf16.mxu0 0
        %1702 = vmatpush1.bf16.msra.mxu0 0
        %1703 = vmatprep.subr.bf16.mxu0 0
        %1704 = vmatpush1.bf16.msra.mxu0 0
        %1705 = vmatprep.subr.bf16.mxu0 0
        %1706 = vmatpush1.bf16.msra.mxu0 0
        %1707 = vmatprep.subr.bf16.mxu0 0
        %1708 = vmatpush1.bf16.msra.mxu0 0
        %1709 = vmatprep.subr.bf16.mxu0 0
        %1710 = vmatpush1.bf16.msra.mxu0 0
        %1711 = vmatprep.subr.bf16.mxu0 0
        %1712 = vmatpush1.bf16.msra.mxu0 0
        %1713 = vmatprep.subr.bf16.mxu0 0
        %1714 = vmatpush1.bf16.msra.mxu0 0
        %1715 = vmatprep.subr.bf16.mxu0 0
        %1716 = vmatpush1.bf16.msra.mxu0 0
        %1717 = vmatprep.mubr.bf16.mxu0 0
        %1718 = vmatmul.mubr.bf16.gmra.mrb[0].mxu0 %v1680
        %v1719 = vpop.f32.mrb[0].mxu0
        %v1720 = vadd.f32 0.0, %v1719
        %v1721 = vpop.f32.mrb[0].mxu0
        %v1722 = vpop.f32.mrb[0].mxu0
        %v1723 = vpop.f32.mrb[0].mxu0
        %1724 = vdwg.mxu0
        %1726 = vrot.lane.b32.xlu0 %v1720, 16
        %v1727 = vpop.permute.xlu0 %1726
        %vm1729 = vcmask 195712
        %1730 = vst.msk [vmem:[#allocation2] sm:$0xff] %vm1729, %v1727
        %1731 = vrot.lane.b32.xlu0 %v1272, 104
        %v1732 = vpop.permute.xlu0 %1731
        %1733 = vrot.lane.b32.xlu0 %v1330, 104
        %v1734 = vpop.permute.xlu0 %1733
        %v1736 = vsel %vm1389, %v1732, 0
        %v1739 = vsel %vm1389, %v1734, 0
        %1741 = vmatprep.subr.bf16.mxu0 0
        %1742 = vmatpush1.bf16.xpose.msra.mxu0 %v1739
        %1743 = vmatprep.subr.bf16.mxu0 0
        %1744 = vmatpush1.bf16.xpose.msra.mxu0 0
        %1745 = vmatprep.subr.bf16.mxu0 0
        %1746 = vmatpush1.bf16.xpose.msra.mxu0 0
        %1747 = vmatprep.subr.bf16.mxu0 0
        %1748 = vmatpush1.bf16.xpose.msra.mxu0 0
        %1749 = vmatprep.subr.bf16.mxu0 0
        %1750 = vmatpush1.bf16.xpose.msra.mxu0 0
        %1751 = vmatprep.subr.bf16.mxu0 0
        %1752 = vmatpush1.bf16.xpose.msra.mxu0 0
        %1753 = vmatprep.subr.bf16.mxu0 0
        %1754 = vmatpush1.bf16.xpose.msra.mxu0 0
        %1755 = vmatprep.subr.bf16.mxu0 0
        %1756 = vmatpush1.bf16.xpose.msra.mxu0 0
        %1757 = vmatprep.subr.bf16.mxu0 0
        %1758 = vmatpush1.bf16.xpose.msra.mxu0 0
        %1759 = vmatprep.subr.bf16.mxu0 0
        %1760 = vmatpush1.bf16.xpose.msra.mxu0 0
        %1761 = vmatprep.subr.bf16.mxu0 0
        %1762 = vmatpush1.bf16.xpose.msra.mxu0 0
        %1763 = vmatprep.subr.bf16.mxu0 0
        %1764 = vmatpush1.bf16.xpose.msra.mxu0 0
        %1765 = vmatprep.subr.bf16.mxu0 0
        %1766 = vmatpush1.bf16.xpose.msra.mxu0 0
        %1767 = vmatprep.subr.bf16.mxu0 0
        %1768 = vmatpush1.bf16.xpose.msra.mxu0 0
        %1769 = vmatprep.subr.bf16.mxu0 0
        %1770 = vmatpush1.bf16.xpose.msra.mxu0 0
        %1771 = vmatprep.subr.bf16.mxu0 0
        %1772 = vmatpush1.bf16.xpose.msra.mxu0 0
        %1773 = vmatprep.mubr.bf16.mxu0 0
        %1774 = vmatmul.mubr.bf16.gmra.mrb[0].mxu0 %v1736
        %v1775 = vpop.f32.mrb[0].mxu0
        %v1776 = vadd.f32 0.0, %v1775
        %v1777 = vpop.f32.mrb[0].mxu0
        %v1778 = vpop.f32.mrb[0].mxu0
        %v1779 = vpop.f32.mrb[0].mxu0
        %1780 = vdwg.mxu0
        %v1781 = vsel %vm1389, %v1776, -inf
        %1782 = vmax.xlane.f32.xlu0 %v1781
        %v1783 = vpop.xlane.xlu0 %1782
        %v1784 = vsub.f32 %v1776, %v1783
        %v1785 = vmul.f32 %v1784, 1.442695
        %v1786 = vpow.pop %v1785
        %v1787 = vsel %vm1389, %v1786, 0.0
        %1788 = vadd.xlane.f32.xlu0 %v1787
        %v1789 = vpop.xlane.xlu0 %1788
        %v1790 = vrcp.pop %v1789
        %v1791 = vmul.f32 %v1786, %v1790
        %v1792 = vpack.c.bf16 %v1791, %v1791
        %1793 = vrot.lane.b32.xlu0 %v1388, 104
        %v1794 = vpop.permute.xlu0 %1793
        %v1796 = vsel %vm1389, %v1792, 0
        %v1799 = vsel %vm1451, %v1794, 0
        %1801 = vmatprep.subr.bf16.mxu0 0
        %1802 = vmatpush1.bf16.msra.mxu0 %v1799
        %1803 = vmatprep.subr.bf16.mxu0 0
        %1804 = vmatpush1.bf16.msra.mxu0 0
        %1805 = vmatprep.subr.bf16.mxu0 0
        %1806 = vmatpush1.bf16.msra.mxu0 0
        %1807 = vmatprep.subr.bf16.mxu0 0
        %1808 = vmatpush1.bf16.msra.mxu0 0
        %1809 = vmatprep.subr.bf16.mxu0 0
        %1810 = vmatpush1.bf16.msra.mxu0 0
        %1811 = vmatprep.subr.bf16.mxu0 0
        %1812 = vmatpush1.bf16.msra.mxu0 0
        %1813 = vmatprep.subr.bf16.mxu0 0
        %1814 = vmatpush1.bf16.msra.mxu0 0
        %1815 = vmatprep.subr.bf16.mxu0 0
        %1816 = vmatpush1.bf16.msra.mxu0 0
        %1817 = vmatprep.subr.bf16.mxu0 0
        %1818 = vmatpush1.bf16.msra.mxu0 0
        %1819 = vmatprep.subr.bf16.mxu0 0
        %1820 = vmatpush1.bf16.msra.mxu0 0
        %1821 = vmatprep.subr.bf16.mxu0 0
        %1822 = vmatpush1.bf16.msra.mxu0 0
        %1823 = vmatprep.subr.bf16.mxu0 0
        %1824 = vmatpush1.bf16.msra.mxu0 0
        %1825 = vmatprep.subr.bf16.mxu0 0
        %1826 = vmatpush1.bf16.msra.mxu0 0
        %1827 = vmatprep.subr.bf16.mxu0 0
        %1828 = vmatpush1.bf16.msra.mxu0 0
        %1829 = vmatprep.subr.bf16.mxu0 0
        %1830 = vmatpush1.bf16.msra.mxu0 0
        %1831 = vmatprep.subr.bf16.mxu0 0
        %1832 = vmatpush1.bf16.msra.mxu0 0
        %1833 = vmatprep.mubr.bf16.mxu0 0
        %1834 = vmatmul.mubr.bf16.gmra.mrb[0].mxu0 %v1796
        %v1835 = vpop.f32.mrb[0].mxu0
        %v1836 = vadd.f32 0.0, %v1835
        %v1837 = vpop.f32.mrb[0].mxu0
        %v1838 = vpop.f32.mrb[0].mxu0
        %v1839 = vpop.f32.mrb[0].mxu0
        %1840 = vdwg.mxu0
        %1842 = vrot.lane.b32.xlu0 %v1836, 24
        %v1843 = vpop.permute.xlu0 %1842
        %vm1845 = vcmask 261312
        %1846 = vst.msk [vmem:[#allocation2] sm:$0xff] %vm1845, %v1843
        %v1847 = vrot.slane %v1272, 4
        %v1848 = vrot.slane %v1330, 4
        %v1850 = vsel %vm1389, %v1847, 0
        %v1853 = vsel %vm1389, %v1848, 0
        %1855 = vmatprep.subr.bf16.mxu0 0
        %1856 = vmatpush1.bf16.xpose.msra.mxu0 %v1853
        %1857 = vmatprep.subr.bf16.mxu0 0
        %1858 = vmatpush1.bf16.xpose.msra.mxu0 0
        %1859 = vmatprep.subr.bf16.mxu0 0
        %1860 = vmatpush1.bf16.xpose.msra.mxu0 0
        %1861 = vmatprep.subr.bf16.mxu0 0
        %1862 = vmatpush1.bf16.xpose.msra.mxu0 0
        %1863 = vmatprep.subr.bf16.mxu0 0
        %1864 = vmatpush1.bf16.xpose.msra.mxu0 0
        %1865 = vmatprep.subr.bf16.mxu0 0
        %1866 = vmatpush1.bf16.xpose.msra.mxu0 0
        %1867 = vmatprep.subr.bf16.mxu0 0
        %1868 = vmatpush1.bf16.xpose.msra.mxu0 0
        %1869 = vmatprep.subr.bf16.mxu0 0
        %1870 = vmatpush1.bf16.xpose.msra.mxu0 0
        %1871 = vmatprep.subr.bf16.mxu0 0
        %1872 = vmatpush1.bf16.xpose.msra.mxu0 0
        %1873 = vmatprep.subr.bf16.mxu0 0
        %1874 = vmatpush1.bf16.xpose.msra.mxu0 0
        %1875 = vmatprep.subr.bf16.mxu0 0
        %1876 = vmatpush1.bf16.xpose.msra.mxu0 0
        %1877 = vmatprep.subr.bf16.mxu0 0
        %1878 = vmatpush1.bf16.xpose.msra.mxu0 0
        %1879 = vmatprep.subr.bf16.mxu0 0
        %1880 = vmatpush1.bf16.xpose.msra.mxu0 0
        %1881 = vmatprep.subr.bf16.mxu0 0
        %1882 = vmatpush1.bf16.xpose.msra.mxu0 0
        %1883 = vmatprep.subr.bf16.mxu0 0
        %1884 = vmatpush1.bf16.xpose.msra.mxu0 0
        %1885 = vmatprep.subr.bf16.mxu0 0
        %1886 = vmatpush1.bf16.xpose.msra.mxu0 0
        %1887 = vmatprep.mubr.bf16.mxu0 0
        %1888 = vmatmul.mubr.bf16.gmra.mrb[0].mxu0 %v1850
        %v1889 = vpop.f32.mrb[0].mxu0
        %v1890 = vadd.f32 0.0, %v1889
        %v1891 = vpop.f32.mrb[0].mxu0
        %v1892 = vpop.f32.mrb[0].mxu0
        %v1893 = vpop.f32.mrb[0].mxu0
        %1894 = vdwg.mxu0
        %v1895 = vsel %vm1389, %v1890, -inf
        %1896 = vmax.xlane.f32.xlu0 %v1895
        %v1897 = vpop.xlane.xlu0 %1896
        %v1898 = vsub.f32 %v1890, %v1897
        %v1899 = vmul.f32 %v1898, 1.442695
        %v1900 = vpow.pop %v1899
        %v1901 = vsel %vm1389, %v1900, 0.0
        %1902 = vadd.xlane.f32.xlu0 %v1901
        %v1903 = vpop.xlane.xlu0 %1902
        %v1904 = vrcp.pop %v1903
        %v1905 = vmul.f32 %v1900, %v1904
        %v1906 = vpack.c.bf16 %v1905, %v1905
        %v1907 = vrot.slane %v1388, 4
        %v1909 = vsel %vm1389, %v1906, 0
        %v1912 = vsel %vm1451, %v1907, 0
        %1914 = vmatprep.subr.bf16.mxu0 0
        %1915 = vmatpush1.bf16.msra.mxu0 %v1912
        %1916 = vmatprep.subr.bf16.mxu0 0
        %1917 = vmatpush1.bf16.msra.mxu0 0
        %1918 = vmatprep.subr.bf16.mxu0 0
        %1919 = vmatpush1.bf16.msra.mxu0 0
        %1920 = vmatprep.subr.bf16.mxu0 0
        %1921 = vmatpush1.bf16.msra.mxu0 0
        %1922 = vmatprep.subr.bf16.mxu0 0
        %1923 = vmatpush1.bf16.msra.mxu0 0
        %1924 = vmatprep.subr.bf16.mxu0 0
        %1925 = vmatpush1.bf16.msra.mxu0 0
        %1926 = vmatprep.subr.bf16.mxu0 0
        %1927 = vmatpush1.bf16.msra.mxu0 0
        %1928 = vmatprep.subr.bf16.mxu0 0
        %1929 = vmatpush1.bf16.msra.mxu0 0
        %1930 = vmatprep.subr.bf16.mxu0 0
        %1931 = vmatpush1.bf16.msra.mxu0 0
        %1932 = vmatprep.subr.bf16.mxu0 0
        %1933 = vmatpush1.bf16.msra.mxu0 0
        %1934 = vmatprep.subr.bf16.mxu0 0
        %1935 = vmatpush1.bf16.msra.mxu0 0
        %1936 = vmatprep.subr.bf16.mxu0 0
        %1937 = vmatpush1.bf16.msra.mxu0 0
        %1938 = vmatprep.subr.bf16.mxu0 0
        %1939 = vmatpush1.bf16.msra.mxu0 0
        %1940 = vmatprep.subr.bf16.mxu0 0
        %1941 = vmatpush1.bf16.msra.mxu0 0
        %1942 = vmatprep.subr.bf16.mxu0 0
        %1943 = vmatpush1.bf16.msra.mxu0 0
        %1944 = vmatprep.subr.bf16.mxu0 0
        %1945 = vmatpush1.bf16.msra.mxu0 0
        %1946 = vmatprep.mubr.bf16.mxu0 0
        %1947 = vmatmul.mubr.bf16.gmra.mrb[0].mxu0 %v1909
        %v1948 = vpop.f32.mrb[0].mxu0
        %v1949 = vadd.f32 0.0, %v1948
        %v1950 = vpop.f32.mrb[0].mxu0
        %v1951 = vpop.f32.mrb[0].mxu0
        %v1952 = vpop.f32.mrb[0].mxu0
        %1953 = vdwg.mxu0
        %1954 = vst.msk [vmem:[#allocation2 + $0x8] sm:$0xff] %vm1389, %v1949
        %1955 = vrot.lane.b32.xlu0 %v1847, 120
        %v1956 = vpop.permute.xlu0 %1955
        %1957 = vrot.lane.b32.xlu0 %v1848, 120
        %v1958 = vpop.permute.xlu0 %1957
        %v1960 = vsel %vm1389, %v1956, 0
        %v1963 = vsel %vm1389, %v1958, 0
        %1965 = vmatprep.subr.bf16.mxu0 0
        %1966 = vmatpush1.bf16.xpose.msra.mxu0 %v1963
        %1967 = vmatprep.subr.bf16.mxu0 0
        %1968 = vmatpush1.bf16.xpose.msra.mxu0 0
        %1969 = vmatprep.subr.bf16.mxu0 0
        %1970 = vmatpush1.bf16.xpose.msra.mxu0 0
        %1971 = vmatprep.subr.bf16.mxu0 0
        %1972 = vmatpush1.bf16.xpose.msra.mxu0 0
        %1973 = vmatprep.subr.bf16.mxu0 0
        %1974 = vmatpush1.bf16.xpose.msra.mxu0 0
        %1975 = vmatprep.subr.bf16.mxu0 0
        %1976 = vmatpush1.bf16.xpose.msra.mxu0 0
        %1977 = vmatprep.subr.bf16.mxu0 0
        %1978 = vmatpush1.bf16.xpose.msra.mxu0 0
        %1979 = vmatprep.subr.bf16.mxu0 0
        %1980 = vmatpush1.bf16.xpose.msra.mxu0 0
        %1981 = vmatprep.subr.bf16.mxu0 0
        %1982 = vmatpush1.bf16.xpose.msra.mxu0 0
        %1983 = vmatprep.subr.bf16.mxu0 0
        %1984 = vmatpush1.bf16.xpose.msra.mxu0 0
        %1985 = vmatprep.subr.bf16.mxu0 0
        %1986 = vmatpush1.bf16.xpose.msra.mxu0 0
        %1987 = vmatprep.subr.bf16.mxu0 0
        %1988 = vmatpush1.bf16.xpose.msra.mxu0 0
        %1989 = vmatprep.subr.bf16.mxu0 0
        %1990 = vmatpush1.bf16.xpose.msra.mxu0 0
        %1991 = vmatprep.subr.bf16.mxu0 0
        %1992 = vmatpush1.bf16.xpose.msra.mxu0 0
        %1993 = vmatprep.subr.bf16.mxu0 0
        %1994 = vmatpush1.bf16.xpose.msra.mxu0 0
        %1995 = vmatprep.subr.bf16.mxu0 0
        %1996 = vmatpush1.bf16.xpose.msra.mxu0 0
        %1997 = vmatprep.mubr.bf16.mxu0 0
        %1998 = vmatmul.mubr.bf16.gmra.mrb[0].mxu0 %v1960
        %v1999 = vpop.f32.mrb[0].mxu0
        %v2000 = vadd.f32 0.0, %v1999
        %v2001 = vpop.f32.mrb[0].mxu0
        %v2002 = vpop.f32.mrb[0].mxu0
        %v2003 = vpop.f32.mrb[0].mxu0
        %2004 = vdwg.mxu0
        %v2005 = vsel %vm1389, %v2000, -inf
        %2006 = vmax.xlane.f32.xlu0 %v2005
        %v2007 = vpop.xlane.xlu0 %2006
        %v2008 = vsub.f32 %v2000, %v2007
        %v2009 = vmul.f32 %v2008, 1.442695
        %v2010 = vpow.pop %v2009
        %v2011 = vsel %vm1389, %v2010, 0.0
        %2012 = vadd.xlane.f32.xlu0 %v2011
        %v2013 = vpop.xlane.xlu0 %2012
        %v2014 = vrcp.pop %v2013
        %v2015 = vmul.f32 %v2010, %v2014
        %v2016 = vpack.c.bf16 %v2015, %v2015
        %2017 = vrot.lane.b32.xlu0 %v1907, 120
        %v2018 = vpop.permute.xlu0 %2017
        %v2020 = vsel %vm1389, %v2016, 0
        %v2023 = vsel %vm1451, %v2018, 0
        %2025 = vmatprep.subr.bf16.mxu0 0
        %2026 = vmatpush1.bf16.msra.mxu0 %v2023
        %2027 = vmatprep.subr.bf16.mxu0 0
        %2028 = vmatpush1.bf16.msra.mxu0 0
        %2029 = vmatprep.subr.bf16.mxu0 0
        %2030 = vmatpush1.bf16.msra.mxu0 0
        %2031 = vmatprep.subr.bf16.mxu0 0
        %2032 = vmatpush1.bf16.msra.mxu0 0
        %2033 = vmatprep.subr.bf16.mxu0 0
        %2034 = vmatpush1.bf16.msra.mxu0 0
        %2035 = vmatprep.subr.bf16.mxu0 0
        %2036 = vmatpush1.bf16.msra.mxu0 0
        %2037 = vmatprep.subr.bf16.mxu0 0
        %2038 = vmatpush1.bf16.msra.mxu0 0
        %2039 = vmatprep.subr.bf16.mxu0 0
        %2040 = vmatpush1.bf16.msra.mxu0 0
        %2041 = vmatprep.subr.bf16.mxu0 0
        %2042 = vmatpush1.bf16.msra.mxu0 0
        %2043 = vmatprep.subr.bf16.mxu0 0
        %2044 = vmatpush1.bf16.msra.mxu0 0
        %2045 = vmatprep.subr.bf16.mxu0 0
        %2046 = vmatpush1.bf16.msra.mxu0 0
        %2047 = vmatprep.subr.bf16.mxu0 0
        %2048 = vmatpush1.bf16.msra.mxu0 0
        %2049 = vmatprep.subr.bf16.mxu0 0
        %2050 = vmatpush1.bf16.msra.mxu0 0
        %2051 = vmatprep.subr.bf16.mxu0 0
        %2052 = vmatpush1.bf16.msra.mxu0 0
        %2053 = vmatprep.subr.bf16.mxu0 0
        %2054 = vmatpush1.bf16.msra.mxu0 0
        %2055 = vmatprep.subr.bf16.mxu0 0
        %2056 = vmatpush1.bf16.msra.mxu0 0
        %2057 = vmatprep.mubr.bf16.mxu0 0
        %2058 = vmatmul.mubr.bf16.gmra.mrb[0].mxu0 %v2020
        %v2059 = vpop.f32.mrb[0].mxu0
        %v2060 = vadd.f32 0.0, %v2059
        %v2061 = vpop.f32.mrb[0].mxu0
        %v2062 = vpop.f32.mrb[0].mxu0
        %v2063 = vpop.f32.mrb[0].mxu0
        %2064 = vdwg.mxu0
        %2066 = vrot.lane.b32.xlu0 %v2060, 8
        %v2067 = vpop.permute.xlu0 %2066
        %2069 = vst.msk [vmem:[#allocation2 + $0x8] sm:$0xff] %vm1613, %v2067
        %2070 = vrot.lane.b32.xlu0 %v1847, 112
        %v2071 = vpop.permute.xlu0 %2070
        %2072 = vrot.lane.b32.xlu0 %v1848, 112
        %v2073 = vpop.permute.xlu0 %2072
        %v2075 = vsel %vm1389, %v2071, 0
        %v2078 = vsel %vm1389, %v2073, 0
        %2080 = vmatprep.subr.bf16.mxu0 0
        %2081 = vmatpush1.bf16.xpose.msra.mxu0 %v2078
        %2082 = vmatprep.subr.bf16.mxu0 0
        %2083 = vmatpush1.bf16.xpose.msra.mxu0 0
        %2084 = vmatprep.subr.bf16.mxu0 0
        %2085 = vmatpush1.bf16.xpose.msra.mxu0 0
        %2086 = vmatprep.subr.bf16.mxu0 0
        %2087 = vmatpush1.bf16.xpose.msra.mxu0 0
        %2088 = vmatprep.subr.bf16.mxu0 0
        %2089 = vmatpush1.bf16.xpose.msra.mxu0 0
        %2090 = vmatprep.subr.bf16.mxu0 0
        %2091 = vmatpush1.bf16.xpose.msra.mxu0 0
        %2092 = vmatprep.subr.bf16.mxu0 0
        %2093 = vmatpush1.bf16.xpose.msra.mxu0 0
        %2094 = vmatprep.subr.bf16.mxu0 0
        %2095 = vmatpush1.bf16.xpose.msra.mxu0 0
        %2096 = vmatprep.subr.bf16.mxu0 0
        %2097 = vmatpush1.bf16.xpose.msra.mxu0 0
        %2098 = vmatprep.subr.bf16.mxu0 0
        %2099 = vmatpush1.bf16.xpose.msra.mxu0 0
        %2100 = vmatprep.subr.bf16.mxu0 0
        %2101 = vmatpush1.bf16.xpose.msra.mxu0 0
        %2102 = vmatprep.subr.bf16.mxu0 0
        %2103 = vmatpush1.bf16.xpose.msra.mxu0 0
        %2104 = vmatprep.subr.bf16.mxu0 0
        %2105 = vmatpush1.bf16.xpose.msra.mxu0 0
        %2106 = vmatprep.subr.bf16.mxu0 0
        %2107 = vmatpush1.bf16.xpose.msra.mxu0 0
        %2108 = vmatprep.subr.bf16.mxu0 0
        %2109 = vmatpush1.bf16.xpose.msra.mxu0 0
        %2110 = vmatprep.subr.bf16.mxu0 0
        %2111 = vmatpush1.bf16.xpose.msra.mxu0 0
        %2112 = vmatprep.mubr.bf16.mxu0 0
        %2113 = vmatmul.mubr.bf16.gmra.mrb[0].mxu0 %v2075
        %v2114 = vpop.f32.mrb[0].mxu0
        %v2115 = vadd.f32 0.0, %v2114
        %v2116 = vpop.f32.mrb[0].mxu0
        %v2117 = vpop.f32.mrb[0].mxu0
        %v2118 = vpop.f32.mrb[0].mxu0
        %2119 = vdwg.mxu0
        %v2120 = vsel %vm1389, %v2115, -inf
        %2121 = vmax.xlane.f32.xlu0 %v2120
        %v2122 = vpop.xlane.xlu0 %2121
        %v2123 = vsub.f32 %v2115, %v2122
        %v2124 = vmul.f32 %v2123, 1.442695
        %v2125 = vpow.pop %v2124
        %v2126 = vsel %vm1389, %v2125, 0.0
        %2127 = vadd.xlane.f32.xlu0 %v2126
        %v2128 = vpop.xlane.xlu0 %2127
        %v2129 = vrcp.pop %v2128
        %v2130 = vmul.f32 %v2125, %v2129
        %v2131 = vpack.c.bf16 %v2130, %v2130
        %2132 = vrot.lane.b32.xlu0 %v1907, 112
        %v2133 = vpop.permute.xlu0 %2132
        %v2135 = vsel %vm1389, %v2131, 0
        %v2138 = vsel %vm1451, %v2133, 0
        %2140 = vmatprep.subr.bf16.mxu0 0
        %2141 = vmatpush1.bf16.msra.mxu0 %v2138
        %2142 = vmatprep.subr.bf16.mxu0 0
        %2143 = vmatpush1.bf16.msra.mxu0 0
        %2144 = vmatprep.subr.bf16.mxu0 0
        %2145 = vmatpush1.bf16.msra.mxu0 0
        %2146 = vmatprep.subr.bf16.mxu0 0
        %2147 = vmatpush1.bf16.msra.mxu0 0
        %2148 = vmatprep.subr.bf16.mxu0 0
        %2149 = vmatpush1.bf16.msra.mxu0 0
        %2150 = vmatprep.subr.bf16.mxu0 0
        %2151 = vmatpush1.bf16.msra.mxu0 0
        %2152 = vmatprep.subr.bf16.mxu0 0
        %2153 = vmatpush1.bf16.msra.mxu0 0
        %2154 = vmatprep.subr.bf16.mxu0 0
        %2155 = vmatpush1.bf16.msra.mxu0 0
        %2156 = vmatprep.subr.bf16.mxu0 0
        %2157 = vmatpush1.bf16.msra.mxu0 0
        %2158 = vmatprep.subr.bf16.mxu0 0
        %2159 = vmatpush1.bf16.msra.mxu0 0
        %2160 = vmatprep.subr.bf16.mxu0 0
        %2161 = vmatpush1.bf16.msra.mxu0 0
        %2162 = vmatprep.subr.bf16.mxu0 0
        %2163 = vmatpush1.bf16.msra.mxu0 0
        %2164 = vmatprep.subr.bf16.mxu0 0
        %2165 = vmatpush1.bf16.msra.mxu0 0
        %2166 = vmatprep.subr.bf16.mxu0 0
        %2167 = vmatpush1.bf16.msra.mxu0 0
        %2168 = vmatprep.subr.bf16.mxu0 0
        %2169 = vmatpush1.bf16.msra.mxu0 0
        %2170 = vmatprep.subr.bf16.mxu0 0
        %2171 = vmatpush1.bf16.msra.mxu0 0
        %2172 = vmatprep.mubr.bf16.mxu0 0
        %2173 = vmatmul.mubr.bf16.gmra.mrb[0].mxu0 %v2135
        %v2174 = vpop.f32.mrb[0].mxu0
        %v2175 = vadd.f32 0.0, %v2174
        %v2176 = vpop.f32.mrb[0].mxu0
        %v2177 = vpop.f32.mrb[0].mxu0
        %v2178 = vpop.f32.mrb[0].mxu0
        %2179 = vdwg.mxu0
        %2181 = vrot.lane.b32.xlu0 %v2175, 16
        %v2182 = vpop.permute.xlu0 %2181
        %2184 = vst.msk [vmem:[#allocation2 + $0x8] sm:$0xff] %vm1729, %v2182
        %2185 = vrot.lane.b32.xlu0 %v1847, 104
        %v2186 = vpop.permute.xlu0 %2185
        %2187 = vrot.lane.b32.xlu0 %v1848, 104
        %v2188 = vpop.permute.xlu0 %2187
        %v2190 = vsel %vm1389, %v2186, 0
        %v2193 = vsel %vm1389, %v2188, 0
        %2195 = vmatprep.subr.bf16.mxu0 0
        %2196 = vmatpush1.bf16.xpose.msra.mxu0 %v2193
        %2197 = vmatprep.subr.bf16.mxu0 0
        %2198 = vmatpush1.bf16.xpose.msra.mxu0 0
        %2199 = vmatprep.subr.bf16.mxu0 0
        %2200 = vmatpush1.bf16.xpose.msra.mxu0 0
        %2201 = vmatprep.subr.bf16.mxu0 0
        %2202 = vmatpush1.bf16.xpose.msra.mxu0 0
        %2203 = vmatprep.subr.bf16.mxu0 0
        %2204 = vmatpush1.bf16.xpose.msra.mxu0 0
        %2205 = vmatprep.subr.bf16.mxu0 0
        %2206 = vmatpush1.bf16.xpose.msra.mxu0 0
        %2207 = vmatprep.subr.bf16.mxu0 0
        %2208 = vmatpush1.bf16.xpose.msra.mxu0 0
        %2209 = vmatprep.subr.bf16.mxu0 0
        %2210 = vmatpush1.bf16.xpose.msra.mxu0 0
        %2211 = vmatprep.subr.bf16.mxu0 0
        %2212 = vmatpush1.bf16.xpose.msra.mxu0 0
        %2213 = vmatprep.subr.bf16.mxu0 0
        %2214 = vmatpush1.bf16.xpose.msra.mxu0 0
        %2215 = vmatprep.subr.bf16.mxu0 0
        %2216 = vmatpush1.bf16.xpose.msra.mxu0 0
        %2217 = vmatprep.subr.bf16.mxu0 0
        %2218 = vmatpush1.bf16.xpose.msra.mxu0 0
        %2219 = vmatprep.subr.bf16.mxu0 0
        %2220 = vmatpush1.bf16.xpose.msra.mxu0 0
        %2221 = vmatprep.subr.bf16.mxu0 0
        %2222 = vmatpush1.bf16.xpose.msra.mxu0 0
        %2223 = vmatprep.subr.bf16.mxu0 0
        %2224 = vmatpush1.bf16.xpose.msra.mxu0 0
        %2225 = vmatprep.subr.bf16.mxu0 0
        %2226 = vmatpush1.bf16.xpose.msra.mxu0 0
        %2227 = vmatprep.mubr.bf16.mxu0 0
        %2228 = vmatmul.mubr.bf16.gmra.mrb[0].mxu0 %v2190
        %v2229 = vpop.f32.mrb[0].mxu0
        %v2230 = vadd.f32 0.0, %v2229
        %v2231 = vpop.f32.mrb[0].mxu0
        %v2232 = vpop.f32.mrb[0].mxu0
        %v2233 = vpop.f32.mrb[0].mxu0
        %2234 = vdwg.mxu0
        %v2235 = vsel %vm1389, %v2230, -inf
        %2236 = vmax.xlane.f32.xlu0 %v2235
        %v2237 = vpop.xlane.xlu0 %2236
        %v2238 = vsub.f32 %v2230, %v2237
        %v2239 = vmul.f32 %v2238, 1.442695
        %v2240 = vpow.pop %v2239
        %v2241 = vsel %vm1389, %v2240, 0.0
        %2242 = vadd.xlane.f32.xlu0 %v2241
        %v2243 = vpop.xlane.xlu0 %2242
        %v2244 = vrcp.pop %v2243
        %v2245 = vmul.f32 %v2240, %v2244
        %v2246 = vpack.c.bf16 %v2245, %v2245
        %2247 = vrot.lane.b32.xlu0 %v1907, 104
        %v2248 = vpop.permute.xlu0 %2247
        %v2250 = vsel %vm1389, %v2246, 0
        %v2253 = vsel %vm1451, %v2248, 0
        %2255 = vmatprep.subr.bf16.mxu0 0
        %2256 = vmatpush1.bf16.msra.mxu0 %v2253
        %2257 = vmatprep.subr.bf16.mxu0 0
        %2258 = vmatpush1.bf16.msra.mxu0 0
        %2259 = vmatprep.subr.bf16.mxu0 0
        %2260 = vmatpush1.bf16.msra.mxu0 0
        %2261 = vmatprep.subr.bf16.mxu0 0
        %2262 = vmatpush1.bf16.msra.mxu0 0
        %2263 = vmatprep.subr.bf16.mxu0 0
        %2264 = vmatpush1.bf16.msra.mxu0 0
        %2265 = vmatprep.subr.bf16.mxu0 0
        %2266 = vmatpush1.bf16.msra.mxu0 0
        %2267 = vmatprep.subr.bf16.mxu0 0
        %2268 = vmatpush1.bf16.msra.mxu0 0
        %2269 = vmatprep.subr.bf16.mxu0 0
        %2270 = vmatpush1.bf16.msra.mxu0 0
        %2271 = vmatprep.subr.bf16.mxu0 0
        %2272 = vmatpush1.bf16.msra.mxu0 0
        %2273 = vmatprep.subr.bf16.mxu0 0
        %2274 = vmatpush1.bf16.msra.mxu0 0
        %2275 = vmatprep.subr.bf16.mxu0 0
        %2276 = vmatpush1.bf16.msra.mxu0 0
        %2277 = vmatprep.subr.bf16.mxu0 0
        %2278 = vmatpush1.bf16.msra.mxu0 0
        %2279 = vmatprep.subr.bf16.mxu0 0
        %2280 = vmatpush1.bf16.msra.mxu0 0
        %2281 = vmatprep.subr.bf16.mxu0 0
        %2282 = vmatpush1.bf16.msra.mxu0 0
        %2283 = vmatprep.subr.bf16.mxu0 0
        %2284 = vmatpush1.bf16.msra.mxu0 0
        %2285 = vmatprep.subr.bf16.mxu0 0
        %2286 = vmatpush1.bf16.msra.mxu0 0
        %2287 = vmatprep.mubr.bf16.mxu0 0
        %2288 = vmatmul.mubr.bf16.gmra.mrb[0].mxu0 %v2250
        %v2289 = vpop.f32.mrb[0].mxu0
        %v2290 = vadd.f32 0.0, %v2289
        %v2291 = vpop.f32.mrb[0].mxu0
        %v2292 = vpop.f32.mrb[0].mxu0
        %v2293 = vpop.f32.mrb[0].mxu0
        %2294 = vdwg.mxu0
        %2296 = vrot.lane.b32.xlu0 %v2290, 24
        %v2297 = vpop.permute.xlu0 %2296
        %2299 = vst.msk [vmem:[#allocation2 + $0x8] sm:$0xff] %vm1845, %v2297
        %v2300 = vld [vmem:[#allocation2] sm:$0xff]
        %v2301 = vld [vmem:[#allocation2 + $0x8] sm:$0xff]
        %v2302 = vlaneseq
        %v2303 = vshrl.u32 %v2302, 7
        %v2304 = vadd.s32 %v2303, 8
        %vm2305 = vcmp.lt.s32.totalorder %v2303, 0
        %v2306 = vsub.s32 0, %v2303
        %v2307 = vsel %vm2305, %v2306, %v2303
        %v2308 = vshrl.u32 %v2307, 3
        %v2309 = vand.u32 %v2307, 7
        %v2310 = vsub.s32 0, %v2309
        %v2311 = vsel %vm2305, %v2310, %v2309
        %vm2312 = vcmp.lt.s32.totalorder %v2304, 0
        %v2313 = vsub.s32 0, %v2304
        %v2314 = vsel %vm2312, %v2313, %v2304
        %v2315 = vshrl.u32 %v2314, 3
        %v2316 = vand.u32 %v2314, 7
        %v2317 = vsub.s32 0, %v2316
        %v2318 = vsel %vm2312, %v2317, %v2316
        %vm2319 = vcmp.ne.s32.totalorder %v2311, 0
        %vm2320 = vcmp.ne.s32.totalorder %v2318, 0
        %vm2321 = vcmp.lt.s32.totalorder %v2311, 0
        %vm2322 = vcmp.lt.s32.totalorder %v2318, 0
        %vm2323 = vmand %vm2321, %vm2319
        %vm2324 = vmand %vm2322, %vm2320
        %v2325 = vadd.s32 %v2311, 8
        %v2326 = vadd.s32 %v2318, 8
        %v2327 = vsel %vm2323, %v2325, %v2311
        %v2328 = vsel %vm2324, %v2326, %v2318
        %v2329 = vrot.slane %v2300, 6
        %v2330 = vrot.slane %v2301, 6
        %vm2331 = vcmp.lt.s32.totalorder %v2303, 2
        %v2332 = vsel %vm2331, %v2329, %v2330
        %v2333 = vsel %vm2331, %v2330, %v2329
        %vm2334 = vcmp.ge.s32.totalorder %v2327, 2
        %vm2335 = vcmp.ge.s32.totalorder %v2328, 2
        %v2336 = vsel %vm2334, 1, 0
        %v2337 = vsel %vm2335, 1, 0
        %vm2338 = vcmp.eq.s32.totalorder %v2336, 1
        %vm2339 = vcmp.eq.s32.totalorder %v2337, 1
        %v2340 = vsel %vm2338, %v2333, 0.0
        %v2341 = vsel %vm2339, %v2332, 0.0
        %v2342 = vpack.c.bf16 %v2341, %v2340
        %v2343 = vld [vmem:[%s1095] sm:$0xf]
        %v2344 = vld [vmem:[%s1095 + $0x4] sm:$0xf]
        %v2345 = vld [vmem:[%s1095 + $0x8] sm:$0xf]
        %v2346 = vld [vmem:[%s1095 + $0xc] sm:$0xf]
        %v2347 = vrot.slane %v2300, 7
        %v2348 = vrot.slane %v2301, 7
        %vm2349 = vcmp.lt.s32.totalorder %v2303, 1
        %v2350 = vsel %vm2349, %v2347, %v2348
        %v2351 = vsel %vm2349, %v2348, %v2347
        %vm2352 = vcmp.ge.s32.totalorder %v2327, 1
        %vm2353 = vcmp.ge.s32.totalorder %v2328, 1
        %v2354 = vsel %vm2352, 1, 0
        %v2355 = vsel %vm2353, 1, 0
        %vm2356 = vcmp.eq.s32.totalorder %v2354, 1
        %vm2357 = vcmp.eq.s32.totalorder %v2355, 1
        %v2358 = vsel %vm2356, %v2351, 0.0
        %v2359 = vsel %vm2357, %v2350, 0.0
        %v2360 = vpack.c.bf16 %v2359, %v2358
        %s2361 = scalar_lea.vmem %s1095, 16
        %v2362 = vld [vmem:[%s2361] sm:$0xf]
        %v2363 = vld [vmem:[%s2361 + $0x4] sm:$0xf]
        %v2364 = vld [vmem:[%s2361 + $0x8] sm:$0xf]
        %v2365 = vld [vmem:[%s2361 + $0xc] sm:$0xf]
        %v2370 = vunpack.c.l.b16 %v2362
        %v2371 = vunpack.c.l.b16 %v2363
        %v2372 = vunpack.c.l.b16 %v2364
        %v2373 = vunpack.c.l.b16 %v2365
        %v2374 = vpack.c.b16 %v2371, %v2370
        %v2375 = vpack.c.b16 %v2373, %v2372
        %v2379 = vsel %vm1167, %v2360, 0
        %2381 = vmatprep.subr.bf16.mxu0 0
        %2382 = vmatpush1.bf16.msra.mxu0 %v2374
        %2383 = vmatprep.subr.bf16.mxu0 0
        %2384 = vmatpush1.bf16.msra.mxu0 %v2375
        %2385 = vmatprep.subr.bf16.mxu0 0
        %2386 = vmatpush1.bf16.msra.mxu0 0
        %2387 = vmatprep.subr.bf16.mxu0 0
        %2388 = vmatpush1.bf16.msra.mxu0 0
        %2389 = vmatprep.subr.bf16.mxu0 0
        %2390 = vmatpush1.bf16.msra.mxu0 0
        %2391 = vmatprep.subr.bf16.mxu0 0
        %2392 = vmatpush1.bf16.msra.mxu0 0
        %2393 = vmatprep.subr.bf16.mxu0 0
        %2394 = vmatpush1.bf16.msra.mxu0 0
        %2395 = vmatprep.subr.bf16.mxu0 0
        %2396 = vmatpush1.bf16.msra.mxu0 0
        %2397 = vmatprep.subr.bf16.mxu0 0
        %2398 = vmatpush1.bf16.msra.mxu0 0
        %2399 = vmatprep.subr.bf16.mxu0 0
        %2400 = vmatpush1.bf16.msra.mxu0 0
        %2401 = vmatprep.subr.bf16.mxu0 0
        %2402 = vmatpush1.bf16.msra.mxu0 0
        %2403 = vmatprep.subr.bf16.mxu0 0
        %2404 = vmatpush1.bf16.msra.mxu0 0
        %2405 = vmatprep.subr.bf16.mxu0 0
        %2406 = vmatpush1.bf16.msra.mxu0 0
        %2407 = vmatprep.subr.bf16.mxu0 0
        %2408 = vmatpush1.bf16.msra.mxu0 0
        %2409 = vmatprep.subr.bf16.mxu0 0
        %2410 = vmatpush1.bf16.msra.mxu0 0
        %2411 = vmatprep.subr.bf16.mxu0 0
        %2412 = vmatpush1.bf16.msra.mxu0 0
        %2413 = vmatprep.mubr.bf16.mxu0 0
        %2414 = vmatmul.mubr.bf16.gmra.mrb[0].mxu0 %v2379
        %v2415 = vpop.f32.mrb[0].mxu0
        %v2416 = vadd.f32 0.0, %v2415
        %v2417 = vpop.f32.mrb[0].mxu0
        %v2418 = vpop.f32.mrb[0].mxu0
        %v2419 = vadd.f32 0.0, %v2418
        %v2420 = vpop.f32.mrb[0].mxu0
        %2421 = vdwg.mxu0
        %v2426 = vunpack.c.l.b16 %v2343
        %v2427 = vunpack.c.l.b16 %v2344
        %v2428 = vunpack.c.l.b16 %v2345
        %v2429 = vunpack.c.l.b16 %v2346
        %v2430 = vpack.c.b16 %v2427, %v2426
        %v2431 = vpack.c.b16 %v2429, %v2428
        %v2435 = vsel %vm1167, %v2342, 0
        %2437 = vmatprep.subr.bf16.mxu0 0
        %2438 = vmatpush1.bf16.msra.mxu0 %v2430
        %2439 = vmatprep.subr.bf16.mxu0 0
        %2440 = vmatpush1.bf16.msra.mxu0 %v2431
        %2441 = vmatprep.subr.bf16.mxu0 0
        %2442 = vmatpush1.bf16.msra.mxu0 0
        %2443 = vmatprep.subr.bf16.mxu0 0
        %2444 = vmatpush1.bf16.msra.mxu0 0
        %2445 = vmatprep.subr.bf16.mxu0 0
        %2446 = vmatpush1.bf16.msra.mxu0 0
        %2447 = vmatprep.subr.bf16.mxu0 0
        %2448 = vmatpush1.bf16.msra.mxu0 0
        %2449 = vmatprep.subr.bf16.mxu0 0
        %2450 = vmatpush1.bf16.msra.mxu0 0
        %2451 = vmatprep.subr.bf16.mxu0 0
        %2452 = vmatpush1.bf16.msra.mxu0 0
        %2453 = vmatprep.subr.bf16.mxu0 0
        %2454 = vmatpush1.bf16.msra.mxu0 0
        %2455 = vmatprep.subr.bf16.mxu0 0
        %2456 = vmatpush1.bf16.msra.mxu0 0
        %2457 = vmatprep.subr.bf16.mxu0 0
        %2458 = vmatpush1.bf16.msra.mxu0 0
        %2459 = vmatprep.subr.bf16.mxu0 0
        %2460 = vmatpush1.bf16.msra.mxu0 0
        %2461 = vmatprep.subr.bf16.mxu0 0
        %2462 = vmatpush1.bf16.msra.mxu0 0
        %2463 = vmatprep.subr.bf16.mxu0 0
        %2464 = vmatpush1.bf16.msra.mxu0 0
        %2465 = vmatprep.subr.bf16.mxu0 0
        %2466 = vmatpush1.bf16.msra.mxu0 0
        %2467 = vmatprep.subr.bf16.mxu0 0
        %2468 = vmatpush1.bf16.msra.mxu0 0
        %2469 = vmatprep.mubr.bf16.mxu0 0
        %2470 = vmatmul.mubr.bf16.gmra.mrb[0].mxu0 %v2435
        %v2471 = vpop.f32.mrb[0].mxu0
        %v2472 = vadd.f32 %v2416, %v2471
        %v2473 = vpop.f32.mrb[0].mxu0
        %v2474 = vpop.f32.mrb[0].mxu0
        %v2475 = vadd.f32 %v2419, %v2474
        %v2476 = vpop.f32.mrb[0].mxu0
        %2477 = vdwg.mxu0
        %v2478 = vpack.c.bf16 %v2301, %v2300
        %s2479 = scalar_lea.vmem %s1095, 32
        %v2480 = vld [vmem:[%s2479] sm:$0xf]
        %v2481 = vld [vmem:[%s2479 + $0x4] sm:$0xf]
        %v2482 = vld [vmem:[%s2479 + $0x8] sm:$0xf]
        %v2483 = vld [vmem:[%s2479 + $0xc] sm:$0xf]
        %v2488 = vunpack.c.l.b16 %v2480
        %v2489 = vunpack.c.l.b16 %v2481
        %v2490 = vunpack.c.l.b16 %v2482
        %v2491 = vunpack.c.l.b16 %v2483
        %v2492 = vpack.c.b16 %v2489, %v2488
        %v2493 = vpack.c.b16 %v2491, %v2490
        %v2497 = vsel %vm1167, %v2478, 0
        %2499 = vmatprep.subr.bf16.mxu0 0
        %2500 = vmatpush1.bf16.msra.mxu0 %v2492
        %2501 = vmatprep.subr.bf16.mxu0 0
        %2502 = vmatpush1.bf16.msra.mxu0 %v2493
        %2503 = vmatprep.subr.bf16.mxu0 0
        %2504 = vmatpush1.bf16.msra.mxu0 0
        %2505 = vmatprep.subr.bf16.mxu0 0
        %2506 = vmatpush1.bf16.msra.mxu0 0
        %2507 = vmatprep.subr.bf16.mxu0 0
        %2508 = vmatpush1.bf16.msra.mxu0 0
        %2509 = vmatprep.subr.bf16.mxu0 0
        %2510 = vmatpush1.bf16.msra.mxu0 0
        %2511 = vmatprep.subr.bf16.mxu0 0
        %2512 = vmatpush1.bf16.msra.mxu0 0
        %2513 = vmatprep.subr.bf16.mxu0 0
        %2514 = vmatpush1.bf16.msra.mxu0 0
        %2515 = vmatprep.subr.bf16.mxu0 0
        %2516 = vmatpush1.bf16.msra.mxu0 0
        %2517 = vmatprep.subr.bf16.mxu0 0
        %2518 = vmatpush1.bf16.msra.mxu0 0
        %2519 = vmatprep.subr.bf16.mxu0 0
        %2520 = vmatpush1.bf16.msra.mxu0 0
        %2521 = vmatprep.subr.bf16.mxu0 0
        %2522 = vmatpush1.bf16.msra.mxu0 0
        %2523 = vmatprep.subr.bf16.mxu0 0
        %2524 = vmatpush1.bf16.msra.mxu0 0
        %2525 = vmatprep.subr.bf16.mxu0 0
        %2526 = vmatpush1.bf16.msra.mxu0 0
        %2527 = vmatprep.subr.bf16.mxu0 0
        %2528 = vmatpush1.bf16.msra.mxu0 0
        %2529 = vmatprep.subr.bf16.mxu0 0
        %2530 = vmatpush1.bf16.msra.mxu0 0
        %2531 = vmatprep.mubr.bf16.mxu0 0
        %2532 = vmatmul.mubr.bf16.gmra.mrb[0].mxu0 %v2497
        %v2533 = vpop.f32.mrb[0].mxu0
        %v2534 = vadd.f32 0.0, %v2533
        %v2535 = vpop.f32.mrb[0].mxu0
        %v2536 = vpop.f32.mrb[0].mxu0
        %v2537 = vadd.f32 0.0, %v2536
        %v2538 = vpop.f32.mrb[0].mxu0
        %2539 = vdwg.mxu0
        %v2540 = vadd.f32 %v2472, %v2534
        %v2541 = vadd.f32 %v2475, %v2537
        %v2542 = vrot.slane %v2300, 1
        %v2543 = vrot.slane %v2301, 1
        %vm2544 = vcmp.lt.s32.totalorder %v2303, 7
        %v2545 = vsel %vm2544, %v2542, %v2543
        %v2546 = vsel %vm2544, %v2543, %v2542
        %vm2547 = vcmp.lt.s32.totalorder %v2327, 7
        %vm2548 = vcmp.lt.s32.totalorder %v2328, 7
        %v2549 = vsel %vm2547, 1, 0
        %v2550 = vsel %vm2548, 1, 0
        %vm2551 = vcmp.eq.s32.totalorder %v2549, 1
        %vm2552 = vcmp.eq.s32.totalorder %v2550, 1
        %v2553 = vsel %vm2551, %v2545, 0.0
        %v2554 = vsel %vm2552, %v2546, 0.0
        %v2555 = vpack.c.bf16 %v2554, %v2553
        %s2556 = scalar_lea.vmem %s1095, 48
        %v2557 = vld [vmem:[%s2556] sm:$0xf]
        %v2558 = vld [vmem:[%s2556 + $0x4] sm:$0xf]
        %v2559 = vld [vmem:[%s2556 + $0x8] sm:$0xf]
        %v2560 = vld [vmem:[%s2556 + $0xc] sm:$0xf]
        %v2565 = vunpack.c.l.b16 %v2557
        %v2566 = vunpack.c.l.b16 %v2558
        %v2567 = vunpack.c.l.b16 %v2559
        %v2568 = vunpack.c.l.b16 %v2560
        %v2569 = vpack.c.b16 %v2566, %v2565
        %v2570 = vpack.c.b16 %v2568, %v2567
        %v2574 = vsel %vm1167, %v2555, 0
        %2576 = vmatprep.subr.bf16.mxu0 0
        %2577 = vmatpush1.bf16.msra.mxu0 %v2569
        %2578 = vmatprep.subr.bf16.mxu0 0
        %2579 = vmatpush1.bf16.msra.mxu0 %v2570
        %2580 = vmatprep.subr.bf16.mxu0 0
        %2581 = vmatpush1.bf16.msra.mxu0 0
        %2582 = vmatprep.subr.bf16.mxu0 0
        %2583 = vmatpush1.bf16.msra.mxu0 0
        %2584 = vmatprep.subr.bf16.mxu0 0
        %2585 = vmatpush1.bf16.msra.mxu0 0
        %2586 = vmatprep.subr.bf16.mxu0 0
        %2587 = vmatpush1.bf16.msra.mxu0 0
        %2588 = vmatprep.subr.bf16.mxu0 0
        %2589 = vmatpush1.bf16.msra.mxu0 0
        %2590 = vmatprep.subr.bf16.mxu0 0
        %2591 = vmatpush1.bf16.msra.mxu0 0
        %2592 = vmatprep.subr.bf16.mxu0 0
        %2593 = vmatpush1.bf16.msra.mxu0 0
        %2594 = vmatprep.subr.bf16.mxu0 0
        %2595 = vmatpush1.bf16.msra.mxu0 0
        %2596 = vmatprep.subr.bf16.mxu0 0
        %2597 = vmatpush1.bf16.msra.mxu0 0
        %2598 = vmatprep.subr.bf16.mxu0 0
        %2599 = vmatpush1.bf16.msra.mxu0 0
        %2600 = vmatprep.subr.bf16.mxu0 0
        %2601 = vmatpush1.bf16.msra.mxu0 0
        %2602 = vmatprep.subr.bf16.mxu0 0
        %2603 = vmatpush1.bf16.msra.mxu0 0
        %2604 = vmatprep.subr.bf16.mxu0 0
        %2605 = vmatpush1.bf16.msra.mxu0 0
        %2606 = vmatprep.subr.bf16.mxu0 0
        %2607 = vmatpush1.bf16.msra.mxu0 0
        %2608 = vmatprep.mubr.bf16.mxu0 0
        %2609 = vmatmul.mubr.bf16.gmra.mrb[0].mxu0 %v2574
        %v2610 = vpop.f32.mrb[0].mxu0
        %v2611 = vadd.f32 0.0, %v2610
        %v2612 = vpop.f32.mrb[0].mxu0
        %v2613 = vpop.f32.mrb[0].mxu0
        %v2614 = vadd.f32 0.0, %v2613
        %v2615 = vpop.f32.mrb[0].mxu0
        %2616 = vdwg.mxu0
        %v2617 = vadd.f32 %v2540, %v2611
        %v2618 = vadd.f32 %v2541, %v2614
        %v2619 = vrot.slane %v2300, 2
        %v2620 = vrot.slane %v2301, 2
        %vm2621 = vcmp.lt.s32.totalorder %v2303, 6
        %v2622 = vsel %vm2621, %v2619, %v2620
        %v2623 = vsel %vm2621, %v2620, %v2619
        %vm2624 = vcmp.lt.s32.totalorder %v2327, 6
        %vm2625 = vcmp.lt.s32.totalorder %v2328, 6
        %v2626 = vsel %vm2624, 1, 0
        %v2627 = vsel %vm2625, 1, 0
        %vm2628 = vcmp.eq.s32.totalorder %v2626, 1
        %vm2629 = vcmp.eq.s32.totalorder %v2627, 1
        %v2630 = vsel %vm2628, %v2622, 0.0
        %v2631 = vsel %vm2629, %v2623, 0.0
        %v2632 = vpack.c.bf16 %v2631, %v2630
        %s2633 = scalar_lea.vmem %s1095, 64
        %v2634 = vld [vmem:[%s2633] sm:$0xf]
        %v2635 = vld [vmem:[%s2633 + $0x4] sm:$0xf]
        %v2636 = vld [vmem:[%s2633 + $0x8] sm:$0xf]
        %v2637 = vld [vmem:[%s2633 + $0xc] sm:$0xf]
        %v2642 = vunpack.c.l.b16 %v2634
        %v2643 = vunpack.c.l.b16 %v2635
        %v2644 = vunpack.c.l.b16 %v2636
        %v2645 = vunpack.c.l.b16 %v2637
        %v2646 = vpack.c.b16 %v2643, %v2642
        %v2647 = vpack.c.b16 %v2645, %v2644
        %v2651 = vsel %vm1167, %v2632, 0
        %2653 = vmatprep.subr.bf16.mxu0 0
        %2654 = vmatpush1.bf16.msra.mxu0 %v2646
        %2655 = vmatprep.subr.bf16.mxu0 0
        %2656 = vmatpush1.bf16.msra.mxu0 %v2647
        %2657 = vmatprep.subr.bf16.mxu0 0
        %2658 = vmatpush1.bf16.msra.mxu0 0
        %2659 = vmatprep.subr.bf16.mxu0 0
        %2660 = vmatpush1.bf16.msra.mxu0 0
        %2661 = vmatprep.subr.bf16.mxu0 0
        %2662 = vmatpush1.bf16.msra.mxu0 0
        %2663 = vmatprep.subr.bf16.mxu0 0
        %2664 = vmatpush1.bf16.msra.mxu0 0
        %2665 = vmatprep.subr.bf16.mxu0 0
        %2666 = vmatpush1.bf16.msra.mxu0 0
        %2667 = vmatprep.subr.bf16.mxu0 0
        %2668 = vmatpush1.bf16.msra.mxu0 0
        %2669 = vmatprep.subr.bf16.mxu0 0
        %2670 = vmatpush1.bf16.msra.mxu0 0
        %2671 = vmatprep.subr.bf16.mxu0 0
        %2672 = vmatpush1.bf16.msra.mxu0 0
        %2673 = vmatprep.subr.bf16.mxu0 0
        %2674 = vmatpush1.bf16.msra.mxu0 0
        %2675 = vmatprep.subr.bf16.mxu0 0
        %2676 = vmatpush1.bf16.msra.mxu0 0
        %2677 = vmatprep.subr.bf16.mxu0 0
        %2678 = vmatpush1.bf16.msra.mxu0 0
        %2679 = vmatprep.subr.bf16.mxu0 0
        %2680 = vmatpush1.bf16.msra.mxu0 0
        %2681 = vmatprep.subr.bf16.mxu0 0
        %2682 = vmatpush1.bf16.msra.mxu0 0
        %2683 = vmatprep.subr.bf16.mxu0 0
        %2684 = vmatpush1.bf16.msra.mxu0 0
        %2685 = vmatprep.mubr.bf16.mxu0 0
        %2686 = vmatmul.mubr.bf16.gmra.mrb[0].mxu0 %v2651
        %v2687 = vpop.f32.mrb[0].mxu0
        %v2688 = vadd.f32 0.0, %v2687
        %v2689 = vpop.f32.mrb[0].mxu0
        %v2690 = vpop.f32.mrb[0].mxu0
        %v2691 = vadd.f32 0.0, %v2690
        %v2692 = vpop.f32.mrb[0].mxu0
        %2693 = vdwg.mxu0
        %v2694 = vadd.f32 %v2617, %v2688
        %v2695 = vadd.f32 %v2618, %v2691
        %v2696 = vpack.c.bf16 %v2695, %v2694
        %v2697 = vld [vmem:[%s1087] sm:$0xf]
        %v2698 = vld [vmem:[%s1087 + $0x4] sm:$0xf]
        %v2699 = vld [vmem:[%s1087 + $0x8] sm:$0xf]
        %v2700 = vld [vmem:[%s1087 + $0xc] sm:$0xf]
        %v2701 = vld [vmem:[%s1090] sm:$0x1]
        %v2703 = vlaneseq
        %v2704 = vshrl.u32 %v2703, 7
        %v2705 = vsub.s32 0, %v2704
        %v2706 = vrot.slane %v2701, %v2705
        %v2712 = vunpack.c.l.b16 %v2697
        %v2713 = vunpack.c.l.b16 %v2698
        %v2714 = vunpack.c.l.b16 %v2699
        %v2715 = vunpack.c.l.b16 %v2700
        %v2716 = vpack.c.b16 %v2713, %v2712
        %v2717 = vpack.c.b16 %v2715, %v2714
        %v2721 = vsel %vm1167, %v2696, 0
        %2723 = vmatprep.subr.bf16.mxu0 0
        %2724 = vmatpush1.bf16.msra.mxu0 %v2716
        %2725 = vmatprep.subr.bf16.mxu0 0
        %2726 = vmatpush1.bf16.msra.mxu0 %v2717
        %2727 = vmatprep.subr.bf16.mxu0 0
        %2728 = vmatpush1.bf16.msra.mxu0 0
        %2729 = vmatprep.subr.bf16.mxu0 0
        %2730 = vmatpush1.bf16.msra.mxu0 0
        %2731 = vmatprep.subr.bf16.mxu0 0
        %2732 = vmatpush1.bf16.msra.mxu0 0
        %2733 = vmatprep.subr.bf16.mxu0 0
        %2734 = vmatpush1.bf16.msra.mxu0 0
        %2735 = vmatprep.subr.bf16.mxu0 0
        %2736 = vmatpush1.bf16.msra.mxu0 0
        %2737 = vmatprep.subr.bf16.mxu0 0
        %2738 = vmatpush1.bf16.msra.mxu0 0
        %2739 = vmatprep.subr.bf16.mxu0 0
        %2740 = vmatpush1.bf16.msra.mxu0 0
        %2741 = vmatprep.subr.bf16.mxu0 0
        %2742 = vmatpush1.bf16.msra.mxu0 0
        %2743 = vmatprep.subr.bf16.mxu0 0
        %2744 = vmatpush1.bf16.msra.mxu0 0
        %2745 = vmatprep.subr.bf16.mxu0 0
        %2746 = vmatpush1.bf16.msra.mxu0 0
        %2747 = vmatprep.subr.bf16.mxu0 0
        %2748 = vmatpush1.bf16.msra.mxu0 0
        %2749 = vmatprep.subr.bf16.mxu0 0
        %2750 = vmatpush1.bf16.msra.mxu0 0
        %2751 = vmatprep.subr.bf16.mxu0 0
        %2752 = vmatpush1.bf16.msra.mxu0 0
        %2753 = vmatprep.subr.bf16.mxu0 0
        %2754 = vmatpush1.bf16.msra.mxu0 0
        %2755 = vmatprep.mubr.bf16.mxu0 0
        %2756 = vmatmul.mubr.bf16.gmra.mrb[0].mxu0 %v2721
        %v2757 = vpop.f32.mrb[0].mxu0
        %v2758 = vadd.f32 %v2706, %v2757
        %v2759 = vpop.f32.mrb[0].mxu0
        %v2760 = vpop.f32.mrb[0].mxu0
        %v2761 = vadd.f32 %v2706, %v2760
        %v2762 = vpop.f32.mrb[0].mxu0
        %2763 = vdwg.mxu0
        %v2764 = vadd.f32 %v1163, %v2758
        %v2765 = vadd.f32 %v1164, %v2761
        %v2766 = vld [vmem:[%s1098] sm:$0x1]
        %v2767 = vld [vmem:[%s1101] sm:$0x1]
        %v2768 = vsel %vm1167, %v2764, 0.0
        %2769 = vadd.xlane.f32.xlu0 %v2768
        %v2770 = vpop.xlane.xlu0 %2769
        %v2771 = vsel %vm1167, %v2765, 0.0
        %2772 = vadd.xlane.f32.xlu0 %v2771
        %v2773 = vpop.xlane.xlu0 %2772
        %v2774 = vmul.f32 %v2770, %v1174
        %v2775 = vmul.f32 %v2773, %v1174
        %v2776 = vsub.f32 %v2764, %v2774
        %v2777 = vsub.f32 %v2765, %v2775
        %v2778 = vmul.f32 %v2776, %v2776
        %v2779 = vmul.f32 %v2777, %v2777
        %v2780 = vsel %vm1167, %v2778, 0.0
        %2781 = vadd.xlane.f32.xlu0 %v2780
        %v2782 = vpop.xlane.xlu0 %2781
        %v2783 = vsel %vm1167, %v2779, 0.0
        %2784 = vadd.xlane.f32.xlu0 %v2783
        %v2785 = vpop.xlane.xlu0 %2784
        %v2786 = vmul.f32 %v2782, %v1174
        %v2787 = vmul.f32 %v2785, %v1174
        %v2788 = vadd.f32 %v2786, 1e-05
        %v2789 = vadd.f32 %v2787, 1e-05
        %v2790 = vrsqrt.pop %v2788
        %v2791 = vrsqrt.pop %v2789
        %v2792 = vmul.f32 %v2776, %v2790
        %v2793 = vmul.f32 %v2777, %v2791
        %v2795 = vlaneseq
        %v2796 = vshrl.u32 %v2795, 7
        %v2797 = vsub.s32 0, %v2796
        %v2798 = vrot.slane %v2766, %v2797
        %v2800 = vmul.f32 %v2792, %v2798
        %v2801 = vmul.f32 %v2793, %v2798
        %v2803 = vlaneseq
        %v2804 = vshrl.u32 %v2803, 7
        %v2805 = vsub.s32 0, %v2804
        %v2806 = vrot.slane %v2767, %v2805
        %v2808 = vadd.f32 %v2800, %v2806
        %v2809 = vadd.f32 %v2801, %v2806
        %v2810 = vld [vmem:[%s1060] sm:$0xff]
        %v2811 = vld [vmem:[%s1060 + $0x8] sm:$0xff]
        %v2812 = vld [vmem:[%s1060 + $0x10] sm:$0xff]
        %v2813 = vld [vmem:[%s1060 + $0x18] sm:$0xff]
        %v2814 = vld [vmem:[%s1060 + $0x20] sm:$0xff]
        %v2815 = vld [vmem:[%s1060 + $0x28] sm:$0xff]
        %v2816 = vld [vmem:[%s1060 + $0x30] sm:$0xff]
        %v2817 = vld [vmem:[%s1060 + $0x38] sm:$0xff]
        %v2818 = vld [vmem:[%s1060 + $0x40] sm:$0xff]
        %v2819 = vld [vmem:[%s1060 + $0x48] sm:$0xff]
        %v2820 = vld [vmem:[%s1060 + $0x50] sm:$0xff]
        %v2821 = vld [vmem:[%s1060 + $0x58] sm:$0xff]
        %v2822 = vld [vmem:[%s1060 + $0x60] sm:$0xff]
        %v2823 = vld [vmem:[%s1060 + $0x68] sm:$0xff]
        %v2824 = vld [vmem:[%s1060 + $0x70] sm:$0xff]
        %v2825 = vld [vmem:[%s1060 + $0x78] sm:$0xff]
        %v2826 = vld [vmem:[%s1060 + $0x80] sm:$0xff]
        %v2827 = vld [vmem:[%s1060 + $0x88] sm:$0xff]
        %v2828 = vld [vmem:[%s1060 + $0x90] sm:$0xff]
        %v2829 = vld [vmem:[%s1060 + $0x98] sm:$0xff]
        %v2830 = vld [vmem:[%s1060 + $0xa0] sm:$0xff]
        %v2831 = vld [vmem:[%s1060 + $0xa8] sm:$0xff]
        %v2832 = vld [vmem:[%s1060 + $0xb0] sm:$0xff]
        %v2833 = vld [vmem:[%s1060 + $0xb8] sm:$0xff]
        %v2834 = vld [vmem:[%s1060 + $0xc0] sm:$0xff]
        %v2835 = vld [vmem:[%s1060 + $0xc8] sm:$0xff]
        %v2836 = vld [vmem:[%s1060 + $0xd0] sm:$0xff]
        %v2837 = vld [vmem:[%s1060 + $0xd8] sm:$0xff]
        %v2838 = vld [vmem:[%s1060 + $0xe0] sm:$0xff]
        %v2839 = vld [vmem:[%s1060 + $0xe8] sm:$0xff]
        %v2840 = vld [vmem:[%s1060 + $0xf0] sm:$0xff]
        %v2841 = vld [vmem:[%s1060 + $0xf8] sm:$0xff]
        %v2842 = vpack.c.bf16 %v2809, %v2808
        %v2843 = vld [vmem:[%s1106] sm:$0xf]
        %v2844 = vld [vmem:[%s1106 + $0x4] sm:$0xf]
        %v2845 = vld [vmem:[%s1106 + $0x8] sm:$0xf]
        %v2846 = vld [vmem:[%s1106 + $0xc] sm:$0xf]
        %v2851 = vunpack.c.l.b16 %v2843
        %v2852 = vunpack.c.l.b16 %v2844
        %v2853 = vunpack.c.l.b16 %v2845
        %v2854 = vunpack.c.l.b16 %v2846
        %v2855 = vpack.c.b16 %v2852, %v2851
        %v2856 = vpack.c.b16 %v2854, %v2853
        %v2860 = vsel %vm1167, %v2842, 0
        %2862 = vmatprep.subr.bf16.mxu0 0
        %2863 = vmatpush1.bf16.msra.mxu0 %v2855
        %2864 = vmatprep.subr.bf16.mxu0 0
        %2865 = vmatpush1.bf16.msra.mxu0 %v2856
        %2866 = vmatprep.subr.bf16.mxu0 0
        %2867 = vmatpush1.bf16.msra.mxu0 0
        %2868 = vmatprep.subr.bf16.mxu0 0
        %2869 = vmatpush1.bf16.msra.mxu0 0
        %2870 = vmatprep.subr.bf16.mxu0 0
        %2871 = vmatpush1.bf16.msra.mxu0 0
        %2872 = vmatprep.subr.bf16.mxu0 0
        %2873 = vmatpush1.bf16.msra.mxu0 0
        %2874 = vmatprep.subr.bf16.mxu0 0
        %2875 = vmatpush1.bf16.msra.mxu0 0
        %2876 = vmatprep.subr.bf16.mxu0 0
        %2877 = vmatpush1.bf16.msra.mxu0 0
        %2878 = vmatprep.subr.bf16.mxu0 0
        %2879 = vmatpush1.bf16.msra.mxu0 0
        %2880 = vmatprep.subr.bf16.mxu0 0
        %2881 = vmatpush1.bf16.msra.mxu0 0
        %2882 = vmatprep.subr.bf16.mxu0 0
        %2883 = vmatpush1.bf16.msra.mxu0 0
        %2884 = vmatprep.subr.bf16.mxu0 0
        %2885 = vmatpush1.bf16.msra.mxu0 0
        %2886 = vmatprep.subr.bf16.mxu0 0
        %2887 = vmatpush1.bf16.msra.mxu0 0
        %2888 = vmatprep.subr.bf16.mxu0 0
        %2889 = vmatpush1.bf16.msra.mxu0 0
        %2890 = vmatprep.subr.bf16.mxu0 0
        %2891 = vmatpush1.bf16.msra.mxu0 0
        %2892 = vmatprep.subr.bf16.mxu0 0
        %2893 = vmatpush1.bf16.msra.mxu0 0
        %2894 = vmatprep.mubr.bf16.mxu0 0
        %2895 = vmatmul.mubr.bf16.gmra.mrb[0].mxu0 %v2860
        %v2896 = vpop.f32.mrb[0].mxu0
        %v2897 = vadd.f32 0.0, %v2896
        %v2898 = vpop.f32.mrb[0].mxu0
        %v2899 = vpop.f32.mrb[0].mxu0
        %v2900 = vadd.f32 0.0, %v2899
        %v2901 = vpop.f32.mrb[0].mxu0
        %2902 = vdwg.mxu0
        %v2903 = vpack.c.bf16 %v2900, %v2897
        %v2904 = vpack.c.bf16 %v2811, %v2810
        %v2905 = vpack.c.bf16 %v2813, %v2812
        %v2906 = vpack.c.bf16 %v2815, %v2814
        %v2907 = vpack.c.bf16 %v2817, %v2816
        %v2908 = vpack.c.bf16 %v2819, %v2818
        %v2909 = vpack.c.bf16 %v2821, %v2820
        %v2910 = vpack.c.bf16 %v2823, %v2822
        %v2911 = vpack.c.bf16 %v2825, %v2824
        %v2912 = vpack.c.bf16 %v2827, %v2826
        %v2913 = vpack.c.bf16 %v2829, %v2828
        %v2914 = vpack.c.bf16 %v2831, %v2830
        %v2915 = vpack.c.bf16 %v2833, %v2832
        %v2916 = vpack.c.bf16 %v2835, %v2834
        %v2917 = vpack.c.bf16 %v2837, %v2836
        %v2918 = vpack.c.bf16 %v2839, %v2838
        %v2919 = vpack.c.bf16 %v2841, %v2840
        %v2920 = vld [vmem:[%s1111] sm:$0xf]
        %v2921 = vld [vmem:[%s1111 + $0x4] sm:$0xf]
        %v2922 = vld [vmem:[%s1111 + $0x8] sm:$0xf]
        %v2923 = vld [vmem:[%s1111 + $0xc] sm:$0xf]
        %v2928 = vunpack.c.l.b16 %v2920
        %v2929 = vunpack.c.l.b16 %v2921
        %v2930 = vunpack.c.l.b16 %v2922
        %v2931 = vunpack.c.l.b16 %v2923
        %v2932 = vpack.c.b16 %v2929, %v2928
        %v2933 = vpack.c.b16 %v2931, %v2930
        %v2937 = vsel %vm1167, %v2904, 0
        %v2940 = vsel %vm1167, %v2905, 0
        %v2943 = vsel %vm1167, %v2906, 0
        %v2946 = vsel %vm1167, %v2907, 0
        %v2949 = vsel %vm1167, %v2908, 0
        %v2952 = vsel %vm1167, %v2909, 0
        %v2955 = vsel %vm1167, %v2910, 0
        %v2958 = vsel %vm1167, %v2911, 0
        %v2961 = vsel %vm1167, %v2912, 0
        %v2964 = vsel %vm1167, %v2913, 0
        %v2967 = vsel %vm1167, %v2914, 0
        %v2970 = vsel %vm1167, %v2915, 0
        %v2973 = vsel %vm1167, %v2916, 0
        %v2976 = vsel %vm1167, %v2917, 0
        %v2979 = vsel %vm1167, %v2918, 0
        %v2982 = vsel %vm1167, %v2919, 0
        %2984 = vmatprep.subr.bf16.mxu0 0
        %2985 = vmatpush1.bf16.msra.mxu0 %v2932
        %2986 = vmatprep.subr.bf16.mxu0 0
        %2987 = vmatpush1.bf16.msra.mxu0 %v2933
        %2988 = vmatprep.subr.bf16.mxu0 0
        %2989 = vmatpush1.bf16.msra.mxu0 0
        %2990 = vmatprep.subr.bf16.mxu0 0
        %2991 = vmatpush1.bf16.msra.mxu0 0
        %2992 = vmatprep.subr.bf16.mxu0 0
        %2993 = vmatpush1.bf16.msra.mxu0 0
        %2994 = vmatprep.subr.bf16.mxu0 0
        %2995 = vmatpush1.bf16.msra.mxu0 0
        %2996 = vmatprep.subr.bf16.mxu0 0
        %2997 = vmatpush1.bf16.msra.mxu0 0
        %2998 = vmatprep.subr.bf16.mxu0 0
        %2999 = vmatpush1.bf16.msra.mxu0 0
        %3000 = vmatprep.subr.bf16.mxu0 0
        %3001 = vmatpush1.bf16.msra.mxu0 0
        %3002 = vmatprep.subr.bf16.mxu0 0
        %3003 = vmatpush1.bf16.msra.mxu0 0
        %3004 = vmatprep.subr.bf16.mxu0 0
        %3005 = vmatpush1.bf16.msra.mxu0 0
        %3006 = vmatprep.subr.bf16.mxu0 0
        %3007 = vmatpush1.bf16.msra.mxu0 0
        %3008 = vmatprep.subr.bf16.mxu0 0
        %3009 = vmatpush1.bf16.msra.mxu0 0
        %3010 = vmatprep.subr.bf16.mxu0 0
        %3011 = vmatpush1.bf16.msra.mxu0 0
        %3012 = vmatprep.subr.bf16.mxu0 0
        %3013 = vmatpush1.bf16.msra.mxu0 0
        %3014 = vmatprep.subr.bf16.mxu0 0
        %3015 = vmatpush1.bf16.msra.mxu0 0
        %3016 = vmatprep.mubr.bf16.mxu0 0
        %3017 = vmatmul.mubr.bf16.gmra.mrb[0].mxu0 %v2937
        %v3018 = vpop.f32.mrb[0].mxu0
        %v3019 = vadd.f32 0.0, %v3018
        %v3020 = vpop.f32.mrb[0].mxu0
        %v3021 = vpop.f32.mrb[0].mxu0
        %v3022 = vadd.f32 0.0, %v3021
        %v3023 = vpop.f32.mrb[0].mxu0
        %3024 = vmatprep.mubr.bf16.mxu0 0
        %3025 = vmatmul.mubr.bf16.gmra.mrb[0].mxu0 %v2940
        %v3026 = vpop.f32.mrb[0].mxu0
        %v3027 = vadd.f32 0.0, %v3026
        %v3028 = vpop.f32.mrb[0].mxu0
        %v3029 = vpop.f32.mrb[0].mxu0
        %v3030 = vadd.f32 0.0, %v3029
        %v3031 = vpop.f32.mrb[0].mxu0
        %3032 = vmatprep.mubr.bf16.mxu0 0
        %3033 = vmatmul.mubr.bf16.gmra.mrb[0].mxu0 %v2943
        %v3034 = vpop.f32.mrb[0].mxu0
        %v3035 = vadd.f32 0.0, %v3034
        %v3036 = vpop.f32.mrb[0].mxu0
        %v3037 = vpop.f32.mrb[0].mxu0
        %v3038 = vadd.f32 0.0, %v3037
        %v3039 = vpop.f32.mrb[0].mxu0
        %3040 = vmatprep.mubr.bf16.mxu0 0
        %3041 = vmatmul.mubr.bf16.gmra.mrb[0].mxu0 %v2946
        %v3042 = vpop.f32.mrb[0].mxu0
        %v3043 = vadd.f32 0.0, %v3042
        %v3044 = vpop.f32.mrb[0].mxu0
        %v3045 = vpop.f32.mrb[0].mxu0
        %v3046 = vadd.f32 0.0, %v3045
        %v3047 = vpop.f32.mrb[0].mxu0
        %3048 = vmatprep.mubr.bf16.mxu0 0
        %3049 = vmatmul.mubr.bf16.gmra.mrb[0].mxu0 %v2949
        %v3050 = vpop.f32.mrb[0].mxu0
        %v3051 = vadd.f32 0.0, %v3050
        %v3052 = vpop.f32.mrb[0].mxu0
        %v3053 = vpop.f32.mrb[0].mxu0
        %v3054 = vadd.f32 0.0, %v3053
        %v3055 = vpop.f32.mrb[0].mxu0
        %3056 = vmatprep.mubr.bf16.mxu0 0
        %3057 = vmatmul.mubr.bf16.gmra.mrb[0].mxu0 %v2952
        %v3058 = vpop.f32.mrb[0].mxu0
        %v3059 = vadd.f32 0.0, %v3058
        %v3060 = vpop.f32.mrb[0].mxu0
        %v3061 = vpop.f32.mrb[0].mxu0
        %v3062 = vadd.f32 0.0, %v3061
        %v3063 = vpop.f32.mrb[0].mxu0
        %3064 = vmatprep.mubr.bf16.mxu0 0
        %3065 = vmatmul.mubr.bf16.gmra.mrb[0].mxu0 %v2955
        %v3066 = vpop.f32.mrb[0].mxu0
        %v3067 = vadd.f32 0.0, %v3066
        %v3068 = vpop.f32.mrb[0].mxu0
        %v3069 = vpop.f32.mrb[0].mxu0
        %v3070 = vadd.f32 0.0, %v3069
        %v3071 = vpop.f32.mrb[0].mxu0
        %3072 = vmatprep.mubr.bf16.mxu0 0
        %3073 = vmatmul.mubr.bf16.gmra.mrb[0].mxu0 %v2958
        %v3074 = vpop.f32.mrb[0].mxu0
        %v3075 = vadd.f32 0.0, %v3074
        %v3076 = vpop.f32.mrb[0].mxu0
        %v3077 = vpop.f32.mrb[0].mxu0
        %v3078 = vadd.f32 0.0, %v3077
        %v3079 = vpop.f32.mrb[0].mxu0
        %3080 = vmatprep.mubr.bf16.mxu0 0
        %3081 = vmatmul.mubr.bf16.gmra.mrb[0].mxu0 %v2961
        %v3082 = vpop.f32.mrb[0].mxu0
        %v3083 = vadd.f32 0.0, %v3082
        %v3084 = vpop.f32.mrb[0].mxu0
        %v3085 = vpop.f32.mrb[0].mxu0
        %v3086 = vadd.f32 0.0, %v3085
        %v3087 = vpop.f32.mrb[0].mxu0
        %3088 = vmatprep.mubr.bf16.mxu0 0
        %3089 = vmatmul.mubr.bf16.gmra.mrb[0].mxu0 %v2964
        %v3090 = vpop.f32.mrb[0].mxu0
        %v3091 = vadd.f32 0.0, %v3090
        %v3092 = vpop.f32.mrb[0].mxu0
        %v3093 = vpop.f32.mrb[0].mxu0
        %v3094 = vadd.f32 0.0, %v3093
        %v3095 = vpop.f32.mrb[0].mxu0
        %3096 = vmatprep.mubr.bf16.mxu0 0
        %3097 = vmatmul.mubr.bf16.gmra.mrb[0].mxu0 %v2967
        %v3098 = vpop.f32.mrb[0].mxu0
        %v3099 = vadd.f32 0.0, %v3098
        %v3100 = vpop.f32.mrb[0].mxu0
        %v3101 = vpop.f32.mrb[0].mxu0
        %v3102 = vadd.f32 0.0, %v3101
        %v3103 = vpop.f32.mrb[0].mxu0
        %3104 = vmatprep.mubr.bf16.mxu0 0
        %3105 = vmatmul.mubr.bf16.gmra.mrb[0].mxu0 %v2970
        %v3106 = vpop.f32.mrb[0].mxu0
        %v3107 = vadd.f32 0.0, %v3106
        %v3108 = vpop.f32.mrb[0].mxu0
        %v3109 = vpop.f32.mrb[0].mxu0
        %v3110 = vadd.f32 0.0, %v3109
        %v3111 = vpop.f32.mrb[0].mxu0
        %3112 = vmatprep.mubr.bf16.mxu0 0
        %3113 = vmatmul.mubr.bf16.gmra.mrb[0].mxu0 %v2973
        %v3114 = vpop.f32.mrb[0].mxu0
        %v3115 = vadd.f32 0.0, %v3114
        %v3116 = vpop.f32.mrb[0].mxu0
        %v3117 = vpop.f32.mrb[0].mxu0
        %v3118 = vadd.f32 0.0, %v3117
        %v3119 = vpop.f32.mrb[0].mxu0
        %3120 = vmatprep.mubr.bf16.mxu0 0
        %3121 = vmatmul.mubr.bf16.gmra.mrb[0].mxu0 %v2976
        %v3122 = vpop.f32.mrb[0].mxu0
        %v3123 = vadd.f32 0.0, %v3122
        %v3124 = vpop.f32.mrb[0].mxu0
        %v3125 = vpop.f32.mrb[0].mxu0
        %v3126 = vadd.f32 0.0, %v3125
        %v3127 = vpop.f32.mrb[0].mxu0
        %3128 = vmatprep.mubr.bf16.mxu0 0
        %3129 = vmatmul.mubr.bf16.gmra.mrb[0].mxu0 %v2979
        %v3130 = vpop.f32.mrb[0].mxu0
        %v3131 = vadd.f32 0.0, %v3130
        %v3132 = vpop.f32.mrb[0].mxu0
        %v3133 = vpop.f32.mrb[0].mxu0
        %v3134 = vadd.f32 0.0, %v3133
        %v3135 = vpop.f32.mrb[0].mxu0
        %3136 = vmatprep.mubr.bf16.mxu0 0
        %3137 = vmatmul.mubr.bf16.gmra.mrb[0].mxu0 %v2982
        %v3138 = vpop.f32.mrb[0].mxu0
        %v3139 = vadd.f32 0.0, %v3138
        %v3140 = vpop.f32.mrb[0].mxu0
        %v3141 = vpop.f32.mrb[0].mxu0
        %v3142 = vadd.f32 0.0, %v3141
        %v3143 = vpop.f32.mrb[0].mxu0
        %3144 = vdwg.mxu0
        %v3145 = vpack.c.bf16 %v3022, %v3019
        %v3146 = vpack.c.bf16 %v3030, %v3027
        %v3147 = vpack.c.bf16 %v3038, %v3035
        %v3148 = vpack.c.bf16 %v3046, %v3043
        %v3149 = vpack.c.bf16 %v3054, %v3051
        %v3150 = vpack.c.bf16 %v3062, %v3059
        %v3151 = vpack.c.bf16 %v3070, %v3067
        %v3152 = vpack.c.bf16 %v3078, %v3075
        %v3153 = vpack.c.bf16 %v3086, %v3083
        %v3154 = vpack.c.bf16 %v3094, %v3091
        %v3155 = vpack.c.bf16 %v3102, %v3099
        %v3156 = vpack.c.bf16 %v3110, %v3107
        %v3157 = vpack.c.bf16 %v3118, %v3115
        %v3158 = vpack.c.bf16 %v3126, %v3123
        %v3159 = vpack.c.bf16 %v3134, %v3131
        %v3160 = vpack.c.bf16 %v3142, %v3139
        %v3161 = vld [vmem:[%s1116] sm:$0xf]
        %v3162 = vld [vmem:[%s1116 + $0x4] sm:$0xf]
        %v3163 = vld [vmem:[%s1116 + $0x8] sm:$0xf]
        %v3164 = vld [vmem:[%s1116 + $0xc] sm:$0xf]
        %v3169 = vunpack.c.l.b16 %v3161
        %v3170 = vunpack.c.l.b16 %v3162
        %v3171 = vunpack.c.l.b16 %v3163
        %v3172 = vunpack.c.l.b16 %v3164
        %v3173 = vpack.c.b16 %v3170, %v3169
        %v3174 = vpack.c.b16 %v3172, %v3171
        %3177 = vmatprep.subr.bf16.mxu0 0
        %3178 = vmatpush1.bf16.msra.mxu0 %v3173
        %3179 = vmatprep.subr.bf16.mxu0 0
        %3180 = vmatpush1.bf16.msra.mxu0 %v3174
        %3181 = vmatprep.subr.bf16.mxu0 0
        %3182 = vmatpush1.bf16.msra.mxu0 0
        %3183 = vmatprep.subr.bf16.mxu0 0
        %3184 = vmatpush1.bf16.msra.mxu0 0
        %3185 = vmatprep.subr.bf16.mxu0 0
        %3186 = vmatpush1.bf16.msra.mxu0 0
        %3187 = vmatprep.subr.bf16.mxu0 0
        %3188 = vmatpush1.bf16.msra.mxu0 0
        %3189 = vmatprep.subr.bf16.mxu0 0
        %3190 = vmatpush1.bf16.msra.mxu0 0
        %3191 = vmatprep.subr.bf16.mxu0 0
        %3192 = vmatpush1.bf16.msra.mxu0 0
        %3193 = vmatprep.subr.bf16.mxu0 0
        %3194 = vmatpush1.bf16.msra.mxu0 0
        %3195 = vmatprep.subr.bf16.mxu0 0
        %3196 = vmatpush1.bf16.msra.mxu0 0
        %3197 = vmatprep.subr.bf16.mxu0 0
        %3198 = vmatpush1.bf16.msra.mxu0 0
        %3199 = vmatprep.subr.bf16.mxu0 0
        %3200 = vmatpush1.bf16.msra.mxu0 0
        %3201 = vmatprep.subr.bf16.mxu0 0
        %3202 = vmatpush1.bf16.msra.mxu0 0
        %3203 = vmatprep.subr.bf16.mxu0 0
        %3204 = vmatpush1.bf16.msra.mxu0 0
        %3205 = vmatprep.subr.bf16.mxu0 0
        %3206 = vmatpush1.bf16.msra.mxu0 0
        %3207 = vmatprep.subr.bf16.mxu0 0
        %3208 = vmatpush1.bf16.msra.mxu0 0
        %3209 = vmatprep.mubr.bf16.mxu0 0
        %3210 = vmatmul.mubr.bf16.gmra.mrb[0].mxu0 %v2937
        %v3211 = vpop.f32.mrb[0].mxu0
        %v3212 = vadd.f32 0.0, %v3211
        %v3213 = vpop.f32.mrb[0].mxu0
        %v3214 = vpop.f32.mrb[0].mxu0
        %v3215 = vadd.f32 0.0, %v3214
        %v3216 = vpop.f32.mrb[0].mxu0
        %3217 = vmatprep.mubr.bf16.mxu0 0
        %3218 = vmatmul.mubr.bf16.gmra.mrb[0].mxu0 %v2940
        %v3219 = vpop.f32.mrb[0].mxu0
        %v3220 = vadd.f32 0.0, %v3219
        %v3221 = vpop.f32.mrb[0].mxu0
        %v3222 = vpop.f32.mrb[0].mxu0
        %v3223 = vadd.f32 0.0, %v3222
        %v3224 = vpop.f32.mrb[0].mxu0
        %3225 = vmatprep.mubr.bf16.mxu0 0
        %3226 = vmatmul.mubr.bf16.gmra.mrb[0].mxu0 %v2943
        %v3227 = vpop.f32.mrb[0].mxu0
        %v3228 = vadd.f32 0.0, %v3227
        %v3229 = vpop.f32.mrb[0].mxu0
        %v3230 = vpop.f32.mrb[0].mxu0
        %v3231 = vadd.f32 0.0, %v3230
        %v3232 = vpop.f32.mrb[0].mxu0
        %3233 = vmatprep.mubr.bf16.mxu0 0
        %3234 = vmatmul.mubr.bf16.gmra.mrb[0].mxu0 %v2946
        %v3235 = vpop.f32.mrb[0].mxu0
        %v3236 = vadd.f32 0.0, %v3235
        %v3237 = vpop.f32.mrb[0].mxu0
        %v3238 = vpop.f32.mrb[0].mxu0
        %v3239 = vadd.f32 0.0, %v3238
        %v3240 = vpop.f32.mrb[0].mxu0
        %3241 = vmatprep.mubr.bf16.mxu0 0
        %3242 = vmatmul.mubr.bf16.gmra.mrb[0].mxu0 %v2949
        %v3243 = vpop.f32.mrb[0].mxu0
        %v3244 = vadd.f32 0.0, %v3243
        %v3245 = vpop.f32.mrb[0].mxu0
        %v3246 = vpop.f32.mrb[0].mxu0
        %v3247 = vadd.f32 0.0, %v3246
        %v3248 = vpop.f32.mrb[0].mxu0
        %3249 = vmatprep.mubr.bf16.mxu0 0
        %3250 = vmatmul.mubr.bf16.gmra.mrb[0].mxu0 %v2952
        %v3251 = vpop.f32.mrb[0].mxu0
        %v3252 = vadd.f32 0.0, %v3251
        %v3253 = vpop.f32.mrb[0].mxu0
        %v3254 = vpop.f32.mrb[0].mxu0
        %v3255 = vadd.f32 0.0, %v3254
        %v3256 = vpop.f32.mrb[0].mxu0
        %3257 = vmatprep.mubr.bf16.mxu0 0
        %3258 = vmatmul.mubr.bf16.gmra.mrb[0].mxu0 %v2955
        %v3259 = vpop.f32.mrb[0].mxu0
        %v3260 = vadd.f32 0.0, %v3259
        %v3261 = vpop.f32.mrb[0].mxu0
        %v3262 = vpop.f32.mrb[0].mxu0
        %v3263 = vadd.f32 0.0, %v3262
        %v3264 = vpop.f32.mrb[0].mxu0
        %3265 = vmatprep.mubr.bf16.mxu0 0
        %3266 = vmatmul.mubr.bf16.gmra.mrb[0].mxu0 %v2958
        %v3267 = vpop.f32.mrb[0].mxu0
        %v3268 = vadd.f32 0.0, %v3267
        %v3269 = vpop.f32.mrb[0].mxu0
        %v3270 = vpop.f32.mrb[0].mxu0
        %v3271 = vadd.f32 0.0, %v3270
        %v3272 = vpop.f32.mrb[0].mxu0
        %3273 = vmatprep.mubr.bf16.mxu0 0
        %3274 = vmatmul.mubr.bf16.gmra.mrb[0].mxu0 %v2961
        %v3275 = vpop.f32.mrb[0].mxu0
        %v3276 = vadd.f32 0.0, %v3275
        %v3277 = vpop.f32.mrb[0].mxu0
        %v3278 = vpop.f32.mrb[0].mxu0
        %v3279 = vadd.f32 0.0, %v3278
        %v3280 = vpop.f32.mrb[0].mxu0
        %3281 = vmatprep.mubr.bf16.mxu0 0
        %3282 = vmatmul.mubr.bf16.gmra.mrb[0].mxu0 %v2964
        %v3283 = vpop.f32.mrb[0].mxu0
        %v3284 = vadd.f32 0.0, %v3283
        %v3285 = vpop.f32.mrb[0].mxu0
        %v3286 = vpop.f32.mrb[0].mxu0
        %v3287 = vadd.f32 0.0, %v3286
        %v3288 = vpop.f32.mrb[0].mxu0
        %3289 = vmatprep.mubr.bf16.mxu0 0
        %3290 = vmatmul.mubr.bf16.gmra.mrb[0].mxu0 %v2967
        %v3291 = vpop.f32.mrb[0].mxu0
        %v3292 = vadd.f32 0.0, %v3291
        %v3293 = vpop.f32.mrb[0].mxu0
        %v3294 = vpop.f32.mrb[0].mxu0
        %v3295 = vadd.f32 0.0, %v3294
        %v3296 = vpop.f32.mrb[0].mxu0
        %3297 = vmatprep.mubr.bf16.mxu0 0
        %3298 = vmatmul.mubr.bf16.gmra.mrb[0].mxu0 %v2970
        %v3299 = vpop.f32.mrb[0].mxu0
        %v3300 = vadd.f32 0.0, %v3299
        %v3301 = vpop.f32.mrb[0].mxu0
        %v3302 = vpop.f32.mrb[0].mxu0
        %v3303 = vadd.f32 0.0, %v3302
        %v3304 = vpop.f32.mrb[0].mxu0
        %3305 = vmatprep.mubr.bf16.mxu0 0
        %3306 = vmatmul.mubr.bf16.gmra.mrb[0].mxu0 %v2973
        %v3307 = vpop.f32.mrb[0].mxu0
        %v3308 = vadd.f32 0.0, %v3307
        %v3309 = vpop.f32.mrb[0].mxu0
        %v3310 = vpop.f32.mrb[0].mxu0
        %v3311 = vadd.f32 0.0, %v3310
        %v3312 = vpop.f32.mrb[0].mxu0
        %3313 = vmatprep.mubr.bf16.mxu0 0
        %3314 = vmatmul.mubr.bf16.gmra.mrb[0].mxu0 %v2976
        %v3315 = vpop.f32.mrb[0].mxu0
        %v3316 = vadd.f32 0.0, %v3315
        %v3317 = vpop.f32.mrb[0].mxu0
        %v3318 = vpop.f32.mrb[0].mxu0
        %v3319 = vadd.f32 0.0, %v3318
        %v3320 = vpop.f32.mrb[0].mxu0
        %3321 = vmatprep.mubr.bf16.mxu0 0
        %3322 = vmatmul.mubr.bf16.gmra.mrb[0].mxu0 %v2979
        %v3323 = vpop.f32.mrb[0].mxu0
        %v3324 = vadd.f32 0.0, %v3323
        %v3325 = vpop.f32.mrb[0].mxu0
        %v3326 = vpop.f32.mrb[0].mxu0
        %v3327 = vadd.f32 0.0, %v3326
        %v3328 = vpop.f32.mrb[0].mxu0
        %3329 = vmatprep.mubr.bf16.mxu0 0
        %3330 = vmatmul.mubr.bf16.gmra.mrb[0].mxu0 %v2982
        %v3331 = vpop.f32.mrb[0].mxu0
        %v3332 = vadd.f32 0.0, %v3331
        %v3333 = vpop.f32.mrb[0].mxu0
        %v3334 = vpop.f32.mrb[0].mxu0
        %v3335 = vadd.f32 0.0, %v3334
        %v3336 = vpop.f32.mrb[0].mxu0
        %3337 = vdwg.mxu0
        %v3338 = vpack.c.bf16 %v3215, %v3212
        %v3339 = vpack.c.bf16 %v3223, %v3220
        %v3340 = vpack.c.bf16 %v3231, %v3228
        %v3341 = vpack.c.bf16 %v3239, %v3236
        %v3342 = vpack.c.bf16 %v3247, %v3244
        %v3343 = vpack.c.bf16 %v3255, %v3252
        %v3344 = vpack.c.bf16 %v3263, %v3260
        %v3345 = vpack.c.bf16 %v3271, %v3268
        %v3346 = vpack.c.bf16 %v3279, %v3276
        %v3347 = vpack.c.bf16 %v3287, %v3284
        %v3348 = vpack.c.bf16 %v3295, %v3292
        %v3349 = vpack.c.bf16 %v3303, %v3300
        %v3350 = vpack.c.bf16 %v3311, %v3308
        %v3351 = vpack.c.bf16 %v3319, %v3316
        %v3352 = vpack.c.bf16 %v3327, %v3324
        %v3353 = vpack.c.bf16 %v3335, %v3332
        %v3354 = vlaneseq
        %v3355 = vand.u32 %v3354, 127
        %vm3356 = vcmp.lt.s32.totalorder %v3355, 12
        %v3358 = vsel %vm1389, %v2903, 0
        %v3361 = vsel %vm1389, %v3145, 0
        %v3364 = vsel %vm1389, %v3146, 0
        %v3367 = vsel %vm1389, %v3147, 0
        %v3370 = vsel %vm1389, %v3148, 0
        %v3373 = vsel %vm1389, %v3149, 0
        %v3376 = vsel %vm1389, %v3150, 0
        %v3379 = vsel %vm1389, %v3151, 0
        %v3382 = vsel %vm1389, %v3152, 0
        %3384 = vmatprep.subr.bf16.mxu0 0
        %3385 = vmatpush1.bf16.xpose.msra.mxu0 %v3361
        %3386 = vmatprep.subr.bf16.mxu0 0
        %3387 = vmatpush1.bf16.xpose.msra.mxu0 %v3364
        %3388 = vmatprep.subr.bf16.mxu0 0
        %3389 = vmatpush1.bf16.xpose.msra.mxu0 %v3367
        %3390 = vmatprep.subr.bf16.mxu0 0
        %3391 = vmatpush1.bf16.xpose.msra.mxu0 %v3370
        %3392 = vmatprep.subr.bf16.mxu0 0
        %3393 = vmatpush1.bf16.xpose.msra.mxu0 %v3373
        %3394 = vmatprep.subr.bf16.mxu0 0
        %3395 = vmatpush1.bf16.xpose.msra.mxu0 %v3376
        %3396 = vmatprep.subr.bf16.mxu0 0
        %3397 = vmatpush1.bf16.xpose.msra.mxu0 %v3379
        %3398 = vmatprep.subr.bf16.mxu0 0
        %3399 = vmatpush1.bf16.xpose.msra.mxu0 %v3382
        %3400 = vmatprep.subr.bf16.mxu0 0
        %3401 = vmatpush1.bf16.xpose.msra.mxu0 0
        %3402 = vmatprep.subr.bf16.mxu0 0
        %3403 = vmatpush1.bf16.xpose.msra.mxu0 0
        %3404 = vmatprep.subr.bf16.mxu0 0
        %3405 = vmatpush1.bf16.xpose.msra.mxu0 0
        %3406 = vmatprep.subr.bf16.mxu0 0
        %3407 = vmatpush1.bf16.xpose.msra.mxu0 0
        %3408 = vmatprep.subr.bf16.mxu0 0
        %3409 = vmatpush1.bf16.xpose.msra.mxu0 0
        %3410 = vmatprep.subr.bf16.mxu0 0
        %3411 = vmatpush1.bf16.xpose.msra.mxu0 0
        %3412 = vmatprep.subr.bf16.mxu0 0
        %3413 = vmatpush1.bf16.xpose.msra.mxu0 0
        %3414 = vmatprep.subr.bf16.mxu0 0
        %3415 = vmatpush1.bf16.xpose.msra.mxu0 0
        %3416 = vmatprep.mubr.bf16.mxu0 0
        %3417 = vmatmul.mubr.bf16.gmra.mrb[0].mxu0 %v3358
        %v3418 = vpop.f32.mrb[0].mxu0
        %v3419 = vadd.f32 0.0, %v3418
        %v3420 = vpop.f32.mrb[0].mxu0
        %v3421 = vpop.f32.mrb[0].mxu0
        %v3422 = vpop.f32.mrb[0].mxu0
        %3423 = vdwg.mxu0
        %v3424 = vsel %vm3356, %v3419, -1e+30
        %3425 = vmax.xlane.f32.xlu0 %v3424
        %v3426 = vpop.xlane.xlu0 %3425
        %v3427 = vsub.f32 %v3424, %v3426
        %v3428 = vmul.f32 %v3427, 1.442695
        %v3429 = vpow.pop %v3428
        %3430 = vadd.xlane.f32.xlu0 %v3429
        %v3431 = vpop.xlane.xlu0 %3430
        %v3432 = vrcp.pop %v3431
        %v3433 = vmul.f32 %v3429, %v3432
        %v3434 = vpack.c.bf16 %v3433, %v3433
        %3435 = vmatprep.subr.bf16.mxu0 0
        %3436 = vmatpush1.bf16.msra.mxu0 %v3338
        %3437 = vmatprep.subr.bf16.mxu0 0
        %3438 = vmatpush1.bf16.msra.mxu0 %v3339
        %3439 = vmatprep.subr.bf16.mxu0 0
        %3440 = vmatpush1.bf16.msra.mxu0 %v3340
        %3441 = vmatprep.subr.bf16.mxu0 0
        %3442 = vmatpush1.bf16.msra.mxu0 %v3341
        %3443 = vmatprep.subr.bf16.mxu0 0
        %3444 = vmatpush1.bf16.msra.mxu0 %v3342
        %3445 = vmatprep.subr.bf16.mxu0 0
        %3446 = vmatpush1.bf16.msra.mxu0 %v3343
        %3447 = vmatprep.subr.bf16.mxu0 0
        %3448 = vmatpush1.bf16.msra.mxu0 %v3344
        %3449 = vmatprep.subr.bf16.mxu0 0
        %3450 = vmatpush1.bf16.msra.mxu0 %v3345
        %3451 = vmatprep.subr.bf16.mxu0 0
        %3452 = vmatpush1.bf16.msra.mxu0 0
        %3453 = vmatprep.subr.bf16.mxu0 0
        %3454 = vmatpush1.bf16.msra.mxu0 0
        %3455 = vmatprep.subr.bf16.mxu0 0
        %3456 = vmatpush1.bf16.msra.mxu0 0
        %3457 = vmatprep.subr.bf16.mxu0 0
        %3458 = vmatpush1.bf16.msra.mxu0 0
        %3459 = vmatprep.subr.bf16.mxu0 0
        %3460 = vmatpush1.bf16.msra.mxu0 0
        %3461 = vmatprep.subr.bf16.mxu0 0
        %3462 = vmatpush1.bf16.msra.mxu0 0
        %3463 = vmatprep.subr.bf16.mxu0 0
        %3464 = vmatpush1.bf16.msra.mxu0 0
        %3465 = vmatprep.subr.bf16.mxu0 0
        %3466 = vmatpush1.bf16.msra.mxu0 0
        %3467 = vmatprep.mubr.bf16.mxu0 0
        %3468 = vmatmul.mubr.bf16.gmra.mrb[0].mxu0 %v3434
        %v3469 = vpop.f32.mrb[0].mxu0
        %v3470 = vadd.f32 0.0, %v3469
        %v3471 = vpop.f32.mrb[0].mxu0
        %v3472 = vpop.f32.mrb[0].mxu0
        %v3473 = vpop.f32.mrb[0].mxu0
        %3474 = vdwg.mxu0
        %3475 = vst.msk [vmem:[#allocation2] sm:$0xff] %vm1389, %v3470
        %3477 = vrot.lane.b32.xlu0 %v2903, 120
        %v3478 = vpop.permute.xlu0 %3477
        %3487 = vrot.lane.b32.xlu0 %v3145, 120
        %v3488 = vpop.permute.xlu0 %3487
        %3489 = vrot.lane.b32.xlu0 %v3146, 120
        %v3490 = vpop.permute.xlu0 %3489
        %3491 = vrot.lane.b32.xlu0 %v3147, 120
        %v3492 = vpop.permute.xlu0 %3491
        %3493 = vrot.lane.b32.xlu0 %v3148, 120
        %v3494 = vpop.permute.xlu0 %3493
        %3495 = vrot.lane.b32.xlu0 %v3149, 120
        %v3496 = vpop.permute.xlu0 %3495
        %3497 = vrot.lane.b32.xlu0 %v3150, 120
        %v3498 = vpop.permute.xlu0 %3497
        %3499 = vrot.lane.b32.xlu0 %v3151, 120
        %v3500 = vpop.permute.xlu0 %3499
        %3501 = vrot.lane.b32.xlu0 %v3152, 120
        %v3502 = vpop.permute.xlu0 %3501
        %v3504 = vsel %vm1389, %v3478, 0
        %v3507 = vsel %vm1389, %v3488, 0
        %v3510 = vsel %vm1389, %v3490, 0
        %v3513 = vsel %vm1389, %v3492, 0
        %v3516 = vsel %vm1389, %v3494, 0
        %v3519 = vsel %vm1389, %v3496, 0
        %v3522 = vsel %vm1389, %v3498, 0
        %v3525 = vsel %vm1389, %v3500, 0
        %v3528 = vsel %vm1389, %v3502, 0
        %3530 = vmatprep.subr.bf16.mxu0 0
        %3531 = vmatpush1.bf16.xpose.msra.mxu0 %v3507
        %3532 = vmatprep.subr.bf16.mxu0 0
        %3533 = vmatpush1.bf16.xpose.msra.mxu0 %v3510
        %3534 = vmatprep.subr.bf16.mxu0 0
        %3535 = vmatpush1.bf16.xpose.msra.mxu0 %v3513
        %3536 = vmatprep.subr.bf16.mxu0 0
        %3537 = vmatpush1.bf16.xpose.msra.mxu0 %v3516
        %3538 = vmatprep.subr.bf16.mxu0 0
        %3539 = vmatpush1.bf16.xpose.msra.mxu0 %v3519
        %3540 = vmatprep.subr.bf16.mxu0 0
        %3541 = vmatpush1.bf16.xpose.msra.mxu0 %v3522
        %3542 = vmatprep.subr.bf16.mxu0 0
        %3543 = vmatpush1.bf16.xpose.msra.mxu0 %v3525
        %3544 = vmatprep.subr.bf16.mxu0 0
        %3545 = vmatpush1.bf16.xpose.msra.mxu0 %v3528
        %3546 = vmatprep.subr.bf16.mxu0 0
        %3547 = vmatpush1.bf16.xpose.msra.mxu0 0
        %3548 = vmatprep.subr.bf16.mxu0 0
        %3549 = vmatpush1.bf16.xpose.msra.mxu0 0
        %3550 = vmatprep.subr.bf16.mxu0 0
        %3551 = vmatpush1.bf16.xpose.msra.mxu0 0
        %3552 = vmatprep.subr.bf16.mxu0 0
        %3553 = vmatpush1.bf16.xpose.msra.mxu0 0
        %3554 = vmatprep.subr.bf16.mxu0 0
        %3555 = vmatpush1.bf16.xpose.msra.mxu0 0
        %3556 = vmatprep.subr.bf16.mxu0 0
        %3557 = vmatpush1.bf16.xpose.msra.mxu0 0
        %3558 = vmatprep.subr.bf16.mxu0 0
        %3559 = vmatpush1.bf16.xpose.msra.mxu0 0
        %3560 = vmatprep.subr.bf16.mxu0 0
        %3561 = vmatpush1.bf16.xpose.msra.mxu0 0
        %3562 = vmatprep.mubr.bf16.mxu0 0
        %3563 = vmatmul.mubr.bf16.gmra.mrb[0].mxu0 %v3504
        %v3564 = vpop.f32.mrb[0].mxu0
        %v3565 = vadd.f32 0.0, %v3564
        %v3566 = vpop.f32.mrb[0].mxu0
        %v3567 = vpop.f32.mrb[0].mxu0
        %v3568 = vpop.f32.mrb[0].mxu0
        %3569 = vdwg.mxu0
        %v3570 = vsel %vm3356, %v3565, -1e+30
        %3571 = vmax.xlane.f32.xlu0 %v3570
        %v3572 = vpop.xlane.xlu0 %3571
        %v3573 = vsub.f32 %v3570, %v3572
        %v3574 = vmul.f32 %v3573, 1.442695
        %v3575 = vpow.pop %v3574
        %3576 = vadd.xlane.f32.xlu0 %v3575
        %v3577 = vpop.xlane.xlu0 %3576
        %v3578 = vrcp.pop %v3577
        %v3579 = vmul.f32 %v3575, %v3578
        %v3580 = vpack.c.bf16 %v3579, %v3579
        %3589 = vrot.lane.b32.xlu0 %v3338, 120
        %v3590 = vpop.permute.xlu0 %3589
        %3591 = vrot.lane.b32.xlu0 %v3339, 120
        %v3592 = vpop.permute.xlu0 %3591
        %3593 = vrot.lane.b32.xlu0 %v3340, 120
        %v3594 = vpop.permute.xlu0 %3593
        %3595 = vrot.lane.b32.xlu0 %v3341, 120
        %v3596 = vpop.permute.xlu0 %3595
        %3597 = vrot.lane.b32.xlu0 %v3342, 120
        %v3598 = vpop.permute.xlu0 %3597
        %3599 = vrot.lane.b32.xlu0 %v3343, 120
        %v3600 = vpop.permute.xlu0 %3599
        %3601 = vrot.lane.b32.xlu0 %v3344, 120
        %v3602 = vpop.permute.xlu0 %3601
        %3603 = vrot.lane.b32.xlu0 %v3345, 120
        %v3604 = vpop.permute.xlu0 %3603
        %3613 = vmatprep.subr.bf16.mxu0 0
        %3614 = vmatpush1.bf16.msra.mxu0 %v3590
        %3615 = vmatprep.subr.bf16.mxu0 0
        %3616 = vmatpush1.bf16.msra.mxu0 %v3592
        %3617 = vmatprep.subr.bf16.mxu0 0
        %3618 = vmatpush1.bf16.msra.mxu0 %v3594
        %3619 = vmatprep.subr.bf16.mxu0 0
        %3620 = vmatpush1.bf16.msra.mxu0 %v3596
        %3621 = vmatprep.subr.bf16.mxu0 0
        %3622 = vmatpush1.bf16.msra.mxu0 %v3598
        %3623 = vmatprep.subr.bf16.mxu0 0
        %3624 = vmatpush1.bf16.msra.mxu0 %v3600
        %3625 = vmatprep.subr.bf16.mxu0 0
        %3626 = vmatpush1.bf16.msra.mxu0 %v3602
        %3627 = vmatprep.subr.bf16.mxu0 0
        %3628 = vmatpush1.bf16.msra.mxu0 %v3604
        %3629 = vmatprep.subr.bf16.mxu0 0
        %3630 = vmatpush1.bf16.msra.mxu0 0
        %3631 = vmatprep.subr.bf16.mxu0 0
        %3632 = vmatpush1.bf16.msra.mxu0 0
        %3633 = vmatprep.subr.bf16.mxu0 0
        %3634 = vmatpush1.bf16.msra.mxu0 0
        %3635 = vmatprep.subr.bf16.mxu0 0
        %3636 = vmatpush1.bf16.msra.mxu0 0
        %3637 = vmatprep.subr.bf16.mxu0 0
        %3638 = vmatpush1.bf16.msra.mxu0 0
        %3639 = vmatprep.subr.bf16.mxu0 0
        %3640 = vmatpush1.bf16.msra.mxu0 0
        %3641 = vmatprep.subr.bf16.mxu0 0
        %3642 = vmatpush1.bf16.msra.mxu0 0
        %3643 = vmatprep.subr.bf16.mxu0 0
        %3644 = vmatpush1.bf16.msra.mxu0 0
        %3645 = vmatprep.mubr.bf16.mxu0 0
        %3646 = vmatmul.mubr.bf16.gmra.mrb[0].mxu0 %v3580
        %v3647 = vpop.f32.mrb[0].mxu0
        %v3648 = vadd.f32 0.0, %v3647
        %v3649 = vpop.f32.mrb[0].mxu0
        %v3650 = vpop.f32.mrb[0].mxu0
        %v3651 = vpop.f32.mrb[0].mxu0
        %3652 = vdwg.mxu0
        %3654 = vrot.lane.b32.xlu0 %v3648, 8
        %v3655 = vpop.permute.xlu0 %3654
        %3657 = vst.msk [vmem:[#allocation2] sm:$0xff] %vm1613, %v3655
        %3658 = vrot.lane.b32.xlu0 %v2903, 112
        %v3659 = vpop.permute.xlu0 %3658
        %3660 = vrot.lane.b32.xlu0 %v3145, 112
        %v3661 = vpop.permute.xlu0 %3660
        %3662 = vrot.lane.b32.xlu0 %v3146, 112
        %v3663 = vpop.permute.xlu0 %3662
        %3664 = vrot.lane.b32.xlu0 %v3147, 112
        %v3665 = vpop.permute.xlu0 %3664
        %3666 = vrot.lane.b32.xlu0 %v3148, 112
        %v3667 = vpop.permute.xlu0 %3666
        %3668 = vrot.lane.b32.xlu0 %v3149, 112
        %v3669 = vpop.permute.xlu0 %3668
        %3670 = vrot.lane.b32.xlu0 %v3150, 112
        %v3671 = vpop.permute.xlu0 %3670
        %3672 = vrot.lane.b32.xlu0 %v3151, 112
        %v3673 = vpop.permute.xlu0 %3672
        %3674 = vrot.lane.b32.xlu0 %v3152, 112
        %v3675 = vpop.permute.xlu0 %3674
        %v3677 = vsel %vm1389, %v3659, 0
        %v3680 = vsel %vm1389, %v3661, 0
        %v3683 = vsel %vm1389, %v3663, 0
        %v3686 = vsel %vm1389, %v3665, 0
        %v3689 = vsel %vm1389, %v3667, 0
        %v3692 = vsel %vm1389, %v3669, 0
        %v3695 = vsel %vm1389, %v3671, 0
        %v3698 = vsel %vm1389, %v3673, 0
        %v3701 = vsel %vm1389, %v3675, 0
        %3703 = vmatprep.subr.bf16.mxu0 0
        %3704 = vmatpush1.bf16.xpose.msra.mxu0 %v3680
        %3705 = vmatprep.subr.bf16.mxu0 0
        %3706 = vmatpush1.bf16.xpose.msra.mxu0 %v3683
        %3707 = vmatprep.subr.bf16.mxu0 0
        %3708 = vmatpush1.bf16.xpose.msra.mxu0 %v3686
        %3709 = vmatprep.subr.bf16.mxu0 0
        %3710 = vmatpush1.bf16.xpose.msra.mxu0 %v3689
        %3711 = vmatprep.subr.bf16.mxu0 0
        %3712 = vmatpush1.bf16.xpose.msra.mxu0 %v3692
        %3713 = vmatprep.subr.bf16.mxu0 0
        %3714 = vmatpush1.bf16.xpose.msra.mxu0 %v3695
        %3715 = vmatprep.subr.bf16.mxu0 0
        %3716 = vmatpush1.bf16.xpose.msra.mxu0 %v3698
        %3717 = vmatprep.subr.bf16.mxu0 0
        %3718 = vmatpush1.bf16.xpose.msra.mxu0 %v3701
        %3719 = vmatprep.subr.bf16.mxu0 0
        %3720 = vmatpush1.bf16.xpose.msra.mxu0 0
        %3721 = vmatprep.subr.bf16.mxu0 0
        %3722 = vmatpush1.bf16.xpose.msra.mxu0 0
        %3723 = vmatprep.subr.bf16.mxu0 0
        %3724 = vmatpush1.bf16.xpose.msra.mxu0 0
        %3725 = vmatprep.subr.bf16.mxu0 0
        %3726 = vmatpush1.bf16.xpose.msra.mxu0 0
        %3727 = vmatprep.subr.bf16.mxu0 0
        %3728 = vmatpush1.bf16.xpose.msra.mxu0 0
        %3729 = vmatprep.subr.bf16.mxu0 0
        %3730 = vmatpush1.bf16.xpose.msra.mxu0 0
        %3731 = vmatprep.subr.bf16.mxu0 0
        %3732 = vmatpush1.bf16.xpose.msra.mxu0 0
        %3733 = vmatprep.subr.bf16.mxu0 0
        %3734 = vmatpush1.bf16.xpose.msra.mxu0 0
        %3735 = vmatprep.mubr.bf16.mxu0 0
        %3736 = vmatmul.mubr.bf16.gmra.mrb[0].mxu0 %v3677
        %v3737 = vpop.f32.mrb[0].mxu0
        %v3738 = vadd.f32 0.0, %v3737
        %v3739 = vpop.f32.mrb[0].mxu0
        %v3740 = vpop.f32.mrb[0].mxu0
        %v3741 = vpop.f32.mrb[0].mxu0
        %3742 = vdwg.mxu0
        %v3743 = vsel %vm3356, %v3738, -1e+30
        %3744 = vmax.xlane.f32.xlu0 %v3743
        %v3745 = vpop.xlane.xlu0 %3744
        %v3746 = vsub.f32 %v3743, %v3745
        %v3747 = vmul.f32 %v3746, 1.442695
        %v3748 = vpow.pop %v3747
        %3749 = vadd.xlane.f32.xlu0 %v3748
        %v3750 = vpop.xlane.xlu0 %3749
        %v3751 = vrcp.pop %v3750
        %v3752 = vmul.f32 %v3748, %v3751
        %v3753 = vpack.c.bf16 %v3752, %v3752
        %3754 = vrot.lane.b32.xlu0 %v3338, 112
        %v3755 = vpop.permute.xlu0 %3754
        %3756 = vrot.lane.b32.xlu0 %v3339, 112
        %v3757 = vpop.permute.xlu0 %3756
        %3758 = vrot.lane.b32.xlu0 %v3340, 112
        %v3759 = vpop.permute.xlu0 %3758
        %3760 = vrot.lane.b32.xlu0 %v3341, 112
        %v3761 = vpop.permute.xlu0 %3760
        %3762 = vrot.lane.b32.xlu0 %v3342, 112
        %v3763 = vpop.permute.xlu0 %3762
        %3764 = vrot.lane.b32.xlu0 %v3343, 112
        %v3765 = vpop.permute.xlu0 %3764
        %3766 = vrot.lane.b32.xlu0 %v3344, 112
        %v3767 = vpop.permute.xlu0 %3766
        %3768 = vrot.lane.b32.xlu0 %v3345, 112
        %v3769 = vpop.permute.xlu0 %3768
        %3778 = vmatprep.subr.bf16.mxu0 0
        %3779 = vmatpush1.bf16.msra.mxu0 %v3755
        %3780 = vmatprep.subr.bf16.mxu0 0
        %3781 = vmatpush1.bf16.msra.mxu0 %v3757
        %3782 = vmatprep.subr.bf16.mxu0 0
        %3783 = vmatpush1.bf16.msra.mxu0 %v3759
        %3784 = vmatprep.subr.bf16.mxu0 0
        %3785 = vmatpush1.bf16.msra.mxu0 %v3761
        %3786 = vmatprep.subr.bf16.mxu0 0
        %3787 = vmatpush1.bf16.msra.mxu0 %v3763
        %3788 = vmatprep.subr.bf16.mxu0 0
        %3789 = vmatpush1.bf16.msra.mxu0 %v3765
        %3790 = vmatprep.subr.bf16.mxu0 0
        %3791 = vmatpush1.bf16.msra.mxu0 %v3767
        %3792 = vmatprep.subr.bf16.mxu0 0
        %3793 = vmatpush1.bf16.msra.mxu0 %v3769
        %3794 = vmatprep.subr.bf16.mxu0 0
        %3795 = vmatpush1.bf16.msra.mxu0 0
        %3796 = vmatprep.subr.bf16.mxu0 0
        %3797 = vmatpush1.bf16.msra.mxu0 0
        %3798 = vmatprep.subr.bf16.mxu0 0
        %3799 = vmatpush1.bf16.msra.mxu0 0
        %3800 = vmatprep.subr.bf16.mxu0 0
        %3801 = vmatpush1.bf16.msra.mxu0 0
        %3802 = vmatprep.subr.bf16.mxu0 0
        %3803 = vmatpush1.bf16.msra.mxu0 0
        %3804 = vmatprep.subr.bf16.mxu0 0
        %3805 = vmatpush1.bf16.msra.mxu0 0
        %3806 = vmatprep.subr.bf16.mxu0 0
        %3807 = vmatpush1.bf16.msra.mxu0 0
        %3808 = vmatprep.subr.bf16.mxu0 0
        %3809 = vmatpush1.bf16.msra.mxu0 0
        %3810 = vmatprep.mubr.bf16.mxu0 0
        %3811 = vmatmul.mubr.bf16.gmra.mrb[0].mxu0 %v3753
        %v3812 = vpop.f32.mrb[0].mxu0
        %v3813 = vadd.f32 0.0, %v3812
        %v3814 = vpop.f32.mrb[0].mxu0
        %v3815 = vpop.f32.mrb[0].mxu0
        %v3816 = vpop.f32.mrb[0].mxu0
        %3817 = vdwg.mxu0
        %3819 = vrot.lane.b32.xlu0 %v3813, 16
        %v3820 = vpop.permute.xlu0 %3819
        %3822 = vst.msk [vmem:[#allocation2] sm:$0xff] %vm1729, %v3820
        %3823 = vrot.lane.b32.xlu0 %v2903, 104
        %v3824 = vpop.permute.xlu0 %3823
        %3825 = vrot.lane.b32.xlu0 %v3145, 104
        %v3826 = vpop.permute.xlu0 %3825
        %3827 = vrot.lane.b32.xlu0 %v3146, 104
        %v3828 = vpop.permute.xlu0 %3827
        %3829 = vrot.lane.b32.xlu0 %v3147, 104
        %v3830 = vpop.permute.xlu0 %3829
        %3831 = vrot.lane.b32.xlu0 %v3148, 104
        %v3832 = vpop.permute.xlu0 %3831
        %3833 = vrot.lane.b32.xlu0 %v3149, 104
        %v3834 = vpop.permute.xlu0 %3833
        %3835 = vrot.lane.b32.xlu0 %v3150, 104
        %v3836 = vpop.permute.xlu0 %3835
        %3837 = vrot.lane.b32.xlu0 %v3151, 104
        %v3838 = vpop.permute.xlu0 %3837
        %3839 = vrot.lane.b32.xlu0 %v3152, 104
        %v3840 = vpop.permute.xlu0 %3839
        %v3842 = vsel %vm1389, %v3824, 0
        %v3845 = vsel %vm1389, %v3826, 0
        %v3848 = vsel %vm1389, %v3828, 0
        %v3851 = vsel %vm1389, %v3830, 0
        %v3854 = vsel %vm1389, %v3832, 0
        %v3857 = vsel %vm1389, %v3834, 0
        %v3860 = vsel %vm1389, %v3836, 0
        %v3863 = vsel %vm1389, %v3838, 0
        %v3866 = vsel %vm1389, %v3840, 0
        %3868 = vmatprep.subr.bf16.mxu0 0
        %3869 = vmatpush1.bf16.xpose.msra.mxu0 %v3845
        %3870 = vmatprep.subr.bf16.mxu0 0
        %3871 = vmatpush1.bf16.xpose.msra.mxu0 %v3848
        %3872 = vmatprep.subr.bf16.mxu0 0
        %3873 = vmatpush1.bf16.xpose.msra.mxu0 %v3851
        %3874 = vmatprep.subr.bf16.mxu0 0
        %3875 = vmatpush1.bf16.xpose.msra.mxu0 %v3854
        %3876 = vmatprep.subr.bf16.mxu0 0
        %3877 = vmatpush1.bf16.xpose.msra.mxu0 %v3857
        %3878 = vmatprep.subr.bf16.mxu0 0
        %3879 = vmatpush1.bf16.xpose.msra.mxu0 %v3860
        %3880 = vmatprep.subr.bf16.mxu0 0
        %3881 = vmatpush1.bf16.xpose.msra.mxu0 %v3863
        %3882 = vmatprep.subr.bf16.mxu0 0
        %3883 = vmatpush1.bf16.xpose.msra.mxu0 %v3866
        %3884 = vmatprep.subr.bf16.mxu0 0
        %3885 = vmatpush1.bf16.xpose.msra.mxu0 0
        %3886 = vmatprep.subr.bf16.mxu0 0
        %3887 = vmatpush1.bf16.xpose.msra.mxu0 0
        %3888 = vmatprep.subr.bf16.mxu0 0
        %3889 = vmatpush1.bf16.xpose.msra.mxu0 0
        %3890 = vmatprep.subr.bf16.mxu0 0
        %3891 = vmatpush1.bf16.xpose.msra.mxu0 0
        %3892 = vmatprep.subr.bf16.mxu0 0
        %3893 = vmatpush1.bf16.xpose.msra.mxu0 0
        %3894 = vmatprep.subr.bf16.mxu0 0
        %3895 = vmatpush1.bf16.xpose.msra.mxu0 0
        %3896 = vmatprep.subr.bf16.mxu0 0
        %3897 = vmatpush1.bf16.xpose.msra.mxu0 0
        %3898 = vmatprep.subr.bf16.mxu0 0
        %3899 = vmatpush1.bf16.xpose.msra.mxu0 0
        %3900 = vmatprep.mubr.bf16.mxu0 0
        %3901 = vmatmul.mubr.bf16.gmra.mrb[0].mxu0 %v3842
        %v3902 = vpop.f32.mrb[0].mxu0
        %v3903 = vadd.f32 0.0, %v3902
        %v3904 = vpop.f32.mrb[0].mxu0
        %v3905 = vpop.f32.mrb[0].mxu0
        %v3906 = vpop.f32.mrb[0].mxu0
        %3907 = vdwg.mxu0
        %v3908 = vsel %vm3356, %v3903, -1e+30
        %3909 = vmax.xlane.f32.xlu0 %v3908
        %v3910 = vpop.xlane.xlu0 %3909
        %v3911 = vsub.f32 %v3908, %v3910
        %v3912 = vmul.f32 %v3911, 1.442695
        %v3913 = vpow.pop %v3912
        %3914 = vadd.xlane.f32.xlu0 %v3913
        %v3915 = vpop.xlane.xlu0 %3914
        %v3916 = vrcp.pop %v3915
        %v3917 = vmul.f32 %v3913, %v3916
        %v3918 = vpack.c.bf16 %v3917, %v3917
        %3919 = vrot.lane.b32.xlu0 %v3338, 104
        %v3920 = vpop.permute.xlu0 %3919
        %3921 = vrot.lane.b32.xlu0 %v3339, 104
        %v3922 = vpop.permute.xlu0 %3921
        %3923 = vrot.lane.b32.xlu0 %v3340, 104
        %v3924 = vpop.permute.xlu0 %3923
        %3925 = vrot.lane.b32.xlu0 %v3341, 104
        %v3926 = vpop.permute.xlu0 %3925
        %3927 = vrot.lane.b32.xlu0 %v3342, 104
        %v3928 = vpop.permute.xlu0 %3927
        %3929 = vrot.lane.b32.xlu0 %v3343, 104
        %v3930 = vpop.permute.xlu0 %3929
        %3931 = vrot.lane.b32.xlu0 %v3344, 104
        %v3932 = vpop.permute.xlu0 %3931
        %3933 = vrot.lane.b32.xlu0 %v3345, 104
        %v3934 = vpop.permute.xlu0 %3933
        %3943 = vmatprep.subr.bf16.mxu0 0
        %3944 = vmatpush1.bf16.msra.mxu0 %v3920
        %3945 = vmatprep.subr.bf16.mxu0 0
        %3946 = vmatpush1.bf16.msra.mxu0 %v3922
        %3947 = vmatprep.subr.bf16.mxu0 0
        %3948 = vmatpush1.bf16.msra.mxu0 %v3924
        %3949 = vmatprep.subr.bf16.mxu0 0
        %3950 = vmatpush1.bf16.msra.mxu0 %v3926
        %3951 = vmatprep.subr.bf16.mxu0 0
        %3952 = vmatpush1.bf16.msra.mxu0 %v3928
        %3953 = vmatprep.subr.bf16.mxu0 0
        %3954 = vmatpush1.bf16.msra.mxu0 %v3930
        %3955 = vmatprep.subr.bf16.mxu0 0
        %3956 = vmatpush1.bf16.msra.mxu0 %v3932
        %3957 = vmatprep.subr.bf16.mxu0 0
        %3958 = vmatpush1.bf16.msra.mxu0 %v3934
        %3959 = vmatprep.subr.bf16.mxu0 0
        %3960 = vmatpush1.bf16.msra.mxu0 0
        %3961 = vmatprep.subr.bf16.mxu0 0
        %3962 = vmatpush1.bf16.msra.mxu0 0
        %3963 = vmatprep.subr.bf16.mxu0 0
        %3964 = vmatpush1.bf16.msra.mxu0 0
        %3965 = vmatprep.subr.bf16.mxu0 0
        %3966 = vmatpush1.bf16.msra.mxu0 0
        %3967 = vmatprep.subr.bf16.mxu0 0
        %3968 = vmatpush1.bf16.msra.mxu0 0
        %3969 = vmatprep.subr.bf16.mxu0 0
        %3970 = vmatpush1.bf16.msra.mxu0 0
        %3971 = vmatprep.subr.bf16.mxu0 0
        %3972 = vmatpush1.bf16.msra.mxu0 0
        %3973 = vmatprep.subr.bf16.mxu0 0
        %3974 = vmatpush1.bf16.msra.mxu0 0
        %3975 = vmatprep.mubr.bf16.mxu0 0
        %3976 = vmatmul.mubr.bf16.gmra.mrb[0].mxu0 %v3918
        %v3977 = vpop.f32.mrb[0].mxu0
        %v3978 = vadd.f32 0.0, %v3977
        %v3979 = vpop.f32.mrb[0].mxu0
        %v3980 = vpop.f32.mrb[0].mxu0
        %v3981 = vpop.f32.mrb[0].mxu0
        %3982 = vdwg.mxu0
        %3984 = vrot.lane.b32.xlu0 %v3978, 24
        %v3985 = vpop.permute.xlu0 %3984
        %3987 = vst.msk [vmem:[#allocation2] sm:$0xff] %vm1845, %v3985
        %v3988 = vrot.slane %v2903, 4
        %v3990 = vsel %vm1389, %v3988, 0
        %v3993 = vsel %vm1389, %v3153, 0
        %v3996 = vsel %vm1389, %v3154, 0
        %v3999 = vsel %vm1389, %v3155, 0
        %v4002 = vsel %vm1389, %v3156, 0
        %v4005 = vsel %vm1389, %v3157, 0
        %v4008 = vsel %vm1389, %v3158, 0
        %v4011 = vsel %vm1389, %v3159, 0
        %v4014 = vsel %vm1389, %v3160, 0
        %4016 = vmatprep.subr.bf16.mxu0 0
        %4017 = vmatpush1.bf16.xpose.msra.mxu0 %v3993
        %4018 = vmatprep.subr.bf16.mxu0 0
        %4019 = vmatpush1.bf16.xpose.msra.mxu0 %v3996
        %4020 = vmatprep.subr.bf16.mxu0 0
        %4021 = vmatpush1.bf16.xpose.msra.mxu0 %v3999
        %4022 = vmatprep.subr.bf16.mxu0 0
        %4023 = vmatpush1.bf16.xpose.msra.mxu0 %v4002
        %4024 = vmatprep.subr.bf16.mxu0 0
        %4025 = vmatpush1.bf16.xpose.msra.mxu0 %v4005
        %4026 = vmatprep.subr.bf16.mxu0 0
        %4027 = vmatpush1.bf16.xpose.msra.mxu0 %v4008
        %4028 = vmatprep.subr.bf16.mxu0 0
        %4029 = vmatpush1.bf16.xpose.msra.mxu0 %v4011
        %4030 = vmatprep.subr.bf16.mxu0 0
        %4031 = vmatpush1.bf16.xpose.msra.mxu0 %v4014
        %4032 = vmatprep.subr.bf16.mxu0 0
        %4033 = vmatpush1.bf16.xpose.msra.mxu0 0
        %4034 = vmatprep.subr.bf16.mxu0 0
        %4035 = vmatpush1.bf16.xpose.msra.mxu0 0
        %4036 = vmatprep.subr.bf16.mxu0 0
        %4037 = vmatpush1.bf16.xpose.msra.mxu0 0
        %4038 = vmatprep.subr.bf16.mxu0 0
        %4039 = vmatpush1.bf16.xpose.msra.mxu0 0
        %4040 = vmatprep.subr.bf16.mxu0 0
        %4041 = vmatpush1.bf16.xpose.msra.mxu0 0
        %4042 = vmatprep.subr.bf16.mxu0 0
        %4043 = vmatpush1.bf16.xpose.msra.mxu0 0
        %4044 = vmatprep.subr.bf16.mxu0 0
        %4045 = vmatpush1.bf16.xpose.msra.mxu0 0
        %4046 = vmatprep.subr.bf16.mxu0 0
        %4047 = vmatpush1.bf16.xpose.msra.mxu0 0
        %4048 = vmatprep.mubr.bf16.mxu0 0
        %4049 = vmatmul.mubr.bf16.gmra.mrb[0].mxu0 %v3990
        %v4050 = vpop.f32.mrb[0].mxu0
        %v4051 = vadd.f32 0.0, %v4050
        %v4052 = vpop.f32.mrb[0].mxu0
        %v4053 = vpop.f32.mrb[0].mxu0
        %v4054 = vpop.f32.mrb[0].mxu0
        %4055 = vdwg.mxu0
        %v4056 = vsel %vm3356, %v4051, -1e+30
        %4057 = vmax.xlane.f32.xlu0 %v4056
        %v4058 = vpop.xlane.xlu0 %4057
        %v4059 = vsub.f32 %v4056, %v4058
        %v4060 = vmul.f32 %v4059, 1.442695
        %v4061 = vpow.pop %v4060
        %4062 = vadd.xlane.f32.xlu0 %v4061
        %v4063 = vpop.xlane.xlu0 %4062
        %v4064 = vrcp.pop %v4063
        %v4065 = vmul.f32 %v4061, %v4064
        %v4066 = vpack.c.bf16 %v4065, %v4065
        %4067 = vmatprep.subr.bf16.mxu0 0
        %4068 = vmatpush1.bf16.msra.mxu0 %v3346
        %4069 = vmatprep.subr.bf16.mxu0 0
        %4070 = vmatpush1.bf16.msra.mxu0 %v3347
        %4071 = vmatprep.subr.bf16.mxu0 0
        %4072 = vmatpush1.bf16.msra.mxu0 %v3348
        %4073 = vmatprep.subr.bf16.mxu0 0
        %4074 = vmatpush1.bf16.msra.mxu0 %v3349
        %4075 = vmatprep.subr.bf16.mxu0 0
        %4076 = vmatpush1.bf16.msra.mxu0 %v3350
        %4077 = vmatprep.subr.bf16.mxu0 0
        %4078 = vmatpush1.bf16.msra.mxu0 %v3351
        %4079 = vmatprep.subr.bf16.mxu0 0
        %4080 = vmatpush1.bf16.msra.mxu0 %v3352
        %4081 = vmatprep.subr.bf16.mxu0 0
        %4082 = vmatpush1.bf16.msra.mxu0 %v3353
        %4083 = vmatprep.subr.bf16.mxu0 0
        %4084 = vmatpush1.bf16.msra.mxu0 0
        %4085 = vmatprep.subr.bf16.mxu0 0
        %4086 = vmatpush1.bf16.msra.mxu0 0
        %4087 = vmatprep.subr.bf16.mxu0 0
        %4088 = vmatpush1.bf16.msra.mxu0 0
        %4089 = vmatprep.subr.bf16.mxu0 0
        %4090 = vmatpush1.bf16.msra.mxu0 0
        %4091 = vmatprep.subr.bf16.mxu0 0
        %4092 = vmatpush1.bf16.msra.mxu0 0
        %4093 = vmatprep.subr.bf16.mxu0 0
        %4094 = vmatpush1.bf16.msra.mxu0 0
        %4095 = vmatprep.subr.bf16.mxu0 0
        %4096 = vmatpush1.bf16.msra.mxu0 0
        %4097 = vmatprep.subr.bf16.mxu0 0
        %4098 = vmatpush1.bf16.msra.mxu0 0
        %4099 = vmatprep.mubr.bf16.mxu0 0
        %4100 = vmatmul.mubr.bf16.gmra.mrb[0].mxu0 %v4066
        %v4101 = vpop.f32.mrb[0].mxu0
        %v4102 = vadd.f32 0.0, %v4101
        %v4103 = vpop.f32.mrb[0].mxu0
        %v4104 = vpop.f32.mrb[0].mxu0
        %v4105 = vpop.f32.mrb[0].mxu0
        %4106 = vdwg.mxu0
        %4107 = vst.msk [vmem:[#allocation2 + $0x8] sm:$0xff] %vm1389, %v4102
        %4108 = vrot.lane.b32.xlu0 %v3988, 120
        %v4109 = vpop.permute.xlu0 %4108
        %4118 = vrot.lane.b32.xlu0 %v3153, 120
        %v4119 = vpop.permute.xlu0 %4118
        %4120 = vrot.lane.b32.xlu0 %v3154, 120
        %v4121 = vpop.permute.xlu0 %4120
        %4122 = vrot.lane.b32.xlu0 %v3155, 120
        %v4123 = vpop.permute.xlu0 %4122
        %4124 = vrot.lane.b32.xlu0 %v3156, 120
        %v4125 = vpop.permute.xlu0 %4124
        %4126 = vrot.lane.b32.xlu0 %v3157, 120
        %v4127 = vpop.permute.xlu0 %4126
        %4128 = vrot.lane.b32.xlu0 %v3158, 120
        %v4129 = vpop.permute.xlu0 %4128
        %4130 = vrot.lane.b32.xlu0 %v3159, 120
        %v4131 = vpop.permute.xlu0 %4130
        %4132 = vrot.lane.b32.xlu0 %v3160, 120
        %v4133 = vpop.permute.xlu0 %4132
        %v4135 = vsel %vm1389, %v4109, 0
        %v4138 = vsel %vm1389, %v4119, 0
        %v4141 = vsel %vm1389, %v4121, 0
        %v4144 = vsel %vm1389, %v4123, 0
        %v4147 = vsel %vm1389, %v4125, 0
        %v4150 = vsel %vm1389, %v4127, 0
        %v4153 = vsel %vm1389, %v4129, 0
        %v4156 = vsel %vm1389, %v4131, 0
        %v4159 = vsel %vm1389, %v4133, 0
        %4161 = vmatprep.subr.bf16.mxu0 0
        %4162 = vmatpush1.bf16.xpose.msra.mxu0 %v4138
        %4163 = vmatprep.subr.bf16.mxu0 0
        %4164 = vmatpush1.bf16.xpose.msra.mxu0 %v4141
        %4165 = vmatprep.subr.bf16.mxu0 0
        %4166 = vmatpush1.bf16.xpose.msra.mxu0 %v4144
        %4167 = vmatprep.subr.bf16.mxu0 0
        %4168 = vmatpush1.bf16.xpose.msra.mxu0 %v4147
        %4169 = vmatprep.subr.bf16.mxu0 0
        %4170 = vmatpush1.bf16.xpose.msra.mxu0 %v4150
        %4171 = vmatprep.subr.bf16.mxu0 0
        %4172 = vmatpush1.bf16.xpose.msra.mxu0 %v4153
        %4173 = vmatprep.subr.bf16.mxu0 0
        %4174 = vmatpush1.bf16.xpose.msra.mxu0 %v4156
        %4175 = vmatprep.subr.bf16.mxu0 0
        %4176 = vmatpush1.bf16.xpose.msra.mxu0 %v4159
        %4177 = vmatprep.subr.bf16.mxu0 0
        %4178 = vmatpush1.bf16.xpose.msra.mxu0 0
        %4179 = vmatprep.subr.bf16.mxu0 0
        %4180 = vmatpush1.bf16.xpose.msra.mxu0 0
        %4181 = vmatprep.subr.bf16.mxu0 0
        %4182 = vmatpush1.bf16.xpose.msra.mxu0 0
        %4183 = vmatprep.subr.bf16.mxu0 0
        %4184 = vmatpush1.bf16.xpose.msra.mxu0 0
        %4185 = vmatprep.subr.bf16.mxu0 0
        %4186 = vmatpush1.bf16.xpose.msra.mxu0 0
        %4187 = vmatprep.subr.bf16.mxu0 0
        %4188 = vmatpush1.bf16.xpose.msra.mxu0 0
        %4189 = vmatprep.subr.bf16.mxu0 0
        %4190 = vmatpush1.bf16.xpose.msra.mxu0 0
        %4191 = vmatprep.subr.bf16.mxu0 0
        %4192 = vmatpush1.bf16.xpose.msra.mxu0 0
        %4193 = vmatprep.mubr.bf16.mxu0 0
        %4194 = vmatmul.mubr.bf16.gmra.mrb[0].mxu0 %v4135
        %v4195 = vpop.f32.mrb[0].mxu0
        %v4196 = vadd.f32 0.0, %v4195
        %v4197 = vpop.f32.mrb[0].mxu0
        %v4198 = vpop.f32.mrb[0].mxu0
        %v4199 = vpop.f32.mrb[0].mxu0
        %4200 = vdwg.mxu0
        %v4201 = vsel %vm3356, %v4196, -1e+30
        %4202 = vmax.xlane.f32.xlu0 %v4201
        %v4203 = vpop.xlane.xlu0 %4202
        %v4204 = vsub.f32 %v4201, %v4203
        %v4205 = vmul.f32 %v4204, 1.442695
        %v4206 = vpow.pop %v4205
        %4207 = vadd.xlane.f32.xlu0 %v4206
        %v4208 = vpop.xlane.xlu0 %4207
        %v4209 = vrcp.pop %v4208
        %v4210 = vmul.f32 %v4206, %v4209
        %v4211 = vpack.c.bf16 %v4210, %v4210
        %4220 = vrot.lane.b32.xlu0 %v3346, 120
        %v4221 = vpop.permute.xlu0 %4220
        %4222 = vrot.lane.b32.xlu0 %v3347, 120
        %v4223 = vpop.permute.xlu0 %4222
        %4224 = vrot.lane.b32.xlu0 %v3348, 120
        %v4225 = vpop.permute.xlu0 %4224
        %4226 = vrot.lane.b32.xlu0 %v3349, 120
        %v4227 = vpop.permute.xlu0 %4226
        %4228 = vrot.lane.b32.xlu0 %v3350, 120
        %v4229 = vpop.permute.xlu0 %4228
        %4230 = vrot.lane.b32.xlu0 %v3351, 120
        %v4231 = vpop.permute.xlu0 %4230
        %4232 = vrot.lane.b32.xlu0 %v3352, 120
        %v4233 = vpop.permute.xlu0 %4232
        %4234 = vrot.lane.b32.xlu0 %v3353, 120
        %v4235 = vpop.permute.xlu0 %4234
        %4244 = vmatprep.subr.bf16.mxu0 0
        %4245 = vmatpush1.bf16.msra.mxu0 %v4221
        %4246 = vmatprep.subr.bf16.mxu0 0
        %4247 = vmatpush1.bf16.msra.mxu0 %v4223
        %4248 = vmatprep.subr.bf16.mxu0 0
        %4249 = vmatpush1.bf16.msra.mxu0 %v4225
        %4250 = vmatprep.subr.bf16.mxu0 0
        %4251 = vmatpush1.bf16.msra.mxu0 %v4227
        %4252 = vmatprep.subr.bf16.mxu0 0
        %4253 = vmatpush1.bf16.msra.mxu0 %v4229
        %4254 = vmatprep.subr.bf16.mxu0 0
        %4255 = vmatpush1.bf16.msra.mxu0 %v4231
        %4256 = vmatprep.subr.bf16.mxu0 0
        %4257 = vmatpush1.bf16.msra.mxu0 %v4233
        %4258 = vmatprep.subr.bf16.mxu0 0
        %4259 = vmatpush1.bf16.msra.mxu0 %v4235
        %4260 = vmatprep.subr.bf16.mxu0 0
        %4261 = vmatpush1.bf16.msra.mxu0 0
        %4262 = vmatprep.subr.bf16.mxu0 0
        %4263 = vmatpush1.bf16.msra.mxu0 0
        %4264 = vmatprep.subr.bf16.mxu0 0
        %4265 = vmatpush1.bf16.msra.mxu0 0
        %4266 = vmatprep.subr.bf16.mxu0 0
        %4267 = vmatpush1.bf16.msra.mxu0 0
        %4268 = vmatprep.subr.bf16.mxu0 0
        %4269 = vmatpush1.bf16.msra.mxu0 0
        %4270 = vmatprep.subr.bf16.mxu0 0
        %4271 = vmatpush1.bf16.msra.mxu0 0
        %4272 = vmatprep.subr.bf16.mxu0 0
        %4273 = vmatpush1.bf16.msra.mxu0 0
        %4274 = vmatprep.subr.bf16.mxu0 0
        %4275 = vmatpush1.bf16.msra.mxu0 0
        %4276 = vmatprep.mubr.bf16.mxu0 0
        %4277 = vmatmul.mubr.bf16.gmra.mrb[0].mxu0 %v4211
        %v4278 = vpop.f32.mrb[0].mxu0
        %v4279 = vadd.f32 0.0, %v4278
        %v4280 = vpop.f32.mrb[0].mxu0
        %v4281 = vpop.f32.mrb[0].mxu0
        %v4282 = vpop.f32.mrb[0].mxu0
        %4283 = vdwg.mxu0
        %4285 = vrot.lane.b32.xlu0 %v4279, 8
        %v4286 = vpop.permute.xlu0 %4285
        %4288 = vst.msk [vmem:[#allocation2 + $0x8] sm:$0xff] %vm1613, %v4286
        %4289 = vrot.lane.b32.xlu0 %v3988, 112
        %v4290 = vpop.permute.xlu0 %4289
        %4291 = vrot.lane.b32.xlu0 %v3153, 112
        %v4292 = vpop.permute.xlu0 %4291
        %4293 = vrot.lane.b32.xlu0 %v3154, 112
        %v4294 = vpop.permute.xlu0 %4293
        %4295 = vrot.lane.b32.xlu0 %v3155, 112
        %v4296 = vpop.permute.xlu0 %4295
        %4297 = vrot.lane.b32.xlu0 %v3156, 112
        %v4298 = vpop.permute.xlu0 %4297
        %4299 = vrot.lane.b32.xlu0 %v3157, 112
        %v4300 = vpop.permute.xlu0 %4299
        %4301 = vrot.lane.b32.xlu0 %v3158, 112
        %v4302 = vpop.permute.xlu0 %4301
        %4303 = vrot.lane.b32.xlu0 %v3159, 112
        %v4304 = vpop.permute.xlu0 %4303
        %4305 = vrot.lane.b32.xlu0 %v3160, 112
        %v4306 = vpop.permute.xlu0 %4305
        %v4308 = vsel %vm1389, %v4290, 0
        %v4311 = vsel %vm1389, %v4292, 0
        %v4314 = vsel %vm1389, %v4294, 0
        %v4317 = vsel %vm1389, %v4296, 0
        %v4320 = vsel %vm1389, %v4298, 0
        %v4323 = vsel %vm1389, %v4300, 0
        %v4326 = vsel %vm1389, %v4302, 0
        %v4329 = vsel %vm1389, %v4304, 0
        %v4332 = vsel %vm1389, %v4306, 0
        %4334 = vmatprep.subr.bf16.mxu0 0
        %4335 = vmatpush1.bf16.xpose.msra.mxu0 %v4311
        %4336 = vmatprep.subr.bf16.mxu0 0
        %4337 = vmatpush1.bf16.xpose.msra.mxu0 %v4314
        %4338 = vmatprep.subr.bf16.mxu0 0
        %4339 = vmatpush1.bf16.xpose.msra.mxu0 %v4317
        %4340 = vmatprep.subr.bf16.mxu0 0
        %4341 = vmatpush1.bf16.xpose.msra.mxu0 %v4320
        %4342 = vmatprep.subr.bf16.mxu0 0
        %4343 = vmatpush1.bf16.xpose.msra.mxu0 %v4323
        %4344 = vmatprep.subr.bf16.mxu0 0
        %4345 = vmatpush1.bf16.xpose.msra.mxu0 %v4326
        %4346 = vmatprep.subr.bf16.mxu0 0
        %4347 = vmatpush1.bf16.xpose.msra.mxu0 %v4329
        %4348 = vmatprep.subr.bf16.mxu0 0
        %4349 = vmatpush1.bf16.xpose.msra.mxu0 %v4332
        %4350 = vmatprep.subr.bf16.mxu0 0
        %4351 = vmatpush1.bf16.xpose.msra.mxu0 0
        %4352 = vmatprep.subr.bf16.mxu0 0
        %4353 = vmatpush1.bf16.xpose.msra.mxu0 0
        %4354 = vmatprep.subr.bf16.mxu0 0
        %4355 = vmatpush1.bf16.xpose.msra.mxu0 0
        %4356 = vmatprep.subr.bf16.mxu0 0
        %4357 = vmatpush1.bf16.xpose.msra.mxu0 0
        %4358 = vmatprep.subr.bf16.mxu0 0
        %4359 = vmatpush1.bf16.xpose.msra.mxu0 0
        %4360 = vmatprep.subr.bf16.mxu0 0
        %4361 = vmatpush1.bf16.xpose.msra.mxu0 0
        %4362 = vmatprep.subr.bf16.mxu0 0
        %4363 = vmatpush1.bf16.xpose.msra.mxu0 0
        %4364 = vmatprep.subr.bf16.mxu0 0
        %4365 = vmatpush1.bf16.xpose.msra.mxu0 0
        %4366 = vmatprep.mubr.bf16.mxu0 0
        %4367 = vmatmul.mubr.bf16.gmra.mrb[0].mxu0 %v4308
        %v4368 = vpop.f32.mrb[0].mxu0
        %v4369 = vadd.f32 0.0, %v4368
        %v4370 = vpop.f32.mrb[0].mxu0
        %v4371 = vpop.f32.mrb[0].mxu0
        %v4372 = vpop.f32.mrb[0].mxu0
        %4373 = vdwg.mxu0
        %v4374 = vsel %vm3356, %v4369, -1e+30
        %4375 = vmax.xlane.f32.xlu0 %v4374
        %v4376 = vpop.xlane.xlu0 %4375
        %v4377 = vsub.f32 %v4374, %v4376
        %v4378 = vmul.f32 %v4377, 1.442695
        %v4379 = vpow.pop %v4378
        %4380 = vadd.xlane.f32.xlu0 %v4379
        %v4381 = vpop.xlane.xlu0 %4380
        %v4382 = vrcp.pop %v4381
        %v4383 = vmul.f32 %v4379, %v4382
        %v4384 = vpack.c.bf16 %v4383, %v4383
        %4385 = vrot.lane.b32.xlu0 %v3346, 112
        %v4386 = vpop.permute.xlu0 %4385
        %4387 = vrot.lane.b32.xlu0 %v3347, 112
        %v4388 = vpop.permute.xlu0 %4387
        %4389 = vrot.lane.b32.xlu0 %v3348, 112
        %v4390 = vpop.permute.xlu0 %4389
        %4391 = vrot.lane.b32.xlu0 %v3349, 112
        %v4392 = vpop.permute.xlu0 %4391
        %4393 = vrot.lane.b32.xlu0 %v3350, 112
        %v4394 = vpop.permute.xlu0 %4393
        %4395 = vrot.lane.b32.xlu0 %v3351, 112
        %v4396 = vpop.permute.xlu0 %4395
        %4397 = vrot.lane.b32.xlu0 %v3352, 112
        %v4398 = vpop.permute.xlu0 %4397
        %4399 = vrot.lane.b32.xlu0 %v3353, 112
        %v4400 = vpop.permute.xlu0 %4399
        %4409 = vmatprep.subr.bf16.mxu0 0
        %4410 = vmatpush1.bf16.msra.mxu0 %v4386
        %4411 = vmatprep.subr.bf16.mxu0 0
        %4412 = vmatpush1.bf16.msra.mxu0 %v4388
        %4413 = vmatprep.subr.bf16.mxu0 0
        %4414 = vmatpush1.bf16.msra.mxu0 %v4390
        %4415 = vmatprep.subr.bf16.mxu0 0
        %4416 = vmatpush1.bf16.msra.mxu0 %v4392
        %4417 = vmatprep.subr.bf16.mxu0 0
        %4418 = vmatpush1.bf16.msra.mxu0 %v4394
        %4419 = vmatprep.subr.bf16.mxu0 0
        %4420 = vmatpush1.bf16.msra.mxu0 %v4396
        %4421 = vmatprep.subr.bf16.mxu0 0
        %4422 = vmatpush1.bf16.msra.mxu0 %v4398
        %4423 = vmatprep.subr.bf16.mxu0 0
        %4424 = vmatpush1.bf16.msra.mxu0 %v4400
        %4425 = vmatprep.subr.bf16.mxu0 0
        %4426 = vmatpush1.bf16.msra.mxu0 0
        %4427 = vmatprep.subr.bf16.mxu0 0
        %4428 = vmatpush1.bf16.msra.mxu0 0
        %4429 = vmatprep.subr.bf16.mxu0 0
        %4430 = vmatpush1.bf16.msra.mxu0 0
        %4431 = vmatprep.subr.bf16.mxu0 0
        %4432 = vmatpush1.bf16.msra.mxu0 0
        %4433 = vmatprep.subr.bf16.mxu0 0
        %4434 = vmatpush1.bf16.msra.mxu0 0
        %4435 = vmatprep.subr.bf16.mxu0 0
        %4436 = vmatpush1.bf16.msra.mxu0 0
        %4437 = vmatprep.subr.bf16.mxu0 0
        %4438 = vmatpush1.bf16.msra.mxu0 0
        %4439 = vmatprep.subr.bf16.mxu0 0
        %4440 = vmatpush1.bf16.msra.mxu0 0
        %4441 = vmatprep.mubr.bf16.mxu0 0
        %4442 = vmatmul.mubr.bf16.gmra.mrb[0].mxu0 %v4384
        %v4443 = vpop.f32.mrb[0].mxu0
        %v4444 = vadd.f32 0.0, %v4443
        %v4445 = vpop.f32.mrb[0].mxu0
        %v4446 = vpop.f32.mrb[0].mxu0
        %v4447 = vpop.f32.mrb[0].mxu0
        %4448 = vdwg.mxu0
        %4450 = vrot.lane.b32.xlu0 %v4444, 16
        %v4451 = vpop.permute.xlu0 %4450
        %4453 = vst.msk [vmem:[#allocation2 + $0x8] sm:$0xff] %vm1729, %v4451
        %4454 = vrot.lane.b32.xlu0 %v3988, 104
        %v4455 = vpop.permute.xlu0 %4454
        %4456 = vrot.lane.b32.xlu0 %v3153, 104
        %v4457 = vpop.permute.xlu0 %4456
        %4458 = vrot.lane.b32.xlu0 %v3154, 104
        %v4459 = vpop.permute.xlu0 %4458
        %4460 = vrot.lane.b32.xlu0 %v3155, 104
        %v4461 = vpop.permute.xlu0 %4460
        %4462 = vrot.lane.b32.xlu0 %v3156, 104
        %v4463 = vpop.permute.xlu0 %4462
        %4464 = vrot.lane.b32.xlu0 %v3157, 104
        %v4465 = vpop.permute.xlu0 %4464
        %4466 = vrot.lane.b32.xlu0 %v3158, 104
        %v4467 = vpop.permute.xlu0 %4466
        %4468 = vrot.lane.b32.xlu0 %v3159, 104
        %v4469 = vpop.permute.xlu0 %4468
        %4470 = vrot.lane.b32.xlu0 %v3160, 104
        %v4471 = vpop.permute.xlu0 %4470
        %v4473 = vsel %vm1389, %v4455, 0
        %v4476 = vsel %vm1389, %v4457, 0
        %v4479 = vsel %vm1389, %v4459, 0
        %v4482 = vsel %vm1389, %v4461, 0
        %v4485 = vsel %vm1389, %v4463, 0
        %v4488 = vsel %vm1389, %v4465, 0
        %v4491 = vsel %vm1389, %v4467, 0
        %v4494 = vsel %vm1389, %v4469, 0
        %v4497 = vsel %vm1389, %v4471, 0
        %4499 = vmatprep.subr.bf16.mxu0 0
        %4500 = vmatpush1.bf16.xpose.msra.mxu0 %v4476
        %4501 = vmatprep.subr.bf16.mxu0 0
        %4502 = vmatpush1.bf16.xpose.msra.mxu0 %v4479
        %4503 = vmatprep.subr.bf16.mxu0 0
        %4504 = vmatpush1.bf16.xpose.msra.mxu0 %v4482
        %4505 = vmatprep.subr.bf16.mxu0 0
        %4506 = vmatpush1.bf16.xpose.msra.mxu0 %v4485
        %4507 = vmatprep.subr.bf16.mxu0 0
        %4508 = vmatpush1.bf16.xpose.msra.mxu0 %v4488
        %4509 = vmatprep.subr.bf16.mxu0 0
        %4510 = vmatpush1.bf16.xpose.msra.mxu0 %v4491
        %4511 = vmatprep.subr.bf16.mxu0 0
        %4512 = vmatpush1.bf16.xpose.msra.mxu0 %v4494
        %4513 = vmatprep.subr.bf16.mxu0 0
        %4514 = vmatpush1.bf16.xpose.msra.mxu0 %v4497
        %4515 = vmatprep.subr.bf16.mxu0 0
        %4516 = vmatpush1.bf16.xpose.msra.mxu0 0
        %4517 = vmatprep.subr.bf16.mxu0 0
        %4518 = vmatpush1.bf16.xpose.msra.mxu0 0
        %4519 = vmatprep.subr.bf16.mxu0 0
        %4520 = vmatpush1.bf16.xpose.msra.mxu0 0
        %4521 = vmatprep.subr.bf16.mxu0 0
        %4522 = vmatpush1.bf16.xpose.msra.mxu0 0
        %4523 = vmatprep.subr.bf16.mxu0 0
        %4524 = vmatpush1.bf16.xpose.msra.mxu0 0
        %4525 = vmatprep.subr.bf16.mxu0 0
        %4526 = vmatpush1.bf16.xpose.msra.mxu0 0
        %4527 = vmatprep.subr.bf16.mxu0 0
        %4528 = vmatpush1.bf16.xpose.msra.mxu0 0
        %4529 = vmatprep.subr.bf16.mxu0 0
        %4530 = vmatpush1.bf16.xpose.msra.mxu0 0
        %4531 = vmatprep.mubr.bf16.mxu0 0
        %4532 = vmatmul.mubr.bf16.gmra.mrb[0].mxu0 %v4473
        %v4533 = vpop.f32.mrb[0].mxu0
        %v4534 = vadd.f32 0.0, %v4533
        %v4535 = vpop.f32.mrb[0].mxu0
        %v4536 = vpop.f32.mrb[0].mxu0
        %v4537 = vpop.f32.mrb[0].mxu0
        %4538 = vdwg.mxu0
        %v4539 = vsel %vm3356, %v4534, -1e+30
        %4540 = vmax.xlane.f32.xlu0 %v4539
        %v4541 = vpop.xlane.xlu0 %4540
        %v4542 = vsub.f32 %v4539, %v4541
        %v4543 = vmul.f32 %v4542, 1.442695
        %v4544 = vpow.pop %v4543
        %4545 = vadd.xlane.f32.xlu0 %v4544
        %v4546 = vpop.xlane.xlu0 %4545
        %v4547 = vrcp.pop %v4546
        %v4548 = vmul.f32 %v4544, %v4547
        %v4549 = vpack.c.bf16 %v4548, %v4548
        %4550 = vrot.lane.b32.xlu0 %v3346, 104
        %v4551 = vpop.permute.xlu0 %4550
        %4552 = vrot.lane.b32.xlu0 %v3347, 104
        %v4553 = vpop.permute.xlu0 %4552
        %4554 = vrot.lane.b32.xlu0 %v3348, 104
        %v4555 = vpop.permute.xlu0 %4554
        %4556 = vrot.lane.b32.xlu0 %v3349, 104
        %v4557 = vpop.permute.xlu0 %4556
        %4558 = vrot.lane.b32.xlu0 %v3350, 104
        %v4559 = vpop.permute.xlu0 %4558
        %4560 = vrot.lane.b32.xlu0 %v3351, 104
        %v4561 = vpop.permute.xlu0 %4560
        %4562 = vrot.lane.b32.xlu0 %v3352, 104
        %v4563 = vpop.permute.xlu0 %4562
        %4564 = vrot.lane.b32.xlu0 %v3353, 104
        %v4565 = vpop.permute.xlu0 %4564
        %4574 = vmatprep.subr.bf16.mxu0 0
        %4575 = vmatpush1.bf16.msra.mxu0 %v4551
        %4576 = vmatprep.subr.bf16.mxu0 0
        %4577 = vmatpush1.bf16.msra.mxu0 %v4553
        %4578 = vmatprep.subr.bf16.mxu0 0
        %4579 = vmatpush1.bf16.msra.mxu0 %v4555
        %4580 = vmatprep.subr.bf16.mxu0 0
        %4581 = vmatpush1.bf16.msra.mxu0 %v4557
        %4582 = vmatprep.subr.bf16.mxu0 0
        %4583 = vmatpush1.bf16.msra.mxu0 %v4559
        %4584 = vmatprep.subr.bf16.mxu0 0
        %4585 = vmatpush1.bf16.msra.mxu0 %v4561
        %4586 = vmatprep.subr.bf16.mxu0 0
        %4587 = vmatpush1.bf16.msra.mxu0 %v4563
        %4588 = vmatprep.subr.bf16.mxu0 0
        %4589 = vmatpush1.bf16.msra.mxu0 %v4565
        %4590 = vmatprep.subr.bf16.mxu0 0
        %4591 = vmatpush1.bf16.msra.mxu0 0
        %4592 = vmatprep.subr.bf16.mxu0 0
        %4593 = vmatpush1.bf16.msra.mxu0 0
        %4594 = vmatprep.subr.bf16.mxu0 0
        %4595 = vmatpush1.bf16.msra.mxu0 0
        %4596 = vmatprep.subr.bf16.mxu0 0
        %4597 = vmatpush1.bf16.msra.mxu0 0
        %4598 = vmatprep.subr.bf16.mxu0 0
        %4599 = vmatpush1.bf16.msra.mxu0 0
        %4600 = vmatprep.subr.bf16.mxu0 0
        %4601 = vmatpush1.bf16.msra.mxu0 0
        %4602 = vmatprep.subr.bf16.mxu0 0
        %4603 = vmatpush1.bf16.msra.mxu0 0
        %4604 = vmatprep.subr.bf16.mxu0 0
        %4605 = vmatpush1.bf16.msra.mxu0 0
        %4606 = vmatprep.mubr.bf16.mxu0 0
        %4607 = vmatmul.mubr.bf16.gmra.mrb[0].mxu0 %v4549
        %v4608 = vpop.f32.mrb[0].mxu0
        %v4609 = vadd.f32 0.0, %v4608
        %v4610 = vpop.f32.mrb[0].mxu0
        %v4611 = vpop.f32.mrb[0].mxu0
        %v4612 = vpop.f32.mrb[0].mxu0
        %4613 = vdwg.mxu0
        %4615 = vrot.lane.b32.xlu0 %v4609, 24
        %v4616 = vpop.permute.xlu0 %4615
        %4618 = vst.msk [vmem:[#allocation2 + $0x8] sm:$0xff] %vm1845, %v4616
        %v4619 = vld [vmem:[#allocation2] sm:$0xff]
        %v4620 = vld [vmem:[#allocation2 + $0x8] sm:$0xff]
        %v4621 = vrot.slane %v4619, 6
        %v4622 = vrot.slane %v4620, 6
        %v4623 = vsel %vm2331, %v4621, %v4622
        %v4624 = vsel %vm2331, %v4622, %v4621
        %v4625 = vsel %vm2338, %v4624, 0.0
        %v4626 = vsel %vm2339, %v4623, 0.0
        %v4627 = vpack.c.bf16 %v4626, %v4625
        %v4628 = vld [vmem:[%s1129] sm:$0xf]
        %v4629 = vld [vmem:[%s1129 + $0x4] sm:$0xf]
        %v4630 = vld [vmem:[%s1129 + $0x8] sm:$0xf]
        %v4631 = vld [vmem:[%s1129 + $0xc] sm:$0xf]
        %v4632 = vrot.slane %v4619, 7
        %v4633 = vrot.slane %v4620, 7
        %v4634 = vsel %vm2349, %v4632, %v4633
        %v4635 = vsel %vm2349, %v4633, %v4632
        %v4636 = vsel %vm2356, %v4635, 0.0
        %v4637 = vsel %vm2357, %v4634, 0.0
        %v4638 = vpack.c.bf16 %v4637, %v4636
        %s4639 = scalar_lea.vmem %s1129, 16
        %v4640 = vld [vmem:[%s4639] sm:$0xf]
        %v4641 = vld [vmem:[%s4639 + $0x4] sm:$0xf]
        %v4642 = vld [vmem:[%s4639 + $0x8] sm:$0xf]
        %v4643 = vld [vmem:[%s4639 + $0xc] sm:$0xf]
        %v4648 = vunpack.c.l.b16 %v4640
        %v4649 = vunpack.c.l.b16 %v4641
        %v4650 = vunpack.c.l.b16 %v4642
        %v4651 = vunpack.c.l.b16 %v4643
        %v4652 = vpack.c.b16 %v4649, %v4648
        %v4653 = vpack.c.b16 %v4651, %v4650
        %v4657 = vsel %vm1167, %v4638, 0
        %4659 = vmatprep.subr.bf16.mxu0 0
        %4660 = vmatpush1.bf16.msra.mxu0 %v4652
        %4661 = vmatprep.subr.bf16.mxu0 0
        %4662 = vmatpush1.bf16.msra.mxu0 %v4653
        %4663 = vmatprep.subr.bf16.mxu0 0
        %4664 = vmatpush1.bf16.msra.mxu0 0
        %4665 = vmatprep.subr.bf16.mxu0 0
        %4666 = vmatpush1.bf16.msra.mxu0 0
        %4667 = vmatprep.subr.bf16.mxu0 0
        %4668 = vmatpush1.bf16.msra.mxu0 0
        %4669 = vmatprep.subr.bf16.mxu0 0
        %4670 = vmatpush1.bf16.msra.mxu0 0
        %4671 = vmatprep.subr.bf16.mxu0 0
        %4672 = vmatpush1.bf16.msra.mxu0 0
        %4673 = vmatprep.subr.bf16.mxu0 0
        %4674 = vmatpush1.bf16.msra.mxu0 0
        %4675 = vmatprep.subr.bf16.mxu0 0
        %4676 = vmatpush1.bf16.msra.mxu0 0
        %4677 = vmatprep.subr.bf16.mxu0 0
        %4678 = vmatpush1.bf16.msra.mxu0 0
        %4679 = vmatprep.subr.bf16.mxu0 0
        %4680 = vmatpush1.bf16.msra.mxu0 0
        %4681 = vmatprep.subr.bf16.mxu0 0
        %4682 = vmatpush1.bf16.msra.mxu0 0
        %4683 = vmatprep.subr.bf16.mxu0 0
        %4684 = vmatpush1.bf16.msra.mxu0 0
        %4685 = vmatprep.subr.bf16.mxu0 0
        %4686 = vmatpush1.bf16.msra.mxu0 0
        %4687 = vmatprep.subr.bf16.mxu0 0
        %4688 = vmatpush1.bf16.msra.mxu0 0
        %4689 = vmatprep.subr.bf16.mxu0 0
        %4690 = vmatpush1.bf16.msra.mxu0 0
        %4691 = vmatprep.mubr.bf16.mxu0 0
        %4692 = vmatmul.mubr.bf16.gmra.mrb[0].mxu0 %v4657
        %v4693 = vpop.f32.mrb[0].mxu0
        %v4694 = vadd.f32 0.0, %v4693
        %v4695 = vpop.f32.mrb[0].mxu0
        %v4696 = vpop.f32.mrb[0].mxu0
        %v4697 = vadd.f32 0.0, %v4696
        %v4698 = vpop.f32.mrb[0].mxu0
        %4699 = vdwg.mxu0
        %v4704 = vunpack.c.l.b16 %v4628
        %v4705 = vunpack.c.l.b16 %v4629
        %v4706 = vunpack.c.l.b16 %v4630
        %v4707 = vunpack.c.l.b16 %v4631
        %v4708 = vpack.c.b16 %v4705, %v4704
        %v4709 = vpack.c.b16 %v4707, %v4706
        %v4713 = vsel %vm1167, %v4627, 0
        %4715 = vmatprep.subr.bf16.mxu0 0
        %4716 = vmatpush1.bf16.msra.mxu0 %v4708
        %4717 = vmatprep.subr.bf16.mxu0 0
        %4718 = vmatpush1.bf16.msra.mxu0 %v4709
        %4719 = vmatprep.subr.bf16.mxu0 0
        %4720 = vmatpush1.bf16.msra.mxu0 0
        %4721 = vmatprep.subr.bf16.mxu0 0
        %4722 = vmatpush1.bf16.msra.mxu0 0
        %4723 = vmatprep.subr.bf16.mxu0 0
        %4724 = vmatpush1.bf16.msra.mxu0 0
        %4725 = vmatprep.subr.bf16.mxu0 0
        %4726 = vmatpush1.bf16.msra.mxu0 0
        %4727 = vmatprep.subr.bf16.mxu0 0
        %4728 = vmatpush1.bf16.msra.mxu0 0
        %4729 = vmatprep.subr.bf16.mxu0 0
        %4730 = vmatpush1.bf16.msra.mxu0 0
        %4731 = vmatprep.subr.bf16.mxu0 0
        %4732 = vmatpush1.bf16.msra.mxu0 0
        %4733 = vmatprep.subr.bf16.mxu0 0
        %4734 = vmatpush1.bf16.msra.mxu0 0
        %4735 = vmatprep.subr.bf16.mxu0 0
        %4736 = vmatpush1.bf16.msra.mxu0 0
        %4737 = vmatprep.subr.bf16.mxu0 0
        %4738 = vmatpush1.bf16.msra.mxu0 0
        %4739 = vmatprep.subr.bf16.mxu0 0
        %4740 = vmatpush1.bf16.msra.mxu0 0
        %4741 = vmatprep.subr.bf16.mxu0 0
        %4742 = vmatpush1.bf16.msra.mxu0 0
        %4743 = vmatprep.subr.bf16.mxu0 0
        %4744 = vmatpush1.bf16.msra.mxu0 0
        %4745 = vmatprep.subr.bf16.mxu0 0
        %4746 = vmatpush1.bf16.msra.mxu0 0
        %4747 = vmatprep.mubr.bf16.mxu0 0
        %4748 = vmatmul.mubr.bf16.gmra.mrb[0].mxu0 %v4713
        %v4749 = vpop.f32.mrb[0].mxu0
        %v4750 = vadd.f32 %v4694, %v4749
        %v4751 = vpop.f32.mrb[0].mxu0
        %v4752 = vpop.f32.mrb[0].mxu0
        %v4753 = vadd.f32 %v4697, %v4752
        %v4754 = vpop.f32.mrb[0].mxu0
        %4755 = vdwg.mxu0
        %v4756 = vpack.c.bf16 %v4620, %v4619
        %s4757 = scalar_lea.vmem %s1129, 32
        %v4758 = vld [vmem:[%s4757] sm:$0xf]
        %v4759 = vld [vmem:[%s4757 + $0x4] sm:$0xf]
        %v4760 = vld [vmem:[%s4757 + $0x8] sm:$0xf]
        %v4761 = vld [vmem:[%s4757 + $0xc] sm:$0xf]
        %v4766 = vunpack.c.l.b16 %v4758
        %v4767 = vunpack.c.l.b16 %v4759
        %v4768 = vunpack.c.l.b16 %v4760
        %v4769 = vunpack.c.l.b16 %v4761
        %v4770 = vpack.c.b16 %v4767, %v4766
        %v4771 = vpack.c.b16 %v4769, %v4768
        %v4775 = vsel %vm1167, %v4756, 0
        %4777 = vmatprep.subr.bf16.mxu0 0
        %4778 = vmatpush1.bf16.msra.mxu0 %v4770
        %4779 = vmatprep.subr.bf16.mxu0 0
        %4780 = vmatpush1.bf16.msra.mxu0 %v4771
        %4781 = vmatprep.subr.bf16.mxu0 0
        %4782 = vmatpush1.bf16.msra.mxu0 0
        %4783 = vmatprep.subr.bf16.mxu0 0
        %4784 = vmatpush1.bf16.msra.mxu0 0
        %4785 = vmatprep.subr.bf16.mxu0 0
        %4786 = vmatpush1.bf16.msra.mxu0 0
        %4787 = vmatprep.subr.bf16.mxu0 0
        %4788 = vmatpush1.bf16.msra.mxu0 0
        %4789 = vmatprep.subr.bf16.mxu0 0
        %4790 = vmatpush1.bf16.msra.mxu0 0
        %4791 = vmatprep.subr.bf16.mxu0 0
        %4792 = vmatpush1.bf16.msra.mxu0 0
        %4793 = vmatprep.subr.bf16.mxu0 0
        %4794 = vmatpush1.bf16.msra.mxu0 0
        %4795 = vmatprep.subr.bf16.mxu0 0
        %4796 = vmatpush1.bf16.msra.mxu0 0
        %4797 = vmatprep.subr.bf16.mxu0 0
        %4798 = vmatpush1.bf16.msra.mxu0 0
        %4799 = vmatprep.subr.bf16.mxu0 0
        %4800 = vmatpush1.bf16.msra.mxu0 0
        %4801 = vmatprep.subr.bf16.mxu0 0
        %4802 = vmatpush1.bf16.msra.mxu0 0
        %4803 = vmatprep.subr.bf16.mxu0 0
        %4804 = vmatpush1.bf16.msra.mxu0 0
        %4805 = vmatprep.subr.bf16.mxu0 0
        %4806 = vmatpush1.bf16.msra.mxu0 0
        %4807 = vmatprep.subr.bf16.mxu0 0
        %4808 = vmatpush1.bf16.msra.mxu0 0
        %4809 = vmatprep.mubr.bf16.mxu0 0
        %4810 = vmatmul.mubr.bf16.gmra.mrb[0].mxu0 %v4775
        %v4811 = vpop.f32.mrb[0].mxu0
        %v4812 = vadd.f32 0.0, %v4811
        %v4813 = vpop.f32.mrb[0].mxu0
        %v4814 = vpop.f32.mrb[0].mxu0
        %v4815 = vadd.f32 0.0, %v4814
        %v4816 = vpop.f32.mrb[0].mxu0
        %4817 = vdwg.mxu0
        %v4818 = vadd.f32 %v4750, %v4812
        %v4819 = vadd.f32 %v4753, %v4815
        %v4820 = vrot.slane %v4619, 1
        %v4821 = vrot.slane %v4620, 1
        %v4822 = vsel %vm2544, %v4820, %v4821
        %v4823 = vsel %vm2544, %v4821, %v4820
        %v4824 = vsel %vm2551, %v4822, 0.0
        %v4825 = vsel %vm2552, %v4823, 0.0
        %v4826 = vpack.c.bf16 %v4825, %v4824
        %s4827 = scalar_lea.vmem %s1129, 48
        %v4828 = vld [vmem:[%s4827] sm:$0xf]
        %v4829 = vld [vmem:[%s4827 + $0x4] sm:$0xf]
        %v4830 = vld [vmem:[%s4827 + $0x8] sm:$0xf]
        %v4831 = vld [vmem:[%s4827 + $0xc] sm:$0xf]
        %v4836 = vunpack.c.l.b16 %v4828
        %v4837 = vunpack.c.l.b16 %v4829
        %v4838 = vunpack.c.l.b16 %v4830
        %v4839 = vunpack.c.l.b16 %v4831
        %v4840 = vpack.c.b16 %v4837, %v4836
        %v4841 = vpack.c.b16 %v4839, %v4838
        %v4845 = vsel %vm1167, %v4826, 0
        %4847 = vmatprep.subr.bf16.mxu0 0
        %4848 = vmatpush1.bf16.msra.mxu0 %v4840
        %4849 = vmatprep.subr.bf16.mxu0 0
        %4850 = vmatpush1.bf16.msra.mxu0 %v4841
        %4851 = vmatprep.subr.bf16.mxu0 0
        %4852 = vmatpush1.bf16.msra.mxu0 0
        %4853 = vmatprep.subr.bf16.mxu0 0
        %4854 = vmatpush1.bf16.msra.mxu0 0
        %4855 = vmatprep.subr.bf16.mxu0 0
        %4856 = vmatpush1.bf16.msra.mxu0 0
        %4857 = vmatprep.subr.bf16.mxu0 0
        %4858 = vmatpush1.bf16.msra.mxu0 0
        %4859 = vmatprep.subr.bf16.mxu0 0
        %4860 = vmatpush1.bf16.msra.mxu0 0
        %4861 = vmatprep.subr.bf16.mxu0 0
        %4862 = vmatpush1.bf16.msra.mxu0 0
        %4863 = vmatprep.subr.bf16.mxu0 0
        %4864 = vmatpush1.bf16.msra.mxu0 0
        %4865 = vmatprep.subr.bf16.mxu0 0
        %4866 = vmatpush1.bf16.msra.mxu0 0
        %4867 = vmatprep.subr.bf16.mxu0 0
        %4868 = vmatpush1.bf16.msra.mxu0 0
        %4869 = vmatprep.subr.bf16.mxu0 0
        %4870 = vmatpush1.bf16.msra.mxu0 0
        %4871 = vmatprep.subr.bf16.mxu0 0
        %4872 = vmatpush1.bf16.msra.mxu0 0
        %4873 = vmatprep.subr.bf16.mxu0 0
        %4874 = vmatpush1.bf16.msra.mxu0 0
        %4875 = vmatprep.subr.bf16.mxu0 0
        %4876 = vmatpush1.bf16.msra.mxu0 0
        %4877 = vmatprep.subr.bf16.mxu0 0
        %4878 = vmatpush1.bf16.msra.mxu0 0
        %4879 = vmatprep.mubr.bf16.mxu0 0
        %4880 = vmatmul.mubr.bf16.gmra.mrb[0].mxu0 %v4845
        %v4881 = vpop.f32.mrb[0].mxu0
        %v4882 = vadd.f32 0.0, %v4881
        %v4883 = vpop.f32.mrb[0].mxu0
        %v4884 = vpop.f32.mrb[0].mxu0
        %v4885 = vadd.f32 0.0, %v4884
        %v4886 = vpop.f32.mrb[0].mxu0
        %4887 = vdwg.mxu0
        %v4888 = vadd.f32 %v4818, %v4882
        %v4889 = vadd.f32 %v4819, %v4885
        %v4890 = vrot.slane %v4619, 2
        %v4891 = vrot.slane %v4620, 2
        %v4892 = vsel %vm2621, %v4890, %v4891
        %v4893 = vsel %vm2621, %v4891, %v4890
        %v4894 = vsel %vm2628, %v4892, 0.0
        %v4895 = vsel %vm2629, %v4893, 0.0
        %v4896 = vpack.c.bf16 %v4895, %v4894
        %s4897 = scalar_lea.vmem %s1129, 64
        %v4898 = vld [vmem:[%s4897] sm:$0xf]
        %v4899 = vld [vmem:[%s4897 + $0x4] sm:$0xf]
        %v4900 = vld [vmem:[%s4897 + $0x8] sm:$0xf]
        %v4901 = vld [vmem:[%s4897 + $0xc] sm:$0xf]
        %v4906 = vunpack.c.l.b16 %v4898
        %v4907 = vunpack.c.l.b16 %v4899
        %v4908 = vunpack.c.l.b16 %v4900
        %v4909 = vunpack.c.l.b16 %v4901
        %v4910 = vpack.c.b16 %v4907, %v4906
        %v4911 = vpack.c.b16 %v4909, %v4908
        %v4915 = vsel %vm1167, %v4896, 0
        %4917 = vmatprep.subr.bf16.mxu0 0
        %4918 = vmatpush1.bf16.msra.mxu0 %v4910
        %4919 = vmatprep.subr.bf16.mxu0 0
        %4920 = vmatpush1.bf16.msra.mxu0 %v4911
        %4921 = vmatprep.subr.bf16.mxu0 0
        %4922 = vmatpush1.bf16.msra.mxu0 0
        %4923 = vmatprep.subr.bf16.mxu0 0
        %4924 = vmatpush1.bf16.msra.mxu0 0
        %4925 = vmatprep.subr.bf16.mxu0 0
        %4926 = vmatpush1.bf16.msra.mxu0 0
        %4927 = vmatprep.subr.bf16.mxu0 0
        %4928 = vmatpush1.bf16.msra.mxu0 0
        %4929 = vmatprep.subr.bf16.mxu0 0
        %4930 = vmatpush1.bf16.msra.mxu0 0
        %4931 = vmatprep.subr.bf16.mxu0 0
        %4932 = vmatpush1.bf16.msra.mxu0 0
        %4933 = vmatprep.subr.bf16.mxu0 0
        %4934 = vmatpush1.bf16.msra.mxu0 0
        %4935 = vmatprep.subr.bf16.mxu0 0
        %4936 = vmatpush1.bf16.msra.mxu0 0
        %4937 = vmatprep.subr.bf16.mxu0 0
        %4938 = vmatpush1.bf16.msra.mxu0 0
        %4939 = vmatprep.subr.bf16.mxu0 0
        %4940 = vmatpush1.bf16.msra.mxu0 0
        %4941 = vmatprep.subr.bf16.mxu0 0
        %4942 = vmatpush1.bf16.msra.mxu0 0
        %4943 = vmatprep.subr.bf16.mxu0 0
        %4944 = vmatpush1.bf16.msra.mxu0 0
        %4945 = vmatprep.subr.bf16.mxu0 0
        %4946 = vmatpush1.bf16.msra.mxu0 0
        %4947 = vmatprep.subr.bf16.mxu0 0
        %4948 = vmatpush1.bf16.msra.mxu0 0
        %4949 = vmatprep.mubr.bf16.mxu0 0
        %4950 = vmatmul.mubr.bf16.gmra.mrb[0].mxu0 %v4915
        %v4951 = vpop.f32.mrb[0].mxu0
        %v4952 = vadd.f32 0.0, %v4951
        %v4953 = vpop.f32.mrb[0].mxu0
        %v4954 = vpop.f32.mrb[0].mxu0
        %v4955 = vadd.f32 0.0, %v4954
        %v4956 = vpop.f32.mrb[0].mxu0
        %4957 = vdwg.mxu0
        %v4958 = vadd.f32 %v4888, %v4952
        %v4959 = vadd.f32 %v4889, %v4955
        %v4960 = vpack.c.bf16 %v4959, %v4958
        %v4961 = vld [vmem:[%s1121] sm:$0xf]
        %v4962 = vld [vmem:[%s1121 + $0x4] sm:$0xf]
        %v4963 = vld [vmem:[%s1121 + $0x8] sm:$0xf]
        %v4964 = vld [vmem:[%s1121 + $0xc] sm:$0xf]
        %v4965 = vld [vmem:[%s1124] sm:$0x1]
        %v4967 = vlaneseq
        %v4968 = vshrl.u32 %v4967, 7
        %v4969 = vsub.s32 0, %v4968
        %v4970 = vrot.slane %v4965, %v4969
        %v4976 = vunpack.c.l.b16 %v4961
        %v4977 = vunpack.c.l.b16 %v4962
        %v4978 = vunpack.c.l.b16 %v4963
        %v4979 = vunpack.c.l.b16 %v4964
        %v4980 = vpack.c.b16 %v4977, %v4976
        %v4981 = vpack.c.b16 %v4979, %v4978
        %v4985 = vsel %vm1167, %v4960, 0
        %4987 = vmatprep.subr.bf16.mxu0 0
        %4988 = vmatpush1.bf16.msra.mxu0 %v4980
        %4989 = vmatprep.subr.bf16.mxu0 0
        %4990 = vmatpush1.bf16.msra.mxu0 %v4981
        %4991 = vmatprep.subr.bf16.mxu0 0
        %4992 = vmatpush1.bf16.msra.mxu0 0
        %4993 = vmatprep.subr.bf16.mxu0 0
        %4994 = vmatpush1.bf16.msra.mxu0 0
        %4995 = vmatprep.subr.bf16.mxu0 0
        %4996 = vmatpush1.bf16.msra.mxu0 0
        %4997 = vmatprep.subr.bf16.mxu0 0
        %4998 = vmatpush1.bf16.msra.mxu0 0
        %4999 = vmatprep.subr.bf16.mxu0 0
        %5000 = vmatpush1.bf16.msra.mxu0 0
        %5001 = vmatprep.subr.bf16.mxu0 0
        %5002 = vmatpush1.bf16.msra.mxu0 0
        %5003 = vmatprep.subr.bf16.mxu0 0
        %5004 = vmatpush1.bf16.msra.mxu0 0
        %5005 = vmatprep.subr.bf16.mxu0 0
        %5006 = vmatpush1.bf16.msra.mxu0 0
        %5007 = vmatprep.subr.bf16.mxu0 0
        %5008 = vmatpush1.bf16.msra.mxu0 0
        %5009 = vmatprep.subr.bf16.mxu0 0
        %5010 = vmatpush1.bf16.msra.mxu0 0
        %5011 = vmatprep.subr.bf16.mxu0 0
        %5012 = vmatpush1.bf16.msra.mxu0 0
        %5013 = vmatprep.subr.bf16.mxu0 0
        %5014 = vmatpush1.bf16.msra.mxu0 0
        %5015 = vmatprep.subr.bf16.mxu0 0
        %5016 = vmatpush1.bf16.msra.mxu0 0
        %5017 = vmatprep.subr.bf16.mxu0 0
        %5018 = vmatpush1.bf16.msra.mxu0 0
        %5019 = vmatprep.mubr.bf16.mxu0 0
        %5020 = vmatmul.mubr.bf16.gmra.mrb[0].mxu0 %v4985
        %v5021 = vpop.f32.mrb[0].mxu0
        %v5022 = vadd.f32 %v4970, %v5021
        %v5023 = vpop.f32.mrb[0].mxu0
        %v5024 = vpop.f32.mrb[0].mxu0
        %v5025 = vadd.f32 %v4970, %v5024
        %v5026 = vpop.f32.mrb[0].mxu0
        %5027 = vdwg.mxu0
        %v5028 = vadd.f32 %v2764, %v5022
        %v5029 = vadd.f32 %v2765, %v5025
        %v5030 = vld [vmem:[%s1132] sm:$0x1]
        %v5031 = vld [vmem:[%s1135] sm:$0x1]
        %v5032 = vsel %vm1167, %v5028, 0.0
        %5033 = vadd.xlane.f32.xlu0 %v5032
        %v5034 = vpop.xlane.xlu0 %5033
        %v5035 = vsel %vm1167, %v5029, 0.0
        %5036 = vadd.xlane.f32.xlu0 %v5035
        %v5037 = vpop.xlane.xlu0 %5036
        %v5038 = vmul.f32 %v5034, %v1174
        %v5039 = vmul.f32 %v5037, %v1174
        %v5040 = vsub.f32 %v5028, %v5038
        %v5041 = vsub.f32 %v5029, %v5039
        %v5042 = vmul.f32 %v5040, %v5040
        %v5043 = vmul.f32 %v5041, %v5041
        %v5044 = vsel %vm1167, %v5042, 0.0
        %5045 = vadd.xlane.f32.xlu0 %v5044
        %v5046 = vpop.xlane.xlu0 %5045
        %v5047 = vsel %vm1167, %v5043, 0.0
        %5048 = vadd.xlane.f32.xlu0 %v5047
        %v5049 = vpop.xlane.xlu0 %5048
        %v5050 = vmul.f32 %v5046, %v1174
        %v5051 = vmul.f32 %v5049, %v1174
        %v5052 = vadd.f32 %v5050, 1e-05
        %v5053 = vadd.f32 %v5051, 1e-05
        %v5054 = vrsqrt.pop %v5052
        %v5055 = vrsqrt.pop %v5053
        %v5056 = vmul.f32 %v5040, %v5054
        %v5057 = vmul.f32 %v5041, %v5055
        %v5059 = vlaneseq
        %v5060 = vshrl.u32 %v5059, 7
        %v5061 = vsub.s32 0, %v5060
        %v5062 = vrot.slane %v5030, %v5061
        %v5064 = vmul.f32 %v5056, %v5062
        %v5065 = vmul.f32 %v5057, %v5062
        %v5067 = vlaneseq
        %v5068 = vshrl.u32 %v5067, 7
        %v5069 = vsub.s32 0, %v5068
        %v5070 = vrot.slane %v5031, %v5069
        %v5072 = vadd.f32 %v5064, %v5070
        %v5073 = vadd.f32 %v5065, %v5070
        %v5074 = vpack.c.bf16 %v5073, %v5072
        %v5075 = vld [vmem:[%s1140] sm:$0xf]
        %v5076 = vld [vmem:[%s1140 + $0x4] sm:$0xf]
        %v5077 = vld [vmem:[%s1140 + $0x8] sm:$0xf]
        %v5078 = vld [vmem:[%s1140 + $0xc] sm:$0xf]
        %v5079 = vld [vmem:[%s1143] sm:$0x1]
        %v5081 = vlaneseq
        %v5082 = vshrl.u32 %v5081, 7
        %v5083 = vsub.s32 0, %v5082
        %v5084 = vrot.slane %v5079, %v5083
        %v5090 = vunpack.c.l.b16 %v5075
        %v5091 = vunpack.c.l.b16 %v5076
        %v5092 = vunpack.c.l.b16 %v5077
        %v5093 = vunpack.c.l.b16 %v5078
        %v5094 = vpack.c.b16 %v5091, %v5090
        %v5095 = vpack.c.b16 %v5093, %v5092
        %v5099 = vsel %vm1167, %v5074, 0
        %5101 = vmatprep.subr.bf16.mxu0 0
        %5102 = vmatpush1.bf16.msra.mxu0 %v5094
        %5103 = vmatprep.subr.bf16.mxu0 0
        %5104 = vmatpush1.bf16.msra.mxu0 %v5095
        %5105 = vmatprep.subr.bf16.mxu0 0
        %5106 = vmatpush1.bf16.msra.mxu0 0
        %5107 = vmatprep.subr.bf16.mxu0 0
        %5108 = vmatpush1.bf16.msra.mxu0 0
        %5109 = vmatprep.subr.bf16.mxu0 0
        %5110 = vmatpush1.bf16.msra.mxu0 0
        %5111 = vmatprep.subr.bf16.mxu0 0
        %5112 = vmatpush1.bf16.msra.mxu0 0
        %5113 = vmatprep.subr.bf16.mxu0 0
        %5114 = vmatpush1.bf16.msra.mxu0 0
        %5115 = vmatprep.subr.bf16.mxu0 0
        %5116 = vmatpush1.bf16.msra.mxu0 0
        %5117 = vmatprep.subr.bf16.mxu0 0
        %5118 = vmatpush1.bf16.msra.mxu0 0
        %5119 = vmatprep.subr.bf16.mxu0 0
        %5120 = vmatpush1.bf16.msra.mxu0 0
        %5121 = vmatprep.subr.bf16.mxu0 0
        %5122 = vmatpush1.bf16.msra.mxu0 0
        %5123 = vmatprep.subr.bf16.mxu0 0
        %5124 = vmatpush1.bf16.msra.mxu0 0
        %5125 = vmatprep.subr.bf16.mxu0 0
        %5126 = vmatpush1.bf16.msra.mxu0 0
        %5127 = vmatprep.subr.bf16.mxu0 0
        %5128 = vmatpush1.bf16.msra.mxu0 0
        %5129 = vmatprep.subr.bf16.mxu0 0
        %5130 = vmatpush1.bf16.msra.mxu0 0
        %5131 = vmatprep.subr.bf16.mxu0 0
        %5132 = vmatpush1.bf16.msra.mxu0 0
        %5133 = vmatprep.mubr.bf16.mxu0 0
        %5134 = vmatmul.mubr.bf16.gmra.mrb[0].mxu0 %v5099
        %v5135 = vpop.f32.mrb[0].mxu0
        %v5136 = vadd.f32 %v5084, %v5135
        %v5137 = vpop.f32.mrb[0].mxu0
        %v5138 = vpop.f32.mrb[0].mxu0
        %v5139 = vadd.f32 %v5084, %v5138
        %v5140 = vpop.f32.mrb[0].mxu0
        %5141 = vdwg.mxu0
        %v5142 = vmul.f32 %v5136, 0.5
        %v5143 = vmul.f32 %v5139, 0.5
        %v5144 = vmul.f32 %v5136, 0.70710677
        %v5145 = vmul.f32 %v5139, 0.70710677
        %vm5146 = vcmp.ge.f32.partialorder %v5144, 0.0
        %vm5147 = vcmp.ge.f32.partialorder %v5145, 0.0
        %v5148 = vsel %vm5146, 1.0, -1.0
        %v5149 = vsel %vm5147, 1.0, -1.0
        %v5150 = vand.u32 2147483647, %v5144
        %v5151 = vand.u32 2147483647, %v5145
        %v5152 = vmul.f32 %v5150, 0.3275911
        %v5153 = vmul.f32 %v5151, 0.3275911
        %v5154 = vadd.f32 %v5152, 1.0
        %v5155 = vadd.f32 %v5153, 1.0
        %v5156 = vrcp.pop %v5154
        %v5157 = vmul.f32 1.0, %v5156
        %v5158 = vrcp.pop %v5155
        %v5159 = vmul.f32 1.0, %v5158
        %v5160 = vmul.f32 %v5157, 1.0614054
        %v5161 = vmul.f32 %v5159, 1.0614054
        %v5162 = vadd.f32 %v5160, -1.4531521
        %v5163 = vadd.f32 %v5161, -1.4531521
        %v5164 = vmul.f32 %v5162, %v5157
        %v5165 = vmul.f32 %v5163, %v5159
        %v5166 = vadd.f32 %v5164, 1.4214138
        %v5167 = vadd.f32 %v5165, 1.4214138
        %v5168 = vmul.f32 %v5166, %v5157
        %v5169 = vmul.f32 %v5167, %v5159
        %v5170 = vadd.f32 %v5168, -0.28449672
        %v5171 = vadd.f32 %v5169, -0.28449672
        %v5172 = vmul.f32 %v5170, %v5157
        %v5173 = vmul.f32 %v5171, %v5159
        %v5174 = vadd.f32 %v5172, 0.2548296
        %v5175 = vadd.f32 %v5173, 0.2548296
        %v5176 = vmul.f32 %v5174, %v5157
        %v5177 = vmul.f32 %v5175, %v5159
        %v5178 = vsub.f32 0.0, %v5150
        %v5179 = vsub.f32 0.0, %v5151
        %v5180 = vmul.f32 %v5178, %v5150
        %v5181 = vmul.f32 %v5179, %v5151
        %v5182 = vmul.f32 %v5180, 1.442695
        %v5183 = vpow.pop %v5182
        %v5184 = vmul.f32 %v5181, 1.442695
        %v5185 = vpow.pop %v5184
        %v5186 = vmul.f32 %v5176, %v5183
        %v5187 = vmul.f32 %v5177, %v5185
        %v5188 = vsub.f32 1.0, %v5186
        %v5189 = vsub.f32 1.0, %v5187
        %v5190 = vmul.f32 %v5148, %v5188
        %v5191 = vmul.f32 %v5149, %v5189
        %v5192 = vadd.f32 %v5190, 1.0
        %v5193 = vadd.f32 %v5191, 1.0
        %v5194 = vmul.f32 %v5142, %v5192
        %v5195 = vmul.f32 %v5143, %v5193
        %v5196 = vpack.c.bf16 %v5195, %v5194
        %v5197 = vld [vmem:[%s1148] sm:$0xf]
        %v5198 = vld [vmem:[%s1148 + $0x4] sm:$0xf]
        %v5199 = vld [vmem:[%s1148 + $0x8] sm:$0xf]
        %v5200 = vld [vmem:[%s1148 + $0xc] sm:$0xf]
        %v5201 = vld [vmem:[%s1148 + $0x10] sm:$0xf]
        %v5202 = vld [vmem:[%s1148 + $0x14] sm:$0xf]
        %v5203 = vld [vmem:[%s1148 + $0x18] sm:$0xf]
        %v5204 = vld [vmem:[%s1148 + $0x1c] sm:$0xf]
        %v5205 = vld [vmem:[%s1151] sm:$0x1]
        %v5207 = vlaneseq
        %v5208 = vshrl.u32 %v5207, 7
        %v5209 = vsub.s32 0, %v5208
        %v5210 = vrot.slane %v5205, %v5209
        %v5220 = vunpack.c.l.b16 %v5197
        %v5221 = vunpack.c.l.b16 %v5198
        %v5222 = vunpack.c.l.b16 %v5199
        %v5223 = vunpack.c.l.b16 %v5200
        %v5224 = vunpack.c.l.b16 %v5201
        %v5225 = vunpack.c.l.b16 %v5202
        %v5226 = vunpack.c.l.b16 %v5203
        %v5227 = vunpack.c.l.b16 %v5204
        %v5228 = vpack.c.b16 %v5221, %v5220
        %v5229 = vpack.c.b16 %v5223, %v5222
        %v5230 = vpack.c.b16 %v5225, %v5224
        %v5231 = vpack.c.b16 %v5227, %v5226
        %vm5236 = vcmask 523264
        %v5238 = vsel %vm5236, %v5196, 0
        %5240 = vmatprep.subr.bf16.mxu0 0
        %5241 = vmatpush1.bf16.msra.mxu0 %v5228
        %5242 = vmatprep.subr.bf16.mxu0 0
        %5243 = vmatpush1.bf16.msra.mxu0 %v5229
        %5244 = vmatprep.subr.bf16.mxu0 0
        %5245 = vmatpush1.bf16.msra.mxu0 %v5230
        %5246 = vmatprep.subr.bf16.mxu0 0
        %5247 = vmatpush1.bf16.msra.mxu0 %v5231
        %5248 = vmatprep.subr.bf16.mxu0 0
        %5249 = vmatpush1.bf16.msra.mxu0 0
        %5250 = vmatprep.subr.bf16.mxu0 0
        %5251 = vmatpush1.bf16.msra.mxu0 0
        %5252 = vmatprep.subr.bf16.mxu0 0
        %5253 = vmatpush1.bf16.msra.mxu0 0
        %5254 = vmatprep.subr.bf16.mxu0 0
        %5255 = vmatpush1.bf16.msra.mxu0 0
        %5256 = vmatprep.subr.bf16.mxu0 0
        %5257 = vmatpush1.bf16.msra.mxu0 0
        %5258 = vmatprep.subr.bf16.mxu0 0
        %5259 = vmatpush1.bf16.msra.mxu0 0
        %5260 = vmatprep.subr.bf16.mxu0 0
        %5261 = vmatpush1.bf16.msra.mxu0 0
        %5262 = vmatprep.subr.bf16.mxu0 0
        %5263 = vmatpush1.bf16.msra.mxu0 0
        %5264 = vmatprep.subr.bf16.mxu0 0
        %5265 = vmatpush1.bf16.msra.mxu0 0
        %5266 = vmatprep.subr.bf16.mxu0 0
        %5267 = vmatpush1.bf16.msra.mxu0 0
        %5268 = vmatprep.subr.bf16.mxu0 0
        %5269 = vmatpush1.bf16.msra.mxu0 0
        %5270 = vmatprep.subr.bf16.mxu0 0
        %5271 = vmatpush1.bf16.msra.mxu0 0
        %5272 = vmatprep.mubr.bf16.mxu0 0
        %5273 = vmatmul.mubr.bf16.gmra.mrb[0].mxu0 %v5238
        %v5274 = vpop.f32.mrb[0].mxu0
        %v5275 = vadd.f32 %v5210, %v5274
        %v5276 = vpop.f32.mrb[0].mxu0
        %v5277 = vpop.f32.mrb[0].mxu0
        %v5278 = vadd.f32 %v5210, %v5277
        %v5279 = vpop.f32.mrb[0].mxu0
        %5280 = vdwg.mxu0
        %v5281 = vadd.f32 %v5028, %v5275
        %v5282 = vadd.f32 %v5029, %v5278
        %5283 = vst.msk [vmem:[%s1049] sm:$0xff] %vm1167, %v5281
        %5284 = vst.msk [vmem:[%s1049 + $0x8] sm:$0xff] %vm1167, %v5282
        %s5285 = sand.u32 %s682, 1
        %s5286 = scalar_lea.sflag [#allocation4], %s5285
        %s5287 = sand.u32 %s682, 1
        %s5288 = smul.addr %s5287, 16
        %s5289 = scalar_lea.vmem [#allocation3], %s5288
        // Predicated region
        $region121: #{tpu_custom_call.1} parent=115 // pred_check
          %p5290 = pneg %p692
        $region122: #{tpu_custom_call.1} parent=115 // pred_check_branch
          %5292 = sbr.rel (%p5290) target = $region124
        $region123: #{tpu_custom_call.1} parent=115 // pred_region
          %s5293 = smul.u32 2, %s42
          %s5295 = ssub.s32 256, 256
          %5296 = vsyncadd %s5286, %s5295
          %s5297 = smul.addr %s5293, 128
          %s5298 = scalar_lea.hbm %s24, %s5297
          %s5299 = sshll.u32 %s5289, 4
          %s5300 = int_to_ptr.vmem [resolvable:$true] %s5299
          %5305 = dma.vmem_to_hbm [thread:$0]  %s5300, 256, %s5298, %s5286, 128, 128, 8
        $region124: #{tpu_custom_call.1} parent=115 // pred_fallthru
          _
      $region116: #{tpu_custom_call.1} parent=5 // pred_fallthru
        _
      %p5306 = scmp.le.s32.totalorder 2, %s33
      // Predicated region
      $region125: #{tpu_custom_call.1} parent=5 // pred_check
        %p5307 = pneg %p5306
      $region126: #{tpu_custom_call.1} parent=5 // pred_check_branch
        %5309 = sbr.rel (%p5307) target = $region128
      $region127: #{tpu_custom_call.1} parent=5 // pred_region
        %s5310 = ssub.s32 %s33, 2
        // Predicated region
        $region129: #{tpu_custom_call.1} parent=127 // pred_check
          %p5311 = pneg %p698
        $region130: #{tpu_custom_call.1} parent=127 // pred_check_branch
          %5313 = sbr.rel (%p5311) target = $region132
        $region131: #{tpu_custom_call.1} parent=127 // pred_region
          %s5314 = sand.u32 %s683, 1
          %s5315 = scalar_lea.sflag [#allocation4], %s5314
          %s5316 = sand.u32 %s683, 1
          %s5317 = smul.addr %s5316, 16
          %s5318 = scalar_lea.vmem [#allocation3], %s5317
          %5319 = dma.done %s5315, 256
        $region132: #{tpu_custom_call.1} parent=127 // pred_fallthru
          _
      $region128: #{tpu_custom_call.1} parent=5 // pred_fallthru
        _
    $region6: #{tpu_custom_call.1} parent=1 // loop_footer
      %s37 = sadd.s32 1, %s33
    $region7: #{tpu_custom_call.1} parent=1 // loop_footer_branch
      %32 = sbr.rel target = $region3
    $region8: #{tpu_custom_call.1} parent=1 // loop_exit
      _
    %5320 = vsyncpa [#allocation4], 1
    %s5321 = scalar_lea.sflag [#allocation4], 1
    %5322 = vsyncpa %s5321, 1

</llo_original>
